<compile_context>
chip_gen: v5e
topology: v5e:2x2
jax: 0.10.0
libtpu: 0.0.40
codegen_flags: <defaults>
</compile_context>

<pallas_src>
import jax
import jax.numpy as jnp
from jax import lax
from jax.experimental import pallas as pl
from jax.experimental.pallas import tpu as pltpu

LANES = 128
BN_EPS = 1e-5


# -----------------------------------------------------------------------------
# Kernel 1a: single-K-step matmul + bias (fc layer).
# -----------------------------------------------------------------------------
def _matmul_bias_kernel(a_ref, b_ref, bias_ref, o_ref):
    acc = jnp.dot(a_ref[...], b_ref[...], preferred_element_type=jnp.float32)
    o_ref[...] = (acc + bias_ref[...]).astype(o_ref.dtype)


def matmul_bias(a, b, bias_row, *, tm):
    """a: (M, K) bf16, b: (K, 128) bf16, bias_row: (1, 128) f32. Single K step."""
    M, K = a.shape
    K2, N = b.shape
    assert K == K2 and M % tm == 0
    return pl.pallas_call(
        _matmul_bias_kernel,
        out_shape=jax.ShapeDtypeStruct((M, N), jnp.float32),
        grid_spec=pltpu.PrefetchScalarGridSpec(
            num_scalar_prefetch=0,
            grid=(M // tm,),
            in_specs=[
                pl.BlockSpec((tm, K), lambda i: (i, 0)),
                pl.BlockSpec((K, N), lambda i: (0, 0)),
                pl.BlockSpec((1, N), lambda i: (0, 0)),
            ],
            out_specs=pl.BlockSpec((tm, N), lambda i: (i, 0)),
        ),
        compiler_params=pltpu.CompilerParams(dimension_semantics=("parallel",)),
    )(a, b, bias_row)


# -----------------------------------------------------------------------------
# Kernel 1b: conv matmul + bias, with fused per-tile BatchNorm statistics.
# -----------------------------------------------------------------------------
def _matmul_bias_stats_kernel(a_ref, b_ref, bias_ref, o_ref, sum_ref, sq_ref):
    acc = jnp.dot(a_ref[...], b_ref[...], preferred_element_type=jnp.float32)
    acc = acc + bias_ref[...]
    o_ref[...] = acc.astype(o_ref.dtype)
    s = jnp.sum(acc, axis=0, keepdims=True)          # (1, 128) per-tile channel sum
    q = jnp.sum(acc * acc, axis=0, keepdims=True)    # (1, 128) per-tile channel sumsq
    sum_ref[...] = s.reshape(1, 1, s.shape[-1])
    sq_ref[...] = q.reshape(1, 1, q.shape[-1])


def conv_matmul_stats(a, b, bias_row, *, tm):
    M, K = a.shape
    N = b.shape[1]
    assert M % tm == 0
    nt = M // tm
    return pl.pallas_call(
        _matmul_bias_stats_kernel,
        out_shape=(
            jax.ShapeDtypeStruct((M, N), jnp.float32),
            jax.ShapeDtypeStruct((nt, 1, N), jnp.float32),
            jax.ShapeDtypeStruct((nt, 1, N), jnp.float32),
        ),
        grid_spec=pltpu.PrefetchScalarGridSpec(
            num_scalar_prefetch=0,
            grid=(nt,),
            in_specs=[
                pl.BlockSpec((tm, K), lambda i: (i, 0)),
                pl.BlockSpec((K, N), lambda i: (0, 0)),
                pl.BlockSpec((1, N), lambda i: (0, 0)),
            ],
            out_specs=[
                pl.BlockSpec((tm, N), lambda i: (i, 0)),
                pl.BlockSpec((1, 1, N), lambda i: (i, 0, 0)),
                pl.BlockSpec((1, 1, N), lambda i: (i, 0, 0)),
            ],
        ),
        compiler_params=pltpu.CompilerParams(dimension_semantics=("parallel",)),
    )(a, b, bias_row)


# -----------------------------------------------------------------------------
# Kernel 2: tiled BatchNorm apply (scale/shift) + ReLU + 2x2 max pool.
# Input rows are the conv output viewed as (B*H, W, 128); each grid step handles
# `tr` consecutive H-rows (tr even, tr | H so tiles never straddle batch images).
# -----------------------------------------------------------------------------
def _bn_relu_pool_kernel(x_ref, scale_ref, shift_ref, o_ref):
    trh, w2, c = o_ref.shape                       # (tr//2, W//2, 128)
    scale = scale_ref[...]                         # (1, 128)
    shift = shift_ref[...]
    xa = x_ref[:, pl.ds(0, w2, 2), :]              # even W columns, (tr, w2, c)
    xb = x_ref[:, pl.ds(1, w2, 2), :]              # odd  W columns
    ya = jnp.maximum(xa * scale + shift, 0.0)      # BN + ReLU
    yb = jnp.maximum(xb * scale + shift, 0.0)
    yw = jnp.maximum(ya, yb)                       # pool over W pairs
    o_ref[...] = jnp.max(yw.reshape(trh, 2, w2, c), axis=1)   # pool over H pairs


def bn_relu_pool_apply(rows, scale_row, shift_row, *, tr):
    R, W, C = rows.shape
    assert R % tr == 0 and tr % 2 == 0 and W % 2 == 0
    return pl.pallas_call(
        _bn_relu_pool_kernel,
        out_shape=jax.ShapeDtypeStruct((R // 2, W // 2, C), jnp.float32),
        grid_spec=pltpu.PrefetchScalarGridSpec(
            num_scalar_prefetch=0,
            grid=(R // tr,),
            in_specs=[
                pl.BlockSpec((tr, W, C), lambda i: (i, 0, 0)),
                pl.BlockSpec((1, C), lambda i: (0, 0)),
                pl.BlockSpec((1, C), lambda i: (0, 0)),
            ],
            out_specs=pl.BlockSpec((tr // 2, W // 2, C), lambda i: (i, 0, 0)),
        ),
        compiler_params=pltpu.CompilerParams(dimension_semantics=("parallel",)),
    )(rows, scale_row, shift_row)


# -----------------------------------------------------------------------------
# XLA glue: im2col for 3x3 / pad 1 / stride 1 convolution (NHWC, bf16).
# -----------------------------------------------------------------------------
def im2col_3x3(x_nhwc):
    B, H, W, C = x_nhwc.shape
    xp = jnp.pad(x_nhwc, ((0, 0), (1, 1), (1, 1), (0, 0)))
    cols = [xp[:, dy:dy + H, dx:dx + W, :] for dy in range(3) for dx in range(3)]
    patches = jnp.stack(cols, axis=3)                # (B, H, W, 9, C)
    return patches.reshape(B * H * W, 9 * C)         # row order: (b, h, w)


def conv3x3_bn_relu_pool(x_nhwc, wmat, bias_row, gamma_pad, beta_pad, *,
                         tm=1024, tr=16):
    """3x3 same conv (weights pre-padded to 128 out-channels) -> train-mode BN
    (batch stats) -> ReLU -> 2x2 maxpool.  x_nhwc: (B,H,W,Cin) bf16.
    Returns (B, H/2, W/2, 128) f32 with channels >= real Cout equal to zero."""
    B, H, W, Cin = x_nhwc.shape
    M = B * H * W
    tm = min(tm, M)
    tr = min(tr, H)
    assert M % tm == 0 and H % tr == 0 and tr % 2 == 0 and W % 2 == 0

    patches = im2col_3x3(x_nhwc)                     # (M, 9*Cin) bf16
    conv_out, psum, psq = conv_matmul_stats(patches, wmat, bias_row, tm=tm)

    # Tiny per-channel math (128 values): one-pass biased variance -> scale/shift.
    n = float(M)
    ch_sum = jnp.sum(psum, axis=(0, 1))              # (128,)
    ch_sq = jnp.sum(psq, axis=(0, 1))
    mean = ch_sum / n
    var = jnp.maximum(ch_sq / n - mean * mean, 0.0)
    inv_std = lax.rsqrt(var + BN_EPS)
    scale = (gamma_pad * inv_std).reshape(1, LANES)
    shift = (beta_pad - mean * gamma_pad * inv_std).reshape(1, LANES)

    rows = conv_out.reshape(B * H, W, LANES)         # free reshape, (b, h) major
    pooled = bn_relu_pool_apply(rows, scale, shift, tr=tr)   # (B*H/2, W/2, 128)
    return pooled.reshape(B, H // 2, W // 2, LANES)


# -----------------------------------------------------------------------------
# Parameters (PyTorch layouts) and one-time packing for the kernels.
# -----------------------------------------------------------------------------
def init_params(key):
    ks = jax.random.split(key, 6)
    return {
        "w1": jax.random.normal(ks[0], (16, 3, 3, 3), jnp.float32) * 0.1,
        "b1": jax.random.normal(ks[1], (16,), jnp.float32) * 0.1,
        "gamma1": jnp.ones((16,), jnp.float32),
        "beta1": jnp.zeros((16,), jnp.float32),
        "w2": jax.random.normal(ks[2], (32, 16, 3, 3), jnp.float32) * 0.05,
        "b2": jax.random.normal(ks[3], (32,), jnp.float32) * 0.05,
        "gamma2": jnp.ones((32,), jnp.float32),
        "beta2": jnp.zeros((32,), jnp.float32),
        "w_fc": jax.random.normal(ks[4], (10, 32 * 16 * 16), jnp.float32) * 0.01,
        "b_fc": jax.random.normal(ks[5], (10,), jnp.float32) * 0.01,
    }


def prepare_params(params):
    """One-time packing (outside the forward): im2col weight matrices, zero-padding
    of the output-channel axis to 128 lanes, bf16 casts, and NCHW->NHWC row
    permutation of the fc weight (so the activations never need a transpose)."""
    def pad_cols(w):
        return jnp.pad(w, ((0, 0), (0, LANES - w.shape[1])))

    def pad_vec(v):
        return jnp.pad(v, (0, LANES - v.shape[0])).astype(jnp.float32)

    w1 = jnp.transpose(params["w1"], (2, 3, 1, 0)).reshape(9 * 3, 16)
    w2 = jnp.transpose(params["w2"], (2, 3, 1, 0)).reshape(9 * 16, 32)
    # fc weight: (10, 32*16*16) NCHW-flatten columns -> NHWC-flatten, then (8192, 128)
    wfc = params["w_fc"].reshape(10, 32, 16, 16)
    wfc = jnp.transpose(wfc, (0, 2, 3, 1)).reshape(10, 16 * 16 * 32).T

    return {
        "wmat1": pad_cols(w1).astype(jnp.bfloat16),
        "bias1": pad_vec(params["b1"]).reshape(1, LANES),
        "gamma1": pad_vec(params["gamma1"]),
        "beta1": pad_vec(params["beta1"]),
        "wmat2": pad_cols(w2).astype(jnp.bfloat16),
        "bias2": pad_vec(params["b2"]).reshape(1, LANES),
        "gamma2": pad_vec(params["gamma2"]),
        "beta2": pad_vec(params["beta2"]),
        "wfc": pad_cols(wfc).astype(jnp.bfloat16),
        "bfc": pad_vec(params["b_fc"]).reshape(1, LANES),
    }


# -----------------------------------------------------------------------------
# Full SimpleConvNet forward.
# -----------------------------------------------------------------------------
def simple_convnet_forward(x_nchw, pp):
    B = x_nchw.shape[0]
    x = jnp.transpose(x_nchw, (0, 2, 3, 1)).astype(jnp.bfloat16)    # NCHW -> NHWC

    x = conv3x3_bn_relu_pool(x, pp["wmat1"], pp["bias1"],
                             pp["gamma1"], pp["beta1"])             # (B, 32, 32, 128)
    x = x[..., :16].astype(jnp.bfloat16)                            # keep real channels

    x = conv3x3_bn_relu_pool(x, pp["wmat2"], pp["bias2"],
                             pp["gamma2"], pp["beta2"])             # (B, 16, 16, 128)

    # Flatten in NHWC order; fc weights were pre-permuted to match x.view(B, -1)
    # on the original NCHW tensor, so no activation transpose is needed.
    feat = x[..., :32].reshape(B, 16 * 16 * 32).astype(jnp.bfloat16)
    logits = matmul_bias(feat, pp["wfc"], pp["bfc"], tm=B)          # (B, 128)
    return logits[:, :10]


if __name__ == "__main__":
    key = jax.random.PRNGKey(0)
    k_params, k_x = jax.random.split(key)
    params = init_params(k_params)
    pp = prepare_params(params)

    # fc expects 32*16*16 features -> the module implies a 64x64 spatial input
    # after two /2 pools; batch kept small.
    x = jax.random.normal(k_x, (2, 3, 64, 64), jnp.float32)         # NCHW, like PyTorch

    fwd = jax.jit(simple_convnet_forward)
    out = fwd(x, pp)
    jax.block_until_ready(out)
    assert out.shape == (2, 10) and out.dtype == jnp.float32
    print("KERNEL_OK")
</pallas_src>

<mosaic_0001>
module attributes {stable_mosaic.version = 11 : i64} {
  func.func @_matmul_bias_stats_kernel(%arg0: i32, %arg1: memref<1024x27xbf16, #tpu.memory_space<vmem>>, %arg2: memref<27x128xbf16, #tpu.memory_space<vmem>>, %arg3: memref<1x128xf32, #tpu.memory_space<vmem>>, %arg4: memref<1024x128xf32, #tpu.memory_space<vmem>>, %arg5: memref<1x1x128xf32, #tpu.memory_space<vmem>>, %arg6: memref<1x1x128xf32, #tpu.memory_space<vmem>>) attributes {dimension_semantics = [#tpu.dimension_semantics<parallel>], iteration_bounds = array<i64: 8>, scalar_prefetch = 0 : i64, scratch_operands = 0 : i64, tpu.core_type = #tpu.core_type<tc>, window_params = [{transform_indices = @transform_0, window_bounds = array<i64: 1024, 27>}, {pipeline_mode = #tpu.pipeline_mode<synchronous>, transform_indices = @transform_1, window_bounds = array<i64: 27, 128>}, {pipeline_mode = #tpu.pipeline_mode<synchronous>, transform_indices = @transform_2, window_bounds = array<i64: 1, 128>}, {transform_indices = @transform_3, window_bounds = array<i64: 1024, 128>}, {transform_indices = @transform_4, window_bounds = array<i64: 1, 1, 128>}, {transform_indices = @transform_5, window_bounds = array<i64: 1, 1, 128>}]} {
    %c0 = arith.constant 0 : index
    %c0_0 = arith.constant 0 : index
    %0 = vector.load %arg1[%c0, %c0_0] : memref<1024x27xbf16, #tpu.memory_space<vmem>>, vector<1024x27xbf16>
    %c0_1 = arith.constant 0 : index
    %c0_2 = arith.constant 0 : index
    %1 = vector.load %arg2[%c0_1, %c0_2] : memref<27x128xbf16, #tpu.memory_space<vmem>>, vector<27x128xbf16>
    %cst = arith.constant dense<0.000000e+00> : vector<1024x128xf32>
    %2 = tpu.matmul %0, %1, %cst {dimension_numbers = #tpu.dot_dimension_numbers<[1], [0], [0], [1], [0, 0, 1, 1], [], []>} : vector<1024x27xbf16>, vector<27x128xbf16>, vector<1024x128xf32> -> vector<1024x128xf32>
    %c0_3 = arith.constant 0 : index
    %c0_4 = arith.constant 0 : index
    %3 = vector.load %arg3[%c0_3, %c0_4] : memref<1x128xf32, #tpu.memory_space<vmem>>, vector<1x128xf32>
    %4 = vector.broadcast %3 : vector<1x128xf32> to vector<1024x128xf32>
    %5 = arith.addf %2, %4 : vector<1024x128xf32>
    %c0_5 = arith.constant 0 : index
    %c0_6 = arith.constant 0 : index
    %6 = vector.load %arg4[%c0_5, %c0_6] : memref<1024x128xf32, #tpu.memory_space<vmem>>, vector<1024x128xf32>
    tpu.vector_store %arg4[%c0_5, %c0_6], %5 {strides = array<i32>} : memref<1024x128xf32, #tpu.memory_space<vmem>>, vector<1024x128xf32>,
    %cst_7 = arith.constant dense<0.000000e+00> : vector<128xf32>
    %7 = vector.multi_reduction <add>, %5, %cst_7 [0] : vector<1024x128xf32> to vector<128xf32>
    %8 = vector.shape_cast %7 : vector<128xf32> to vector<1x128xf32>
    %9 = arith.mulf %5, %5 : vector<1024x128xf32>
    %cst_8 = arith.constant dense<0.000000e+00> : vector<128xf32>
    %10 = vector.multi_reduction <add>, %9, %cst_8 [0] : vector<1024x128xf32> to vector<128xf32>
    %11 = vector.shape_cast %10 : vector<128xf32> to vector<1x128xf32>
    %12 = vector.shape_cast %8 : vector<1x128xf32> to vector<1x1x128xf32>
    %c0_9 = arith.constant 0 : index
    %c0_10 = arith.constant 0 : index
    %c0_11 = arith.constant 0 : index
    %13 = vector.load %arg5[%c0_9, %c0_10, %c0_11] : memref<1x1x128xf32, #tpu.memory_space<vmem>>, vector<1x1x128xf32>
    tpu.vector_store %arg5[%c0_9, %c0_10, %c0_11], %12 {strides = array<i32>} : memref<1x1x128xf32, #tpu.memory_space<vmem>>, vector<1x1x128xf32>,
    %14 = vector.shape_cast %11 : vector<1x128xf32> to vector<1x1x128xf32>
    %c0_12 = arith.constant 0 : index
    %c0_13 = arith.constant 0 : index
    %c0_14 = arith.constant 0 : index
    %15 = vector.load %arg6[%c0_12, %c0_13, %c0_14] : memref<1x1x128xf32, #tpu.memory_space<vmem>>, vector<1x1x128xf32>
    tpu.vector_store %arg6[%c0_12, %c0_13, %c0_14], %14 {strides = array<i32>} : memref<1x1x128xf32, #tpu.memory_space<vmem>>, vector<1x1x128xf32>,
    return
  }
  func.func @transform_0(%arg0: i32) -> (i32, i32) {
    %c0_i32 = arith.constant 0 : i32
    %c0_i32_0 = arith.constant 0 : i32
    return %arg0, %c0_i32 : i32, i32
  }
  func.func @transform_1(%arg0: i32) -> (i32, i32) {
    %c0_i32 = arith.constant 0 : i32
    %c0_i32_0 = arith.constant 0 : i32
    %c0_i32_1 = arith.constant 0 : i32
    return %c0_i32, %c0_i32_0 : i32, i32
  }
  func.func @transform_2(%arg0: i32) -> (i32, i32) {
    %c0_i32 = arith.constant 0 : i32
    %c0_i32_0 = arith.constant 0 : i32
    %c0_i32_1 = arith.constant 0 : i32
    return %c0_i32, %c0_i32_0 : i32, i32
  }
  func.func @transform_3(%arg0: i32) -> (i32, i32) {
    %c0_i32 = arith.constant 0 : i32
    %c0_i32_0 = arith.constant 0 : i32
    return %arg0, %c0_i32 : i32, i32
  }
  func.func @transform_4(%arg0: i32) -> (i32, i32, i32) {
    %c0_i32 = arith.constant 0 : i32
    %c0_i32_0 = arith.constant 0 : i32
    %c0_i32_1 = arith.constant 0 : i32
    return %arg0, %c0_i32, %c0_i32_0 : i32, i32, i32
  }
  func.func @transform_5(%arg0: i32) -> (i32, i32, i32) {
    %c0_i32 = arith.constant 0 : i32
    %c0_i32_0 = arith.constant 0 : i32
    %c0_i32_1 = arith.constant 0 : i32
    return %arg0, %c0_i32, %c0_i32_0 : i32, i32, i32
  }
}

module attributes {stable_mosaic.version = 11 : i64} {
  func.func @_bn_relu_pool_kernel(%arg0: i32, %arg1: memref<16x64x128xf32, #tpu.memory_space<vmem>>, %arg2: memref<1x128xf32, #tpu.memory_space<vmem>>, %arg3: memref<1x128xf32, #tpu.memory_space<vmem>>, %arg4: memref<8x32x128xf32, #tpu.memory_space<vmem>>) attributes {dimension_semantics = [#tpu.dimension_semantics<parallel>], iteration_bounds = array<i64: 8>, scalar_prefetch = 0 : i64, scratch_operands = 0 : i64, tpu.core_type = #tpu.core_type<tc>, window_params = [{transform_indices = @transform_0, window_bounds = array<i64: 16, 64, 128>}, {pipeline_mode = #tpu.pipeline_mode<synchronous>, transform_indices = @transform_1, window_bounds = array<i64: 1, 128>}, {pipeline_mode = #tpu.pipeline_mode<synchronous>, transform_indices = @transform_2, window_bounds = array<i64: 1, 128>}, {transform_indices = @transform_3, window_bounds = array<i64: 8, 32, 128>}]} {
    %c0 = arith.constant 0 : index
    %c0_0 = arith.constant 0 : index
    %0 = vector.load %arg2[%c0, %c0_0] : memref<1x128xf32, #tpu.memory_space<vmem>>, vector<1x128xf32>
    %c0_1 = arith.constant 0 : index
    %c0_2 = arith.constant 0 : index
    %1 = vector.load %arg3[%c0_1, %c0_2] : memref<1x128xf32, #tpu.memory_space<vmem>>, vector<1x128xf32>
    %c0_3 = arith.constant 0 : index
    %c0_4 = arith.constant 0 : index
    %c0_5 = arith.constant 0 : index
    %2 = tpu.strided_load %arg1[%c0_3, %c0_4, %c0_5] {strides = array<i32: 1, 2, 1>} : memref<16x64x128xf32, #tpu.memory_space<vmem>>, vector<16x32x128xf32>
    %c0_6 = arith.constant 0 : index
    %c1 = arith.constant 1 : index
    %c0_7 = arith.constant 0 : index
    %3 = tpu.strided_load %arg1[%c0_6, %c1, %c0_7] {strides = array<i32: 1, 2, 1>} : memref<16x64x128xf32, #tpu.memory_space<vmem>>, vector<16x32x128xf32>
    %4 = vector.shape_cast %0 : vector<1x128xf32> to vector<1x1x128xf32>
    %5 = vector.broadcast %4 : vector<1x1x128xf32> to vector<16x32x128xf32>
    %6 = arith.mulf %2, %5 : vector<16x32x128xf32>
    %7 = vector.shape_cast %1 : vector<1x128xf32> to vector<1x1x128xf32>
    %8 = vector.broadcast %7 : vector<1x1x128xf32> to vector<16x32x128xf32>
    %9 = arith.addf %6, %8 : vector<16x32x128xf32>
    %cst = arith.constant 0.000000e+00 : f32
    %10 = vector.broadcast %cst : f32 to vector<16x32x128xf32>
    %11 = arith.maximumf %9, %10 : vector<16x32x128xf32>
    %12 = vector.shape_cast %0 : vector<1x128xf32> to vector<1x1x128xf32>
    %13 = vector.broadcast %12 : vector<1x1x128xf32> to vector<16x32x128xf32>
    %14 = arith.mulf %3, %13 : vector<16x32x128xf32>
    %15 = vector.shape_cast %1 : vector<1x128xf32> to vector<1x1x128xf32>
    %16 = vector.broadcast %15 : vector<1x1x128xf32> to vector<16x32x128xf32>
    %17 = arith.addf %14, %16 : vector<16x32x128xf32>
    %cst_8 = arith.constant 0.000000e+00 : f32
    %18 = vector.broadcast %cst_8 : f32 to vector<16x32x128xf32>
    %19 = arith.maximumf %17, %18 : vector<16x32x128xf32>
    %20 = arith.maximumf %11, %19 : vector<16x32x128xf32>
    %21 = vector.shape_cast %20 : vector<16x32x128xf32> to vector<8x2x32x128xf32>
    %cst_9 = arith.constant dense<0xFF800000> : vector<8x32x128xf32>
    %22 = vector.multi_reduction <maximumf>, %21, %cst_9 [1] : vector<8x2x32x128xf32> to vector<8x32x128xf32>
    %c0_10 = arith.constant 0 : index
    %c0_11 = arith.constant 0 : index
    %c0_12 = arith.constant 0 : index
    %23 = vector.load %arg4[%c0_10, %c0_11, %c0_12] : memref<8x32x128xf32, #tpu.memory_space<vmem>>, vector<8x32x128xf32>
    tpu.vector_store %arg4[%c0_10, %c0_11, %c0_12], %22 {strides = array<i32>} : memref<8x32x128xf32, #tpu.memory_space<vmem>>, vector<8x32x128xf32>,
    return
  }
  func.func @transform_0(%arg0: i32) -> (i32, i32, i32) {
    %c0_i32 = arith.constant 0 : i32
    %c0_i32_0 = arith.constant 0 : i32
    %c0_i32_1 = arith.constant 0 : i32
    return %arg0, %c0_i32, %c0_i32_0 : i32, i32, i32
  }
  func.func @transform_1(%arg0: i32) -> (i32, i32) {
    %c0_i32 = arith.constant 0 : i32
    %c0_i32_0 = arith.constant 0 : i32
    %c0_i32_1 = arith.constant 0 : i32
    return %c0_i32, %c0_i32_0 : i32, i32
  }
  func.func @transform_2(%arg0: i32) -> (i32, i32) {
    %c0_i32 = arith.constant 0 : i32
    %c0_i32_0 = arith.constant 0 : i32
    %c0_i32_1 = arith.constant 0 : i32
    return %c0_i32, %c0_i32_0 : i32, i32
  }
  func.func @transform_3(%arg0: i32) -> (i32, i32, i32) {
    %c0_i32 = arith.constant 0 : i32
    %c0_i32_0 = arith.constant 0 : i32
    %c0_i32_1 = arith.constant 0 : i32
    return %arg0, %c0_i32, %c0_i32_0 : i32, i32, i32
  }
}

module attributes {stable_mosaic.version = 11 : i64} {
  func.func @_matmul_bias_stats_kernel(%arg0: i32, %arg1: memref<1024x144xbf16, #tpu.memory_space<vmem>>, %arg2: memref<144x128xbf16, #tpu.memory_space<vmem>>, %arg3: memref<1x128xf32, #tpu.memory_space<vmem>>, %arg4: memref<1024x128xf32, #tpu.memory_space<vmem>>, %arg5: memref<1x1x128xf32, #tpu.memory_space<vmem>>, %arg6: memref<1x1x128xf32, #tpu.memory_space<vmem>>) attributes {dimension_semantics = [#tpu.dimension_semantics<parallel>], iteration_bounds = array<i64: 2>, scalar_prefetch = 0 : i64, scratch_operands = 0 : i64, tpu.core_type = #tpu.core_type<tc>, window_params = [{transform_indices = @transform_0, window_bounds = array<i64: 1024, 144>}, {pipeline_mode = #tpu.pipeline_mode<synchronous>, transform_indices = @transform_1, window_bounds = array<i64: 144, 128>}, {pipeline_mode = #tpu.pipeline_mode<synchronous>, transform_indices = @transform_2, window_bounds = array<i64: 1, 128>}, {transform_indices = @transform_3, window_bounds = array<i64: 1024, 128>}, {transform_indices = @transform_4, window_bounds = array<i64: 1, 1, 128>}, {transform_indices = @transform_5, window_bounds = array<i64: 1, 1, 128>}]} {
    %c0 = arith.constant 0 : index
    %c0_0 = arith.constant 0 : index
    %0 = vector.load %arg1[%c0, %c0_0] : memref<1024x144xbf16, #tpu.memory_space<vmem>>, vector<1024x144xbf16>
    %c0_1 = arith.constant 0 : index
    %c0_2 = arith.constant 0 : index
    %1 = vector.load %arg2[%c0_1, %c0_2] : memref<144x128xbf16, #tpu.memory_space<vmem>>, vector<144x128xbf16>
    %cst = arith.constant dense<0.000000e+00> : vector<1024x128xf32>
    %2 = tpu.matmul %0, %1, %cst {dimension_numbers = #tpu.dot_dimension_numbers<[1], [0], [0], [1], [0, 0, 1, 1], [], []>} : vector<1024x144xbf16>, vector<144x128xbf16>, vector<1024x128xf32> -> vector<1024x128xf32>
    %c0_3 = arith.constant 0 : index
    %c0_4 = arith.constant 0 : index
    %3 = vector.load %arg3[%c0_3, %c0_4] : memref<1x128xf32, #tpu.memory_space<vmem>>, vector<1x128xf32>
    %4 = vector.broadcast %3 : vector<1x128xf32> to vector<1024x128xf32>
    %5 = arith.addf %2, %4 : vector<1024x128xf32>
    %c0_5 = arith.constant 0 : index
    %c0_6 = arith.constant 0 : index
    %6 = vector.load %arg4[%c0_5, %c0_6] : memref<1024x128xf32, #tpu.memory_space<vmem>>, vector<1024x128xf32>
    tpu.vector_store %arg4[%c0_5, %c0_6], %5 {strides = array<i32>} : memref<1024x128xf32, #tpu.memory_space<vmem>>, vector<1024x128xf32>,
    %cst_7 = arith.constant dense<0.000000e+00> : vector<128xf32>
    %7 = vector.multi_reduction <add>, %5, %cst_7 [0] : vector<1024x128xf32> to vector<128xf32>
    %8 = vector.shape_cast %7 : vector<128xf32> to vector<1x128xf32>
    %9 = arith.mulf %5, %5 : vector<1024x128xf32>
    %cst_8 = arith.constant dense<0.000000e+00> : vector<128xf32>
    %10 = vector.multi_reduction <add>, %9, %cst_8 [0] : vector<1024x128xf32> to vector<128xf32>
    %11 = vector.shape_cast %10 : vector<128xf32> to vector<1x128xf32>
    %12 = vector.shape_cast %8 : vector<1x128xf32> to vector<1x1x128xf32>
    %c0_9 = arith.constant 0 : index
    %c0_10 = arith.constant 0 : index
    %c0_11 = arith.constant 0 : index
    %13 = vector.load %arg5[%c0_9, %c0_10, %c0_11] : memref<1x1x128xf32, #tpu.memory_space<vmem>>, vector<1x1x128xf32>
    tpu.vector_store %arg5[%c0_9, %c0_10, %c0_11], %12 {strides = array<i32>} : memref<1x1x128xf32, #tpu.memory_space<vmem>>, vector<1x1x128xf32>,
    %14 = vector.shape_cast %11 : vector<1x128xf32> to vector<1x1x128xf32>
    %c0_12 = arith.constant 0 : index
    %c0_13 = arith.constant 0 : index
    %c0_14 = arith.constant 0 : index
    %15 = vector.load %arg6[%c0_12, %c0_13, %c0_14] : memref<1x1x128xf32, #tpu.memory_space<vmem>>, vector<1x1x128xf32>
    tpu.vector_store %arg6[%c0_12, %c0_13, %c0_14], %14 {strides = array<i32>} : memref<1x1x128xf32, #tpu.memory_space<vmem>>, vector<1x1x128xf32>,
    return
  }
  func.func @transform_0(%arg0: i32) -> (i32, i32) {
    %c0_i32 = arith.constant 0 : i32
    %c0_i32_0 = arith.constant 0 : i32
    return %arg0, %c0_i32 : i32, i32
  }
  func.func @transform_1(%arg0: i32) -> (i32, i32) {
    %c0_i32 = arith.constant 0 : i32
    %c0_i32_0 = arith.constant 0 : i32
    %c0_i32_1 = arith.constant 0 : i32
    return %c0_i32, %c0_i32_0 : i32, i32
  }
  func.func @transform_2(%arg0: i32) -> (i32, i32) {
    %c0_i32 = arith.constant 0 : i32
    %c0_i32_0 = arith.constant 0 : i32
    %c0_i32_1 = arith.constant 0 : i32
    return %c0_i32, %c0_i32_0 : i32, i32
  }
  func.func @transform_3(%arg0: i32) -> (i32, i32) {
    %c0_i32 = arith.constant 0 : i32
    %c0_i32_0 = arith.constant 0 : i32
    return %arg0, %c0_i32 : i32, i32
  }
  func.func @transform_4(%arg0: i32) -> (i32, i32, i32) {
    %c0_i32 = arith.constant 0 : i32
    %c0_i32_0 = arith.constant 0 : i32
    %c0_i32_1 = arith.constant 0 : i32
    return %arg0, %c0_i32, %c0_i32_0 : i32, i32, i32
  }
  func.func @transform_5(%arg0: i32) -> (i32, i32, i32) {
    %c0_i32 = arith.constant 0 : i32
    %c0_i32_0 = arith.constant 0 : i32
    %c0_i32_1 = arith.constant 0 : i32
    return %arg0, %c0_i32, %c0_i32_0 : i32, i32, i32
  }
}

module attributes {stable_mosaic.version = 11 : i64} {
  func.func @_bn_relu_pool_kernel(%arg0: i32, %arg1: memref<16x32x128xf32, #tpu.memory_space<vmem>>, %arg2: memref<1x128xf32, #tpu.memory_space<vmem>>, %arg3: memref<1x128xf32, #tpu.memory_space<vmem>>, %arg4: memref<8x16x128xf32, #tpu.memory_space<vmem>>) attributes {dimension_semantics = [#tpu.dimension_semantics<parallel>], iteration_bounds = array<i64: 4>, scalar_prefetch = 0 : i64, scratch_operands = 0 : i64, tpu.core_type = #tpu.core_type<tc>, window_params = [{transform_indices = @transform_0, window_bounds = array<i64: 16, 32, 128>}, {pipeline_mode = #tpu.pipeline_mode<synchronous>, transform_indices = @transform_1, window_bounds = array<i64: 1, 128>}, {pipeline_mode = #tpu.pipeline_mode<synchronous>, transform_indices = @transform_2, window_bounds = array<i64: 1, 128>}, {transform_indices = @transform_3, window_bounds = array<i64: 8, 16, 128>}]} {
    %c0 = arith.constant 0 : index
    %c0_0 = arith.constant 0 : index
    %0 = vector.load %arg2[%c0, %c0_0] : memref<1x128xf32, #tpu.memory_space<vmem>>, vector<1x128xf32>
    %c0_1 = arith.constant 0 : index
    %c0_2 = arith.constant 0 : index
    %1 = vector.load %arg3[%c0_1, %c0_2] : memref<1x128xf32, #tpu.memory_space<vmem>>, vector<1x128xf32>
    %c0_3 = arith.constant 0 : index
    %c0_4 = arith.constant 0 : index
    %c0_5 = arith.constant 0 : index
    %2 = tpu.strided_load %arg1[%c0_3, %c0_4, %c0_5] {strides = array<i32: 1, 2, 1>} : memref<16x32x128xf32, #tpu.memory_space<vmem>>, vector<16x16x128xf32>
    %c0_6 = arith.constant 0 : index
    %c1 = arith.constant 1 : index
    %c0_7 = arith.constant 0 : index
    %3 = tpu.strided_load %arg1[%c0_6, %c1, %c0_7] {strides = array<i32: 1, 2, 1>} : memref<16x32x128xf32, #tpu.memory_space<vmem>>, vector<16x16x128xf32>
    %4 = vector.shape_cast %0 : vector<1x128xf32> to vector<1x1x128xf32>
    %5 = vector.broadcast %4 : vector<1x1x128xf32> to vector<16x16x128xf32>
    %6 = arith.mulf %2, %5 : vector<16x16x128xf32>
    %7 = vector.shape_cast %1 : vector<1x128xf32> to vector<1x1x128xf32>
    %8 = vector.broadcast %7 : vector<1x1x128xf32> to vector<16x16x128xf32>
    %9 = arith.addf %6, %8 : vector<16x16x128xf32>
    %cst = arith.constant 0.000000e+00 : f32
    %10 = vector.broadcast %cst : f32 to vector<16x16x128xf32>
    %11 = arith.maximumf %9, %10 : vector<16x16x128xf32>
    %12 = vector.shape_cast %0 : vector<1x128xf32> to vector<1x1x128xf32>
    %13 = vector.broadcast %12 : vector<1x1x128xf32> to vector<16x16x128xf32>
    %14 = arith.mulf %3, %13 : vector<16x16x128xf32>
    %15 = vector.shape_cast %1 : vector<1x128xf32> to vector<1x1x128xf32>
    %16 = vector.broadcast %15 : vector<1x1x128xf32> to vector<16x16x128xf32>
    %17 = arith.addf %14, %16 : vector<16x16x128xf32>
    %cst_8 = arith.constant 0.000000e+00 : f32
    %18 = vector.broadcast %cst_8 : f32 to vector<16x16x128xf32>
    %19 = arith.maximumf %17, %18 : vector<16x16x128xf32>
    %20 = arith.maximumf %11, %19 : vector<16x16x128xf32>
    %21 = vector.shape_cast %20 : vector<16x16x128xf32> to vector<8x2x16x128xf32>
    %cst_9 = arith.constant dense<0xFF800000> : vector<8x16x128xf32>
    %22 = vector.multi_reduction <maximumf>, %21, %cst_9 [1] : vector<8x2x16x128xf32> to vector<8x16x128xf32>
    %c0_10 = arith.constant 0 : index
    %c0_11 = arith.constant 0 : index
    %c0_12 = arith.constant 0 : index
    %23 = vector.load %arg4[%c0_10, %c0_11, %c0_12] : memref<8x16x128xf32, #tpu.memory_space<vmem>>, vector<8x16x128xf32>
    tpu.vector_store %arg4[%c0_10, %c0_11, %c0_12], %22 {strides = array<i32>} : memref<8x16x128xf32, #tpu.memory_space<vmem>>, vector<8x16x128xf32>,
    return
  }
  func.func @transform_0(%arg0: i32) -> (i32, i32, i32) {
    %c0_i32 = arith.constant 0 : i32
    %c0_i32_0 = arith.constant 0 : i32
    %c0_i32_1 = arith.constant 0 : i32
    return %arg0, %c0_i32, %c0_i32_0 : i32, i32, i32
  }
  func.func @transform_1(%arg0: i32) -> (i32, i32) {
    %c0_i32 = arith.constant 0 : i32
    %c0_i32_0 = arith.constant 0 : i32
    %c0_i32_1 = arith.constant 0 : i32
    return %c0_i32, %c0_i32_0 : i32, i32
  }
  func.func @transform_2(%arg0: i32) -> (i32, i32) {
    %c0_i32 = arith.constant 0 : i32
    %c0_i32_0 = arith.constant 0 : i32
    %c0_i32_1 = arith.constant 0 : i32
    return %c0_i32, %c0_i32_0 : i32, i32
  }
  func.func @transform_3(%arg0: i32) -> (i32, i32, i32) {
    %c0_i32 = arith.constant 0 : i32
    %c0_i32_0 = arith.constant 0 : i32
    %c0_i32_1 = arith.constant 0 : i32
    return %arg0, %c0_i32, %c0_i32_0 : i32, i32, i32
  }
}

module attributes {stable_mosaic.version = 11 : i64} {
  func.func @_matmul_bias_kernel(%arg0: i32, %arg1: memref<2x8192xbf16, #tpu.memory_space<vmem>>, %arg2: memref<8192x128xbf16, #tpu.memory_space<vmem>>, %arg3: memref<1x128xf32, #tpu.memory_space<vmem>>, %arg4: memref<2x128xf32, #tpu.memory_space<vmem>>) attributes {dimension_semantics = [#tpu.dimension_semantics<parallel>], iteration_bounds = array<i64: 1>, scalar_prefetch = 0 : i64, scratch_operands = 0 : i64, tpu.core_type = #tpu.core_type<tc>, window_params = [{transform_indices = @transform_0, window_bounds = array<i64: 2, 8192>}, {pipeline_mode = #tpu.pipeline_mode<synchronous>, transform_indices = @transform_1, window_bounds = array<i64: 8192, 128>}, {pipeline_mode = #tpu.pipeline_mode<synchronous>, transform_indices = @transform_2, window_bounds = array<i64: 1, 128>}, {transform_indices = @transform_3, window_bounds = array<i64: 2, 128>}]} {
    %c0 = arith.constant 0 : index
    %c0_0 = arith.constant 0 : index
    %0 = vector.load %arg1[%c0, %c0_0] : memref<2x8192xbf16, #tpu.memory_space<vmem>>, vector<2x8192xbf16>
    %c0_1 = arith.constant 0 : index
    %c0_2 = arith.constant 0 : index
    %1 = vector.load %arg2[%c0_1, %c0_2] : memref<8192x128xbf16, #tpu.memory_space<vmem>>, vector<8192x128xbf16>
    %cst = arith.constant dense<0.000000e+00> : vector<2x128xf32>
    %2 = tpu.matmul %0, %1, %cst {dimension_numbers = #tpu.dot_dimension_numbers<[1], [0], [0], [1], [0, 0, 1, 1], [], []>} : vector<2x8192xbf16>, vector<8192x128xbf16>, vector<2x128xf32> -> vector<2x128xf32>
    %c0_3 = arith.constant 0 : index
    %c0_4 = arith.constant 0 : index
    %3 = vector.load %arg3[%c0_3, %c0_4] : memref<1x128xf32, #tpu.memory_space<vmem>>, vector<1x128xf32>
    %4 = vector.broadcast %3 : vector<1x128xf32> to vector<2x128xf32>
    %5 = arith.addf %2, %4 : vector<2x128xf32>
    %c0_5 = arith.constant 0 : index
    %c0_6 = arith.constant 0 : index
    %6 = vector.load %arg4[%c0_5, %c0_6] : memref<2x128xf32, #tpu.memory_space<vmem>>, vector<2x128xf32>
    tpu.vector_store %arg4[%c0_5, %c0_6], %5 {strides = array<i32>} : memref<2x128xf32, #tpu.memory_space<vmem>>, vector<2x128xf32>,
    return
  }
  func.func @transform_0(%arg0: i32) -> (i32, i32) {
    %c0_i32 = arith.constant 0 : i32
    %c0_i32_0 = arith.constant 0 : i32
    return %arg0, %c0_i32 : i32, i32
  }
  func.func @transform_1(%arg0: i32) -> (i32, i32) {
    %c0_i32 = arith.constant 0 : i32
    %c0_i32_0 = arith.constant 0 : i32
    %c0_i32_1 = arith.constant 0 : i32
    return %c0_i32, %c0_i32_0 : i32, i32
  }
  func.func @transform_2(%arg0: i32) -> (i32, i32) {
    %c0_i32 = arith.constant 0 : i32
    %c0_i32_0 = arith.constant 0 : i32
    %c0_i32_1 = arith.constant 0 : i32
    return %c0_i32, %c0_i32_0 : i32, i32
  }
  func.func @transform_3(%arg0: i32) -> (i32, i32) {
    %c0_i32 = arith.constant 0 : i32
    %c0_i32_0 = arith.constant 0 : i32
    return %arg0, %c0_i32 : i32, i32
  }
}

</mosaic_0001>

<llo_original>
// kernel: simple_convnet_forward.6
$region0: #{simple_convnet_forward.6}
  #allocation0 [shape = 'u32[]', space=smem, size = 0x4, offset = 0x4, fixed_abs, tag = 'smem constant byte address 0x4 - core index']
  #allocation1 [shape = 'u32[72,128]{1,0:T(1,128)}', space=vmem, size = 0x9000, scoped, tag = 'internal scratch']
  %s0 = inlined_call_operand.vmem [shape: f32[128,64,128], index: 0, kind: input, shape index: {}]
  %s1 = inlined_call_operand.vmem [shape: f32[1,128], index: 1, kind: input, shape index: {}]
  %s2 = inlined_call_operand.vmem [shape: f32[1,128], index: 2, kind: input, shape index: {}]
  %s3 = inlined_call_operand.vmem [shape: f32[64,32,128], index: 3, kind: output, shape index: {}]
  %s4 = sld [smem:[#allocation0]]
  $region45: #{simple_convnet_forward.6} parent=0
    _
  %s6 = ssub.s32 1, %s4
  %s7 = scalar_select 0, %s6, %s4
  loop: start=0, step=1, limit=10
  $region2: #{simple_convnet_forward.6} parent=0 // loop_pre_header
    _
  $region3: #{simple_convnet_forward.6} parent=0 // loop_header
    %s9 = sphi 0, %s13
    %p10 = scmp.ge.s32.totalorder %s9, 10
    %s19 = sphi 0, %s21
    %s22 = sphi 0, %s19
    %s23 = sphi 0, %s22
    %s39 = sphi 0, %s23
    %s43 = sphi 0, %s43
    %s45 = sphi 0, %s43
    %s46 = sphi 0, %s45
    %s60 = sphi 0, %s46
    %s64 = sphi 0, %s64
    %s66 = sphi 0, %s64
    %s67 = sphi 0, %s66
    %s81 = sphi 0, %s67
    %s87 = sphi 0, %s89
    %s90 = sphi 0, %s87
    %s91 = sphi 0, %s90
    %s107 = sphi 0, %s91
  $region4: #{simple_convnet_forward.6} parent=0 // loop_header_branch
    %12 = sbr.rel (%p10) target = $region8
  $region5: #{simple_convnet_forward.6} parent=0 // loop_body
    %s14 = ssub.s32 %s9, 1
    %s15 = ssub.s32 %s9, 2
    %s16 = sadd.s32 %s9, 1
    %s17 = ssub.s32 %s9, %s16
    %p18 = scmp.eq.s32.totalorder %s17, 0
    %s20 = sadd.s32 %s19, 1
    %s21 = scalar_select %p18, %s19, %s20
    %p24 = pneg %p18
    %p25 = scmp.eq.s32.totalorder %s9, 7
    %p26 = por %p24, %p25
    %p27 = scmp.ne.s32.totalorder %s19, %s22
    %p28 = scmp.eq.s32.totalorder %s9, 0
    %p29 = por %p27, %p28
    %p30 = scmp.ne.s32.totalorder %s19, %s22
    %p31 = scmp.eq.s32.totalorder %s14, 7
    %p32 = por %p30, %p31
    %p33 = scmp.ne.s32.totalorder %s22, %s23
    %p34 = scmp.eq.s32.totalorder %s14, 0
    %p35 = por %p33, %p34
    %p36 = scmp.ne.s32.totalorder %s22, %s23
    %p37 = scmp.eq.s32.totalorder %s15, 7
    %p38 = por %p36, %p37
    %p40 = scmp.ne.s32.totalorder %s23, %s39
    %p41 = scmp.eq.s32.totalorder %s15, 0
    %p42 = por %p40, %p41
    %s44 = sadd.s32 %s43, 1
    %p47 = scmp.eq.s32.totalorder %s9, 7
    %p48 = scmp.ne.s32.totalorder %s43, %s45
    %p49 = scmp.eq.s32.totalorder %s9, 0
    %p50 = por %p48, %p49
    %p51 = scmp.ne.s32.totalorder %s43, %s45
    %p52 = scmp.eq.s32.totalorder %s14, 7
    %p53 = por %p51, %p52
    %p54 = scmp.ne.s32.totalorder %s45, %s46
    %p55 = scmp.eq.s32.totalorder %s14, 0
    %p56 = por %p54, %p55
    %p57 = scmp.ne.s32.totalorder %s45, %s46
    %p58 = scmp.eq.s32.totalorder %s15, 7
    %p59 = por %p57, %p58
    %p61 = scmp.ne.s32.totalorder %s46, %s60
    %p62 = scmp.eq.s32.totalorder %s15, 0
    %p63 = por %p61, %p62
    %s65 = sadd.s32 %s64, 1
    %p68 = scmp.eq.s32.totalorder %s9, 7
    %p69 = scmp.ne.s32.totalorder %s64, %s66
    %p70 = scmp.eq.s32.totalorder %s9, 0
    %p71 = por %p69, %p70
    %p72 = scmp.ne.s32.totalorder %s64, %s66
    %p73 = scmp.eq.s32.totalorder %s14, 7
    %p74 = por %p72, %p73
    %p75 = scmp.ne.s32.totalorder %s66, %s67
    %p76 = scmp.eq.s32.totalorder %s14, 0
    %p77 = por %p75, %p76
    %p78 = scmp.ne.s32.totalorder %s66, %s67
    %p79 = scmp.eq.s32.totalorder %s15, 7
    %p80 = por %p78, %p79
    %p82 = scmp.ne.s32.totalorder %s67, %s81
    %p83 = scmp.eq.s32.totalorder %s15, 0
    %p84 = por %p82, %p83
    %s85 = ssub.s32 %s9, %s16
    %p86 = scmp.eq.s32.totalorder %s85, 0
    %s88 = sadd.s32 %s87, 1
    %s89 = scalar_select %p86, %s87, %s88
    %p92 = pneg %p86
    %p93 = scmp.eq.s32.totalorder %s9, 7
    %p94 = por %p92, %p93
    %p95 = scmp.ne.s32.totalorder %s87, %s90
    %p96 = scmp.eq.s32.totalorder %s9, 0
    %p97 = por %p95, %p96
    %p98 = scmp.ne.s32.totalorder %s87, %s90
    %p99 = scmp.eq.s32.totalorder %s14, 7
    %p100 = por %p98, %p99
    %p101 = scmp.ne.s32.totalorder %s90, %s91
    %p102 = scmp.eq.s32.totalorder %s14, 0
    %p103 = por %p101, %p102
    %p104 = scmp.ne.s32.totalorder %s90, %s91
    %p105 = scmp.eq.s32.totalorder %s15, 7
    %p106 = por %p104, %p105
    %p108 = scmp.ne.s32.totalorder %s91, %s107
    %p109 = scmp.eq.s32.totalorder %s15, 0
    %p110 = por %p108, %p109
    %p111 = scmp.le.s32.totalorder 1, %s9
    %p112 = scmp.lt.s32.totalorder %s9, 9
    %p113 = pnand %p111, %p112
    %p114 = pneg %p113
    // Predicated region
    $region9: #{simple_convnet_forward.6} parent=5 // pred_check
      _
    $region10: #{simple_convnet_forward.6} parent=5 // pred_check_branch
      %116 = sbr.rel (%p113) target = $region12
    $region11: #{simple_convnet_forward.6} parent=5 // pred_region
      %s117 = ssub.s32 %s9, 1
      // Predicated region
      $region13: #{simple_convnet_forward.6} parent=11 // pred_check
        %p118 = pneg %p56
      $region14: #{simple_convnet_forward.6} parent=11 // pred_check_branch
        %120 = sbr.rel (%p118) target = $region16
      $region15: #{simple_convnet_forward.6} parent=11 // pred_region
        _
      $region16: #{simple_convnet_forward.6} parent=11 // pred_fallthru
        _
      // Predicated region
      $region17: #{simple_convnet_forward.6} parent=11 // pred_check
        %p121 = pneg %p77
      $region18: #{simple_convnet_forward.6} parent=11 // pred_check_branch
        %123 = sbr.rel (%p121) target = $region20
      $region19: #{simple_convnet_forward.6} parent=11 // pred_region
        _
      $region20: #{simple_convnet_forward.6} parent=11 // pred_fallthru
        _
    $region12: #{simple_convnet_forward.6} parent=5 // pred_fallthru
      _
    %p124 = scmp.lt.s32.totalorder %s9, 8
    // Predicated region
    $region21: #{simple_convnet_forward.6} parent=5 // pred_check
      %p125 = pneg %p124
    $region22: #{simple_convnet_forward.6} parent=5 // pred_check_branch
      %127 = sbr.rel (%p125) target = $region24
    $region23: #{simple_convnet_forward.6} parent=5 // pred_region
      // Predicated region
      $region25: #{simple_convnet_forward.6} parent=23 // pred_check
        %p128 = pneg %p29
      $region26: #{simple_convnet_forward.6} parent=23 // pred_check_branch
        %130 = sbr.rel (%p128) target = $region28
      $region27: #{simple_convnet_forward.6} parent=23 // pred_region
        %s131 = smul.u32 16, %s9
        %p132 = scmp.lt.s32.totalorder %s131, 127
        %s133 = scalar_select %p132, %s131, 127
        %s134 = smul.addr %s133, 8
        %s135 = smul.addr %s134, 8
        %s136 = scalar_lea.vmem %s0, %s135
        %s137 = smul.u32 16, %s9
      $region28: #{simple_convnet_forward.6} parent=23 // pred_fallthru
        _
    $region24: #{simple_convnet_forward.6} parent=5 // pred_fallthru
      _
    %p138 = scmp.le.s32.totalorder 1, %s9
    %p139 = scmp.lt.s32.totalorder %s9, 9
    %p140 = pnand %p138, %p139
    %p141 = pneg %p140
    // Predicated region
    $region29: #{simple_convnet_forward.6} parent=5 // pred_check
      _
    $region30: #{simple_convnet_forward.6} parent=5 // pred_check_branch
      %143 = sbr.rel (%p140) target = $region32
    $region31: #{simple_convnet_forward.6} parent=5 // pred_region
      %s144 = ssub.s32 %s9, 1
      %s145 = smul.u32 16, %s14
      %p146 = scmp.lt.s32.totalorder %s145, 127
      %s147 = scalar_select %p146, %s145, 127
      %s148 = smul.addr %s147, 8
      %s149 = smul.addr %s148, 8
      %s150 = scalar_lea.vmem %s0, %s149
      %p151 = pneg %p35
      %p152 = pneg %p32
      %p153 = pneg %p56
      %p154 = pneg %p53
      %p155 = pneg %p77
      %p156 = pneg %p74
      %p157 = pneg %p103
      %p158 = pneg %p100
      %s159 = smul.u32 8, %s14
      %p160 = scmp.lt.s32.totalorder %s159, 63
      %s161 = scalar_select %p160, %s159, 63
      %s162 = smul.addr %s161, 4
      %s163 = smul.addr %s162, 8
      %s164 = scalar_lea.vmem %s3, %s163
      %s165 = smul.u32 16, %s14
      %p166 = scmp.lt.s32.totalorder %s165, 127
      %s167 = scalar_select %p166, %s165, 127
      %s168 = smul.addr %s167, 8
      %s169 = smul.addr %s168, 8
      %s170 = scalar_lea.vmem %s0, %s169
      %s171 = smul.u32 16, %s14
      %s172 = smul.u32 8, %s14
      %p173 = scmp.lt.s32.totalorder %s172, 63
      %s174 = scalar_select %p173, %s172, 63
      %s175 = smul.addr %s174, 4
      %s176 = smul.addr %s175, 8
      %s177 = scalar_lea.vmem %s3, %s176
      %s178 = smul.u32 8, %s14
      %v179 = vld [vmem:[%s1] sm:$0x1]
      %v180 = vld [vmem:[%s2] sm:$0x1]
      %v181 = vld [vmem:[%s170] ss:$2 sm:$0xff]
      %s182 = scalar_lea.vmem %s170, 16
      %v183 = vld [vmem:[%s182] ss:$2 sm:$0xff]
      %s184 = scalar_lea.vmem %s170, 32
      %v185 = vld [vmem:[%s184] ss:$2 sm:$0xff]
      %s186 = scalar_lea.vmem %s170, 48
      %v187 = vld [vmem:[%s186] ss:$2 sm:$0xff]
      %s188 = scalar_lea.vmem %s170, 64
      %v189 = vld [vmem:[%s188] ss:$2 sm:$0xff]
      %s190 = scalar_lea.vmem %s170, 80
      %v191 = vld [vmem:[%s190] ss:$2 sm:$0xff]
      %s192 = scalar_lea.vmem %s170, 96
      %v193 = vld [vmem:[%s192] ss:$2 sm:$0xff]
      %s194 = scalar_lea.vmem %s170, 112
      %v195 = vld [vmem:[%s194] ss:$2 sm:$0xff]
      %s196 = scalar_lea.vmem %s170, 128
      %v197 = vld [vmem:[%s196] ss:$2 sm:$0xff]
      %s198 = scalar_lea.vmem %s170, 144
      %v199 = vld [vmem:[%s198] ss:$2 sm:$0xff]
      %s200 = scalar_lea.vmem %s170, 160
      %v201 = vld [vmem:[%s200] ss:$2 sm:$0xff]
      %s202 = scalar_lea.vmem %s170, 176
      %v203 = vld [vmem:[%s202] ss:$2 sm:$0xff]
      %s204 = scalar_lea.vmem %s170, 192
      %v205 = vld [vmem:[%s204] ss:$2 sm:$0xff]
      %s206 = scalar_lea.vmem %s170, 208
      %v207 = vld [vmem:[%s206] ss:$2 sm:$0xff]
      %s208 = scalar_lea.vmem %s170, 224
      %v209 = vld [vmem:[%s208] ss:$2 sm:$0xff]
      %s210 = scalar_lea.vmem %s170, 240
      %v211 = vld [vmem:[%s210] ss:$2 sm:$0xff]
      %s212 = scalar_lea.vmem %s170, 256
      %v213 = vld [vmem:[%s212] ss:$2 sm:$0xff]
      %s214 = scalar_lea.vmem %s170, 272
      %v215 = vld [vmem:[%s214] ss:$2 sm:$0xff]
      %s216 = scalar_lea.vmem %s170, 288
      %v217 = vld [vmem:[%s216] ss:$2 sm:$0xff]
      %s218 = scalar_lea.vmem %s170, 304
      %v219 = vld [vmem:[%s218] ss:$2 sm:$0xff]
      %s220 = scalar_lea.vmem %s170, 320
      %v221 = vld [vmem:[%s220] ss:$2 sm:$0xff]
      %s222 = scalar_lea.vmem %s170, 336
      %v223 = vld [vmem:[%s222] ss:$2 sm:$0xff]
      %s224 = scalar_lea.vmem %s170, 352
      %v225 = vld [vmem:[%s224] ss:$2 sm:$0xff]
      %s226 = scalar_lea.vmem %s170, 368
      %v227 = vld [vmem:[%s226] ss:$2 sm:$0xff]
      %s228 = scalar_lea.vmem %s170, 384
      %v229 = vld [vmem:[%s228] ss:$2 sm:$0xff]
      %s230 = scalar_lea.vmem %s170, 400
      %v231 = vld [vmem:[%s230] ss:$2 sm:$0xff]
      %s232 = scalar_lea.vmem %s170, 416
      %v233 = vld [vmem:[%s232] ss:$2 sm:$0xff]
      %s234 = scalar_lea.vmem %s170, 432
      %v235 = vld [vmem:[%s234] ss:$2 sm:$0xff]
      %s236 = scalar_lea.vmem %s170, 448
      %v237 = vld [vmem:[%s236] ss:$2 sm:$0xff]
      %s238 = scalar_lea.vmem %s170, 464
      %v239 = vld [vmem:[%s238] ss:$2 sm:$0xff]
      %s240 = scalar_lea.vmem %s170, 480
      %v241 = vld [vmem:[%s240] ss:$2 sm:$0xff]
      %s242 = scalar_lea.vmem %s170, 496
      %v243 = vld [vmem:[%s242] ss:$2 sm:$0xff]
      %s244 = scalar_lea.vmem %s170, 512
      %v245 = vld [vmem:[%s244] ss:$2 sm:$0xff]
      %s246 = scalar_lea.vmem %s170, 528
      %v247 = vld [vmem:[%s246] ss:$2 sm:$0xff]
      %s248 = scalar_lea.vmem %s170, 544
      %v249 = vld [vmem:[%s248] ss:$2 sm:$0xff]
      %s250 = scalar_lea.vmem %s170, 560
      %v251 = vld [vmem:[%s250] ss:$2 sm:$0xff]
      %s252 = scalar_lea.vmem %s170, 576
      %v253 = vld [vmem:[%s252] ss:$2 sm:$0xff]
      %s254 = scalar_lea.vmem %s170, 592
      %v255 = vld [vmem:[%s254] ss:$2 sm:$0xff]
      %s256 = scalar_lea.vmem %s170, 608
      %v257 = vld [vmem:[%s256] ss:$2 sm:$0xff]
      %s258 = scalar_lea.vmem %s170, 624
      %v259 = vld [vmem:[%s258] ss:$2 sm:$0xff]
      %s260 = scalar_lea.vmem %s170, 640
      %v261 = vld [vmem:[%s260] ss:$2 sm:$0xff]
      %s262 = scalar_lea.vmem %s170, 656
      %v263 = vld [vmem:[%s262] ss:$2 sm:$0xff]
      %s264 = scalar_lea.vmem %s170, 672
      %v265 = vld [vmem:[%s264] ss:$2 sm:$0xff]
      %s266 = scalar_lea.vmem %s170, 688
      %v267 = vld [vmem:[%s266] ss:$2 sm:$0xff]
      %s268 = scalar_lea.vmem %s170, 704
      %v269 = vld [vmem:[%s268] ss:$2 sm:$0xff]
      %s270 = scalar_lea.vmem %s170, 720
      %v271 = vld [vmem:[%s270] ss:$2 sm:$0xff]
      %s272 = scalar_lea.vmem %s170, 736
      %v273 = vld [vmem:[%s272] ss:$2 sm:$0xff]
      %s274 = scalar_lea.vmem %s170, 752
      %v275 = vld [vmem:[%s274] ss:$2 sm:$0xff]
      %s276 = scalar_lea.vmem %s170, 768
      %v277 = vld [vmem:[%s276] ss:$2 sm:$0xff]
      %s278 = scalar_lea.vmem %s170, 784
      %v279 = vld [vmem:[%s278] ss:$2 sm:$0xff]
      %s280 = scalar_lea.vmem %s170, 800
      %v281 = vld [vmem:[%s280] ss:$2 sm:$0xff]
      %s282 = scalar_lea.vmem %s170, 816
      %v283 = vld [vmem:[%s282] ss:$2 sm:$0xff]
      %s284 = scalar_lea.vmem %s170, 832
      %v285 = vld [vmem:[%s284] ss:$2 sm:$0xff]
      %s286 = scalar_lea.vmem %s170, 848
      %v287 = vld [vmem:[%s286] ss:$2 sm:$0xff]
      %s288 = scalar_lea.vmem %s170, 864
      %v289 = vld [vmem:[%s288] ss:$2 sm:$0xff]
      %s290 = scalar_lea.vmem %s170, 880
      %v291 = vld [vmem:[%s290] ss:$2 sm:$0xff]
      %s292 = scalar_lea.vmem %s170, 896
      %v293 = vld [vmem:[%s292] ss:$2 sm:$0xff]
      %s294 = scalar_lea.vmem %s170, 912
      %v295 = vld [vmem:[%s294] ss:$2 sm:$0xff]
      %s296 = scalar_lea.vmem %s170, 928
      %v297 = vld [vmem:[%s296] ss:$2 sm:$0xff]
      %s298 = scalar_lea.vmem %s170, 944
      %v299 = vld [vmem:[%s298] ss:$2 sm:$0xff]
      %s300 = scalar_lea.vmem %s170, 960
      %v301 = vld [vmem:[%s300] ss:$2 sm:$0xff]
      %s302 = scalar_lea.vmem %s170, 976
      %v303 = vld [vmem:[%s302] ss:$2 sm:$0xff]
      %s304 = scalar_lea.vmem %s170, 992
      %v305 = vld [vmem:[%s304] ss:$2 sm:$0xff]
      %s306 = scalar_lea.vmem %s170, 1008
      %v307 = vld [vmem:[%s306] ss:$2 sm:$0xff]
      %s308 = scalar_lea.vmem %s170, 1
      %v309 = vld [vmem:[%s308] ss:$2 sm:$0xff]
      %s310 = scalar_lea.vmem %s170, 17
      %v311 = vld [vmem:[%s310] ss:$2 sm:$0xff]
      %s312 = scalar_lea.vmem %s170, 33
      %v313 = vld [vmem:[%s312] ss:$2 sm:$0xff]
      %s314 = scalar_lea.vmem %s170, 49
      %v315 = vld [vmem:[%s314] ss:$2 sm:$0xff]
      %s316 = scalar_lea.vmem %s170, 65
      %v317 = vld [vmem:[%s316] ss:$2 sm:$0xff]
      %s318 = scalar_lea.vmem %s170, 81
      %v319 = vld [vmem:[%s318] ss:$2 sm:$0xff]
      %s320 = scalar_lea.vmem %s170, 97
      %v321 = vld [vmem:[%s320] ss:$2 sm:$0xff]
      %s322 = scalar_lea.vmem %s170, 113
      %v323 = vld [vmem:[%s322] ss:$2 sm:$0xff]
      %s324 = scalar_lea.vmem %s170, 129
      %v325 = vld [vmem:[%s324] ss:$2 sm:$0xff]
      %s326 = scalar_lea.vmem %s170, 145
      %v327 = vld [vmem:[%s326] ss:$2 sm:$0xff]
      %s328 = scalar_lea.vmem %s170, 161
      %v329 = vld [vmem:[%s328] ss:$2 sm:$0xff]
      %s330 = scalar_lea.vmem %s170, 177
      %v331 = vld [vmem:[%s330] ss:$2 sm:$0xff]
      %s332 = scalar_lea.vmem %s170, 193
      %v333 = vld [vmem:[%s332] ss:$2 sm:$0xff]
      %s334 = scalar_lea.vmem %s170, 209
      %v335 = vld [vmem:[%s334] ss:$2 sm:$0xff]
      %s336 = scalar_lea.vmem %s170, 225
      %v337 = vld [vmem:[%s336] ss:$2 sm:$0xff]
      %s338 = scalar_lea.vmem %s170, 241
      %v339 = vld [vmem:[%s338] ss:$2 sm:$0xff]
      %s340 = scalar_lea.vmem %s170, 257
      %v341 = vld [vmem:[%s340] ss:$2 sm:$0xff]
      %s342 = scalar_lea.vmem %s170, 273
      %v343 = vld [vmem:[%s342] ss:$2 sm:$0xff]
      %s344 = scalar_lea.vmem %s170, 289
      %v345 = vld [vmem:[%s344] ss:$2 sm:$0xff]
      %s346 = scalar_lea.vmem %s170, 305
      %v347 = vld [vmem:[%s346] ss:$2 sm:$0xff]
      %s348 = scalar_lea.vmem %s170, 321
      %v349 = vld [vmem:[%s348] ss:$2 sm:$0xff]
      %s350 = scalar_lea.vmem %s170, 337
      %v351 = vld [vmem:[%s350] ss:$2 sm:$0xff]
      %s352 = scalar_lea.vmem %s170, 353
      %v353 = vld [vmem:[%s352] ss:$2 sm:$0xff]
      %s354 = scalar_lea.vmem %s170, 369
      %v355 = vld [vmem:[%s354] ss:$2 sm:$0xff]
      %s356 = scalar_lea.vmem %s170, 385
      %v357 = vld [vmem:[%s356] ss:$2 sm:$0xff]
      %s358 = scalar_lea.vmem %s170, 401
      %v359 = vld [vmem:[%s358] ss:$2 sm:$0xff]
      %s360 = scalar_lea.vmem %s170, 417
      %v361 = vld [vmem:[%s360] ss:$2 sm:$0xff]
      %s362 = scalar_lea.vmem %s170, 433
      %v363 = vld [vmem:[%s362] ss:$2 sm:$0xff]
      %s364 = scalar_lea.vmem %s170, 449
      %v365 = vld [vmem:[%s364] ss:$2 sm:$0xff]
      %s366 = scalar_lea.vmem %s170, 465
      %v367 = vld [vmem:[%s366] ss:$2 sm:$0xff]
      %s368 = scalar_lea.vmem %s170, 481
      %v369 = vld [vmem:[%s368] ss:$2 sm:$0xff]
      %s370 = scalar_lea.vmem %s170, 497
      %v371 = vld [vmem:[%s370] ss:$2 sm:$0xff]
      %s372 = scalar_lea.vmem %s170, 513
      %v373 = vld [vmem:[%s372] ss:$2 sm:$0xff]
      %s374 = scalar_lea.vmem %s170, 529
      %v375 = vld [vmem:[%s374] ss:$2 sm:$0xff]
      %s376 = scalar_lea.vmem %s170, 545
      %v377 = vld [vmem:[%s376] ss:$2 sm:$0xff]
      %s378 = scalar_lea.vmem %s170, 561
      %v379 = vld [vmem:[%s378] ss:$2 sm:$0xff]
      %s380 = scalar_lea.vmem %s170, 577
      %v381 = vld [vmem:[%s380] ss:$2 sm:$0xff]
      %s382 = scalar_lea.vmem %s170, 593
      %v383 = vld [vmem:[%s382] ss:$2 sm:$0xff]
      %s384 = scalar_lea.vmem %s170, 609
      %v385 = vld [vmem:[%s384] ss:$2 sm:$0xff]
      %s386 = scalar_lea.vmem %s170, 625
      %v387 = vld [vmem:[%s386] ss:$2 sm:$0xff]
      %s388 = scalar_lea.vmem %s170, 641
      %v389 = vld [vmem:[%s388] ss:$2 sm:$0xff]
      %s390 = scalar_lea.vmem %s170, 657
      %v391 = vld [vmem:[%s390] ss:$2 sm:$0xff]
      %s392 = scalar_lea.vmem %s170, 673
      %v393 = vld [vmem:[%s392] ss:$2 sm:$0xff]
      %s394 = scalar_lea.vmem %s170, 689
      %v395 = vld [vmem:[%s394] ss:$2 sm:$0xff]
      %s396 = scalar_lea.vmem %s170, 705
      %v397 = vld [vmem:[%s396] ss:$2 sm:$0xff]
      %s398 = scalar_lea.vmem %s170, 721
      %v399 = vld [vmem:[%s398] ss:$2 sm:$0xff]
      %s400 = scalar_lea.vmem %s170, 737
      %v401 = vld [vmem:[%s400] ss:$2 sm:$0xff]
      %s402 = scalar_lea.vmem %s170, 753
      %v403 = vld [vmem:[%s402] ss:$2 sm:$0xff]
      %s404 = scalar_lea.vmem %s170, 769
      %v405 = vld [vmem:[%s404] ss:$2 sm:$0xff]
      %s406 = scalar_lea.vmem %s170, 785
      %v407 = vld [vmem:[%s406] ss:$2 sm:$0xff]
      %s408 = scalar_lea.vmem %s170, 801
      %v409 = vld [vmem:[%s408] ss:$2 sm:$0xff]
      %s410 = scalar_lea.vmem %s170, 817
      %v411 = vld [vmem:[%s410] ss:$2 sm:$0xff]
      %s412 = scalar_lea.vmem %s170, 833
      %v413 = vld [vmem:[%s412] ss:$2 sm:$0xff]
      %s414 = scalar_lea.vmem %s170, 849
      %v415 = vld [vmem:[%s414] ss:$2 sm:$0xff]
      %s416 = scalar_lea.vmem %s170, 865
      %v417 = vld [vmem:[%s416] ss:$2 sm:$0xff]
      %s418 = scalar_lea.vmem %s170, 881
      %v419 = vld [vmem:[%s418] ss:$2 sm:$0xff]
      %s420 = scalar_lea.vmem %s170, 897
      %v421 = vld [vmem:[%s420] ss:$2 sm:$0xff]
      %s422 = scalar_lea.vmem %s170, 913
      %v423 = vld [vmem:[%s422] ss:$2 sm:$0xff]
      %s424 = scalar_lea.vmem %s170, 929
      %v425 = vld [vmem:[%s424] ss:$2 sm:$0xff]
      %s426 = scalar_lea.vmem %s170, 945
      %v427 = vld [vmem:[%s426] ss:$2 sm:$0xff]
      %s428 = scalar_lea.vmem %s170, 961
      %v429 = vld [vmem:[%s428] ss:$2 sm:$0xff]
      %s430 = scalar_lea.vmem %s170, 977
      %v431 = vld [vmem:[%s430] ss:$2 sm:$0xff]
      %s432 = scalar_lea.vmem %s170, 993
      %v433 = vld [vmem:[%s432] ss:$2 sm:$0xff]
      %s434 = scalar_lea.vmem %s170, 1009
      %v435 = vld [vmem:[%s434] ss:$2 sm:$0xff]
      %v437 = vperm.slane %v179, 0
      %v439 = vmul.f32 %v181, %v437
      %v440 = vmul.f32 %v183, %v437
      %v441 = vmul.f32 %v185, %v437
      %v442 = vmul.f32 %v187, %v437
      %v443 = vmul.f32 %v189, %v437
      %v444 = vmul.f32 %v191, %v437
      %v445 = vmul.f32 %v193, %v437
      %v446 = vmul.f32 %v195, %v437
      %v447 = vmul.f32 %v197, %v437
      %v448 = vmul.f32 %v199, %v437
      %v449 = vmul.f32 %v201, %v437
      %v450 = vmul.f32 %v203, %v437
      %v451 = vmul.f32 %v205, %v437
      %v452 = vmul.f32 %v207, %v437
      %v453 = vmul.f32 %v209, %v437
      %v454 = vmul.f32 %v211, %v437
      %v455 = vmul.f32 %v213, %v437
      %v456 = vmul.f32 %v215, %v437
      %v457 = vmul.f32 %v217, %v437
      %v458 = vmul.f32 %v219, %v437
      %v459 = vmul.f32 %v221, %v437
      %v460 = vmul.f32 %v223, %v437
      %v461 = vmul.f32 %v225, %v437
      %v462 = vmul.f32 %v227, %v437
      %v463 = vmul.f32 %v229, %v437
      %v464 = vmul.f32 %v231, %v437
      %v465 = vmul.f32 %v233, %v437
      %v466 = vmul.f32 %v235, %v437
      %v467 = vmul.f32 %v237, %v437
      %v468 = vmul.f32 %v239, %v437
      %v469 = vmul.f32 %v241, %v437
      %v470 = vmul.f32 %v243, %v437
      %v471 = vmul.f32 %v245, %v437
      %v472 = vmul.f32 %v247, %v437
      %v473 = vmul.f32 %v249, %v437
      %v474 = vmul.f32 %v251, %v437
      %v475 = vmul.f32 %v253, %v437
      %v476 = vmul.f32 %v255, %v437
      %v477 = vmul.f32 %v257, %v437
      %v478 = vmul.f32 %v259, %v437
      %v479 = vmul.f32 %v261, %v437
      %v480 = vmul.f32 %v263, %v437
      %v481 = vmul.f32 %v265, %v437
      %v482 = vmul.f32 %v267, %v437
      %v483 = vmul.f32 %v269, %v437
      %v484 = vmul.f32 %v271, %v437
      %v485 = vmul.f32 %v273, %v437
      %v486 = vmul.f32 %v275, %v437
      %v487 = vmul.f32 %v277, %v437
      %v488 = vmul.f32 %v279, %v437
      %v489 = vmul.f32 %v281, %v437
      %v490 = vmul.f32 %v283, %v437
      %v491 = vmul.f32 %v285, %v437
      %v492 = vmul.f32 %v287, %v437
      %v493 = vmul.f32 %v289, %v437
      %v494 = vmul.f32 %v291, %v437
      %v495 = vmul.f32 %v293, %v437
      %v496 = vmul.f32 %v295, %v437
      %v497 = vmul.f32 %v297, %v437
      %v498 = vmul.f32 %v299, %v437
      %v499 = vmul.f32 %v301, %v437
      %v500 = vmul.f32 %v303, %v437
      %v501 = vmul.f32 %v305, %v437
      %v502 = vmul.f32 %v307, %v437
      %v504 = vperm.slane %v180, 0
      %v506 = vadd.f32 %v439, %v504
      %v507 = vadd.f32 %v440, %v504
      %v508 = vadd.f32 %v441, %v504
      %v509 = vadd.f32 %v442, %v504
      %v510 = vadd.f32 %v443, %v504
      %v511 = vadd.f32 %v444, %v504
      %v512 = vadd.f32 %v445, %v504
      %v513 = vadd.f32 %v446, %v504
      %v514 = vadd.f32 %v447, %v504
      %v515 = vadd.f32 %v448, %v504
      %v516 = vadd.f32 %v449, %v504
      %v517 = vadd.f32 %v450, %v504
      %v518 = vadd.f32 %v451, %v504
      %v519 = vadd.f32 %v452, %v504
      %v520 = vadd.f32 %v453, %v504
      %v521 = vadd.f32 %v454, %v504
      %v522 = vadd.f32 %v455, %v504
      %v523 = vadd.f32 %v456, %v504
      %v524 = vadd.f32 %v457, %v504
      %v525 = vadd.f32 %v458, %v504
      %v526 = vadd.f32 %v459, %v504
      %v527 = vadd.f32 %v460, %v504
      %v528 = vadd.f32 %v461, %v504
      %v529 = vadd.f32 %v462, %v504
      %v530 = vadd.f32 %v463, %v504
      %v531 = vadd.f32 %v464, %v504
      %v532 = vadd.f32 %v465, %v504
      %v533 = vadd.f32 %v466, %v504
      %v534 = vadd.f32 %v467, %v504
      %v535 = vadd.f32 %v468, %v504
      %v536 = vadd.f32 %v469, %v504
      %v537 = vadd.f32 %v470, %v504
      %v538 = vadd.f32 %v471, %v504
      %v539 = vadd.f32 %v472, %v504
      %v540 = vadd.f32 %v473, %v504
      %v541 = vadd.f32 %v474, %v504
      %v542 = vadd.f32 %v475, %v504
      %v543 = vadd.f32 %v476, %v504
      %v544 = vadd.f32 %v477, %v504
      %v545 = vadd.f32 %v478, %v504
      %v546 = vadd.f32 %v479, %v504
      %v547 = vadd.f32 %v480, %v504
      %v548 = vadd.f32 %v481, %v504
      %v549 = vadd.f32 %v482, %v504
      %v550 = vadd.f32 %v483, %v504
      %v551 = vadd.f32 %v484, %v504
      %v552 = vadd.f32 %v485, %v504
      %v553 = vadd.f32 %v486, %v504
      %v554 = vadd.f32 %v487, %v504
      %v555 = vadd.f32 %v488, %v504
      %v556 = vadd.f32 %v489, %v504
      %v557 = vadd.f32 %v490, %v504
      %v558 = vadd.f32 %v491, %v504
      %v559 = vadd.f32 %v492, %v504
      %v560 = vadd.f32 %v493, %v504
      %v561 = vadd.f32 %v494, %v504
      %v562 = vadd.f32 %v495, %v504
      %v563 = vadd.f32 %v496, %v504
      %v564 = vadd.f32 %v497, %v504
      %v565 = vadd.f32 %v498, %v504
      %v566 = vadd.f32 %v499, %v504
      %v567 = vadd.f32 %v500, %v504
      %v568 = vadd.f32 %v501, %v504
      %v569 = vadd.f32 %v502, %v504
      %v570 = vmax.f32 %v506, 0.0
      %v571 = vmax.f32 %v507, 0.0
      %v572 = vmax.f32 %v508, 0.0
      %v573 = vmax.f32 %v509, 0.0
      %v574 = vmax.f32 %v510, 0.0
      %v575 = vmax.f32 %v511, 0.0
      %v576 = vmax.f32 %v512, 0.0
      %v577 = vmax.f32 %v513, 0.0
      %v578 = vmax.f32 %v514, 0.0
      %v579 = vmax.f32 %v515, 0.0
      %v580 = vmax.f32 %v516, 0.0
      %v581 = vmax.f32 %v517, 0.0
      %v582 = vmax.f32 %v518, 0.0
      %v583 = vmax.f32 %v519, 0.0
      %v584 = vmax.f32 %v520, 0.0
      %v585 = vmax.f32 %v521, 0.0
      %v586 = vmax.f32 %v522, 0.0
      %v587 = vmax.f32 %v523, 0.0
      %v588 = vmax.f32 %v524, 0.0
      %v589 = vmax.f32 %v525, 0.0
      %v590 = vmax.f32 %v526, 0.0
      %v591 = vmax.f32 %v527, 0.0
      %v592 = vmax.f32 %v528, 0.0
      %v593 = vmax.f32 %v529, 0.0
      %v594 = vmax.f32 %v530, 0.0
      %v595 = vmax.f32 %v531, 0.0
      %v596 = vmax.f32 %v532, 0.0
      %v597 = vmax.f32 %v533, 0.0
      %v598 = vmax.f32 %v534, 0.0
      %v599 = vmax.f32 %v535, 0.0
      %v600 = vmax.f32 %v536, 0.0
      %v601 = vmax.f32 %v537, 0.0
      %v602 = vmax.f32 %v538, 0.0
      %v603 = vmax.f32 %v539, 0.0
      %v604 = vmax.f32 %v540, 0.0
      %v605 = vmax.f32 %v541, 0.0
      %v606 = vmax.f32 %v542, 0.0
      %v607 = vmax.f32 %v543, 0.0
      %v608 = vmax.f32 %v544, 0.0
      %v609 = vmax.f32 %v545, 0.0
      %v610 = vmax.f32 %v546, 0.0
      %v611 = vmax.f32 %v547, 0.0
      %v612 = vmax.f32 %v548, 0.0
      %v613 = vmax.f32 %v549, 0.0
      %v614 = vmax.f32 %v550, 0.0
      %v615 = vmax.f32 %v551, 0.0
      %v616 = vmax.f32 %v552, 0.0
      %v617 = vmax.f32 %v553, 0.0
      %v618 = vmax.f32 %v554, 0.0
      %v619 = vmax.f32 %v555, 0.0
      %v620 = vmax.f32 %v556, 0.0
      %v621 = vmax.f32 %v557, 0.0
      %v622 = vmax.f32 %v558, 0.0
      %v623 = vmax.f32 %v559, 0.0
      %v624 = vmax.f32 %v560, 0.0
      %v625 = vmax.f32 %v561, 0.0
      %v626 = vmax.f32 %v562, 0.0
      %v627 = vmax.f32 %v563, 0.0
      %v628 = vmax.f32 %v564, 0.0
      %v629 = vmax.f32 %v565, 0.0
      %v630 = vmax.f32 %v566, 0.0
      %v631 = vmax.f32 %v567, 0.0
      %v632 = vmax.f32 %v568, 0.0
      %v633 = vmax.f32 %v569, 0.0
      %v634 = vmul.f32 %v309, %v437
      %v635 = vmul.f32 %v311, %v437
      %v636 = vmul.f32 %v313, %v437
      %v637 = vmul.f32 %v315, %v437
      %v638 = vmul.f32 %v317, %v437
      %v639 = vmul.f32 %v319, %v437
      %v640 = vmul.f32 %v321, %v437
      %v641 = vmul.f32 %v323, %v437
      %v642 = vmul.f32 %v325, %v437
      %v643 = vmul.f32 %v327, %v437
      %v644 = vmul.f32 %v329, %v437
      %v645 = vmul.f32 %v331, %v437
      %v646 = vmul.f32 %v333, %v437
      %v647 = vmul.f32 %v335, %v437
      %v648 = vmul.f32 %v337, %v437
      %v649 = vmul.f32 %v339, %v437
      %v650 = vmul.f32 %v341, %v437
      %v651 = vmul.f32 %v343, %v437
      %v652 = vmul.f32 %v345, %v437
      %v653 = vmul.f32 %v347, %v437
      %v654 = vmul.f32 %v349, %v437
      %v655 = vmul.f32 %v351, %v437
      %v656 = vmul.f32 %v353, %v437
      %v657 = vmul.f32 %v355, %v437
      %v658 = vmul.f32 %v357, %v437
      %v659 = vmul.f32 %v359, %v437
      %v660 = vmul.f32 %v361, %v437
      %v661 = vmul.f32 %v363, %v437
      %v662 = vmul.f32 %v365, %v437
      %v663 = vmul.f32 %v367, %v437
      %v664 = vmul.f32 %v369, %v437
      %v665 = vmul.f32 %v371, %v437
      %v666 = vmul.f32 %v373, %v437
      %v667 = vmul.f32 %v375, %v437
      %v668 = vmul.f32 %v377, %v437
      %v669 = vmul.f32 %v379, %v437
      %v670 = vmul.f32 %v381, %v437
      %v671 = vmul.f32 %v383, %v437
      %v672 = vmul.f32 %v385, %v437
      %v673 = vmul.f32 %v387, %v437
      %v674 = vmul.f32 %v389, %v437
      %v675 = vmul.f32 %v391, %v437
      %v676 = vmul.f32 %v393, %v437
      %v677 = vmul.f32 %v395, %v437
      %v678 = vmul.f32 %v397, %v437
      %v679 = vmul.f32 %v399, %v437
      %v680 = vmul.f32 %v401, %v437
      %v681 = vmul.f32 %v403, %v437
      %v682 = vmul.f32 %v405, %v437
      %v683 = vmul.f32 %v407, %v437
      %v684 = vmul.f32 %v409, %v437
      %v685 = vmul.f32 %v411, %v437
      %v686 = vmul.f32 %v413, %v437
      %v687 = vmul.f32 %v415, %v437
      %v688 = vmul.f32 %v417, %v437
      %v689 = vmul.f32 %v419, %v437
      %v690 = vmul.f32 %v421, %v437
      %v691 = vmul.f32 %v423, %v437
      %v692 = vmul.f32 %v425, %v437
      %v693 = vmul.f32 %v427, %v437
      %v694 = vmul.f32 %v429, %v437
      %v695 = vmul.f32 %v431, %v437
      %v696 = vmul.f32 %v433, %v437
      %v697 = vmul.f32 %v435, %v437
      %v698 = vadd.f32 %v634, %v504
      %v699 = vadd.f32 %v635, %v504
      %v700 = vadd.f32 %v636, %v504
      %v701 = vadd.f32 %v637, %v504
      %v702 = vadd.f32 %v638, %v504
      %v703 = vadd.f32 %v639, %v504
      %v704 = vadd.f32 %v640, %v504
      %v705 = vadd.f32 %v641, %v504
      %v706 = vadd.f32 %v642, %v504
      %v707 = vadd.f32 %v643, %v504
      %v708 = vadd.f32 %v644, %v504
      %v709 = vadd.f32 %v645, %v504
      %v710 = vadd.f32 %v646, %v504
      %v711 = vadd.f32 %v647, %v504
      %v712 = vadd.f32 %v648, %v504
      %v713 = vadd.f32 %v649, %v504
      %v714 = vadd.f32 %v650, %v504
      %v715 = vadd.f32 %v651, %v504
      %v716 = vadd.f32 %v652, %v504
      %v717 = vadd.f32 %v653, %v504
      %v718 = vadd.f32 %v654, %v504
      %v719 = vadd.f32 %v655, %v504
      %v720 = vadd.f32 %v656, %v504
      %v721 = vadd.f32 %v657, %v504
      %v722 = vadd.f32 %v658, %v504
      %v723 = vadd.f32 %v659, %v504
      %v724 = vadd.f32 %v660, %v504
      %v725 = vadd.f32 %v661, %v504
      %v726 = vadd.f32 %v662, %v504
      %v727 = vadd.f32 %v663, %v504
      %v728 = vadd.f32 %v664, %v504
      %v729 = vadd.f32 %v665, %v504
      %v730 = vadd.f32 %v666, %v504
      %v731 = vadd.f32 %v667, %v504
      %v732 = vadd.f32 %v668, %v504
      %v733 = vadd.f32 %v669, %v504
      %v734 = vadd.f32 %v670, %v504
      %v735 = vadd.f32 %v671, %v504
      %v736 = vadd.f32 %v672, %v504
      %v737 = vadd.f32 %v673, %v504
      %v738 = vadd.f32 %v674, %v504
      %v739 = vadd.f32 %v675, %v504
      %v740 = vadd.f32 %v676, %v504
      %v741 = vadd.f32 %v677, %v504
      %v742 = vadd.f32 %v678, %v504
      %v743 = vadd.f32 %v679, %v504
      %v744 = vadd.f32 %v680, %v504
      %v745 = vadd.f32 %v681, %v504
      %v746 = vadd.f32 %v682, %v504
      %v747 = vadd.f32 %v683, %v504
      %v748 = vadd.f32 %v684, %v504
      %v749 = vadd.f32 %v685, %v504
      %v750 = vadd.f32 %v686, %v504
      %v751 = vadd.f32 %v687, %v504
      %v752 = vadd.f32 %v688, %v504
      %v753 = vadd.f32 %v689, %v504
      %v754 = vadd.f32 %v690, %v504
      %v755 = vadd.f32 %v691, %v504
      %v756 = vadd.f32 %v692, %v504
      %v757 = vadd.f32 %v693, %v504
      %v758 = vadd.f32 %v694, %v504
      %v759 = vadd.f32 %v695, %v504
      %v760 = vadd.f32 %v696, %v504
      %v761 = vadd.f32 %v697, %v504
      %v762 = vmax.f32 %v698, 0.0
      %v763 = vmax.f32 %v699, 0.0
      %v764 = vmax.f32 %v700, 0.0
      %v765 = vmax.f32 %v701, 0.0
      %v766 = vmax.f32 %v702, 0.0
      %v767 = vmax.f32 %v703, 0.0
      %v768 = vmax.f32 %v704, 0.0
      %v769 = vmax.f32 %v705, 0.0
      %v770 = vmax.f32 %v706, 0.0
      %v771 = vmax.f32 %v707, 0.0
      %v772 = vmax.f32 %v708, 0.0
      %v773 = vmax.f32 %v709, 0.0
      %v774 = vmax.f32 %v710, 0.0
      %v775 = vmax.f32 %v711, 0.0
      %v776 = vmax.f32 %v712, 0.0
      %v777 = vmax.f32 %v713, 0.0
      %v778 = vmax.f32 %v714, 0.0
      %v779 = vmax.f32 %v715, 0.0
      %v780 = vmax.f32 %v716, 0.0
      %v781 = vmax.f32 %v717, 0.0
      %v782 = vmax.f32 %v718, 0.0
      %v783 = vmax.f32 %v719, 0.0
      %v784 = vmax.f32 %v720, 0.0
      %v785 = vmax.f32 %v721, 0.0
      %v786 = vmax.f32 %v722, 0.0
      %v787 = vmax.f32 %v723, 0.0
      %v788 = vmax.f32 %v724, 0.0
      %v789 = vmax.f32 %v725, 0.0
      %v790 = vmax.f32 %v726, 0.0
      %v791 = vmax.f32 %v727, 0.0
      %v792 = vmax.f32 %v728, 0.0
      %v793 = vmax.f32 %v729, 0.0
      %v794 = vmax.f32 %v730, 0.0
      %v795 = vmax.f32 %v731, 0.0
      %v796 = vmax.f32 %v732, 0.0
      %v797 = vmax.f32 %v733, 0.0
      %v798 = vmax.f32 %v734, 0.0
      %v799 = vmax.f32 %v735, 0.0
      %v800 = vmax.f32 %v736, 0.0
      %v801 = vmax.f32 %v737, 0.0
      %v802 = vmax.f32 %v738, 0.0
      %v803 = vmax.f32 %v739, 0.0
      %v804 = vmax.f32 %v740, 0.0
      %v805 = vmax.f32 %v741, 0.0
      %v806 = vmax.f32 %v742, 0.0
      %v807 = vmax.f32 %v743, 0.0
      %v808 = vmax.f32 %v744, 0.0
      %v809 = vmax.f32 %v745, 0.0
      %v810 = vmax.f32 %v746, 0.0
      %v811 = vmax.f32 %v747, 0.0
      %v812 = vmax.f32 %v748, 0.0
      %v813 = vmax.f32 %v749, 0.0
      %v814 = vmax.f32 %v750, 0.0
      %v815 = vmax.f32 %v751, 0.0
      %v816 = vmax.f32 %v752, 0.0
      %v817 = vmax.f32 %v753, 0.0
      %v818 = vmax.f32 %v754, 0.0
      %v819 = vmax.f32 %v755, 0.0
      %v820 = vmax.f32 %v756, 0.0
      %v821 = vmax.f32 %v757, 0.0
      %v822 = vmax.f32 %v758, 0.0
      %v823 = vmax.f32 %v759, 0.0
      %v824 = vmax.f32 %v760, 0.0
      %v825 = vmax.f32 %v761, 0.0
      %v826 = vmax.f32 %v570, %v762
      %v827 = vmax.f32 %v571, %v763
      %v828 = vmax.f32 %v572, %v764
      %v829 = vmax.f32 %v573, %v765
      %v830 = vmax.f32 %v574, %v766
      %v831 = vmax.f32 %v575, %v767
      %v832 = vmax.f32 %v576, %v768
      %v833 = vmax.f32 %v577, %v769
      %v834 = vmax.f32 %v578, %v770
      %v835 = vmax.f32 %v579, %v771
      %v836 = vmax.f32 %v580, %v772
      %v837 = vmax.f32 %v581, %v773
      %v838 = vmax.f32 %v582, %v774
      %v839 = vmax.f32 %v583, %v775
      %v840 = vmax.f32 %v584, %v776
      %v841 = vmax.f32 %v585, %v777
      %v842 = vmax.f32 %v586, %v778
      %v843 = vmax.f32 %v587, %v779
      %v844 = vmax.f32 %v588, %v780
      %v845 = vmax.f32 %v589, %v781
      %v846 = vmax.f32 %v590, %v782
      %v847 = vmax.f32 %v591, %v783
      %v848 = vmax.f32 %v592, %v784
      %v849 = vmax.f32 %v593, %v785
      %v850 = vmax.f32 %v594, %v786
      %v851 = vmax.f32 %v595, %v787
      %v852 = vmax.f32 %v596, %v788
      %v853 = vmax.f32 %v597, %v789
      %v854 = vmax.f32 %v598, %v790
      %v855 = vmax.f32 %v599, %v791
      %v856 = vmax.f32 %v600, %v792
      %v857 = vmax.f32 %v601, %v793
      %v858 = vmax.f32 %v602, %v794
      %v859 = vmax.f32 %v603, %v795
      %v860 = vmax.f32 %v604, %v796
      %v861 = vmax.f32 %v605, %v797
      %v862 = vmax.f32 %v606, %v798
      %v863 = vmax.f32 %v607, %v799
      %v864 = vmax.f32 %v608, %v800
      %v865 = vmax.f32 %v609, %v801
      %v866 = vmax.f32 %v610, %v802
      %v867 = vmax.f32 %v611, %v803
      %v868 = vmax.f32 %v612, %v804
      %v869 = vmax.f32 %v613, %v805
      %v870 = vmax.f32 %v614, %v806
      %v871 = vmax.f32 %v615, %v807
      %v872 = vmax.f32 %v616, %v808
      %v873 = vmax.f32 %v617, %v809
      %v874 = vmax.f32 %v618, %v810
      %v875 = vmax.f32 %v619, %v811
      %v876 = vmax.f32 %v620, %v812
      %v877 = vmax.f32 %v621, %v813
      %v878 = vmax.f32 %v622, %v814
      %v879 = vmax.f32 %v623, %v815
      %v880 = vmax.f32 %v624, %v816
      %v881 = vmax.f32 %v625, %v817
      %v882 = vmax.f32 %v626, %v818
      %v883 = vmax.f32 %v627, %v819
      %v884 = vmax.f32 %v628, %v820
      %v885 = vmax.f32 %v629, %v821
      %v886 = vmax.f32 %v630, %v822
      %v887 = vmax.f32 %v631, %v823
      %v888 = vmax.f32 %v632, %v824
      %v889 = vmax.f32 %v633, %v825
      %v890 = vmax.f32 %v826, %v830
      %v891 = vmax.f32 %v827, %v831
      %v892 = vmax.f32 %v828, %v832
      %v893 = vmax.f32 %v829, %v833
      %v894 = vmax.f32 %v834, %v838
      %v895 = vmax.f32 %v835, %v839
      %v896 = vmax.f32 %v836, %v840
      %v897 = vmax.f32 %v837, %v841
      %v898 = vmax.f32 %v842, %v846
      %v899 = vmax.f32 %v843, %v847
      %v900 = vmax.f32 %v844, %v848
      %v901 = vmax.f32 %v845, %v849
      %v902 = vmax.f32 %v850, %v854
      %v903 = vmax.f32 %v851, %v855
      %v904 = vmax.f32 %v852, %v856
      %v905 = vmax.f32 %v853, %v857
      %v906 = vmax.f32 %v858, %v862
      %v907 = vmax.f32 %v859, %v863
      %v908 = vmax.f32 %v860, %v864
      %v909 = vmax.f32 %v861, %v865
      %v910 = vmax.f32 %v866, %v870
      %v911 = vmax.f32 %v867, %v871
      %v912 = vmax.f32 %v868, %v872
      %v913 = vmax.f32 %v869, %v873
      %v914 = vmax.f32 %v874, %v878
      %v915 = vmax.f32 %v875, %v879
      %v916 = vmax.f32 %v876, %v880
      %v917 = vmax.f32 %v877, %v881
      %v918 = vmax.f32 %v882, %v886
      %v919 = vmax.f32 %v883, %v887
      %v920 = vmax.f32 %v884, %v888
      %v921 = vmax.f32 %v885, %v889
      %922 = vst [vmem:[%s177] sm:$0xff] %v890
      %923 = vst [vmem:[%s177 + $0x8] sm:$0xff] %v891
      %924 = vst [vmem:[%s177 + $0x10] sm:$0xff] %v892
      %925 = vst [vmem:[%s177 + $0x18] sm:$0xff] %v893
      %926 = vst [vmem:[%s177 + $0x20] sm:$0xff] %v894
      %927 = vst [vmem:[%s177 + $0x28] sm:$0xff] %v895
      %928 = vst [vmem:[%s177 + $0x30] sm:$0xff] %v896
      %929 = vst [vmem:[%s177 + $0x38] sm:$0xff] %v897
      %930 = vst [vmem:[%s177 + $0x40] sm:$0xff] %v898
      %931 = vst [vmem:[%s177 + $0x48] sm:$0xff] %v899
      %932 = vst [vmem:[%s177 + $0x50] sm:$0xff] %v900
      %933 = vst [vmem:[%s177 + $0x58] sm:$0xff] %v901
      %934 = vst [vmem:[%s177 + $0x60] sm:$0xff] %v902
      %935 = vst [vmem:[%s177 + $0x68] sm:$0xff] %v903
      %936 = vst [vmem:[%s177 + $0x70] sm:$0xff] %v904
      %937 = vst [vmem:[%s177 + $0x78] sm:$0xff] %v905
      %938 = vst [vmem:[%s177 + $0x80] sm:$0xff] %v906
      %939 = vst [vmem:[%s177 + $0x88] sm:$0xff] %v907
      %940 = vst [vmem:[%s177 + $0x90] sm:$0xff] %v908
      %941 = vst [vmem:[%s177 + $0x98] sm:$0xff] %v909
      %942 = vst [vmem:[%s177 + $0xa0] sm:$0xff] %v910
      %943 = vst [vmem:[%s177 + $0xa8] sm:$0xff] %v911
      %944 = vst [vmem:[%s177 + $0xb0] sm:$0xff] %v912
      %945 = vst [vmem:[%s177 + $0xb8] sm:$0xff] %v913
      %946 = vst [vmem:[%s177 + $0xc0] sm:$0xff] %v914
      %947 = vst [vmem:[%s177 + $0xc8] sm:$0xff] %v915
      %948 = vst [vmem:[%s177 + $0xd0] sm:$0xff] %v916
      %949 = vst [vmem:[%s177 + $0xd8] sm:$0xff] %v917
      %950 = vst [vmem:[%s177 + $0xe0] sm:$0xff] %v918
      %951 = vst [vmem:[%s177 + $0xe8] sm:$0xff] %v919
      %952 = vst [vmem:[%s177 + $0xf0] sm:$0xff] %v920
      %953 = vst [vmem:[%s177 + $0xf8] sm:$0xff] %v921
      %s954 = smul.u32 8, %s14
      %p955 = scmp.lt.s32.totalorder %s954, 63
      %s956 = scalar_select %p955, %s954, 63
      %s957 = smul.addr %s956, 4
      %s958 = smul.addr %s957, 8
      %s959 = scalar_lea.vmem %s3, %s958
      // Predicated region
      $region33: #{simple_convnet_forward.6} parent=31 // pred_check
        %p960 = pneg %p100
      $region34: #{simple_convnet_forward.6} parent=31 // pred_check_branch
        %962 = sbr.rel (%p960) target = $region36
      $region35: #{simple_convnet_forward.6} parent=31 // pred_region
        %s963 = smul.u32 8, %s14
      $region36: #{simple_convnet_forward.6} parent=31 // pred_fallthru
        _
    $region32: #{simple_convnet_forward.6} parent=5 // pred_fallthru
      _
    %p964 = scmp.le.s32.totalorder 2, %s9
    // Predicated region
    $region37: #{simple_convnet_forward.6} parent=5 // pred_check
      %p965 = pneg %p964
    $region38: #{simple_convnet_forward.6} parent=5 // pred_check_branch
      %967 = sbr.rel (%p965) target = $region40
    $region39: #{simple_convnet_forward.6} parent=5 // pred_region
      %s968 = ssub.s32 %s9, 2
      // Predicated region
      $region41: #{simple_convnet_forward.6} parent=39 // pred_check
        %p969 = pneg %p106
      $region42: #{simple_convnet_forward.6} parent=39 // pred_check_branch
        %971 = sbr.rel (%p969) target = $region44
      $region43: #{simple_convnet_forward.6} parent=39 // pred_region
        %s972 = smul.u32 8, %s15
        %p973 = scmp.lt.s32.totalorder %s972, 63
        %s974 = scalar_select %p973, %s972, 63
        %s975 = smul.addr %s974, 4
        %s976 = smul.addr %s975, 8
        %s977 = scalar_lea.vmem %s3, %s976
      $region44: #{simple_convnet_forward.6} parent=39 // pred_fallthru
        _
    $region40: #{simple_convnet_forward.6} parent=5 // pred_fallthru
      _
  $region6: #{simple_convnet_forward.6} parent=0 // loop_footer
    %s13 = sadd.s32 1, %s9
  $region7: #{simple_convnet_forward.6} parent=0 // loop_footer_branch
    %8 = sbr.rel target = $region3
  $region8: #{simple_convnet_forward.6} parent=0 // loop_exit
    _

// kernel: simple_convnet_forward.5
$region0: #{simple_convnet_forward.5}
  #allocation0 [shape = 'u32[]', space=smem, size = 0x4, offset = 0x4, fixed_abs, tag = 'smem constant byte address 0x4 - core index']
  #allocation1 [shape = 'u32[72,128]{1,0:T(1,128)}', space=vmem, size = 0x9000, scoped, tag = 'internal scratch']
  %s0 = inlined_call_operand.vmem [shape: bf16[8192,27], index: 0, kind: input, shape index: {}]
  %s1 = inlined_call_operand.vmem [shape: bf16[27,128], index: 1, kind: input, shape index: {}]
  %s2 = inlined_call_operand.vmem [shape: f32[1,128], index: 2, kind: input, shape index: {}]
  %s3 = inlined_call_operand.vmem [shape: f32[8192,128], index: 3, kind: output, shape index: {0}]
  %s4 = inlined_call_operand.vmem [shape: f32[8,1,128], index: 4, kind: output, shape index: {1}]
  %s5 = inlined_call_operand.vmem [shape: f32[8,1,128], index: 5, kind: output, shape index: {2}]
  %6 = xla_tuple %s3, %s4, %s5
  %s7 = sld [smem:[#allocation0]]
  $region61: #{simple_convnet_forward.5} parent=0
    _
  %s9 = ssub.s32 1, %s7
  %s10 = scalar_select 0, %s9, %s7
  loop: start=0, step=1, limit=10
  $region2: #{simple_convnet_forward.5} parent=0 // loop_pre_header
    _
  $region3: #{simple_convnet_forward.5} parent=0 // loop_header
    %s12 = sphi 0, %s16
    %p13 = scmp.ge.s32.totalorder %s12, 10
    %s22 = sphi 0, %s24
    %s25 = sphi 0, %s22
    %s26 = sphi 0, %s25
    %s42 = sphi 0, %s26
    %s46 = sphi 0, %s46
    %s48 = sphi 0, %s46
    %s49 = sphi 0, %s48
    %s63 = sphi 0, %s49
    %s67 = sphi 0, %s67
    %s69 = sphi 0, %s67
    %s70 = sphi 0, %s69
    %s84 = sphi 0, %s70
    %s90 = sphi 0, %s92
    %s93 = sphi 0, %s90
    %s94 = sphi 0, %s93
    %s110 = sphi 0, %s94
    %s116 = sphi 0, %s118
    %s119 = sphi 0, %s116
    %s120 = sphi 0, %s119
    %s136 = sphi 0, %s120
    %s142 = sphi 0, %s144
    %s145 = sphi 0, %s142
    %s146 = sphi 0, %s145
    %s162 = sphi 0, %s146
  $region4: #{simple_convnet_forward.5} parent=0 // loop_header_branch
    %15 = sbr.rel (%p13) target = $region8
  $region5: #{simple_convnet_forward.5} parent=0 // loop_body
    %s17 = ssub.s32 %s12, 1
    %s18 = ssub.s32 %s12, 2
    %s19 = sadd.s32 %s12, 1
    %s20 = ssub.s32 %s12, %s19
    %p21 = scmp.eq.s32.totalorder %s20, 0
    %s23 = sadd.s32 %s22, 1
    %s24 = scalar_select %p21, %s22, %s23
    %p27 = pneg %p21
    %p28 = scmp.eq.s32.totalorder %s12, 7
    %p29 = por %p27, %p28
    %p30 = scmp.ne.s32.totalorder %s22, %s25
    %p31 = scmp.eq.s32.totalorder %s12, 0
    %p32 = por %p30, %p31
    %p33 = scmp.ne.s32.totalorder %s22, %s25
    %p34 = scmp.eq.s32.totalorder %s17, 7
    %p35 = por %p33, %p34
    %p36 = scmp.ne.s32.totalorder %s25, %s26
    %p37 = scmp.eq.s32.totalorder %s17, 0
    %p38 = por %p36, %p37
    %p39 = scmp.ne.s32.totalorder %s25, %s26
    %p40 = scmp.eq.s32.totalorder %s18, 7
    %p41 = por %p39, %p40
    %p43 = scmp.ne.s32.totalorder %s26, %s42
    %p44 = scmp.eq.s32.totalorder %s18, 0
    %p45 = por %p43, %p44
    %s47 = sadd.s32 %s46, 1
    %p50 = scmp.eq.s32.totalorder %s12, 7
    %p51 = scmp.ne.s32.totalorder %s46, %s48
    %p52 = scmp.eq.s32.totalorder %s12, 0
    %p53 = por %p51, %p52
    %p54 = scmp.ne.s32.totalorder %s46, %s48
    %p55 = scmp.eq.s32.totalorder %s17, 7
    %p56 = por %p54, %p55
    %p57 = scmp.ne.s32.totalorder %s48, %s49
    %p58 = scmp.eq.s32.totalorder %s17, 0
    %p59 = por %p57, %p58
    %p60 = scmp.ne.s32.totalorder %s48, %s49
    %p61 = scmp.eq.s32.totalorder %s18, 7
    %p62 = por %p60, %p61
    %p64 = scmp.ne.s32.totalorder %s49, %s63
    %p65 = scmp.eq.s32.totalorder %s18, 0
    %p66 = por %p64, %p65
    %s68 = sadd.s32 %s67, 1
    %p71 = scmp.eq.s32.totalorder %s12, 7
    %p72 = scmp.ne.s32.totalorder %s67, %s69
    %p73 = scmp.eq.s32.totalorder %s12, 0
    %p74 = por %p72, %p73
    %p75 = scmp.ne.s32.totalorder %s67, %s69
    %p76 = scmp.eq.s32.totalorder %s17, 7
    %p77 = por %p75, %p76
    %p78 = scmp.ne.s32.totalorder %s69, %s70
    %p79 = scmp.eq.s32.totalorder %s17, 0
    %p80 = por %p78, %p79
    %p81 = scmp.ne.s32.totalorder %s69, %s70
    %p82 = scmp.eq.s32.totalorder %s18, 7
    %p83 = por %p81, %p82
    %p85 = scmp.ne.s32.totalorder %s70, %s84
    %p86 = scmp.eq.s32.totalorder %s18, 0
    %p87 = por %p85, %p86
    %s88 = ssub.s32 %s12, %s19
    %p89 = scmp.eq.s32.totalorder %s88, 0
    %s91 = sadd.s32 %s90, 1
    %s92 = scalar_select %p89, %s90, %s91
    %p95 = pneg %p89
    %p96 = scmp.eq.s32.totalorder %s12, 7
    %p97 = por %p95, %p96
    %p98 = scmp.ne.s32.totalorder %s90, %s93
    %p99 = scmp.eq.s32.totalorder %s12, 0
    %p100 = por %p98, %p99
    %p101 = scmp.ne.s32.totalorder %s90, %s93
    %p102 = scmp.eq.s32.totalorder %s17, 7
    %p103 = por %p101, %p102
    %p104 = scmp.ne.s32.totalorder %s93, %s94
    %p105 = scmp.eq.s32.totalorder %s17, 0
    %p106 = por %p104, %p105
    %p107 = scmp.ne.s32.totalorder %s93, %s94
    %p108 = scmp.eq.s32.totalorder %s18, 7
    %p109 = por %p107, %p108
    %p111 = scmp.ne.s32.totalorder %s94, %s110
    %p112 = scmp.eq.s32.totalorder %s18, 0
    %p113 = por %p111, %p112
    %s114 = ssub.s32 %s12, %s19
    %p115 = scmp.eq.s32.totalorder %s114, 0
    %s117 = sadd.s32 %s116, 1
    %s118 = scalar_select %p115, %s116, %s117
    %p121 = pneg %p115
    %p122 = scmp.eq.s32.totalorder %s12, 7
    %p123 = por %p121, %p122
    %p124 = scmp.ne.s32.totalorder %s116, %s119
    %p125 = scmp.eq.s32.totalorder %s12, 0
    %p126 = por %p124, %p125
    %p127 = scmp.ne.s32.totalorder %s116, %s119
    %p128 = scmp.eq.s32.totalorder %s17, 7
    %p129 = por %p127, %p128
    %p130 = scmp.ne.s32.totalorder %s119, %s120
    %p131 = scmp.eq.s32.totalorder %s17, 0
    %p132 = por %p130, %p131
    %p133 = scmp.ne.s32.totalorder %s119, %s120
    %p134 = scmp.eq.s32.totalorder %s18, 7
    %p135 = por %p133, %p134
    %p137 = scmp.ne.s32.totalorder %s120, %s136
    %p138 = scmp.eq.s32.totalorder %s18, 0
    %p139 = por %p137, %p138
    %s140 = ssub.s32 %s12, %s19
    %p141 = scmp.eq.s32.totalorder %s140, 0
    %s143 = sadd.s32 %s142, 1
    %s144 = scalar_select %p141, %s142, %s143
    %p147 = pneg %p141
    %p148 = scmp.eq.s32.totalorder %s12, 7
    %p149 = por %p147, %p148
    %p150 = scmp.ne.s32.totalorder %s142, %s145
    %p151 = scmp.eq.s32.totalorder %s12, 0
    %p152 = por %p150, %p151
    %p153 = scmp.ne.s32.totalorder %s142, %s145
    %p154 = scmp.eq.s32.totalorder %s17, 7
    %p155 = por %p153, %p154
    %p156 = scmp.ne.s32.totalorder %s145, %s146
    %p157 = scmp.eq.s32.totalorder %s17, 0
    %p158 = por %p156, %p157
    %p159 = scmp.ne.s32.totalorder %s145, %s146
    %p160 = scmp.eq.s32.totalorder %s18, 7
    %p161 = por %p159, %p160
    %p163 = scmp.ne.s32.totalorder %s146, %s162
    %p164 = scmp.eq.s32.totalorder %s18, 0
    %p165 = por %p163, %p164
    %p166 = scmp.le.s32.totalorder 1, %s12
    %p167 = scmp.lt.s32.totalorder %s12, 9
    %p168 = pnand %p166, %p167
    %p169 = pneg %p168
    // Predicated region
    $region9: #{simple_convnet_forward.5} parent=5 // pred_check
      _
    $region10: #{simple_convnet_forward.5} parent=5 // pred_check_branch
      %171 = sbr.rel (%p168) target = $region12
    $region11: #{simple_convnet_forward.5} parent=5 // pred_region
      %s172 = ssub.s32 %s12, 1
      // Predicated region
      $region13: #{simple_convnet_forward.5} parent=11 // pred_check
        %p173 = pneg %p59
      $region14: #{simple_convnet_forward.5} parent=11 // pred_check_branch
        %175 = sbr.rel (%p173) target = $region16
      $region15: #{simple_convnet_forward.5} parent=11 // pred_region
        _
      $region16: #{simple_convnet_forward.5} parent=11 // pred_fallthru
        _
      // Predicated region
      $region17: #{simple_convnet_forward.5} parent=11 // pred_check
        %p176 = pneg %p80
      $region18: #{simple_convnet_forward.5} parent=11 // pred_check_branch
        %178 = sbr.rel (%p176) target = $region20
      $region19: #{simple_convnet_forward.5} parent=11 // pred_region
        _
      $region20: #{simple_convnet_forward.5} parent=11 // pred_fallthru
        _
    $region12: #{simple_convnet_forward.5} parent=5 // pred_fallthru
      _
    %p179 = scmp.lt.s32.totalorder %s12, 8
    // Predicated region
    $region21: #{simple_convnet_forward.5} parent=5 // pred_check
      %p180 = pneg %p179
    $region22: #{simple_convnet_forward.5} parent=5 // pred_check_branch
      %182 = sbr.rel (%p180) target = $region24
    $region23: #{simple_convnet_forward.5} parent=5 // pred_region
      // Predicated region
      $region25: #{simple_convnet_forward.5} parent=23 // pred_check
        %p183 = pneg %p32
      $region26: #{simple_convnet_forward.5} parent=23 // pred_check_branch
        %185 = sbr.rel (%p183) target = $region28
      $region27: #{simple_convnet_forward.5} parent=23 // pred_region
        %s186 = smul.u32 128, %s12
        %p187 = scmp.lt.s32.totalorder %s186, 1023
        %s188 = scalar_select %p187, %s186, 1023
        %s189 = smul.addr %s188, 4
        %s190 = scalar_lea.vmem %s0, %s189
        %s191 = smul.u32 128, %s12
      $region28: #{simple_convnet_forward.5} parent=23 // pred_fallthru
        _
    $region24: #{simple_convnet_forward.5} parent=5 // pred_fallthru
      _
    %p192 = scmp.le.s32.totalorder 1, %s12
    %p193 = scmp.lt.s32.totalorder %s12, 9
    %p194 = pnand %p192, %p193
    %p195 = pneg %p194
    // Predicated region
    $region29: #{simple_convnet_forward.5} parent=5 // pred_check
      _
    $region30: #{simple_convnet_forward.5} parent=5 // pred_check_branch
      %197 = sbr.rel (%p194) target = $region32
    $region31: #{simple_convnet_forward.5} parent=5 // pred_region
      %s198 = ssub.s32 %s12, 1
      %s199 = smul.u32 128, %s17
      %p200 = scmp.lt.s32.totalorder %s199, 1023
      %s201 = scalar_select %p200, %s199, 1023
      %s202 = smul.addr %s201, 4
      %s203 = scalar_lea.vmem %s0, %s202
      %p204 = pneg %p38
      %p205 = pneg %p35
      %p206 = pneg %p59
      %p207 = pneg %p56
      %p208 = pneg %p80
      %p209 = pneg %p77
      %p210 = pneg %p106
      %p211 = pneg %p103
      %s212 = smul.u32 128, %s17
      %p213 = scmp.lt.s32.totalorder %s212, 1023
      %s214 = scalar_select %p213, %s212, 1023
      %s215 = smul.addr %s214, 8
      %s216 = scalar_lea.vmem %s3, %s215
      %p217 = pneg %p132
      %p218 = pneg %p129
      %p219 = scmp.lt.s32.totalorder %s17, 7
      %s220 = scalar_select %p219, %s17, 7
      %s221 = scalar_lea.vmem %s4, %s220
      %p222 = pneg %p158
      %p223 = pneg %p155
      %p224 = scmp.lt.s32.totalorder %s17, 7
      %s225 = scalar_select %p224, %s17, 7
      %s226 = scalar_lea.vmem %s5, %s225
      %s227 = smul.u32 128, %s17
      %p228 = scmp.lt.s32.totalorder %s227, 1023
      %s229 = scalar_select %p228, %s227, 1023
      %s230 = smul.addr %s229, 4
      %s231 = scalar_lea.vmem %s0, %s230
      %s232 = smul.u32 128, %s17
      %s233 = smul.u32 128, %s17
      %p234 = scmp.lt.s32.totalorder %s233, 1023
      %s235 = scalar_select %p234, %s233, 1023
      %s236 = smul.addr %s235, 8
      %s237 = scalar_lea.vmem %s3, %s236
      %s238 = smul.u32 128, %s17
      %p239 = scmp.lt.s32.totalorder %s17, 7
      %s240 = scalar_select %p239, %s17, 7
      %s241 = scalar_lea.vmem %s4, %s240
      %p242 = scmp.lt.s32.totalorder %s17, 7
      %s243 = scalar_select %p242, %s17, 7
      %s244 = scalar_lea.vmem %s5, %s243
      %v246 = vld [vmem:[%s231] sm:$0xf]
      %v247 = vld [vmem:[%s231 + $0x4] sm:$0xf]
      %v248 = vld [vmem:[%s231 + $0x8] sm:$0xf]
      %v249 = vld [vmem:[%s231 + $0xc] sm:$0xf]
      %v250 = vld [vmem:[%s231 + $0x10] sm:$0xf]
      %v251 = vld [vmem:[%s231 + $0x14] sm:$0xf]
      %v252 = vld [vmem:[%s231 + $0x18] sm:$0xf]
      %v253 = vld [vmem:[%s231 + $0x1c] sm:$0xf]
      %v254 = vld [vmem:[%s231 + $0x20] sm:$0xf]
      %v255 = vld [vmem:[%s231 + $0x24] sm:$0xf]
      %v256 = vld [vmem:[%s231 + $0x28] sm:$0xf]
      %v257 = vld [vmem:[%s231 + $0x2c] sm:$0xf]
      %v258 = vld [vmem:[%s231 + $0x30] sm:$0xf]
      %v259 = vld [vmem:[%s231 + $0x34] sm:$0xf]
      %v260 = vld [vmem:[%s231 + $0x38] sm:$0xf]
      %v261 = vld [vmem:[%s231 + $0x3c] sm:$0xf]
      %v262 = vld [vmem:[%s231 + $0x40] sm:$0xf]
      %v263 = vld [vmem:[%s231 + $0x44] sm:$0xf]
      %v264 = vld [vmem:[%s231 + $0x48] sm:$0xf]
      %v265 = vld [vmem:[%s231 + $0x4c] sm:$0xf]
      %v266 = vld [vmem:[%s231 + $0x50] sm:$0xf]
      %v267 = vld [vmem:[%s231 + $0x54] sm:$0xf]
      %v268 = vld [vmem:[%s231 + $0x58] sm:$0xf]
      %v269 = vld [vmem:[%s231 + $0x5c] sm:$0xf]
      %v270 = vld [vmem:[%s231 + $0x60] sm:$0xf]
      %v271 = vld [vmem:[%s231 + $0x64] sm:$0xf]
      %v272 = vld [vmem:[%s231 + $0x68] sm:$0xf]
      %v273 = vld [vmem:[%s231 + $0x6c] sm:$0xf]
      %v274 = vld [vmem:[%s231 + $0x70] sm:$0xf]
      %v275 = vld [vmem:[%s231 + $0x74] sm:$0xf]
      %v276 = vld [vmem:[%s231 + $0x78] sm:$0xf]
      %v277 = vld [vmem:[%s231 + $0x7c] sm:$0xf]
      %v278 = vld [vmem:[%s231 + $0x80] sm:$0xf]
      %v279 = vld [vmem:[%s231 + $0x84] sm:$0xf]
      %v280 = vld [vmem:[%s231 + $0x88] sm:$0xf]
      %v281 = vld [vmem:[%s231 + $0x8c] sm:$0xf]
      %v282 = vld [vmem:[%s231 + $0x90] sm:$0xf]
      %v283 = vld [vmem:[%s231 + $0x94] sm:$0xf]
      %v284 = vld [vmem:[%s231 + $0x98] sm:$0xf]
      %v285 = vld [vmem:[%s231 + $0x9c] sm:$0xf]
      %v286 = vld [vmem:[%s231 + $0xa0] sm:$0xf]
      %v287 = vld [vmem:[%s231 + $0xa4] sm:$0xf]
      %v288 = vld [vmem:[%s231 + $0xa8] sm:$0xf]
      %v289 = vld [vmem:[%s231 + $0xac] sm:$0xf]
      %v290 = vld [vmem:[%s231 + $0xb0] sm:$0xf]
      %v291 = vld [vmem:[%s231 + $0xb4] sm:$0xf]
      %v292 = vld [vmem:[%s231 + $0xb8] sm:$0xf]
      %v293 = vld [vmem:[%s231 + $0xbc] sm:$0xf]
      %v294 = vld [vmem:[%s231 + $0xc0] sm:$0xf]
      %v295 = vld [vmem:[%s231 + $0xc4] sm:$0xf]
      %v296 = vld [vmem:[%s231 + $0xc8] sm:$0xf]
      %v297 = vld [vmem:[%s231 + $0xcc] sm:$0xf]
      %v298 = vld [vmem:[%s231 + $0xd0] sm:$0xf]
      %v299 = vld [vmem:[%s231 + $0xd4] sm:$0xf]
      %v300 = vld [vmem:[%s231 + $0xd8] sm:$0xf]
      %v301 = vld [vmem:[%s231 + $0xdc] sm:$0xf]
      %v302 = vld [vmem:[%s231 + $0xe0] sm:$0xf]
      %v303 = vld [vmem:[%s231 + $0xe4] sm:$0xf]
      %v304 = vld [vmem:[%s231 + $0xe8] sm:$0xf]
      %v305 = vld [vmem:[%s231 + $0xec] sm:$0xf]
      %v306 = vld [vmem:[%s231 + $0xf0] sm:$0xf]
      %v307 = vld [vmem:[%s231 + $0xf4] sm:$0xf]
      %v308 = vld [vmem:[%s231 + $0xf8] sm:$0xf]
      %v309 = vld [vmem:[%s231 + $0xfc] sm:$0xf]
      %v310 = vld [vmem:[%s231 + $0x100] sm:$0xf]
      %v311 = vld [vmem:[%s231 + $0x104] sm:$0xf]
      %v312 = vld [vmem:[%s231 + $0x108] sm:$0xf]
      %v313 = vld [vmem:[%s231 + $0x10c] sm:$0xf]
      %v314 = vld [vmem:[%s231 + $0x110] sm:$0xf]
      %v315 = vld [vmem:[%s231 + $0x114] sm:$0xf]
      %v316 = vld [vmem:[%s231 + $0x118] sm:$0xf]
      %v317 = vld [vmem:[%s231 + $0x11c] sm:$0xf]
      %v318 = vld [vmem:[%s231 + $0x120] sm:$0xf]
      %v319 = vld [vmem:[%s231 + $0x124] sm:$0xf]
      %v320 = vld [vmem:[%s231 + $0x128] sm:$0xf]
      %v321 = vld [vmem:[%s231 + $0x12c] sm:$0xf]
      %v322 = vld [vmem:[%s231 + $0x130] sm:$0xf]
      %v323 = vld [vmem:[%s231 + $0x134] sm:$0xf]
      %v324 = vld [vmem:[%s231 + $0x138] sm:$0xf]
      %v325 = vld [vmem:[%s231 + $0x13c] sm:$0xf]
      %v326 = vld [vmem:[%s231 + $0x140] sm:$0xf]
      %v327 = vld [vmem:[%s231 + $0x144] sm:$0xf]
      %v328 = vld [vmem:[%s231 + $0x148] sm:$0xf]
      %v329 = vld [vmem:[%s231 + $0x14c] sm:$0xf]
      %v330 = vld [vmem:[%s231 + $0x150] sm:$0xf]
      %v331 = vld [vmem:[%s231 + $0x154] sm:$0xf]
      %v332 = vld [vmem:[%s231 + $0x158] sm:$0xf]
      %v333 = vld [vmem:[%s231 + $0x15c] sm:$0xf]
      %v334 = vld [vmem:[%s231 + $0x160] sm:$0xf]
      %v335 = vld [vmem:[%s231 + $0x164] sm:$0xf]
      %v336 = vld [vmem:[%s231 + $0x168] sm:$0xf]
      %v337 = vld [vmem:[%s231 + $0x16c] sm:$0xf]
      %v338 = vld [vmem:[%s231 + $0x170] sm:$0xf]
      %v339 = vld [vmem:[%s231 + $0x174] sm:$0xf]
      %v340 = vld [vmem:[%s231 + $0x178] sm:$0xf]
      %v341 = vld [vmem:[%s231 + $0x17c] sm:$0xf]
      %v342 = vld [vmem:[%s231 + $0x180] sm:$0xf]
      %v343 = vld [vmem:[%s231 + $0x184] sm:$0xf]
      %v344 = vld [vmem:[%s231 + $0x188] sm:$0xf]
      %v345 = vld [vmem:[%s231 + $0x18c] sm:$0xf]
      %v346 = vld [vmem:[%s231 + $0x190] sm:$0xf]
      %v347 = vld [vmem:[%s231 + $0x194] sm:$0xf]
      %v348 = vld [vmem:[%s231 + $0x198] sm:$0xf]
      %v349 = vld [vmem:[%s231 + $0x19c] sm:$0xf]
      %v350 = vld [vmem:[%s231 + $0x1a0] sm:$0xf]
      %v351 = vld [vmem:[%s231 + $0x1a4] sm:$0xf]
      %v352 = vld [vmem:[%s231 + $0x1a8] sm:$0xf]
      %v353 = vld [vmem:[%s231 + $0x1ac] sm:$0xf]
      %v354 = vld [vmem:[%s231 + $0x1b0] sm:$0xf]
      %v355 = vld [vmem:[%s231 + $0x1b4] sm:$0xf]
      %v356 = vld [vmem:[%s231 + $0x1b8] sm:$0xf]
      %v357 = vld [vmem:[%s231 + $0x1bc] sm:$0xf]
      %v358 = vld [vmem:[%s231 + $0x1c0] sm:$0xf]
      %v359 = vld [vmem:[%s231 + $0x1c4] sm:$0xf]
      %v360 = vld [vmem:[%s231 + $0x1c8] sm:$0xf]
      %v361 = vld [vmem:[%s231 + $0x1cc] sm:$0xf]
      %v362 = vld [vmem:[%s231 + $0x1d0] sm:$0xf]
      %v363 = vld [vmem:[%s231 + $0x1d4] sm:$0xf]
      %v364 = vld [vmem:[%s231 + $0x1d8] sm:$0xf]
      %v365 = vld [vmem:[%s231 + $0x1dc] sm:$0xf]
      %v366 = vld [vmem:[%s231 + $0x1e0] sm:$0xf]
      %v367 = vld [vmem:[%s231 + $0x1e4] sm:$0xf]
      %v368 = vld [vmem:[%s231 + $0x1e8] sm:$0xf]
      %v369 = vld [vmem:[%s231 + $0x1ec] sm:$0xf]
      %v370 = vld [vmem:[%s231 + $0x1f0] sm:$0xf]
      %v371 = vld [vmem:[%s231 + $0x1f4] sm:$0xf]
      %v372 = vld [vmem:[%s231 + $0x1f8] sm:$0xf]
      %v373 = vld [vmem:[%s231 + $0x1fc] sm:$0xf]
      %v374 = vld [vmem:[%s1] sm:$0xf]
      %v375 = vld [vmem:[%s1 + $0x4] sm:$0xf]
      %v376 = vld [vmem:[%s1 + $0x8] sm:$0xf]
      %v377 = vld [vmem:[%s1 + $0xc] sm:$0x3]
      %v378 = vld [vmem:[%s2] sm:$0x1]
      %v380 = vperm.slane %v378, 0
      %v510 = vunpack.c.l.b16 %v246
      %v511 = vunpack.c.l.b16 %v247
      %v512 = vunpack.c.l.b16 %v248
      %v513 = vunpack.c.l.b16 %v249
      %v514 = vunpack.c.l.b16 %v250
      %v515 = vunpack.c.l.b16 %v251
      %v516 = vunpack.c.l.b16 %v252
      %v517 = vunpack.c.l.b16 %v253
      %v518 = vunpack.c.l.b16 %v254
      %v519 = vunpack.c.l.b16 %v255
      %v520 = vunpack.c.l.b16 %v256
      %v521 = vunpack.c.l.b16 %v257
      %v522 = vunpack.c.l.b16 %v258
      %v523 = vunpack.c.l.b16 %v259
      %v524 = vunpack.c.l.b16 %v260
      %v525 = vunpack.c.l.b16 %v261
      %v526 = vunpack.c.l.b16 %v262
      %v527 = vunpack.c.l.b16 %v263
      %v528 = vunpack.c.l.b16 %v264
      %v529 = vunpack.c.l.b16 %v265
      %v530 = vunpack.c.l.b16 %v266
      %v531 = vunpack.c.l.b16 %v267
      %v532 = vunpack.c.l.b16 %v268
      %v533 = vunpack.c.l.b16 %v269
      %v534 = vunpack.c.l.b16 %v270
      %v535 = vunpack.c.l.b16 %v271
      %v536 = vunpack.c.l.b16 %v272
      %v537 = vunpack.c.l.b16 %v273
      %v538 = vunpack.c.l.b16 %v274
      %v539 = vunpack.c.l.b16 %v275
      %v540 = vunpack.c.l.b16 %v276
      %v541 = vunpack.c.l.b16 %v277
      %v542 = vunpack.c.l.b16 %v278
      %v543 = vunpack.c.l.b16 %v279
      %v544 = vunpack.c.l.b16 %v280
      %v545 = vunpack.c.l.b16 %v281
      %v546 = vunpack.c.l.b16 %v282
      %v547 = vunpack.c.l.b16 %v283
      %v548 = vunpack.c.l.b16 %v284
      %v549 = vunpack.c.l.b16 %v285
      %v550 = vunpack.c.l.b16 %v286
      %v551 = vunpack.c.l.b16 %v287
      %v552 = vunpack.c.l.b16 %v288
      %v553 = vunpack.c.l.b16 %v289
      %v554 = vunpack.c.l.b16 %v290
      %v555 = vunpack.c.l.b16 %v291
      %v556 = vunpack.c.l.b16 %v292
      %v557 = vunpack.c.l.b16 %v293
      %v558 = vunpack.c.l.b16 %v294
      %v559 = vunpack.c.l.b16 %v295
      %v560 = vunpack.c.l.b16 %v296
      %v561 = vunpack.c.l.b16 %v297
      %v562 = vunpack.c.l.b16 %v298
      %v563 = vunpack.c.l.b16 %v299
      %v564 = vunpack.c.l.b16 %v300
      %v565 = vunpack.c.l.b16 %v301
      %v566 = vunpack.c.l.b16 %v302
      %v567 = vunpack.c.l.b16 %v303
      %v568 = vunpack.c.l.b16 %v304
      %v569 = vunpack.c.l.b16 %v305
      %v570 = vunpack.c.l.b16 %v306
      %v571 = vunpack.c.l.b16 %v307
      %v572 = vunpack.c.l.b16 %v308
      %v573 = vunpack.c.l.b16 %v309
      %v574 = vunpack.c.l.b16 %v310
      %v575 = vunpack.c.l.b16 %v311
      %v576 = vunpack.c.l.b16 %v312
      %v577 = vunpack.c.l.b16 %v313
      %v578 = vunpack.c.l.b16 %v314
      %v579 = vunpack.c.l.b16 %v315
      %v580 = vunpack.c.l.b16 %v316
      %v581 = vunpack.c.l.b16 %v317
      %v582 = vunpack.c.l.b16 %v318
      %v583 = vunpack.c.l.b16 %v319
      %v584 = vunpack.c.l.b16 %v320
      %v585 = vunpack.c.l.b16 %v321
      %v586 = vunpack.c.l.b16 %v322
      %v587 = vunpack.c.l.b16 %v323
      %v588 = vunpack.c.l.b16 %v324
      %v589 = vunpack.c.l.b16 %v325
      %v590 = vunpack.c.l.b16 %v326
      %v591 = vunpack.c.l.b16 %v327
      %v592 = vunpack.c.l.b16 %v328
      %v593 = vunpack.c.l.b16 %v329
      %v594 = vunpack.c.l.b16 %v330
      %v595 = vunpack.c.l.b16 %v331
      %v596 = vunpack.c.l.b16 %v332
      %v597 = vunpack.c.l.b16 %v333
      %v598 = vunpack.c.l.b16 %v334
      %v599 = vunpack.c.l.b16 %v335
      %v600 = vunpack.c.l.b16 %v336
      %v601 = vunpack.c.l.b16 %v337
      %v602 = vunpack.c.l.b16 %v338
      %v603 = vunpack.c.l.b16 %v339
      %v604 = vunpack.c.l.b16 %v340
      %v605 = vunpack.c.l.b16 %v341
      %v606 = vunpack.c.l.b16 %v342
      %v607 = vunpack.c.l.b16 %v343
      %v608 = vunpack.c.l.b16 %v344
      %v609 = vunpack.c.l.b16 %v345
      %v610 = vunpack.c.l.b16 %v346
      %v611 = vunpack.c.l.b16 %v347
      %v612 = vunpack.c.l.b16 %v348
      %v613 = vunpack.c.l.b16 %v349
      %v614 = vunpack.c.l.b16 %v350
      %v615 = vunpack.c.l.b16 %v351
      %v616 = vunpack.c.l.b16 %v352
      %v617 = vunpack.c.l.b16 %v353
      %v618 = vunpack.c.l.b16 %v354
      %v619 = vunpack.c.l.b16 %v355
      %v620 = vunpack.c.l.b16 %v356
      %v621 = vunpack.c.l.b16 %v357
      %v622 = vunpack.c.l.b16 %v358
      %v623 = vunpack.c.l.b16 %v359
      %v624 = vunpack.c.l.b16 %v360
      %v625 = vunpack.c.l.b16 %v361
      %v626 = vunpack.c.l.b16 %v362
      %v627 = vunpack.c.l.b16 %v363
      %v628 = vunpack.c.l.b16 %v364
      %v629 = vunpack.c.l.b16 %v365
      %v630 = vunpack.c.l.b16 %v366
      %v631 = vunpack.c.l.b16 %v367
      %v632 = vunpack.c.l.b16 %v368
      %v633 = vunpack.c.l.b16 %v369
      %v634 = vunpack.c.l.b16 %v370
      %v635 = vunpack.c.l.b16 %v371
      %v636 = vunpack.c.l.b16 %v372
      %v637 = vunpack.c.l.b16 %v373
      %v638 = vpack.c.b16 %v511, %v510
      %v639 = vpack.c.b16 %v513, %v512
      %v640 = vpack.c.b16 %v515, %v514
      %v641 = vpack.c.b16 %v517, %v516
      %v642 = vpack.c.b16 %v519, %v518
      %v643 = vpack.c.b16 %v521, %v520
      %v644 = vpack.c.b16 %v523, %v522
      %v645 = vpack.c.b16 %v525, %v524
      %v646 = vpack.c.b16 %v527, %v526
      %v647 = vpack.c.b16 %v529, %v528
      %v648 = vpack.c.b16 %v531, %v530
      %v649 = vpack.c.b16 %v533, %v532
      %v650 = vpack.c.b16 %v535, %v534
      %v651 = vpack.c.b16 %v537, %v536
      %v652 = vpack.c.b16 %v539, %v538
      %v653 = vpack.c.b16 %v541, %v540
      %v654 = vpack.c.b16 %v543, %v542
      %v655 = vpack.c.b16 %v545, %v544
      %v656 = vpack.c.b16 %v547, %v546
      %v657 = vpack.c.b16 %v549, %v548
      %v658 = vpack.c.b16 %v551, %v550
      %v659 = vpack.c.b16 %v553, %v552
      %v660 = vpack.c.b16 %v555, %v554
      %v661 = vpack.c.b16 %v557, %v556
      %v662 = vpack.c.b16 %v559, %v558
      %v663 = vpack.c.b16 %v561, %v560
      %v664 = vpack.c.b16 %v563, %v562
      %v665 = vpack.c.b16 %v565, %v564
      %v666 = vpack.c.b16 %v567, %v566
      %v667 = vpack.c.b16 %v569, %v568
      %v668 = vpack.c.b16 %v571, %v570
      %v669 = vpack.c.b16 %v573, %v572
      %v670 = vpack.c.b16 %v575, %v574
      %v671 = vpack.c.b16 %v577, %v576
      %v672 = vpack.c.b16 %v579, %v578
      %v673 = vpack.c.b16 %v581, %v580
      %v674 = vpack.c.b16 %v583, %v582
      %v675 = vpack.c.b16 %v585, %v584
      %v676 = vpack.c.b16 %v587, %v586
      %v677 = vpack.c.b16 %v589, %v588
      %v678 = vpack.c.b16 %v591, %v590
      %v679 = vpack.c.b16 %v593, %v592
      %v680 = vpack.c.b16 %v595, %v594
      %v681 = vpack.c.b16 %v597, %v596
      %v682 = vpack.c.b16 %v599, %v598
      %v683 = vpack.c.b16 %v601, %v600
      %v684 = vpack.c.b16 %v603, %v602
      %v685 = vpack.c.b16 %v605, %v604
      %v686 = vpack.c.b16 %v607, %v606
      %v687 = vpack.c.b16 %v609, %v608
      %v688 = vpack.c.b16 %v611, %v610
      %v689 = vpack.c.b16 %v613, %v612
      %v690 = vpack.c.b16 %v615, %v614
      %v691 = vpack.c.b16 %v617, %v616
      %v692 = vpack.c.b16 %v619, %v618
      %v693 = vpack.c.b16 %v621, %v620
      %v694 = vpack.c.b16 %v623, %v622
      %v695 = vpack.c.b16 %v625, %v624
      %v696 = vpack.c.b16 %v627, %v626
      %v697 = vpack.c.b16 %v629, %v628
      %v698 = vpack.c.b16 %v631, %v630
      %v699 = vpack.c.b16 %v633, %v632
      %v700 = vpack.c.b16 %v635, %v634
      %v701 = vpack.c.b16 %v637, %v636
      %v706 = vunpack.c.l.b16 %v374
      %v707 = vunpack.c.l.b16 %v375
      %v708 = vunpack.c.l.b16 %v376
      %v709 = vunpack.c.l.b16 %v377
      %v710 = vpack.c.b16 %v707, %v706
      %v711 = vpack.c.b16 %v709, %v708
      %vm713 = vcmask 220160
      %v715 = vsel %vm713, %v638, 0
      %v718 = vsel %vm713, %v639, 0
      %v721 = vsel %vm713, %v640, 0
      %v724 = vsel %vm713, %v641, 0
      %v727 = vsel %vm713, %v642, 0
      %v730 = vsel %vm713, %v643, 0
      %v733 = vsel %vm713, %v644, 0
      %v736 = vsel %vm713, %v645, 0
      %v739 = vsel %vm713, %v646, 0
      %v742 = vsel %vm713, %v647, 0
      %v745 = vsel %vm713, %v648, 0
      %v748 = vsel %vm713, %v649, 0
      %v751 = vsel %vm713, %v650, 0
      %v754 = vsel %vm713, %v651, 0
      %v757 = vsel %vm713, %v652, 0
      %v760 = vsel %vm713, %v653, 0
      %v763 = vsel %vm713, %v654, 0
      %v766 = vsel %vm713, %v655, 0
      %v769 = vsel %vm713, %v656, 0
      %v772 = vsel %vm713, %v657, 0
      %v775 = vsel %vm713, %v658, 0
      %v778 = vsel %vm713, %v659, 0
      %v781 = vsel %vm713, %v660, 0
      %v784 = vsel %vm713, %v661, 0
      %v787 = vsel %vm713, %v662, 0
      %v790 = vsel %vm713, %v663, 0
      %v793 = vsel %vm713, %v664, 0
      %v796 = vsel %vm713, %v665, 0
      %v799 = vsel %vm713, %v666, 0
      %v802 = vsel %vm713, %v667, 0
      %v805 = vsel %vm713, %v668, 0
      %v808 = vsel %vm713, %v669, 0
      %v811 = vsel %vm713, %v670, 0
      %v814 = vsel %vm713, %v671, 0
      %v817 = vsel %vm713, %v672, 0
      %v820 = vsel %vm713, %v673, 0
      %v823 = vsel %vm713, %v674, 0
      %v826 = vsel %vm713, %v675, 0
      %v829 = vsel %vm713, %v676, 0
      %v832 = vsel %vm713, %v677, 0
      %v835 = vsel %vm713, %v678, 0
      %v838 = vsel %vm713, %v679, 0
      %v841 = vsel %vm713, %v680, 0
      %v844 = vsel %vm713, %v681, 0
      %v847 = vsel %vm713, %v682, 0
      %v850 = vsel %vm713, %v683, 0
      %v853 = vsel %vm713, %v684, 0
      %v856 = vsel %vm713, %v685, 0
      %v859 = vsel %vm713, %v686, 0
      %v862 = vsel %vm713, %v687, 0
      %v865 = vsel %vm713, %v688, 0
      %v868 = vsel %vm713, %v689, 0
      %v871 = vsel %vm713, %v690, 0
      %v874 = vsel %vm713, %v691, 0
      %v877 = vsel %vm713, %v692, 0
      %v880 = vsel %vm713, %v693, 0
      %v883 = vsel %vm713, %v694, 0
      %v886 = vsel %vm713, %v695, 0
      %v889 = vsel %vm713, %v696, 0
      %v892 = vsel %vm713, %v697, 0
      %v895 = vsel %vm713, %v698, 0
      %v898 = vsel %vm713, %v699, 0
      %v901 = vsel %vm713, %v700, 0
      %v904 = vsel %vm713, %v701, 0
      %vm906 = vcmask 1044480
      %vm907 = vcmask 1045504
      %v908 = vsel %vm906, 4294967295, 65535
      %v909 = vsel %vm907, %v908, 0
      %v911 = vand.u32 %v711, %v909
      %913 = vmatpush.bf16.msra.mxu0 0
      %914 = vmatpush.bf16.msra.mxu0 0
      %915 = vmatpush.bf16.msra.mxu0 0
      %916 = vmatpush.bf16.msra.mxu0 0
      %917 = vmatpush.bf16.msra.mxu0 0
      %918 = vmatpush.bf16.msra.mxu0 0
      %919 = vmatpush.bf16.msra.mxu0 %v911
      %920 = vmatpush.bf16.msra.mxu0 %v710
      %921 = vmatmul.bf16.gmra.mxu0 %v715
      %v922 = vpop.f32.mrf.mxu0
      %v923 = vadd.f32 %v380, %v922
      %v924 = vpop.f32.mrf.mxu0
      %v925 = vadd.f32 %v380, %v924
      %926 = vmatmul.bf16.gmra.mxu0 %v718
      %v927 = vpop.f32.mrf.mxu0
      %v928 = vadd.f32 %v380, %v927
      %v929 = vpop.f32.mrf.mxu0
      %v930 = vadd.f32 %v380, %v929
      %931 = vmatmul.bf16.gmra.mxu0 %v721
      %v932 = vpop.f32.mrf.mxu0
      %v933 = vadd.f32 %v380, %v932
      %v934 = vpop.f32.mrf.mxu0
      %v935 = vadd.f32 %v380, %v934
      %936 = vmatmul.bf16.gmra.mxu0 %v724
      %v937 = vpop.f32.mrf.mxu0
      %v938 = vadd.f32 %v380, %v937
      %v939 = vpop.f32.mrf.mxu0
      %v940 = vadd.f32 %v380, %v939
      %941 = vmatmul.bf16.gmra.mxu0 %v727
      %v942 = vpop.f32.mrf.mxu0
      %v943 = vadd.f32 %v380, %v942
      %v944 = vpop.f32.mrf.mxu0
      %v945 = vadd.f32 %v380, %v944
      %946 = vmatmul.bf16.gmra.mxu0 %v730
      %v947 = vpop.f32.mrf.mxu0
      %v948 = vadd.f32 %v380, %v947
      %v949 = vpop.f32.mrf.mxu0
      %v950 = vadd.f32 %v380, %v949
      %951 = vmatmul.bf16.gmra.mxu0 %v733
      %v952 = vpop.f32.mrf.mxu0
      %v953 = vadd.f32 %v380, %v952
      %v954 = vpop.f32.mrf.mxu0
      %v955 = vadd.f32 %v380, %v954
      %956 = vmatmul.bf16.gmra.mxu0 %v736
      %v957 = vpop.f32.mrf.mxu0
      %v958 = vadd.f32 %v380, %v957
      %v959 = vpop.f32.mrf.mxu0
      %v960 = vadd.f32 %v380, %v959
      %961 = vmatmul.bf16.gmra.mxu0 %v739
      %v962 = vpop.f32.mrf.mxu0
      %v963 = vadd.f32 %v380, %v962
      %v964 = vpop.f32.mrf.mxu0
      %v965 = vadd.f32 %v380, %v964
      %966 = vmatmul.bf16.gmra.mxu0 %v742
      %v967 = vpop.f32.mrf.mxu0
      %v968 = vadd.f32 %v380, %v967
      %v969 = vpop.f32.mrf.mxu0
      %v970 = vadd.f32 %v380, %v969
      %971 = vmatmul.bf16.gmra.mxu0 %v745
      %v972 = vpop.f32.mrf.mxu0
      %v973 = vadd.f32 %v380, %v972
      %v974 = vpop.f32.mrf.mxu0
      %v975 = vadd.f32 %v380, %v974
      %976 = vmatmul.bf16.gmra.mxu0 %v748
      %v977 = vpop.f32.mrf.mxu0
      %v978 = vadd.f32 %v380, %v977
      %v979 = vpop.f32.mrf.mxu0
      %v980 = vadd.f32 %v380, %v979
      %981 = vmatmul.bf16.gmra.mxu0 %v751
      %v982 = vpop.f32.mrf.mxu0
      %v983 = vadd.f32 %v380, %v982
      %v984 = vpop.f32.mrf.mxu0
      %v985 = vadd.f32 %v380, %v984
      %986 = vmatmul.bf16.gmra.mxu0 %v754
      %v987 = vpop.f32.mrf.mxu0
      %v988 = vadd.f32 %v380, %v987
      %v989 = vpop.f32.mrf.mxu0
      %v990 = vadd.f32 %v380, %v989
      %991 = vmatmul.bf16.gmra.mxu0 %v757
      %v992 = vpop.f32.mrf.mxu0
      %v993 = vadd.f32 %v380, %v992
      %v994 = vpop.f32.mrf.mxu0
      %v995 = vadd.f32 %v380, %v994
      %996 = vmatmul.bf16.gmra.mxu0 %v760
      %v997 = vpop.f32.mrf.mxu0
      %v998 = vadd.f32 %v380, %v997
      %v999 = vpop.f32.mrf.mxu0
      %v1000 = vadd.f32 %v380, %v999
      %1001 = vmatmul.bf16.gmra.mxu0 %v763
      %v1002 = vpop.f32.mrf.mxu0
      %v1003 = vadd.f32 %v380, %v1002
      %v1004 = vpop.f32.mrf.mxu0
      %v1005 = vadd.f32 %v380, %v1004
      %1006 = vmatmul.bf16.gmra.mxu0 %v766
      %v1007 = vpop.f32.mrf.mxu0
      %v1008 = vadd.f32 %v380, %v1007
      %v1009 = vpop.f32.mrf.mxu0
      %v1010 = vadd.f32 %v380, %v1009
      %1011 = vmatmul.bf16.gmra.mxu0 %v769
      %v1012 = vpop.f32.mrf.mxu0
      %v1013 = vadd.f32 %v380, %v1012
      %v1014 = vpop.f32.mrf.mxu0
      %v1015 = vadd.f32 %v380, %v1014
      %1016 = vmatmul.bf16.gmra.mxu0 %v772
      %v1017 = vpop.f32.mrf.mxu0
      %v1018 = vadd.f32 %v380, %v1017
      %v1019 = vpop.f32.mrf.mxu0
      %v1020 = vadd.f32 %v380, %v1019
      %1021 = vmatmul.bf16.gmra.mxu0 %v775
      %v1022 = vpop.f32.mrf.mxu0
      %v1023 = vadd.f32 %v380, %v1022
      %v1024 = vpop.f32.mrf.mxu0
      %v1025 = vadd.f32 %v380, %v1024
      %1026 = vmatmul.bf16.gmra.mxu0 %v778
      %v1027 = vpop.f32.mrf.mxu0
      %v1028 = vadd.f32 %v380, %v1027
      %v1029 = vpop.f32.mrf.mxu0
      %v1030 = vadd.f32 %v380, %v1029
      %1031 = vmatmul.bf16.gmra.mxu0 %v781
      %v1032 = vpop.f32.mrf.mxu0
      %v1033 = vadd.f32 %v380, %v1032
      %v1034 = vpop.f32.mrf.mxu0
      %v1035 = vadd.f32 %v380, %v1034
      %1036 = vmatmul.bf16.gmra.mxu0 %v784
      %v1037 = vpop.f32.mrf.mxu0
      %v1038 = vadd.f32 %v380, %v1037
      %v1039 = vpop.f32.mrf.mxu0
      %v1040 = vadd.f32 %v380, %v1039
      %1041 = vmatmul.bf16.gmra.mxu0 %v787
      %v1042 = vpop.f32.mrf.mxu0
      %v1043 = vadd.f32 %v380, %v1042
      %v1044 = vpop.f32.mrf.mxu0
      %v1045 = vadd.f32 %v380, %v1044
      %1046 = vmatmul.bf16.gmra.mxu0 %v790
      %v1047 = vpop.f32.mrf.mxu0
      %v1048 = vadd.f32 %v380, %v1047
      %v1049 = vpop.f32.mrf.mxu0
      %v1050 = vadd.f32 %v380, %v1049
      %1051 = vmatmul.bf16.gmra.mxu0 %v793
      %v1052 = vpop.f32.mrf.mxu0
      %v1053 = vadd.f32 %v380, %v1052
      %v1054 = vpop.f32.mrf.mxu0
      %v1055 = vadd.f32 %v380, %v1054
      %1056 = vmatmul.bf16.gmra.mxu0 %v796
      %v1057 = vpop.f32.mrf.mxu0
      %v1058 = vadd.f32 %v380, %v1057
      %v1059 = vpop.f32.mrf.mxu0
      %v1060 = vadd.f32 %v380, %v1059
      %1061 = vmatmul.bf16.gmra.mxu0 %v799
      %v1062 = vpop.f32.mrf.mxu0
      %v1063 = vadd.f32 %v380, %v1062
      %v1064 = vpop.f32.mrf.mxu0
      %v1065 = vadd.f32 %v380, %v1064
      %1066 = vmatmul.bf16.gmra.mxu0 %v802
      %v1067 = vpop.f32.mrf.mxu0
      %v1068 = vadd.f32 %v380, %v1067
      %v1069 = vpop.f32.mrf.mxu0
      %v1070 = vadd.f32 %v380, %v1069
      %1071 = vmatmul.bf16.gmra.mxu0 %v805
      %v1072 = vpop.f32.mrf.mxu0
      %v1073 = vadd.f32 %v380, %v1072
      %v1074 = vpop.f32.mrf.mxu0
      %v1075 = vadd.f32 %v380, %v1074
      %1076 = vmatmul.bf16.gmra.mxu0 %v808
      %v1077 = vpop.f32.mrf.mxu0
      %v1078 = vadd.f32 %v380, %v1077
      %v1079 = vpop.f32.mrf.mxu0
      %v1080 = vadd.f32 %v380, %v1079
      %1081 = vmatmul.bf16.gmra.mxu0 %v811
      %v1082 = vpop.f32.mrf.mxu0
      %v1083 = vadd.f32 %v380, %v1082
      %v1084 = vpop.f32.mrf.mxu0
      %v1085 = vadd.f32 %v380, %v1084
      %1086 = vmatmul.bf16.gmra.mxu0 %v814
      %v1087 = vpop.f32.mrf.mxu0
      %v1088 = vadd.f32 %v380, %v1087
      %v1089 = vpop.f32.mrf.mxu0
      %v1090 = vadd.f32 %v380, %v1089
      %1091 = vmatmul.bf16.gmra.mxu0 %v817
      %v1092 = vpop.f32.mrf.mxu0
      %v1093 = vadd.f32 %v380, %v1092
      %v1094 = vpop.f32.mrf.mxu0
      %v1095 = vadd.f32 %v380, %v1094
      %1096 = vmatmul.bf16.gmra.mxu0 %v820
      %v1097 = vpop.f32.mrf.mxu0
      %v1098 = vadd.f32 %v380, %v1097
      %v1099 = vpop.f32.mrf.mxu0
      %v1100 = vadd.f32 %v380, %v1099
      %1101 = vmatmul.bf16.gmra.mxu0 %v823
      %v1102 = vpop.f32.mrf.mxu0
      %v1103 = vadd.f32 %v380, %v1102
      %v1104 = vpop.f32.mrf.mxu0
      %v1105 = vadd.f32 %v380, %v1104
      %1106 = vmatmul.bf16.gmra.mxu0 %v826
      %v1107 = vpop.f32.mrf.mxu0
      %v1108 = vadd.f32 %v380, %v1107
      %v1109 = vpop.f32.mrf.mxu0
      %v1110 = vadd.f32 %v380, %v1109
      %1111 = vmatmul.bf16.gmra.mxu0 %v829
      %v1112 = vpop.f32.mrf.mxu0
      %v1113 = vadd.f32 %v380, %v1112
      %v1114 = vpop.f32.mrf.mxu0
      %v1115 = vadd.f32 %v380, %v1114
      %1116 = vmatmul.bf16.gmra.mxu0 %v832
      %v1117 = vpop.f32.mrf.mxu0
      %v1118 = vadd.f32 %v380, %v1117
      %v1119 = vpop.f32.mrf.mxu0
      %v1120 = vadd.f32 %v380, %v1119
      %1121 = vmatmul.bf16.gmra.mxu0 %v835
      %v1122 = vpop.f32.mrf.mxu0
      %v1123 = vadd.f32 %v380, %v1122
      %v1124 = vpop.f32.mrf.mxu0
      %v1125 = vadd.f32 %v380, %v1124
      %1126 = vmatmul.bf16.gmra.mxu0 %v838
      %v1127 = vpop.f32.mrf.mxu0
      %v1128 = vadd.f32 %v380, %v1127
      %v1129 = vpop.f32.mrf.mxu0
      %v1130 = vadd.f32 %v380, %v1129
      %1131 = vmatmul.bf16.gmra.mxu0 %v841
      %v1132 = vpop.f32.mrf.mxu0
      %v1133 = vadd.f32 %v380, %v1132
      %v1134 = vpop.f32.mrf.mxu0
      %v1135 = vadd.f32 %v380, %v1134
      %1136 = vmatmul.bf16.gmra.mxu0 %v844
      %v1137 = vpop.f32.mrf.mxu0
      %v1138 = vadd.f32 %v380, %v1137
      %v1139 = vpop.f32.mrf.mxu0
      %v1140 = vadd.f32 %v380, %v1139
      %1141 = vmatmul.bf16.gmra.mxu0 %v847
      %v1142 = vpop.f32.mrf.mxu0
      %v1143 = vadd.f32 %v380, %v1142
      %v1144 = vpop.f32.mrf.mxu0
      %v1145 = vadd.f32 %v380, %v1144
      %1146 = vmatmul.bf16.gmra.mxu0 %v850
      %v1147 = vpop.f32.mrf.mxu0
      %v1148 = vadd.f32 %v380, %v1147
      %v1149 = vpop.f32.mrf.mxu0
      %v1150 = vadd.f32 %v380, %v1149
      %1151 = vmatmul.bf16.gmra.mxu0 %v853
      %v1152 = vpop.f32.mrf.mxu0
      %v1153 = vadd.f32 %v380, %v1152
      %v1154 = vpop.f32.mrf.mxu0
      %v1155 = vadd.f32 %v380, %v1154
      %1156 = vmatmul.bf16.gmra.mxu0 %v856
      %v1157 = vpop.f32.mrf.mxu0
      %v1158 = vadd.f32 %v380, %v1157
      %v1159 = vpop.f32.mrf.mxu0
      %v1160 = vadd.f32 %v380, %v1159
      %1161 = vmatmul.bf16.gmra.mxu0 %v859
      %v1162 = vpop.f32.mrf.mxu0
      %v1163 = vadd.f32 %v380, %v1162
      %v1164 = vpop.f32.mrf.mxu0
      %v1165 = vadd.f32 %v380, %v1164
      %1166 = vmatmul.bf16.gmra.mxu0 %v862
      %v1167 = vpop.f32.mrf.mxu0
      %v1168 = vadd.f32 %v380, %v1167
      %v1169 = vpop.f32.mrf.mxu0
      %v1170 = vadd.f32 %v380, %v1169
      %1171 = vmatmul.bf16.gmra.mxu0 %v865
      %v1172 = vpop.f32.mrf.mxu0
      %v1173 = vadd.f32 %v380, %v1172
      %v1174 = vpop.f32.mrf.mxu0
      %v1175 = vadd.f32 %v380, %v1174
      %1176 = vmatmul.bf16.gmra.mxu0 %v868
      %v1177 = vpop.f32.mrf.mxu0
      %v1178 = vadd.f32 %v380, %v1177
      %v1179 = vpop.f32.mrf.mxu0
      %v1180 = vadd.f32 %v380, %v1179
      %1181 = vmatmul.bf16.gmra.mxu0 %v871
      %v1182 = vpop.f32.mrf.mxu0
      %v1183 = vadd.f32 %v380, %v1182
      %v1184 = vpop.f32.mrf.mxu0
      %v1185 = vadd.f32 %v380, %v1184
      %1186 = vmatmul.bf16.gmra.mxu0 %v874
      %v1187 = vpop.f32.mrf.mxu0
      %v1188 = vadd.f32 %v380, %v1187
      %v1189 = vpop.f32.mrf.mxu0
      %v1190 = vadd.f32 %v380, %v1189
      %1191 = vmatmul.bf16.gmra.mxu0 %v877
      %v1192 = vpop.f32.mrf.mxu0
      %v1193 = vadd.f32 %v380, %v1192
      %v1194 = vpop.f32.mrf.mxu0
      %v1195 = vadd.f32 %v380, %v1194
      %1196 = vmatmul.bf16.gmra.mxu0 %v880
      %v1197 = vpop.f32.mrf.mxu0
      %v1198 = vadd.f32 %v380, %v1197
      %v1199 = vpop.f32.mrf.mxu0
      %v1200 = vadd.f32 %v380, %v1199
      %1201 = vmatmul.bf16.gmra.mxu0 %v883
      %v1202 = vpop.f32.mrf.mxu0
      %v1203 = vadd.f32 %v380, %v1202
      %v1204 = vpop.f32.mrf.mxu0
      %v1205 = vadd.f32 %v380, %v1204
      %1206 = vmatmul.bf16.gmra.mxu0 %v886
      %v1207 = vpop.f32.mrf.mxu0
      %v1208 = vadd.f32 %v380, %v1207
      %v1209 = vpop.f32.mrf.mxu0
      %v1210 = vadd.f32 %v380, %v1209
      %1211 = vmatmul.bf16.gmra.mxu0 %v889
      %v1212 = vpop.f32.mrf.mxu0
      %v1213 = vadd.f32 %v380, %v1212
      %v1214 = vpop.f32.mrf.mxu0
      %v1215 = vadd.f32 %v380, %v1214
      %1216 = vmatmul.bf16.gmra.mxu0 %v892
      %v1217 = vpop.f32.mrf.mxu0
      %v1218 = vadd.f32 %v380, %v1217
      %v1219 = vpop.f32.mrf.mxu0
      %v1220 = vadd.f32 %v380, %v1219
      %1221 = vmatmul.bf16.gmra.mxu0 %v895
      %v1222 = vpop.f32.mrf.mxu0
      %v1223 = vadd.f32 %v380, %v1222
      %v1224 = vpop.f32.mrf.mxu0
      %v1225 = vadd.f32 %v380, %v1224
      %1226 = vmatmul.bf16.gmra.mxu0 %v898
      %v1227 = vpop.f32.mrf.mxu0
      %v1228 = vadd.f32 %v380, %v1227
      %v1229 = vpop.f32.mrf.mxu0
      %v1230 = vadd.f32 %v380, %v1229
      %1231 = vmatmul.bf16.gmra.mxu0 %v901
      %v1232 = vpop.f32.mrf.mxu0
      %v1233 = vadd.f32 %v380, %v1232
      %v1234 = vpop.f32.mrf.mxu0
      %v1235 = vadd.f32 %v380, %v1234
      %1236 = vmatmul.bf16.gmra.mxu0 %v904
      %v1237 = vpop.f32.mrf.mxu0
      %v1238 = vadd.f32 %v380, %v1237
      %v1239 = vpop.f32.mrf.mxu0
      %v1240 = vadd.f32 %v380, %v1239
      %1241 = vdwg.mxu0
      %1242 = vst [vmem:[%s237] sm:$0xff] %v923
      %1243 = vst [vmem:[%s237 + $0x8] sm:$0xff] %v925
      %1244 = vst [vmem:[%s237 + $0x10] sm:$0xff] %v928
      %1245 = vst [vmem:[%s237 + $0x18] sm:$0xff] %v930
      %1246 = vst [vmem:[%s237 + $0x20] sm:$0xff] %v933
      %1247 = vst [vmem:[%s237 + $0x28] sm:$0xff] %v935
      %1248 = vst [vmem:[%s237 + $0x30] sm:$0xff] %v938
      %1249 = vst [vmem:[%s237 + $0x38] sm:$0xff] %v940
      %1250 = vst [vmem:[%s237 + $0x40] sm:$0xff] %v943
      %1251 = vst [vmem:[%s237 + $0x48] sm:$0xff] %v945
      %1252 = vst [vmem:[%s237 + $0x50] sm:$0xff] %v948
      %1253 = vst [vmem:[%s237 + $0x58] sm:$0xff] %v950
      %1254 = vst [vmem:[%s237 + $0x60] sm:$0xff] %v953
      %1255 = vst [vmem:[%s237 + $0x68] sm:$0xff] %v955
      %1256 = vst [vmem:[%s237 + $0x70] sm:$0xff] %v958
      %1257 = vst [vmem:[%s237 + $0x78] sm:$0xff] %v960
      %1258 = vst [vmem:[%s237 + $0x80] sm:$0xff] %v963
      %1259 = vst [vmem:[%s237 + $0x88] sm:$0xff] %v965
      %1260 = vst [vmem:[%s237 + $0x90] sm:$0xff] %v968
      %1261 = vst [vmem:[%s237 + $0x98] sm:$0xff] %v970
      %1262 = vst [vmem:[%s237 + $0xa0] sm:$0xff] %v973
      %1263 = vst [vmem:[%s237 + $0xa8] sm:$0xff] %v975
      %1264 = vst [vmem:[%s237 + $0xb0] sm:$0xff] %v978
      %1265 = vst [vmem:[%s237 + $0xb8] sm:$0xff] %v980
      %1266 = vst [vmem:[%s237 + $0xc0] sm:$0xff] %v983
      %1267 = vst [vmem:[%s237 + $0xc8] sm:$0xff] %v985
      %1268 = vst [vmem:[%s237 + $0xd0] sm:$0xff] %v988
      %1269 = vst [vmem:[%s237 + $0xd8] sm:$0xff] %v990
      %1270 = vst [vmem:[%s237 + $0xe0] sm:$0xff] %v993
      %1271 = vst [vmem:[%s237 + $0xe8] sm:$0xff] %v995
      %1272 = vst [vmem:[%s237 + $0xf0] sm:$0xff] %v998
      %1273 = vst [vmem:[%s237 + $0xf8] sm:$0xff] %v1000
      %1274 = vst [vmem:[%s237 + $0x100] sm:$0xff] %v1003
      %1275 = vst [vmem:[%s237 + $0x108] sm:$0xff] %v1005
      %1276 = vst [vmem:[%s237 + $0x110] sm:$0xff] %v1008
      %1277 = vst [vmem:[%s237 + $0x118] sm:$0xff] %v1010
      %1278 = vst [vmem:[%s237 + $0x120] sm:$0xff] %v1013
      %1279 = vst [vmem:[%s237 + $0x128] sm:$0xff] %v1015
      %1280 = vst [vmem:[%s237 + $0x130] sm:$0xff] %v1018
      %1281 = vst [vmem:[%s237 + $0x138] sm:$0xff] %v1020
      %1282 = vst [vmem:[%s237 + $0x140] sm:$0xff] %v1023
      %1283 = vst [vmem:[%s237 + $0x148] sm:$0xff] %v1025
      %1284 = vst [vmem:[%s237 + $0x150] sm:$0xff] %v1028
      %1285 = vst [vmem:[%s237 + $0x158] sm:$0xff] %v1030
      %1286 = vst [vmem:[%s237 + $0x160] sm:$0xff] %v1033
      %1287 = vst [vmem:[%s237 + $0x168] sm:$0xff] %v1035
      %1288 = vst [vmem:[%s237 + $0x170] sm:$0xff] %v1038
      %1289 = vst [vmem:[%s237 + $0x178] sm:$0xff] %v1040
      %1290 = vst [vmem:[%s237 + $0x180] sm:$0xff] %v1043
      %1291 = vst [vmem:[%s237 + $0x188] sm:$0xff] %v1045
      %1292 = vst [vmem:[%s237 + $0x190] sm:$0xff] %v1048
      %1293 = vst [vmem:[%s237 + $0x198] sm:$0xff] %v1050
      %1294 = vst [vmem:[%s237 + $0x1a0] sm:$0xff] %v1053
      %1295 = vst [vmem:[%s237 + $0x1a8] sm:$0xff] %v1055
      %1296 = vst [vmem:[%s237 + $0x1b0] sm:$0xff] %v1058
      %1297 = vst [vmem:[%s237 + $0x1b8] sm:$0xff] %v1060
      %1298 = vst [vmem:[%s237 + $0x1c0] sm:$0xff] %v1063
      %1299 = vst [vmem:[%s237 + $0x1c8] sm:$0xff] %v1065
      %1300 = vst [vmem:[%s237 + $0x1d0] sm:$0xff] %v1068
      %1301 = vst [vmem:[%s237 + $0x1d8] sm:$0xff] %v1070
      %1302 = vst [vmem:[%s237 + $0x1e0] sm:$0xff] %v1073
      %1303 = vst [vmem:[%s237 + $0x1e8] sm:$0xff] %v1075
      %1304 = vst [vmem:[%s237 + $0x1f0] sm:$0xff] %v1078
      %1305 = vst [vmem:[%s237 + $0x1f8] sm:$0xff] %v1080
      %1306 = vst [vmem:[%s237 + $0x200] sm:$0xff] %v1083
      %1307 = vst [vmem:[%s237 + $0x208] sm:$0xff] %v1085
      %1308 = vst [vmem:[%s237 + $0x210] sm:$0xff] %v1088
      %1309 = vst [vmem:[%s237 + $0x218] sm:$0xff] %v1090
      %1310 = vst [vmem:[%s237 + $0x220] sm:$0xff] %v1093
      %1311 = vst [vmem:[%s237 + $0x228] sm:$0xff] %v1095
      %1312 = vst [vmem:[%s237 + $0x230] sm:$0xff] %v1098
      %1313 = vst [vmem:[%s237 + $0x238] sm:$0xff] %v1100
      %1314 = vst [vmem:[%s237 + $0x240] sm:$0xff] %v1103
      %1315 = vst [vmem:[%s237 + $0x248] sm:$0xff] %v1105
      %1316 = vst [vmem:[%s237 + $0x250] sm:$0xff] %v1108
      %1317 = vst [vmem:[%s237 + $0x258] sm:$0xff] %v1110
      %1318 = vst [vmem:[%s237 + $0x260] sm:$0xff] %v1113
      %1319 = vst [vmem:[%s237 + $0x268] sm:$0xff] %v1115
      %1320 = vst [vmem:[%s237 + $0x270] sm:$0xff] %v1118
      %1321 = vst [vmem:[%s237 + $0x278] sm:$0xff] %v1120
      %1322 = vst [vmem:[%s237 + $0x280] sm:$0xff] %v1123
      %1323 = vst [vmem:[%s237 + $0x288] sm:$0xff] %v1125
      %1324 = vst [vmem:[%s237 + $0x290] sm:$0xff] %v1128
      %1325 = vst [vmem:[%s237 + $0x298] sm:$0xff] %v1130
      %1326 = vst [vmem:[%s237 + $0x2a0] sm:$0xff] %v1133
      %1327 = vst [vmem:[%s237 + $0x2a8] sm:$0xff] %v1135
      %1328 = vst [vmem:[%s237 + $0x2b0] sm:$0xff] %v1138
      %1329 = vst [vmem:[%s237 + $0x2b8] sm:$0xff] %v1140
      %1330 = vst [vmem:[%s237 + $0x2c0] sm:$0xff] %v1143
      %1331 = vst [vmem:[%s237 + $0x2c8] sm:$0xff] %v1145
      %1332 = vst [vmem:[%s237 + $0x2d0] sm:$0xff] %v1148
      %1333 = vst [vmem:[%s237 + $0x2d8] sm:$0xff] %v1150
      %1334 = vst [vmem:[%s237 + $0x2e0] sm:$0xff] %v1153
      %1335 = vst [vmem:[%s237 + $0x2e8] sm:$0xff] %v1155
      %1336 = vst [vmem:[%s237 + $0x2f0] sm:$0xff] %v1158
      %1337 = vst [vmem:[%s237 + $0x2f8] sm:$0xff] %v1160
      %1338 = vst [vmem:[%s237 + $0x300] sm:$0xff] %v1163
      %1339 = vst [vmem:[%s237 + $0x308] sm:$0xff] %v1165
      %1340 = vst [vmem:[%s237 + $0x310] sm:$0xff] %v1168
      %1341 = vst [vmem:[%s237 + $0x318] sm:$0xff] %v1170
      %1342 = vst [vmem:[%s237 + $0x320] sm:$0xff] %v1173
      %1343 = vst [vmem:[%s237 + $0x328] sm:$0xff] %v1175
      %1344 = vst [vmem:[%s237 + $0x330] sm:$0xff] %v1178
      %1345 = vst [vmem:[%s237 + $0x338] sm:$0xff] %v1180
      %1346 = vst [vmem:[%s237 + $0x340] sm:$0xff] %v1183
      %1347 = vst [vmem:[%s237 + $0x348] sm:$0xff] %v1185
      %1348 = vst [vmem:[%s237 + $0x350] sm:$0xff] %v1188
      %1349 = vst [vmem:[%s237 + $0x358] sm:$0xff] %v1190
      %1350 = vst [vmem:[%s237 + $0x360] sm:$0xff] %v1193
      %1351 = vst [vmem:[%s237 + $0x368] sm:$0xff] %v1195
      %1352 = vst [vmem:[%s237 + $0x370] sm:$0xff] %v1198
      %1353 = vst [vmem:[%s237 + $0x378] sm:$0xff] %v1200
      %1354 = vst [vmem:[%s237 + $0x380] sm:$0xff] %v1203
      %1355 = vst [vmem:[%s237 + $0x388] sm:$0xff] %v1205
      %1356 = vst [vmem:[%s237 + $0x390] sm:$0xff] %v1208
      %1357 = vst [vmem:[%s237 + $0x398] sm:$0xff] %v1210
      %1358 = vst [vmem:[%s237 + $0x3a0] sm:$0xff] %v1213
      %1359 = vst [vmem:[%s237 + $0x3a8] sm:$0xff] %v1215
      %1360 = vst [vmem:[%s237 + $0x3b0] sm:$0xff] %v1218
      %1361 = vst [vmem:[%s237 + $0x3b8] sm:$0xff] %v1220
      %1362 = vst [vmem:[%s237 + $0x3c0] sm:$0xff] %v1223
      %1363 = vst [vmem:[%s237 + $0x3c8] sm:$0xff] %v1225
      %1364 = vst [vmem:[%s237 + $0x3d0] sm:$0xff] %v1228
      %1365 = vst [vmem:[%s237 + $0x3d8] sm:$0xff] %v1230
      %1366 = vst [vmem:[%s237 + $0x3e0] sm:$0xff] %v1233
      %1367 = vst [vmem:[%s237 + $0x3e8] sm:$0xff] %v1235
      %1368 = vst [vmem:[%s237 + $0x3f0] sm:$0xff] %v1238
      %1369 = vst [vmem:[%s237 + $0x3f8] sm:$0xff] %v1240
      %v1370 = vadd.f32 %v923, %v925
      %v1371 = vadd.f32 %v1370, %v928
      %v1372 = vadd.f32 %v1371, %v930
      %v1373 = vadd.f32 %v1372, %v933
      %v1374 = vadd.f32 %v1373, %v935
      %v1375 = vadd.f32 %v1374, %v938
      %v1376 = vadd.f32 %v1375, %v940
      %v1377 = vadd.f32 %v1376, %v943
      %v1378 = vadd.f32 %v1377, %v945
      %v1379 = vadd.f32 %v1378, %v948
      %v1380 = vadd.f32 %v1379, %v950
      %v1381 = vadd.f32 %v1380, %v953
      %v1382 = vadd.f32 %v1381, %v955
      %v1383 = vadd.f32 %v1382, %v958
      %v1384 = vadd.f32 %v1383, %v960
      %v1385 = vadd.f32 %v1384, %v963
      %v1386 = vadd.f32 %v1385, %v965
      %v1387 = vadd.f32 %v1386, %v968
      %v1388 = vadd.f32 %v1387, %v970
      %v1389 = vadd.f32 %v1388, %v973
      %v1390 = vadd.f32 %v1389, %v975
      %v1391 = vadd.f32 %v1390, %v978
      %v1392 = vadd.f32 %v1391, %v980
      %v1393 = vadd.f32 %v1392, %v983
      %v1394 = vadd.f32 %v1393, %v985
      %v1395 = vadd.f32 %v1394, %v988
      %v1396 = vadd.f32 %v1395, %v990
      %v1397 = vadd.f32 %v1396, %v993
      %v1398 = vadd.f32 %v1397, %v995
      %v1399 = vadd.f32 %v1398, %v998
      %v1400 = vadd.f32 %v1399, %v1000
      %v1401 = vadd.f32 %v1400, %v1003
      %v1402 = vadd.f32 %v1401, %v1005
      %v1403 = vadd.f32 %v1402, %v1008
      %v1404 = vadd.f32 %v1403, %v1010
      %v1405 = vadd.f32 %v1404, %v1013
      %v1406 = vadd.f32 %v1405, %v1015
      %v1407 = vadd.f32 %v1406, %v1018
      %v1408 = vadd.f32 %v1407, %v1020
      %v1409 = vadd.f32 %v1408, %v1023
      %v1410 = vadd.f32 %v1409, %v1025
      %v1411 = vadd.f32 %v1410, %v1028
      %v1412 = vadd.f32 %v1411, %v1030
      %v1413 = vadd.f32 %v1412, %v1033
      %v1414 = vadd.f32 %v1413, %v1035
      %v1415 = vadd.f32 %v1414, %v1038
      %v1416 = vadd.f32 %v1415, %v1040
      %v1417 = vadd.f32 %v1416, %v1043
      %v1418 = vadd.f32 %v1417, %v1045
      %v1419 = vadd.f32 %v1418, %v1048
      %v1420 = vadd.f32 %v1419, %v1050
      %v1421 = vadd.f32 %v1420, %v1053
      %v1422 = vadd.f32 %v1421, %v1055
      %v1423 = vadd.f32 %v1422, %v1058
      %v1424 = vadd.f32 %v1423, %v1060
      %v1425 = vadd.f32 %v1424, %v1063
      %v1426 = vadd.f32 %v1425, %v1065
      %v1427 = vadd.f32 %v1426, %v1068
      %v1428 = vadd.f32 %v1427, %v1070
      %v1429 = vadd.f32 %v1428, %v1073
      %v1430 = vadd.f32 %v1429, %v1075
      %v1431 = vadd.f32 %v1430, %v1078
      %v1432 = vadd.f32 %v1431, %v1080
      %v1433 = vadd.f32 %v1432, %v1083
      %v1434 = vadd.f32 %v1433, %v1085
      %v1435 = vadd.f32 %v1434, %v1088
      %v1436 = vadd.f32 %v1435, %v1090
      %v1437 = vadd.f32 %v1436, %v1093
      %v1438 = vadd.f32 %v1437, %v1095
      %v1439 = vadd.f32 %v1438, %v1098
      %v1440 = vadd.f32 %v1439, %v1100
      %v1441 = vadd.f32 %v1440, %v1103
      %v1442 = vadd.f32 %v1441, %v1105
      %v1443 = vadd.f32 %v1442, %v1108
      %v1444 = vadd.f32 %v1443, %v1110
      %v1445 = vadd.f32 %v1444, %v1113
      %v1446 = vadd.f32 %v1445, %v1115
      %v1447 = vadd.f32 %v1446, %v1118
      %v1448 = vadd.f32 %v1447, %v1120
      %v1449 = vadd.f32 %v1448, %v1123
      %v1450 = vadd.f32 %v1449, %v1125
      %v1451 = vadd.f32 %v1450, %v1128
      %v1452 = vadd.f32 %v1451, %v1130
      %v1453 = vadd.f32 %v1452, %v1133
      %v1454 = vadd.f32 %v1453, %v1135
      %v1455 = vadd.f32 %v1454, %v1138
      %v1456 = vadd.f32 %v1455, %v1140
      %v1457 = vadd.f32 %v1456, %v1143
      %v1458 = vadd.f32 %v1457, %v1145
      %v1459 = vadd.f32 %v1458, %v1148
      %v1460 = vadd.f32 %v1459, %v1150
      %v1461 = vadd.f32 %v1460, %v1153
      %v1462 = vadd.f32 %v1461, %v1155
      %v1463 = vadd.f32 %v1462, %v1158
      %v1464 = vadd.f32 %v1463, %v1160
      %v1465 = vadd.f32 %v1464, %v1163
      %v1466 = vadd.f32 %v1465, %v1165
      %v1467 = vadd.f32 %v1466, %v1168
      %v1468 = vadd.f32 %v1467, %v1170
      %v1469 = vadd.f32 %v1468, %v1173
      %v1470 = vadd.f32 %v1469, %v1175
      %v1471 = vadd.f32 %v1470, %v1178
      %v1472 = vadd.f32 %v1471, %v1180
      %v1473 = vadd.f32 %v1472, %v1183
      %v1474 = vadd.f32 %v1473, %v1185
      %v1475 = vadd.f32 %v1474, %v1188
      %v1476 = vadd.f32 %v1475, %v1190
      %v1477 = vadd.f32 %v1476, %v1193
      %v1478 = vadd.f32 %v1477, %v1195
      %v1479 = vadd.f32 %v1478, %v1198
      %v1480 = vadd.f32 %v1479, %v1200
      %v1481 = vadd.f32 %v1480, %v1203
      %v1482 = vadd.f32 %v1481, %v1205
      %v1483 = vadd.f32 %v1482, %v1208
      %v1484 = vadd.f32 %v1483, %v1210
      %v1485 = vadd.f32 %v1484, %v1213
      %v1486 = vadd.f32 %v1485, %v1215
      %v1487 = vadd.f32 %v1486, %v1218
      %v1488 = vadd.f32 %v1487, %v1220
      %v1489 = vadd.f32 %v1488, %v1223
      %v1490 = vadd.f32 %v1489, %v1225
      %v1491 = vadd.f32 %v1490, %v1228
      %v1492 = vadd.f32 %v1491, %v1230
      %v1493 = vadd.f32 %v1492, %v1233
      %v1494 = vadd.f32 %v1493, %v1235
      %v1495 = vadd.f32 %v1494, %v1238
      %v1496 = vadd.f32 %v1495, %v1240
      %v1497 = vrot.slane %v1496, 4
      %v1498 = vadd.f32 %v1496, %v1497
      %v1499 = vrot.slane %v1498, 2
      %v1500 = vadd.f32 %v1498, %v1499
      %v1501 = vrot.slane %v1500, 1
      %v1502 = vadd.f32 %v1500, %v1501
      %v1503 = vmul.f32 %v923, %v923
      %v1504 = vmul.f32 %v925, %v925
      %v1505 = vmul.f32 %v928, %v928
      %v1506 = vmul.f32 %v930, %v930
      %v1507 = vmul.f32 %v933, %v933
      %v1508 = vmul.f32 %v935, %v935
      %v1509 = vmul.f32 %v938, %v938
      %v1510 = vmul.f32 %v940, %v940
      %v1511 = vmul.f32 %v943, %v943
      %v1512 = vmul.f32 %v945, %v945
      %v1513 = vmul.f32 %v948, %v948
      %v1514 = vmul.f32 %v950, %v950
      %v1515 = vmul.f32 %v953, %v953
      %v1516 = vmul.f32 %v955, %v955
      %v1517 = vmul.f32 %v958, %v958
      %v1518 = vmul.f32 %v960, %v960
      %v1519 = vmul.f32 %v963, %v963
      %v1520 = vmul.f32 %v965, %v965
      %v1521 = vmul.f32 %v968, %v968
      %v1522 = vmul.f32 %v970, %v970
      %v1523 = vmul.f32 %v973, %v973
      %v1524 = vmul.f32 %v975, %v975
      %v1525 = vmul.f32 %v978, %v978
      %v1526 = vmul.f32 %v980, %v980
      %v1527 = vmul.f32 %v983, %v983
      %v1528 = vmul.f32 %v985, %v985
      %v1529 = vmul.f32 %v988, %v988
      %v1530 = vmul.f32 %v990, %v990
      %v1531 = vmul.f32 %v993, %v993
      %v1532 = vmul.f32 %v995, %v995
      %v1533 = vmul.f32 %v998, %v998
      %v1534 = vmul.f32 %v1000, %v1000
      %v1535 = vmul.f32 %v1003, %v1003
      %v1536 = vmul.f32 %v1005, %v1005
      %v1537 = vmul.f32 %v1008, %v1008
      %v1538 = vmul.f32 %v1010, %v1010
      %v1539 = vmul.f32 %v1013, %v1013
      %v1540 = vmul.f32 %v1015, %v1015
      %v1541 = vmul.f32 %v1018, %v1018
      %v1542 = vmul.f32 %v1020, %v1020
      %v1543 = vmul.f32 %v1023, %v1023
      %v1544 = vmul.f32 %v1025, %v1025
      %v1545 = vmul.f32 %v1028, %v1028
      %v1546 = vmul.f32 %v1030, %v1030
      %v1547 = vmul.f32 %v1033, %v1033
      %v1548 = vmul.f32 %v1035, %v1035
      %v1549 = vmul.f32 %v1038, %v1038
      %v1550 = vmul.f32 %v1040, %v1040
      %v1551 = vmul.f32 %v1043, %v1043
      %v1552 = vmul.f32 %v1045, %v1045
      %v1553 = vmul.f32 %v1048, %v1048
      %v1554 = vmul.f32 %v1050, %v1050
      %v1555 = vmul.f32 %v1053, %v1053
      %v1556 = vmul.f32 %v1055, %v1055
      %v1557 = vmul.f32 %v1058, %v1058
      %v1558 = vmul.f32 %v1060, %v1060
      %v1559 = vmul.f32 %v1063, %v1063
      %v1560 = vmul.f32 %v1065, %v1065
      %v1561 = vmul.f32 %v1068, %v1068
      %v1562 = vmul.f32 %v1070, %v1070
      %v1563 = vmul.f32 %v1073, %v1073
      %v1564 = vmul.f32 %v1075, %v1075
      %v1565 = vmul.f32 %v1078, %v1078
      %v1566 = vmul.f32 %v1080, %v1080
      %v1567 = vmul.f32 %v1083, %v1083
      %v1568 = vmul.f32 %v1085, %v1085
      %v1569 = vmul.f32 %v1088, %v1088
      %v1570 = vmul.f32 %v1090, %v1090
      %v1571 = vmul.f32 %v1093, %v1093
      %v1572 = vmul.f32 %v1095, %v1095
      %v1573 = vmul.f32 %v1098, %v1098
      %v1574 = vmul.f32 %v1100, %v1100
      %v1575 = vmul.f32 %v1103, %v1103
      %v1576 = vmul.f32 %v1105, %v1105
      %v1577 = vmul.f32 %v1108, %v1108
      %v1578 = vmul.f32 %v1110, %v1110
      %v1579 = vmul.f32 %v1113, %v1113
      %v1580 = vmul.f32 %v1115, %v1115
      %v1581 = vmul.f32 %v1118, %v1118
      %v1582 = vmul.f32 %v1120, %v1120
      %v1583 = vmul.f32 %v1123, %v1123
      %v1584 = vmul.f32 %v1125, %v1125
      %v1585 = vmul.f32 %v1128, %v1128
      %v1586 = vmul.f32 %v1130, %v1130
      %v1587 = vmul.f32 %v1133, %v1133
      %v1588 = vmul.f32 %v1135, %v1135
      %v1589 = vmul.f32 %v1138, %v1138
      %v1590 = vmul.f32 %v1140, %v1140
      %v1591 = vmul.f32 %v1143, %v1143
      %v1592 = vmul.f32 %v1145, %v1145
      %v1593 = vmul.f32 %v1148, %v1148
      %v1594 = vmul.f32 %v1150, %v1150
      %v1595 = vmul.f32 %v1153, %v1153
      %v1596 = vmul.f32 %v1155, %v1155
      %v1597 = vmul.f32 %v1158, %v1158
      %v1598 = vmul.f32 %v1160, %v1160
      %v1599 = vmul.f32 %v1163, %v1163
      %v1600 = vmul.f32 %v1165, %v1165
      %v1601 = vmul.f32 %v1168, %v1168
      %v1602 = vmul.f32 %v1170, %v1170
      %v1603 = vmul.f32 %v1173, %v1173
      %v1604 = vmul.f32 %v1175, %v1175
      %v1605 = vmul.f32 %v1178, %v1178
      %v1606 = vmul.f32 %v1180, %v1180
      %v1607 = vmul.f32 %v1183, %v1183
      %v1608 = vmul.f32 %v1185, %v1185
      %v1609 = vmul.f32 %v1188, %v1188
      %v1610 = vmul.f32 %v1190, %v1190
      %v1611 = vmul.f32 %v1193, %v1193
      %v1612 = vmul.f32 %v1195, %v1195
      %v1613 = vmul.f32 %v1198, %v1198
      %v1614 = vmul.f32 %v1200, %v1200
      %v1615 = vmul.f32 %v1203, %v1203
      %v1616 = vmul.f32 %v1205, %v1205
      %v1617 = vmul.f32 %v1208, %v1208
      %v1618 = vmul.f32 %v1210, %v1210
      %v1619 = vmul.f32 %v1213, %v1213
      %v1620 = vmul.f32 %v1215, %v1215
      %v1621 = vmul.f32 %v1218, %v1218
      %v1622 = vmul.f32 %v1220, %v1220
      %v1623 = vmul.f32 %v1223, %v1223
      %v1624 = vmul.f32 %v1225, %v1225
      %v1625 = vmul.f32 %v1228, %v1228
      %v1626 = vmul.f32 %v1230, %v1230
      %v1627 = vmul.f32 %v1233, %v1233
      %v1628 = vmul.f32 %v1235, %v1235
      %v1629 = vmul.f32 %v1238, %v1238
      %v1630 = vmul.f32 %v1240, %v1240
      %v1631 = vadd.f32 %v1503, %v1504
      %v1632 = vadd.f32 %v1631, %v1505
      %v1633 = vadd.f32 %v1632, %v1506
      %v1634 = vadd.f32 %v1633, %v1507
      %v1635 = vadd.f32 %v1634, %v1508
      %v1636 = vadd.f32 %v1635, %v1509
      %v1637 = vadd.f32 %v1636, %v1510
      %v1638 = vadd.f32 %v1637, %v1511
      %v1639 = vadd.f32 %v1638, %v1512
      %v1640 = vadd.f32 %v1639, %v1513
      %v1641 = vadd.f32 %v1640, %v1514
      %v1642 = vadd.f32 %v1641, %v1515
      %v1643 = vadd.f32 %v1642, %v1516
      %v1644 = vadd.f32 %v1643, %v1517
      %v1645 = vadd.f32 %v1644, %v1518
      %v1646 = vadd.f32 %v1645, %v1519
      %v1647 = vadd.f32 %v1646, %v1520
      %v1648 = vadd.f32 %v1647, %v1521
      %v1649 = vadd.f32 %v1648, %v1522
      %v1650 = vadd.f32 %v1649, %v1523
      %v1651 = vadd.f32 %v1650, %v1524
      %v1652 = vadd.f32 %v1651, %v1525
      %v1653 = vadd.f32 %v1652, %v1526
      %v1654 = vadd.f32 %v1653, %v1527
      %v1655 = vadd.f32 %v1654, %v1528
      %v1656 = vadd.f32 %v1655, %v1529
      %v1657 = vadd.f32 %v1656, %v1530
      %v1658 = vadd.f32 %v1657, %v1531
      %v1659 = vadd.f32 %v1658, %v1532
      %v1660 = vadd.f32 %v1659, %v1533
      %v1661 = vadd.f32 %v1660, %v1534
      %v1662 = vadd.f32 %v1661, %v1535
      %v1663 = vadd.f32 %v1662, %v1536
      %v1664 = vadd.f32 %v1663, %v1537
      %v1665 = vadd.f32 %v1664, %v1538
      %v1666 = vadd.f32 %v1665, %v1539
      %v1667 = vadd.f32 %v1666, %v1540
      %v1668 = vadd.f32 %v1667, %v1541
      %v1669 = vadd.f32 %v1668, %v1542
      %v1670 = vadd.f32 %v1669, %v1543
      %v1671 = vadd.f32 %v1670, %v1544
      %v1672 = vadd.f32 %v1671, %v1545
      %v1673 = vadd.f32 %v1672, %v1546
      %v1674 = vadd.f32 %v1673, %v1547
      %v1675 = vadd.f32 %v1674, %v1548
      %v1676 = vadd.f32 %v1675, %v1549
      %v1677 = vadd.f32 %v1676, %v1550
      %v1678 = vadd.f32 %v1677, %v1551
      %v1679 = vadd.f32 %v1678, %v1552
      %v1680 = vadd.f32 %v1679, %v1553
      %v1681 = vadd.f32 %v1680, %v1554
      %v1682 = vadd.f32 %v1681, %v1555
      %v1683 = vadd.f32 %v1682, %v1556
      %v1684 = vadd.f32 %v1683, %v1557
      %v1685 = vadd.f32 %v1684, %v1558
      %v1686 = vadd.f32 %v1685, %v1559
      %v1687 = vadd.f32 %v1686, %v1560
      %v1688 = vadd.f32 %v1687, %v1561
      %v1689 = vadd.f32 %v1688, %v1562
      %v1690 = vadd.f32 %v1689, %v1563
      %v1691 = vadd.f32 %v1690, %v1564
      %v1692 = vadd.f32 %v1691, %v1565
      %v1693 = vadd.f32 %v1692, %v1566
      %v1694 = vadd.f32 %v1693, %v1567
      %v1695 = vadd.f32 %v1694, %v1568
      %v1696 = vadd.f32 %v1695, %v1569
      %v1697 = vadd.f32 %v1696, %v1570
      %v1698 = vadd.f32 %v1697, %v1571
      %v1699 = vadd.f32 %v1698, %v1572
      %v1700 = vadd.f32 %v1699, %v1573
      %v1701 = vadd.f32 %v1700, %v1574
      %v1702 = vadd.f32 %v1701, %v1575
      %v1703 = vadd.f32 %v1702, %v1576
      %v1704 = vadd.f32 %v1703, %v1577
      %v1705 = vadd.f32 %v1704, %v1578
      %v1706 = vadd.f32 %v1705, %v1579
      %v1707 = vadd.f32 %v1706, %v1580
      %v1708 = vadd.f32 %v1707, %v1581
      %v1709 = vadd.f32 %v1708, %v1582
      %v1710 = vadd.f32 %v1709, %v1583
      %v1711 = vadd.f32 %v1710, %v1584
      %v1712 = vadd.f32 %v1711, %v1585
      %v1713 = vadd.f32 %v1712, %v1586
      %v1714 = vadd.f32 %v1713, %v1587
      %v1715 = vadd.f32 %v1714, %v1588
      %v1716 = vadd.f32 %v1715, %v1589
      %v1717 = vadd.f32 %v1716, %v1590
      %v1718 = vadd.f32 %v1717, %v1591
      %v1719 = vadd.f32 %v1718, %v1592
      %v1720 = vadd.f32 %v1719, %v1593
      %v1721 = vadd.f32 %v1720, %v1594
      %v1722 = vadd.f32 %v1721, %v1595
      %v1723 = vadd.f32 %v1722, %v1596
      %v1724 = vadd.f32 %v1723, %v1597
      %v1725 = vadd.f32 %v1724, %v1598
      %v1726 = vadd.f32 %v1725, %v1599
      %v1727 = vadd.f32 %v1726, %v1600
      %v1728 = vadd.f32 %v1727, %v1601
      %v1729 = vadd.f32 %v1728, %v1602
      %v1730 = vadd.f32 %v1729, %v1603
      %v1731 = vadd.f32 %v1730, %v1604
      %v1732 = vadd.f32 %v1731, %v1605
      %v1733 = vadd.f32 %v1732, %v1606
      %v1734 = vadd.f32 %v1733, %v1607
      %v1735 = vadd.f32 %v1734, %v1608
      %v1736 = vadd.f32 %v1735, %v1609
      %v1737 = vadd.f32 %v1736, %v1610
      %v1738 = vadd.f32 %v1737, %v1611
      %v1739 = vadd.f32 %v1738, %v1612
      %v1740 = vadd.f32 %v1739, %v1613
      %v1741 = vadd.f32 %v1740, %v1614
      %v1742 = vadd.f32 %v1741, %v1615
      %v1743 = vadd.f32 %v1742, %v1616
      %v1744 = vadd.f32 %v1743, %v1617
      %v1745 = vadd.f32 %v1744, %v1618
      %v1746 = vadd.f32 %v1745, %v1619
      %v1747 = vadd.f32 %v1746, %v1620
      %v1748 = vadd.f32 %v1747, %v1621
      %v1749 = vadd.f32 %v1748, %v1622
      %v1750 = vadd.f32 %v1749, %v1623
      %v1751 = vadd.f32 %v1750, %v1624
      %v1752 = vadd.f32 %v1751, %v1625
      %v1753 = vadd.f32 %v1752, %v1626
      %v1754 = vadd.f32 %v1753, %v1627
      %v1755 = vadd.f32 %v1754, %v1628
      %v1756 = vadd.f32 %v1755, %v1629
      %v1757 = vadd.f32 %v1756, %v1630
      %v1758 = vrot.slane %v1757, 4
      %v1759 = vadd.f32 %v1757, %v1758
      %v1760 = vrot.slane %v1759, 2
      %v1761 = vadd.f32 %v1759, %v1760
      %v1762 = vrot.slane %v1761, 1
      %v1763 = vadd.f32 %v1761, %v1762
      %1764 = vst [vmem:[%s241] sm:$0x1] %v1502
      %1765 = vst [vmem:[%s244] sm:$0x1] %v1763
      %s1766 = smul.u32 128, %s17
      %p1767 = scmp.lt.s32.totalorder %s1766, 1023
      %s1768 = scalar_select %p1767, %s1766, 1023
      %s1769 = smul.addr %s1768, 8
      %s1770 = scalar_lea.vmem %s3, %s1769
      %p1771 = scmp.lt.s32.totalorder %s17, 7
      %s1772 = scalar_select %p1771, %s17, 7
      %s1773 = scalar_lea.vmem %s4, %s1772
      %p1774 = scmp.lt.s32.totalorder %s17, 7
      %s1775 = scalar_select %p1774, %s17, 7
      %s1776 = scalar_lea.vmem %s5, %s1775
      // Predicated region
      $region33: #{simple_convnet_forward.5} parent=31 // pred_check
        %p1777 = pneg %p103
      $region34: #{simple_convnet_forward.5} parent=31 // pred_check_branch
        %1779 = sbr.rel (%p1777) target = $region36
      $region35: #{simple_convnet_forward.5} parent=31 // pred_region
        %s1780 = smul.u32 128, %s17
      $region36: #{simple_convnet_forward.5} parent=31 // pred_fallthru
        _
      // Predicated region
      $region37: #{simple_convnet_forward.5} parent=31 // pred_check
        %p1781 = pneg %p129
      $region38: #{simple_convnet_forward.5} parent=31 // pred_check_branch
        %1783 = sbr.rel (%p1781) target = $region40
      $region39: #{simple_convnet_forward.5} parent=31 // pred_region
        _
      $region40: #{simple_convnet_forward.5} parent=31 // pred_fallthru
        _
      // Predicated region
      $region41: #{simple_convnet_forward.5} parent=31 // pred_check
        %p1784 = pneg %p155
      $region42: #{simple_convnet_forward.5} parent=31 // pred_check_branch
        %1786 = sbr.rel (%p1784) target = $region44
      $region43: #{simple_convnet_forward.5} parent=31 // pred_region
        _
      $region44: #{simple_convnet_forward.5} parent=31 // pred_fallthru
        _
    $region32: #{simple_convnet_forward.5} parent=5 // pred_fallthru
      _
    %p1787 = scmp.le.s32.totalorder 2, %s12
    // Predicated region
    $region45: #{simple_convnet_forward.5} parent=5 // pred_check
      %p1788 = pneg %p1787
    $region46: #{simple_convnet_forward.5} parent=5 // pred_check_branch
      %1790 = sbr.rel (%p1788) target = $region48
    $region47: #{simple_convnet_forward.5} parent=5 // pred_region
      %s1791 = ssub.s32 %s12, 2
      // Predicated region
      $region49: #{simple_convnet_forward.5} parent=47 // pred_check
        %p1792 = pneg %p109
      $region50: #{simple_convnet_forward.5} parent=47 // pred_check_branch
        %1794 = sbr.rel (%p1792) target = $region52
      $region51: #{simple_convnet_forward.5} parent=47 // pred_region
        %s1795 = smul.u32 128, %s18
        %p1796 = scmp.lt.s32.totalorder %s1795, 1023
        %s1797 = scalar_select %p1796, %s1795, 1023
        %s1798 = smul.addr %s1797, 8
        %s1799 = scalar_lea.vmem %s3, %s1798
      $region52: #{simple_convnet_forward.5} parent=47 // pred_fallthru
        _
      // Predicated region
      $region53: #{simple_convnet_forward.5} parent=47 // pred_check
        %p1800 = pneg %p135
      $region54: #{simple_convnet_forward.5} parent=47 // pred_check_branch
        %1802 = sbr.rel (%p1800) target = $region56
      $region55: #{simple_convnet_forward.5} parent=47 // pred_region
        %p1803 = scmp.lt.s32.totalorder %s18, 7
        %s1804 = scalar_select %p1803, %s18, 7
        %s1805 = scalar_lea.vmem %s4, %s1804
      $region56: #{simple_convnet_forward.5} parent=47 // pred_fallthru
        _
      // Predicated region
      $region57: #{simple_convnet_forward.5} parent=47 // pred_check
        %p1806 = pneg %p161
      $region58: #{simple_convnet_forward.5} parent=47 // pred_check_branch
        %1808 = sbr.rel (%p1806) target = $region60
      $region59: #{simple_convnet_forward.5} parent=47 // pred_region
        %p1809 = scmp.lt.s32.totalorder %s18, 7
        %s1810 = scalar_select %p1809, %s18, 7
        %s1811 = scalar_lea.vmem %s5, %s1810
      $region60: #{simple_convnet_forward.5} parent=47 // pred_fallthru
        _
    $region48: #{simple_convnet_forward.5} parent=5 // pred_fallthru
      _
  $region6: #{simple_convnet_forward.5} parent=0 // loop_footer
    %s16 = sadd.s32 1, %s12
  $region7: #{simple_convnet_forward.5} parent=0 // loop_footer_branch
    %11 = sbr.rel target = $region3
  $region8: #{simple_convnet_forward.5} parent=0 // loop_exit
    _

// kernel: simple_convnet_forward.7
$region0: #{simple_convnet_forward.7}
  #allocation0 [shape = 'u32[]', space=smem, size = 0x4, offset = 0x4, fixed_abs, tag = 'smem constant byte address 0x4 - core index']
  #allocation1 [shape = 'u32[72,128]{1,0:T(1,128)}', space=vmem, size = 0x9000, scoped, tag = 'internal scratch']
  %s0 = inlined_call_operand.vmem [shape: bf16[2048,144], index: 0, kind: input, shape index: {}]
  %s1 = inlined_call_operand.vmem [shape: bf16[144,128], index: 1, kind: input, shape index: {}]
  %s2 = inlined_call_operand.vmem [shape: f32[1,128], index: 2, kind: input, shape index: {}]
  %s3 = inlined_call_operand.vmem [shape: f32[2048,128], index: 3, kind: output, shape index: {0}]
  %s4 = inlined_call_operand.vmem [shape: f32[2,1,128], index: 4, kind: output, shape index: {1}]
  %s5 = inlined_call_operand.vmem [shape: f32[2,1,128], index: 5, kind: output, shape index: {2}]
  %6 = xla_tuple %s3, %s4, %s5
  %s7 = sld [smem:[#allocation0]]
  $region61: #{simple_convnet_forward.7} parent=0
    _
  %s9 = ssub.s32 1, %s7
  %s10 = scalar_select 0, %s9, %s7
  loop: start=0, step=1, limit=4
  $region2: #{simple_convnet_forward.7} parent=0 // loop_pre_header
    _
  $region3: #{simple_convnet_forward.7} parent=0 // loop_header
    %s12 = sphi 0, %s16
    %p13 = scmp.ge.s32.totalorder %s12, 4
    %s22 = sphi 0, %s24
    %s25 = sphi 0, %s22
    %s26 = sphi 0, %s25
    %s42 = sphi 0, %s26
    %s46 = sphi 0, %s46
    %s48 = sphi 0, %s46
    %s49 = sphi 0, %s48
    %s63 = sphi 0, %s49
    %s67 = sphi 0, %s67
    %s69 = sphi 0, %s67
    %s70 = sphi 0, %s69
    %s84 = sphi 0, %s70
    %s90 = sphi 0, %s92
    %s93 = sphi 0, %s90
    %s94 = sphi 0, %s93
    %s110 = sphi 0, %s94
    %s116 = sphi 0, %s118
    %s119 = sphi 0, %s116
    %s120 = sphi 0, %s119
    %s136 = sphi 0, %s120
    %s142 = sphi 0, %s144
    %s145 = sphi 0, %s142
    %s146 = sphi 0, %s145
    %s162 = sphi 0, %s146
  $region4: #{simple_convnet_forward.7} parent=0 // loop_header_branch
    %15 = sbr.rel (%p13) target = $region8
  $region5: #{simple_convnet_forward.7} parent=0 // loop_body
    %s17 = ssub.s32 %s12, 1
    %s18 = ssub.s32 %s12, 2
    %s19 = sadd.s32 %s12, 1
    %s20 = ssub.s32 %s12, %s19
    %p21 = scmp.eq.s32.totalorder %s20, 0
    %s23 = sadd.s32 %s22, 1
    %s24 = scalar_select %p21, %s22, %s23
    %p27 = pneg %p21
    %p28 = scmp.eq.s32.totalorder %s12, 1
    %p29 = por %p27, %p28
    %p30 = scmp.ne.s32.totalorder %s22, %s25
    %p31 = scmp.eq.s32.totalorder %s12, 0
    %p32 = por %p30, %p31
    %p33 = scmp.ne.s32.totalorder %s22, %s25
    %p34 = scmp.eq.s32.totalorder %s17, 1
    %p35 = por %p33, %p34
    %p36 = scmp.ne.s32.totalorder %s25, %s26
    %p37 = scmp.eq.s32.totalorder %s17, 0
    %p38 = por %p36, %p37
    %p39 = scmp.ne.s32.totalorder %s25, %s26
    %p40 = scmp.eq.s32.totalorder %s18, 1
    %p41 = por %p39, %p40
    %p43 = scmp.ne.s32.totalorder %s26, %s42
    %p44 = scmp.eq.s32.totalorder %s18, 0
    %p45 = por %p43, %p44
    %s47 = sadd.s32 %s46, 1
    %p50 = scmp.eq.s32.totalorder %s12, 1
    %p51 = scmp.ne.s32.totalorder %s46, %s48
    %p52 = scmp.eq.s32.totalorder %s12, 0
    %p53 = por %p51, %p52
    %p54 = scmp.ne.s32.totalorder %s46, %s48
    %p55 = scmp.eq.s32.totalorder %s17, 1
    %p56 = por %p54, %p55
    %p57 = scmp.ne.s32.totalorder %s48, %s49
    %p58 = scmp.eq.s32.totalorder %s17, 0
    %p59 = por %p57, %p58
    %p60 = scmp.ne.s32.totalorder %s48, %s49
    %p61 = scmp.eq.s32.totalorder %s18, 1
    %p62 = por %p60, %p61
    %p64 = scmp.ne.s32.totalorder %s49, %s63
    %p65 = scmp.eq.s32.totalorder %s18, 0
    %p66 = por %p64, %p65
    %s68 = sadd.s32 %s67, 1
    %p71 = scmp.eq.s32.totalorder %s12, 1
    %p72 = scmp.ne.s32.totalorder %s67, %s69
    %p73 = scmp.eq.s32.totalorder %s12, 0
    %p74 = por %p72, %p73
    %p75 = scmp.ne.s32.totalorder %s67, %s69
    %p76 = scmp.eq.s32.totalorder %s17, 1
    %p77 = por %p75, %p76
    %p78 = scmp.ne.s32.totalorder %s69, %s70
    %p79 = scmp.eq.s32.totalorder %s17, 0
    %p80 = por %p78, %p79
    %p81 = scmp.ne.s32.totalorder %s69, %s70
    %p82 = scmp.eq.s32.totalorder %s18, 1
    %p83 = por %p81, %p82
    %p85 = scmp.ne.s32.totalorder %s70, %s84
    %p86 = scmp.eq.s32.totalorder %s18, 0
    %p87 = por %p85, %p86
    %s88 = ssub.s32 %s12, %s19
    %p89 = scmp.eq.s32.totalorder %s88, 0
    %s91 = sadd.s32 %s90, 1
    %s92 = scalar_select %p89, %s90, %s91
    %p95 = pneg %p89
    %p96 = scmp.eq.s32.totalorder %s12, 1
    %p97 = por %p95, %p96
    %p98 = scmp.ne.s32.totalorder %s90, %s93
    %p99 = scmp.eq.s32.totalorder %s12, 0
    %p100 = por %p98, %p99
    %p101 = scmp.ne.s32.totalorder %s90, %s93
    %p102 = scmp.eq.s32.totalorder %s17, 1
    %p103 = por %p101, %p102
    %p104 = scmp.ne.s32.totalorder %s93, %s94
    %p105 = scmp.eq.s32.totalorder %s17, 0
    %p106 = por %p104, %p105
    %p107 = scmp.ne.s32.totalorder %s93, %s94
    %p108 = scmp.eq.s32.totalorder %s18, 1
    %p109 = por %p107, %p108
    %p111 = scmp.ne.s32.totalorder %s94, %s110
    %p112 = scmp.eq.s32.totalorder %s18, 0
    %p113 = por %p111, %p112
    %s114 = ssub.s32 %s12, %s19
    %p115 = scmp.eq.s32.totalorder %s114, 0
    %s117 = sadd.s32 %s116, 1
    %s118 = scalar_select %p115, %s116, %s117
    %p121 = pneg %p115
    %p122 = scmp.eq.s32.totalorder %s12, 1
    %p123 = por %p121, %p122
    %p124 = scmp.ne.s32.totalorder %s116, %s119
    %p125 = scmp.eq.s32.totalorder %s12, 0
    %p126 = por %p124, %p125
    %p127 = scmp.ne.s32.totalorder %s116, %s119
    %p128 = scmp.eq.s32.totalorder %s17, 1
    %p129 = por %p127, %p128
    %p130 = scmp.ne.s32.totalorder %s119, %s120
    %p131 = scmp.eq.s32.totalorder %s17, 0
    %p132 = por %p130, %p131
    %p133 = scmp.ne.s32.totalorder %s119, %s120
    %p134 = scmp.eq.s32.totalorder %s18, 1
    %p135 = por %p133, %p134
    %p137 = scmp.ne.s32.totalorder %s120, %s136
    %p138 = scmp.eq.s32.totalorder %s18, 0
    %p139 = por %p137, %p138
    %s140 = ssub.s32 %s12, %s19
    %p141 = scmp.eq.s32.totalorder %s140, 0
    %s143 = sadd.s32 %s142, 1
    %s144 = scalar_select %p141, %s142, %s143
    %p147 = pneg %p141
    %p148 = scmp.eq.s32.totalorder %s12, 1
    %p149 = por %p147, %p148
    %p150 = scmp.ne.s32.totalorder %s142, %s145
    %p151 = scmp.eq.s32.totalorder %s12, 0
    %p152 = por %p150, %p151
    %p153 = scmp.ne.s32.totalorder %s142, %s145
    %p154 = scmp.eq.s32.totalorder %s17, 1
    %p155 = por %p153, %p154
    %p156 = scmp.ne.s32.totalorder %s145, %s146
    %p157 = scmp.eq.s32.totalorder %s17, 0
    %p158 = por %p156, %p157
    %p159 = scmp.ne.s32.totalorder %s145, %s146
    %p160 = scmp.eq.s32.totalorder %s18, 1
    %p161 = por %p159, %p160
    %p163 = scmp.ne.s32.totalorder %s146, %s162
    %p164 = scmp.eq.s32.totalorder %s18, 0
    %p165 = por %p163, %p164
    %p166 = scmp.le.s32.totalorder 1, %s12
    %p167 = scmp.lt.s32.totalorder %s12, 3
    %p168 = pnand %p166, %p167
    %p169 = pneg %p168
    // Predicated region
    $region9: #{simple_convnet_forward.7} parent=5 // pred_check
      _
    $region10: #{simple_convnet_forward.7} parent=5 // pred_check_branch
      %171 = sbr.rel (%p168) target = $region12
    $region11: #{simple_convnet_forward.7} parent=5 // pred_region
      %s172 = ssub.s32 %s12, 1
      // Predicated region
      $region13: #{simple_convnet_forward.7} parent=11 // pred_check
        %p173 = pneg %p59
      $region14: #{simple_convnet_forward.7} parent=11 // pred_check_branch
        %175 = sbr.rel (%p173) target = $region16
      $region15: #{simple_convnet_forward.7} parent=11 // pred_region
        _
      $region16: #{simple_convnet_forward.7} parent=11 // pred_fallthru
        _
      // Predicated region
      $region17: #{simple_convnet_forward.7} parent=11 // pred_check
        %p176 = pneg %p80
      $region18: #{simple_convnet_forward.7} parent=11 // pred_check_branch
        %178 = sbr.rel (%p176) target = $region20
      $region19: #{simple_convnet_forward.7} parent=11 // pred_region
        _
      $region20: #{simple_convnet_forward.7} parent=11 // pred_fallthru
        _
    $region12: #{simple_convnet_forward.7} parent=5 // pred_fallthru
      _
    %p179 = scmp.lt.s32.totalorder %s12, 2
    // Predicated region
    $region21: #{simple_convnet_forward.7} parent=5 // pred_check
      %p180 = pneg %p179
    $region22: #{simple_convnet_forward.7} parent=5 // pred_check_branch
      %182 = sbr.rel (%p180) target = $region24
    $region23: #{simple_convnet_forward.7} parent=5 // pred_region
      // Predicated region
      $region25: #{simple_convnet_forward.7} parent=23 // pred_check
        %p183 = pneg %p32
      $region26: #{simple_convnet_forward.7} parent=23 // pred_check_branch
        %185 = sbr.rel (%p183) target = $region28
      $region27: #{simple_convnet_forward.7} parent=23 // pred_region
        %s186 = smul.u32 128, %s12
        %p187 = scmp.lt.s32.totalorder %s186, 255
        %s188 = scalar_select %p187, %s186, 255
        %s189 = smul.addr %s188, 2
        %s190 = smul.addr %s189, 4
        %s191 = scalar_lea.vmem %s0, %s190
        %s192 = smul.u32 128, %s12
      $region28: #{simple_convnet_forward.7} parent=23 // pred_fallthru
        _
    $region24: #{simple_convnet_forward.7} parent=5 // pred_fallthru
      _
    %p193 = scmp.le.s32.totalorder 1, %s12
    %p194 = scmp.lt.s32.totalorder %s12, 3
    %p195 = pnand %p193, %p194
    %p196 = pneg %p195
    // Predicated region
    $region29: #{simple_convnet_forward.7} parent=5 // pred_check
      _
    $region30: #{simple_convnet_forward.7} parent=5 // pred_check_branch
      %198 = sbr.rel (%p195) target = $region32
    $region31: #{simple_convnet_forward.7} parent=5 // pred_region
      %s199 = ssub.s32 %s12, 1
      %s200 = smul.u32 128, %s17
      %p201 = scmp.lt.s32.totalorder %s200, 255
      %s202 = scalar_select %p201, %s200, 255
      %s203 = smul.addr %s202, 2
      %s204 = smul.addr %s203, 4
      %s205 = scalar_lea.vmem %s0, %s204
      %p206 = pneg %p38
      %p207 = pneg %p35
      %p208 = pneg %p59
      %p209 = pneg %p56
      %p210 = pneg %p80
      %p211 = pneg %p77
      %p212 = pneg %p106
      %p213 = pneg %p103
      %s214 = smul.u32 128, %s17
      %p215 = scmp.lt.s32.totalorder %s214, 255
      %s216 = scalar_select %p215, %s214, 255
      %s217 = smul.addr %s216, 8
      %s218 = scalar_lea.vmem %s3, %s217
      %p219 = pneg %p132
      %p220 = pneg %p129
      %p221 = scmp.lt.s32.totalorder %s17, 1
      %s222 = scalar_select %p221, %s17, 1
      %s223 = scalar_lea.vmem %s4, %s222
      %p224 = pneg %p158
      %p225 = pneg %p155
      %p226 = scmp.lt.s32.totalorder %s17, 1
      %s227 = scalar_select %p226, %s17, 1
      %s228 = scalar_lea.vmem %s5, %s227
      %s229 = smul.u32 128, %s17
      %p230 = scmp.lt.s32.totalorder %s229, 255
      %s231 = scalar_select %p230, %s229, 255
      %s232 = smul.addr %s231, 2
      %s233 = smul.addr %s232, 4
      %s234 = scalar_lea.vmem %s0, %s233
      %s235 = smul.u32 128, %s17
      %s236 = smul.u32 128, %s17
      %p237 = scmp.lt.s32.totalorder %s236, 255
      %s238 = scalar_select %p237, %s236, 255
      %s239 = smul.addr %s238, 8
      %s240 = scalar_lea.vmem %s3, %s239
      %s241 = smul.u32 128, %s17
      %p242 = scmp.lt.s32.totalorder %s17, 1
      %s243 = scalar_select %p242, %s17, 1
      %s244 = scalar_lea.vmem %s4, %s243
      %p245 = scmp.lt.s32.totalorder %s17, 1
      %s246 = scalar_select %p245, %s17, 1
      %s247 = scalar_lea.vmem %s5, %s246
      %v249 = vld [vmem:[%s234] sm:$0xff]
      %v250 = vld [vmem:[%s234 + $0x8] sm:$0xff]
      %v251 = vld [vmem:[%s234 + $0x10] sm:$0xff]
      %v252 = vld [vmem:[%s234 + $0x18] sm:$0xff]
      %v253 = vld [vmem:[%s234 + $0x20] sm:$0xff]
      %v254 = vld [vmem:[%s234 + $0x28] sm:$0xff]
      %v255 = vld [vmem:[%s234 + $0x30] sm:$0xff]
      %v256 = vld [vmem:[%s234 + $0x38] sm:$0xff]
      %v257 = vld [vmem:[%s234 + $0x40] sm:$0xff]
      %v258 = vld [vmem:[%s234 + $0x48] sm:$0xff]
      %v259 = vld [vmem:[%s234 + $0x50] sm:$0xff]
      %v260 = vld [vmem:[%s234 + $0x58] sm:$0xff]
      %v261 = vld [vmem:[%s234 + $0x60] sm:$0xff]
      %v262 = vld [vmem:[%s234 + $0x68] sm:$0xff]
      %v263 = vld [vmem:[%s234 + $0x70] sm:$0xff]
      %v264 = vld [vmem:[%s234 + $0x78] sm:$0xff]
      %v265 = vld [vmem:[%s234 + $0x80] sm:$0xff]
      %v266 = vld [vmem:[%s234 + $0x88] sm:$0xff]
      %v267 = vld [vmem:[%s234 + $0x90] sm:$0xff]
      %v268 = vld [vmem:[%s234 + $0x98] sm:$0xff]
      %v269 = vld [vmem:[%s234 + $0xa0] sm:$0xff]
      %v270 = vld [vmem:[%s234 + $0xa8] sm:$0xff]
      %v271 = vld [vmem:[%s234 + $0xb0] sm:$0xff]
      %v272 = vld [vmem:[%s234 + $0xb8] sm:$0xff]
      %v273 = vld [vmem:[%s234 + $0xc0] sm:$0xff]
      %v274 = vld [vmem:[%s234 + $0xc8] sm:$0xff]
      %v275 = vld [vmem:[%s234 + $0xd0] sm:$0xff]
      %v276 = vld [vmem:[%s234 + $0xd8] sm:$0xff]
      %v277 = vld [vmem:[%s234 + $0xe0] sm:$0xff]
      %v278 = vld [vmem:[%s234 + $0xe8] sm:$0xff]
      %v279 = vld [vmem:[%s234 + $0xf0] sm:$0xff]
      %v280 = vld [vmem:[%s234 + $0xf8] sm:$0xff]
      %v281 = vld [vmem:[%s234 + $0x100] sm:$0xff]
      %v282 = vld [vmem:[%s234 + $0x108] sm:$0xff]
      %v283 = vld [vmem:[%s234 + $0x110] sm:$0xff]
      %v284 = vld [vmem:[%s234 + $0x118] sm:$0xff]
      %v285 = vld [vmem:[%s234 + $0x120] sm:$0xff]
      %v286 = vld [vmem:[%s234 + $0x128] sm:$0xff]
      %v287 = vld [vmem:[%s234 + $0x130] sm:$0xff]
      %v288 = vld [vmem:[%s234 + $0x138] sm:$0xff]
      %v289 = vld [vmem:[%s234 + $0x140] sm:$0xff]
      %v290 = vld [vmem:[%s234 + $0x148] sm:$0xff]
      %v291 = vld [vmem:[%s234 + $0x150] sm:$0xff]
      %v292 = vld [vmem:[%s234 + $0x158] sm:$0xff]
      %v293 = vld [vmem:[%s234 + $0x160] sm:$0xff]
      %v294 = vld [vmem:[%s234 + $0x168] sm:$0xff]
      %v295 = vld [vmem:[%s234 + $0x170] sm:$0xff]
      %v296 = vld [vmem:[%s234 + $0x178] sm:$0xff]
      %v297 = vld [vmem:[%s234 + $0x180] sm:$0xff]
      %v298 = vld [vmem:[%s234 + $0x188] sm:$0xff]
      %v299 = vld [vmem:[%s234 + $0x190] sm:$0xff]
      %v300 = vld [vmem:[%s234 + $0x198] sm:$0xff]
      %v301 = vld [vmem:[%s234 + $0x1a0] sm:$0xff]
      %v302 = vld [vmem:[%s234 + $0x1a8] sm:$0xff]
      %v303 = vld [vmem:[%s234 + $0x1b0] sm:$0xff]
      %v304 = vld [vmem:[%s234 + $0x1b8] sm:$0xff]
      %v305 = vld [vmem:[%s234 + $0x1c0] sm:$0xff]
      %v306 = vld [vmem:[%s234 + $0x1c8] sm:$0xff]
      %v307 = vld [vmem:[%s234 + $0x1d0] sm:$0xff]
      %v308 = vld [vmem:[%s234 + $0x1d8] sm:$0xff]
      %v309 = vld [vmem:[%s234 + $0x1e0] sm:$0xff]
      %v310 = vld [vmem:[%s234 + $0x1e8] sm:$0xff]
      %v311 = vld [vmem:[%s234 + $0x1f0] sm:$0xff]
      %v312 = vld [vmem:[%s234 + $0x1f8] sm:$0xff]
      %v313 = vld [vmem:[%s234 + $0x200] sm:$0xff]
      %v314 = vld [vmem:[%s234 + $0x208] sm:$0xff]
      %v315 = vld [vmem:[%s234 + $0x210] sm:$0xff]
      %v316 = vld [vmem:[%s234 + $0x218] sm:$0xff]
      %v317 = vld [vmem:[%s234 + $0x220] sm:$0xff]
      %v318 = vld [vmem:[%s234 + $0x228] sm:$0xff]
      %v319 = vld [vmem:[%s234 + $0x230] sm:$0xff]
      %v320 = vld [vmem:[%s234 + $0x238] sm:$0xff]
      %v321 = vld [vmem:[%s234 + $0x240] sm:$0xff]
      %v322 = vld [vmem:[%s234 + $0x248] sm:$0xff]
      %v323 = vld [vmem:[%s234 + $0x250] sm:$0xff]
      %v324 = vld [vmem:[%s234 + $0x258] sm:$0xff]
      %v325 = vld [vmem:[%s234 + $0x260] sm:$0xff]
      %v326 = vld [vmem:[%s234 + $0x268] sm:$0xff]
      %v327 = vld [vmem:[%s234 + $0x270] sm:$0xff]
      %v328 = vld [vmem:[%s234 + $0x278] sm:$0xff]
      %v329 = vld [vmem:[%s234 + $0x280] sm:$0xff]
      %v330 = vld [vmem:[%s234 + $0x288] sm:$0xff]
      %v331 = vld [vmem:[%s234 + $0x290] sm:$0xff]
      %v332 = vld [vmem:[%s234 + $0x298] sm:$0xff]
      %v333 = vld [vmem:[%s234 + $0x2a0] sm:$0xff]
      %v334 = vld [vmem:[%s234 + $0x2a8] sm:$0xff]
      %v335 = vld [vmem:[%s234 + $0x2b0] sm:$0xff]
      %v336 = vld [vmem:[%s234 + $0x2b8] sm:$0xff]
      %v337 = vld [vmem:[%s234 + $0x2c0] sm:$0xff]
      %v338 = vld [vmem:[%s234 + $0x2c8] sm:$0xff]
      %v339 = vld [vmem:[%s234 + $0x2d0] sm:$0xff]
      %v340 = vld [vmem:[%s234 + $0x2d8] sm:$0xff]
      %v341 = vld [vmem:[%s234 + $0x2e0] sm:$0xff]
      %v342 = vld [vmem:[%s234 + $0x2e8] sm:$0xff]
      %v343 = vld [vmem:[%s234 + $0x2f0] sm:$0xff]
      %v344 = vld [vmem:[%s234 + $0x2f8] sm:$0xff]
      %v345 = vld [vmem:[%s234 + $0x300] sm:$0xff]
      %v346 = vld [vmem:[%s234 + $0x308] sm:$0xff]
      %v347 = vld [vmem:[%s234 + $0x310] sm:$0xff]
      %v348 = vld [vmem:[%s234 + $0x318] sm:$0xff]
      %v349 = vld [vmem:[%s234 + $0x320] sm:$0xff]
      %v350 = vld [vmem:[%s234 + $0x328] sm:$0xff]
      %v351 = vld [vmem:[%s234 + $0x330] sm:$0xff]
      %v352 = vld [vmem:[%s234 + $0x338] sm:$0xff]
      %v353 = vld [vmem:[%s234 + $0x340] sm:$0xff]
      %v354 = vld [vmem:[%s234 + $0x348] sm:$0xff]
      %v355 = vld [vmem:[%s234 + $0x350] sm:$0xff]
      %v356 = vld [vmem:[%s234 + $0x358] sm:$0xff]
      %v357 = vld [vmem:[%s234 + $0x360] sm:$0xff]
      %v358 = vld [vmem:[%s234 + $0x368] sm:$0xff]
      %v359 = vld [vmem:[%s234 + $0x370] sm:$0xff]
      %v360 = vld [vmem:[%s234 + $0x378] sm:$0xff]
      %v361 = vld [vmem:[%s234 + $0x380] sm:$0xff]
      %v362 = vld [vmem:[%s234 + $0x388] sm:$0xff]
      %v363 = vld [vmem:[%s234 + $0x390] sm:$0xff]
      %v364 = vld [vmem:[%s234 + $0x398] sm:$0xff]
      %v365 = vld [vmem:[%s234 + $0x3a0] sm:$0xff]
      %v366 = vld [vmem:[%s234 + $0x3a8] sm:$0xff]
      %v367 = vld [vmem:[%s234 + $0x3b0] sm:$0xff]
      %v368 = vld [vmem:[%s234 + $0x3b8] sm:$0xff]
      %v369 = vld [vmem:[%s234 + $0x3c0] sm:$0xff]
      %v370 = vld [vmem:[%s234 + $0x3c8] sm:$0xff]
      %v371 = vld [vmem:[%s234 + $0x3d0] sm:$0xff]
      %v372 = vld [vmem:[%s234 + $0x3d8] sm:$0xff]
      %v373 = vld [vmem:[%s234 + $0x3e0] sm:$0xff]
      %v374 = vld [vmem:[%s234 + $0x3e8] sm:$0xff]
      %v375 = vld [vmem:[%s234 + $0x3f0] sm:$0xff]
      %v376 = vld [vmem:[%s234 + $0x3f8] sm:$0xff]
      %v377 = vld [vmem:[%s1] sm:$0xf]
      %v378 = vld [vmem:[%s1 + $0x4] sm:$0xf]
      %v379 = vld [vmem:[%s1 + $0x8] sm:$0xf]
      %v380 = vld [vmem:[%s1 + $0xc] sm:$0xf]
      %v381 = vld [vmem:[%s1 + $0x10] sm:$0xf]
      %v382 = vld [vmem:[%s1 + $0x14] sm:$0xf]
      %v383 = vld [vmem:[%s1 + $0x18] sm:$0xf]
      %v384 = vld [vmem:[%s1 + $0x1c] sm:$0xf]
      %v385 = vld [vmem:[%s1 + $0x20] sm:$0xf]
      %v386 = vld [vmem:[%s1 + $0x24] sm:$0xf]
      %v387 = vld [vmem:[%s1 + $0x28] sm:$0xf]
      %v388 = vld [vmem:[%s1 + $0x2c] sm:$0xf]
      %v389 = vld [vmem:[%s1 + $0x30] sm:$0xf]
      %v390 = vld [vmem:[%s1 + $0x34] sm:$0xf]
      %v391 = vld [vmem:[%s1 + $0x38] sm:$0xf]
      %v392 = vld [vmem:[%s1 + $0x3c] sm:$0xf]
      %v393 = vld [vmem:[%s1 + $0x40] sm:$0xf]
      %v394 = vld [vmem:[%s1 + $0x44] sm:$0xf]
      %v395 = vld [vmem:[%s2] sm:$0x1]
      %v397 = vperm.slane %v395, 0
      %v527 = vunpack.c.l.b16 %v249
      %v528 = vunpack.c.h.b16 %v249
      %v529 = vunpack.c.l.b16 %v250
      %v530 = vunpack.c.h.b16 %v250
      %v531 = vunpack.c.l.b16 %v251
      %v532 = vunpack.c.h.b16 %v251
      %v533 = vunpack.c.l.b16 %v252
      %v534 = vunpack.c.h.b16 %v252
      %v535 = vunpack.c.l.b16 %v253
      %v536 = vunpack.c.h.b16 %v253
      %v537 = vunpack.c.l.b16 %v254
      %v538 = vunpack.c.h.b16 %v254
      %v539 = vunpack.c.l.b16 %v255
      %v540 = vunpack.c.h.b16 %v255
      %v541 = vunpack.c.l.b16 %v256
      %v542 = vunpack.c.h.b16 %v256
      %v543 = vunpack.c.l.b16 %v257
      %v544 = vunpack.c.h.b16 %v257
      %v545 = vunpack.c.l.b16 %v258
      %v546 = vunpack.c.h.b16 %v258
      %v547 = vunpack.c.l.b16 %v259
      %v548 = vunpack.c.h.b16 %v259
      %v549 = vunpack.c.l.b16 %v260
      %v550 = vunpack.c.h.b16 %v260
      %v551 = vunpack.c.l.b16 %v261
      %v552 = vunpack.c.h.b16 %v261
      %v553 = vunpack.c.l.b16 %v262
      %v554 = vunpack.c.h.b16 %v262
      %v555 = vunpack.c.l.b16 %v263
      %v556 = vunpack.c.h.b16 %v263
      %v557 = vunpack.c.l.b16 %v264
      %v558 = vunpack.c.h.b16 %v264
      %v559 = vunpack.c.l.b16 %v265
      %v560 = vunpack.c.h.b16 %v265
      %v561 = vunpack.c.l.b16 %v266
      %v562 = vunpack.c.h.b16 %v266
      %v563 = vunpack.c.l.b16 %v267
      %v564 = vunpack.c.h.b16 %v267
      %v565 = vunpack.c.l.b16 %v268
      %v566 = vunpack.c.h.b16 %v268
      %v567 = vunpack.c.l.b16 %v269
      %v568 = vunpack.c.h.b16 %v269
      %v569 = vunpack.c.l.b16 %v270
      %v570 = vunpack.c.h.b16 %v270
      %v571 = vunpack.c.l.b16 %v271
      %v572 = vunpack.c.h.b16 %v271
      %v573 = vunpack.c.l.b16 %v272
      %v574 = vunpack.c.h.b16 %v272
      %v575 = vunpack.c.l.b16 %v273
      %v576 = vunpack.c.h.b16 %v273
      %v577 = vunpack.c.l.b16 %v274
      %v578 = vunpack.c.h.b16 %v274
      %v579 = vunpack.c.l.b16 %v275
      %v580 = vunpack.c.h.b16 %v275
      %v581 = vunpack.c.l.b16 %v276
      %v582 = vunpack.c.h.b16 %v276
      %v583 = vunpack.c.l.b16 %v277
      %v584 = vunpack.c.h.b16 %v277
      %v585 = vunpack.c.l.b16 %v278
      %v586 = vunpack.c.h.b16 %v278
      %v587 = vunpack.c.l.b16 %v279
      %v588 = vunpack.c.h.b16 %v279
      %v589 = vunpack.c.l.b16 %v280
      %v590 = vunpack.c.h.b16 %v280
      %v591 = vunpack.c.l.b16 %v281
      %v592 = vunpack.c.h.b16 %v281
      %v593 = vunpack.c.l.b16 %v282
      %v594 = vunpack.c.h.b16 %v282
      %v595 = vunpack.c.l.b16 %v283
      %v596 = vunpack.c.h.b16 %v283
      %v597 = vunpack.c.l.b16 %v284
      %v598 = vunpack.c.h.b16 %v284
      %v599 = vunpack.c.l.b16 %v285
      %v600 = vunpack.c.h.b16 %v285
      %v601 = vunpack.c.l.b16 %v286
      %v602 = vunpack.c.h.b16 %v286
      %v603 = vunpack.c.l.b16 %v287
      %v604 = vunpack.c.h.b16 %v287
      %v605 = vunpack.c.l.b16 %v288
      %v606 = vunpack.c.h.b16 %v288
      %v607 = vunpack.c.l.b16 %v289
      %v608 = vunpack.c.h.b16 %v289
      %v609 = vunpack.c.l.b16 %v290
      %v610 = vunpack.c.h.b16 %v290
      %v611 = vunpack.c.l.b16 %v291
      %v612 = vunpack.c.h.b16 %v291
      %v613 = vunpack.c.l.b16 %v292
      %v614 = vunpack.c.h.b16 %v292
      %v615 = vunpack.c.l.b16 %v293
      %v616 = vunpack.c.h.b16 %v293
      %v617 = vunpack.c.l.b16 %v294
      %v618 = vunpack.c.h.b16 %v294
      %v619 = vunpack.c.l.b16 %v295
      %v620 = vunpack.c.h.b16 %v295
      %v621 = vunpack.c.l.b16 %v296
      %v622 = vunpack.c.h.b16 %v296
      %v623 = vunpack.c.l.b16 %v297
      %v624 = vunpack.c.h.b16 %v297
      %v625 = vunpack.c.l.b16 %v298
      %v626 = vunpack.c.h.b16 %v298
      %v627 = vunpack.c.l.b16 %v299
      %v628 = vunpack.c.h.b16 %v299
      %v629 = vunpack.c.l.b16 %v300
      %v630 = vunpack.c.h.b16 %v300
      %v631 = vunpack.c.l.b16 %v301
      %v632 = vunpack.c.h.b16 %v301
      %v633 = vunpack.c.l.b16 %v302
      %v634 = vunpack.c.h.b16 %v302
      %v635 = vunpack.c.l.b16 %v303
      %v636 = vunpack.c.h.b16 %v303
      %v637 = vunpack.c.l.b16 %v304
      %v638 = vunpack.c.h.b16 %v304
      %v639 = vunpack.c.l.b16 %v305
      %v640 = vunpack.c.h.b16 %v305
      %v641 = vunpack.c.l.b16 %v306
      %v642 = vunpack.c.h.b16 %v306
      %v643 = vunpack.c.l.b16 %v307
      %v644 = vunpack.c.h.b16 %v307
      %v645 = vunpack.c.l.b16 %v308
      %v646 = vunpack.c.h.b16 %v308
      %v647 = vunpack.c.l.b16 %v309
      %v648 = vunpack.c.h.b16 %v309
      %v649 = vunpack.c.l.b16 %v310
      %v650 = vunpack.c.h.b16 %v310
      %v651 = vunpack.c.l.b16 %v311
      %v652 = vunpack.c.h.b16 %v311
      %v653 = vunpack.c.l.b16 %v312
      %v654 = vunpack.c.h.b16 %v312
      %v655 = vunpack.c.l.b16 %v313
      %v656 = vunpack.c.h.b16 %v313
      %v657 = vunpack.c.l.b16 %v314
      %v658 = vunpack.c.h.b16 %v314
      %v659 = vunpack.c.l.b16 %v315
      %v660 = vunpack.c.h.b16 %v315
      %v661 = vunpack.c.l.b16 %v316
      %v662 = vunpack.c.h.b16 %v316
      %v663 = vunpack.c.l.b16 %v317
      %v664 = vunpack.c.h.b16 %v317
      %v665 = vunpack.c.l.b16 %v318
      %v666 = vunpack.c.h.b16 %v318
      %v667 = vunpack.c.l.b16 %v319
      %v668 = vunpack.c.h.b16 %v319
      %v669 = vunpack.c.l.b16 %v320
      %v670 = vunpack.c.h.b16 %v320
      %v671 = vunpack.c.l.b16 %v321
      %v672 = vunpack.c.h.b16 %v321
      %v673 = vunpack.c.l.b16 %v322
      %v674 = vunpack.c.h.b16 %v322
      %v675 = vunpack.c.l.b16 %v323
      %v676 = vunpack.c.h.b16 %v323
      %v677 = vunpack.c.l.b16 %v324
      %v678 = vunpack.c.h.b16 %v324
      %v679 = vunpack.c.l.b16 %v325
      %v680 = vunpack.c.h.b16 %v325
      %v681 = vunpack.c.l.b16 %v326
      %v682 = vunpack.c.h.b16 %v326
      %v683 = vunpack.c.l.b16 %v327
      %v684 = vunpack.c.h.b16 %v327
      %v685 = vunpack.c.l.b16 %v328
      %v686 = vunpack.c.h.b16 %v328
      %v687 = vunpack.c.l.b16 %v329
      %v688 = vunpack.c.h.b16 %v329
      %v689 = vunpack.c.l.b16 %v330
      %v690 = vunpack.c.h.b16 %v330
      %v691 = vunpack.c.l.b16 %v331
      %v692 = vunpack.c.h.b16 %v331
      %v693 = vunpack.c.l.b16 %v332
      %v694 = vunpack.c.h.b16 %v332
      %v695 = vunpack.c.l.b16 %v333
      %v696 = vunpack.c.h.b16 %v333
      %v697 = vunpack.c.l.b16 %v334
      %v698 = vunpack.c.h.b16 %v334
      %v699 = vunpack.c.l.b16 %v335
      %v700 = vunpack.c.h.b16 %v335
      %v701 = vunpack.c.l.b16 %v336
      %v702 = vunpack.c.h.b16 %v336
      %v703 = vunpack.c.l.b16 %v337
      %v704 = vunpack.c.h.b16 %v337
      %v705 = vunpack.c.l.b16 %v338
      %v706 = vunpack.c.h.b16 %v338
      %v707 = vunpack.c.l.b16 %v339
      %v708 = vunpack.c.h.b16 %v339
      %v709 = vunpack.c.l.b16 %v340
      %v710 = vunpack.c.h.b16 %v340
      %v711 = vunpack.c.l.b16 %v341
      %v712 = vunpack.c.h.b16 %v341
      %v713 = vunpack.c.l.b16 %v342
      %v714 = vunpack.c.h.b16 %v342
      %v715 = vunpack.c.l.b16 %v343
      %v716 = vunpack.c.h.b16 %v343
      %v717 = vunpack.c.l.b16 %v344
      %v718 = vunpack.c.h.b16 %v344
      %v719 = vunpack.c.l.b16 %v345
      %v720 = vunpack.c.h.b16 %v345
      %v721 = vunpack.c.l.b16 %v346
      %v722 = vunpack.c.h.b16 %v346
      %v723 = vunpack.c.l.b16 %v347
      %v724 = vunpack.c.h.b16 %v347
      %v725 = vunpack.c.l.b16 %v348
      %v726 = vunpack.c.h.b16 %v348
      %v727 = vunpack.c.l.b16 %v349
      %v728 = vunpack.c.h.b16 %v349
      %v729 = vunpack.c.l.b16 %v350
      %v730 = vunpack.c.h.b16 %v350
      %v731 = vunpack.c.l.b16 %v351
      %v732 = vunpack.c.h.b16 %v351
      %v733 = vunpack.c.l.b16 %v352
      %v734 = vunpack.c.h.b16 %v352
      %v735 = vunpack.c.l.b16 %v353
      %v736 = vunpack.c.h.b16 %v353
      %v737 = vunpack.c.l.b16 %v354
      %v738 = vunpack.c.h.b16 %v354
      %v739 = vunpack.c.l.b16 %v355
      %v740 = vunpack.c.h.b16 %v355
      %v741 = vunpack.c.l.b16 %v356
      %v742 = vunpack.c.h.b16 %v356
      %v743 = vunpack.c.l.b16 %v357
      %v744 = vunpack.c.h.b16 %v357
      %v745 = vunpack.c.l.b16 %v358
      %v746 = vunpack.c.h.b16 %v358
      %v747 = vunpack.c.l.b16 %v359
      %v748 = vunpack.c.h.b16 %v359
      %v749 = vunpack.c.l.b16 %v360
      %v750 = vunpack.c.h.b16 %v360
      %v751 = vunpack.c.l.b16 %v361
      %v752 = vunpack.c.h.b16 %v361
      %v753 = vunpack.c.l.b16 %v362
      %v754 = vunpack.c.h.b16 %v362
      %v755 = vunpack.c.l.b16 %v363
      %v756 = vunpack.c.h.b16 %v363
      %v757 = vunpack.c.l.b16 %v364
      %v758 = vunpack.c.h.b16 %v364
      %v759 = vunpack.c.l.b16 %v365
      %v760 = vunpack.c.h.b16 %v365
      %v761 = vunpack.c.l.b16 %v366
      %v762 = vunpack.c.h.b16 %v366
      %v763 = vunpack.c.l.b16 %v367
      %v764 = vunpack.c.h.b16 %v367
      %v765 = vunpack.c.l.b16 %v368
      %v766 = vunpack.c.h.b16 %v368
      %v767 = vunpack.c.l.b16 %v369
      %v768 = vunpack.c.h.b16 %v369
      %v769 = vunpack.c.l.b16 %v370
      %v770 = vunpack.c.h.b16 %v370
      %v771 = vunpack.c.l.b16 %v371
      %v772 = vunpack.c.h.b16 %v371
      %v773 = vunpack.c.l.b16 %v372
      %v774 = vunpack.c.h.b16 %v372
      %v775 = vunpack.c.l.b16 %v373
      %v776 = vunpack.c.h.b16 %v373
      %v777 = vunpack.c.l.b16 %v374
      %v778 = vunpack.c.h.b16 %v374
      %v779 = vunpack.c.l.b16 %v375
      %v780 = vunpack.c.h.b16 %v375
      %v781 = vunpack.c.l.b16 %v376
      %v782 = vunpack.c.h.b16 %v376
      %v783 = vpack.c.b16 %v529, %v527
      %v784 = vpack.c.b16 %v530, %v528
      %v785 = vpack.c.b16 %v533, %v531
      %v786 = vpack.c.b16 %v534, %v532
      %v787 = vpack.c.b16 %v537, %v535
      %v788 = vpack.c.b16 %v538, %v536
      %v789 = vpack.c.b16 %v541, %v539
      %v790 = vpack.c.b16 %v542, %v540
      %v791 = vpack.c.b16 %v545, %v543
      %v792 = vpack.c.b16 %v546, %v544
      %v793 = vpack.c.b16 %v549, %v547
      %v794 = vpack.c.b16 %v550, %v548
      %v795 = vpack.c.b16 %v553, %v551
      %v796 = vpack.c.b16 %v554, %v552
      %v797 = vpack.c.b16 %v557, %v555
      %v798 = vpack.c.b16 %v558, %v556
      %v799 = vpack.c.b16 %v561, %v559
      %v800 = vpack.c.b16 %v562, %v560
      %v801 = vpack.c.b16 %v565, %v563
      %v802 = vpack.c.b16 %v566, %v564
      %v803 = vpack.c.b16 %v569, %v567
      %v804 = vpack.c.b16 %v570, %v568
      %v805 = vpack.c.b16 %v573, %v571
      %v806 = vpack.c.b16 %v574, %v572
      %v807 = vpack.c.b16 %v577, %v575
      %v808 = vpack.c.b16 %v578, %v576
      %v809 = vpack.c.b16 %v581, %v579
      %v810 = vpack.c.b16 %v582, %v580
      %v811 = vpack.c.b16 %v585, %v583
      %v812 = vpack.c.b16 %v586, %v584
      %v813 = vpack.c.b16 %v589, %v587
      %v814 = vpack.c.b16 %v590, %v588
      %v815 = vpack.c.b16 %v593, %v591
      %v816 = vpack.c.b16 %v594, %v592
      %v817 = vpack.c.b16 %v597, %v595
      %v818 = vpack.c.b16 %v598, %v596
      %v819 = vpack.c.b16 %v601, %v599
      %v820 = vpack.c.b16 %v602, %v600
      %v821 = vpack.c.b16 %v605, %v603
      %v822 = vpack.c.b16 %v606, %v604
      %v823 = vpack.c.b16 %v609, %v607
      %v824 = vpack.c.b16 %v610, %v608
      %v825 = vpack.c.b16 %v613, %v611
      %v826 = vpack.c.b16 %v614, %v612
      %v827 = vpack.c.b16 %v617, %v615
      %v828 = vpack.c.b16 %v618, %v616
      %v829 = vpack.c.b16 %v621, %v619
      %v830 = vpack.c.b16 %v622, %v620
      %v831 = vpack.c.b16 %v625, %v623
      %v832 = vpack.c.b16 %v626, %v624
      %v833 = vpack.c.b16 %v629, %v627
      %v834 = vpack.c.b16 %v630, %v628
      %v835 = vpack.c.b16 %v633, %v631
      %v836 = vpack.c.b16 %v634, %v632
      %v837 = vpack.c.b16 %v637, %v635
      %v838 = vpack.c.b16 %v638, %v636
      %v839 = vpack.c.b16 %v641, %v639
      %v840 = vpack.c.b16 %v642, %v640
      %v841 = vpack.c.b16 %v645, %v643
      %v842 = vpack.c.b16 %v646, %v644
      %v843 = vpack.c.b16 %v649, %v647
      %v844 = vpack.c.b16 %v650, %v648
      %v845 = vpack.c.b16 %v653, %v651
      %v846 = vpack.c.b16 %v654, %v652
      %v847 = vpack.c.b16 %v657, %v655
      %v848 = vpack.c.b16 %v658, %v656
      %v849 = vpack.c.b16 %v661, %v659
      %v850 = vpack.c.b16 %v662, %v660
      %v851 = vpack.c.b16 %v665, %v663
      %v852 = vpack.c.b16 %v666, %v664
      %v853 = vpack.c.b16 %v669, %v667
      %v854 = vpack.c.b16 %v670, %v668
      %v855 = vpack.c.b16 %v673, %v671
      %v856 = vpack.c.b16 %v674, %v672
      %v857 = vpack.c.b16 %v677, %v675
      %v858 = vpack.c.b16 %v678, %v676
      %v859 = vpack.c.b16 %v681, %v679
      %v860 = vpack.c.b16 %v682, %v680
      %v861 = vpack.c.b16 %v685, %v683
      %v862 = vpack.c.b16 %v686, %v684
      %v863 = vpack.c.b16 %v689, %v687
      %v864 = vpack.c.b16 %v690, %v688
      %v865 = vpack.c.b16 %v693, %v691
      %v866 = vpack.c.b16 %v694, %v692
      %v867 = vpack.c.b16 %v697, %v695
      %v868 = vpack.c.b16 %v698, %v696
      %v869 = vpack.c.b16 %v701, %v699
      %v870 = vpack.c.b16 %v702, %v700
      %v871 = vpack.c.b16 %v705, %v703
      %v872 = vpack.c.b16 %v706, %v704
      %v873 = vpack.c.b16 %v709, %v707
      %v874 = vpack.c.b16 %v710, %v708
      %v875 = vpack.c.b16 %v713, %v711
      %v876 = vpack.c.b16 %v714, %v712
      %v877 = vpack.c.b16 %v717, %v715
      %v878 = vpack.c.b16 %v718, %v716
      %v879 = vpack.c.b16 %v721, %v719
      %v880 = vpack.c.b16 %v722, %v720
      %v881 = vpack.c.b16 %v725, %v723
      %v882 = vpack.c.b16 %v726, %v724
      %v883 = vpack.c.b16 %v729, %v727
      %v884 = vpack.c.b16 %v730, %v728
      %v885 = vpack.c.b16 %v733, %v731
      %v886 = vpack.c.b16 %v734, %v732
      %v887 = vpack.c.b16 %v737, %v735
      %v888 = vpack.c.b16 %v738, %v736
      %v889 = vpack.c.b16 %v741, %v739
      %v890 = vpack.c.b16 %v742, %v740
      %v891 = vpack.c.b16 %v745, %v743
      %v892 = vpack.c.b16 %v746, %v744
      %v893 = vpack.c.b16 %v749, %v747
      %v894 = vpack.c.b16 %v750, %v748
      %v895 = vpack.c.b16 %v753, %v751
      %v896 = vpack.c.b16 %v754, %v752
      %v897 = vpack.c.b16 %v757, %v755
      %v898 = vpack.c.b16 %v758, %v756
      %v899 = vpack.c.b16 %v761, %v759
      %v900 = vpack.c.b16 %v762, %v760
      %v901 = vpack.c.b16 %v765, %v763
      %v902 = vpack.c.b16 %v766, %v764
      %v903 = vpack.c.b16 %v769, %v767
      %v904 = vpack.c.b16 %v770, %v768
      %v905 = vpack.c.b16 %v773, %v771
      %v906 = vpack.c.b16 %v774, %v772
      %v907 = vpack.c.b16 %v777, %v775
      %v908 = vpack.c.b16 %v778, %v776
      %v909 = vpack.c.b16 %v781, %v779
      %v910 = vpack.c.b16 %v782, %v780
      %v993 = vunpack.c.l.b16 %v377
      %v994 = vunpack.c.l.b16 %v378
      %v995 = vunpack.c.l.b16 %v379
      %v996 = vunpack.c.l.b16 %v380
      %v997 = vunpack.c.l.b16 %v381
      %v998 = vunpack.c.l.b16 %v382
      %v999 = vunpack.c.l.b16 %v383
      %v1000 = vunpack.c.l.b16 %v384
      %v1001 = vunpack.c.l.b16 %v385
      %v1002 = vunpack.c.l.b16 %v386
      %v1003 = vunpack.c.l.b16 %v387
      %v1004 = vunpack.c.l.b16 %v388
      %v1005 = vunpack.c.l.b16 %v389
      %v1006 = vunpack.c.l.b16 %v390
      %v1007 = vunpack.c.l.b16 %v391
      %v1008 = vunpack.c.l.b16 %v392
      %v1009 = vunpack.c.l.b16 %v393
      %v1010 = vunpack.c.l.b16 %v394
      %v1011 = vpack.c.b16 %v994, %v993
      %v1012 = vpack.c.b16 %v996, %v995
      %v1013 = vpack.c.b16 %v998, %v997
      %v1014 = vpack.c.b16 %v1000, %v999
      %v1015 = vpack.c.b16 %v1002, %v1001
      %v1016 = vpack.c.b16 %v1004, %v1003
      %v1017 = vpack.c.b16 %v1006, %v1005
      %v1018 = vpack.c.b16 %v1008, %v1007
      %v1019 = vpack.c.b16 %v1010, %v1009
      %vm1029 = vcmask 130048
      %v1031 = vsel %vm1029, %v784, 0
      %v1034 = vsel %vm1029, %v786, 0
      %v1037 = vsel %vm1029, %v788, 0
      %v1040 = vsel %vm1029, %v790, 0
      %v1043 = vsel %vm1029, %v792, 0
      %v1046 = vsel %vm1029, %v794, 0
      %v1049 = vsel %vm1029, %v796, 0
      %v1052 = vsel %vm1029, %v798, 0
      %v1055 = vsel %vm1029, %v800, 0
      %v1058 = vsel %vm1029, %v802, 0
      %v1061 = vsel %vm1029, %v804, 0
      %v1064 = vsel %vm1029, %v806, 0
      %v1067 = vsel %vm1029, %v808, 0
      %v1070 = vsel %vm1029, %v810, 0
      %v1073 = vsel %vm1029, %v812, 0
      %v1076 = vsel %vm1029, %v814, 0
      %v1079 = vsel %vm1029, %v816, 0
      %v1082 = vsel %vm1029, %v818, 0
      %v1085 = vsel %vm1029, %v820, 0
      %v1088 = vsel %vm1029, %v822, 0
      %v1091 = vsel %vm1029, %v824, 0
      %v1094 = vsel %vm1029, %v826, 0
      %v1097 = vsel %vm1029, %v828, 0
      %v1100 = vsel %vm1029, %v830, 0
      %v1103 = vsel %vm1029, %v832, 0
      %v1106 = vsel %vm1029, %v834, 0
      %v1109 = vsel %vm1029, %v836, 0
      %v1112 = vsel %vm1029, %v838, 0
      %v1115 = vsel %vm1029, %v840, 0
      %v1118 = vsel %vm1029, %v842, 0
      %v1121 = vsel %vm1029, %v844, 0
      %v1124 = vsel %vm1029, %v846, 0
      %v1127 = vsel %vm1029, %v848, 0
      %v1130 = vsel %vm1029, %v850, 0
      %v1133 = vsel %vm1029, %v852, 0
      %v1136 = vsel %vm1029, %v854, 0
      %v1139 = vsel %vm1029, %v856, 0
      %v1142 = vsel %vm1029, %v858, 0
      %v1145 = vsel %vm1029, %v860, 0
      %v1148 = vsel %vm1029, %v862, 0
      %v1151 = vsel %vm1029, %v864, 0
      %v1154 = vsel %vm1029, %v866, 0
      %v1157 = vsel %vm1029, %v868, 0
      %v1160 = vsel %vm1029, %v870, 0
      %v1163 = vsel %vm1029, %v872, 0
      %v1166 = vsel %vm1029, %v874, 0
      %v1169 = vsel %vm1029, %v876, 0
      %v1172 = vsel %vm1029, %v878, 0
      %v1175 = vsel %vm1029, %v880, 0
      %v1178 = vsel %vm1029, %v882, 0
      %v1181 = vsel %vm1029, %v884, 0
      %v1184 = vsel %vm1029, %v886, 0
      %v1187 = vsel %vm1029, %v888, 0
      %v1190 = vsel %vm1029, %v890, 0
      %v1193 = vsel %vm1029, %v892, 0
      %v1196 = vsel %vm1029, %v894, 0
      %v1199 = vsel %vm1029, %v896, 0
      %v1202 = vsel %vm1029, %v898, 0
      %v1205 = vsel %vm1029, %v900, 0
      %v1208 = vsel %vm1029, %v902, 0
      %v1211 = vsel %vm1029, %v904, 0
      %v1214 = vsel %vm1029, %v906, 0
      %v1217 = vsel %vm1029, %v908, 0
      %v1220 = vsel %vm1029, %v910, 0
      %1222 = vmatpush.bf16.msra.mxu0 %v1018
      %1223 = vmatpush.bf16.msra.mxu0 %v1017
      %1224 = vmatpush.bf16.msra.mxu0 %v1016
      %1225 = vmatpush.bf16.msra.mxu0 %v1015
      %1226 = vmatpush.bf16.msra.mxu0 %v1014
      %1227 = vmatpush.bf16.msra.mxu0 %v1013
      %1228 = vmatpush.bf16.msra.mxu0 %v1012
      %1229 = vmatpush.bf16.msra.mxu0 %v1011
      %1230 = vmatmul.bf16.gmra.mxu0 %v783
      %v1231 = vpop.f32.mrf.mxu0
      %v1232 = vadd.f32 %v397, %v1231
      %v1233 = vpop.f32.mrf.mxu0
      %v1234 = vadd.f32 %v397, %v1233
      %1235 = vmatmul.bf16.gmra.mxu0 %v785
      %v1236 = vpop.f32.mrf.mxu0
      %v1237 = vadd.f32 %v397, %v1236
      %v1238 = vpop.f32.mrf.mxu0
      %v1239 = vadd.f32 %v397, %v1238
      %1240 = vmatmul.bf16.gmra.mxu0 %v787
      %v1241 = vpop.f32.mrf.mxu0
      %v1242 = vadd.f32 %v397, %v1241
      %v1243 = vpop.f32.mrf.mxu0
      %v1244 = vadd.f32 %v397, %v1243
      %1245 = vmatmul.bf16.gmra.mxu0 %v789
      %v1246 = vpop.f32.mrf.mxu0
      %v1247 = vadd.f32 %v397, %v1246
      %v1248 = vpop.f32.mrf.mxu0
      %v1249 = vadd.f32 %v397, %v1248
      %1250 = vmatmul.bf16.gmra.mxu0 %v791
      %v1251 = vpop.f32.mrf.mxu0
      %v1252 = vadd.f32 %v397, %v1251
      %v1253 = vpop.f32.mrf.mxu0
      %v1254 = vadd.f32 %v397, %v1253
      %1255 = vmatmul.bf16.gmra.mxu0 %v793
      %v1256 = vpop.f32.mrf.mxu0
      %v1257 = vadd.f32 %v397, %v1256
      %v1258 = vpop.f32.mrf.mxu0
      %v1259 = vadd.f32 %v397, %v1258
      %1260 = vmatmul.bf16.gmra.mxu0 %v795
      %v1261 = vpop.f32.mrf.mxu0
      %v1262 = vadd.f32 %v397, %v1261
      %v1263 = vpop.f32.mrf.mxu0
      %v1264 = vadd.f32 %v397, %v1263
      %1265 = vmatmul.bf16.gmra.mxu0 %v797
      %v1266 = vpop.f32.mrf.mxu0
      %v1267 = vadd.f32 %v397, %v1266
      %v1268 = vpop.f32.mrf.mxu0
      %v1269 = vadd.f32 %v397, %v1268
      %1270 = vmatmul.bf16.gmra.mxu0 %v799
      %v1271 = vpop.f32.mrf.mxu0
      %v1272 = vadd.f32 %v397, %v1271
      %v1273 = vpop.f32.mrf.mxu0
      %v1274 = vadd.f32 %v397, %v1273
      %1275 = vmatmul.bf16.gmra.mxu0 %v801
      %v1276 = vpop.f32.mrf.mxu0
      %v1277 = vadd.f32 %v397, %v1276
      %v1278 = vpop.f32.mrf.mxu0
      %v1279 = vadd.f32 %v397, %v1278
      %1280 = vmatmul.bf16.gmra.mxu0 %v803
      %v1281 = vpop.f32.mrf.mxu0
      %v1282 = vadd.f32 %v397, %v1281
      %v1283 = vpop.f32.mrf.mxu0
      %v1284 = vadd.f32 %v397, %v1283
      %1285 = vmatmul.bf16.gmra.mxu0 %v805
      %v1286 = vpop.f32.mrf.mxu0
      %v1287 = vadd.f32 %v397, %v1286
      %v1288 = vpop.f32.mrf.mxu0
      %v1289 = vadd.f32 %v397, %v1288
      %1290 = vmatmul.bf16.gmra.mxu0 %v807
      %v1291 = vpop.f32.mrf.mxu0
      %v1292 = vadd.f32 %v397, %v1291
      %v1293 = vpop.f32.mrf.mxu0
      %v1294 = vadd.f32 %v397, %v1293
      %1295 = vmatmul.bf16.gmra.mxu0 %v809
      %v1296 = vpop.f32.mrf.mxu0
      %v1297 = vadd.f32 %v397, %v1296
      %v1298 = vpop.f32.mrf.mxu0
      %v1299 = vadd.f32 %v397, %v1298
      %1300 = vmatmul.bf16.gmra.mxu0 %v811
      %v1301 = vpop.f32.mrf.mxu0
      %v1302 = vadd.f32 %v397, %v1301
      %v1303 = vpop.f32.mrf.mxu0
      %v1304 = vadd.f32 %v397, %v1303
      %1305 = vmatmul.bf16.gmra.mxu0 %v813
      %v1306 = vpop.f32.mrf.mxu0
      %v1307 = vadd.f32 %v397, %v1306
      %v1308 = vpop.f32.mrf.mxu0
      %v1309 = vadd.f32 %v397, %v1308
      %1310 = vmatmul.bf16.gmra.mxu0 %v815
      %v1311 = vpop.f32.mrf.mxu0
      %v1312 = vadd.f32 %v397, %v1311
      %v1313 = vpop.f32.mrf.mxu0
      %v1314 = vadd.f32 %v397, %v1313
      %1315 = vmatmul.bf16.gmra.mxu0 %v817
      %v1316 = vpop.f32.mrf.mxu0
      %v1317 = vadd.f32 %v397, %v1316
      %v1318 = vpop.f32.mrf.mxu0
      %v1319 = vadd.f32 %v397, %v1318
      %1320 = vmatmul.bf16.gmra.mxu0 %v819
      %v1321 = vpop.f32.mrf.mxu0
      %v1322 = vadd.f32 %v397, %v1321
      %v1323 = vpop.f32.mrf.mxu0
      %v1324 = vadd.f32 %v397, %v1323
      %1325 = vmatmul.bf16.gmra.mxu0 %v821
      %v1326 = vpop.f32.mrf.mxu0
      %v1327 = vadd.f32 %v397, %v1326
      %v1328 = vpop.f32.mrf.mxu0
      %v1329 = vadd.f32 %v397, %v1328
      %1330 = vmatmul.bf16.gmra.mxu0 %v823
      %v1331 = vpop.f32.mrf.mxu0
      %v1332 = vadd.f32 %v397, %v1331
      %v1333 = vpop.f32.mrf.mxu0
      %v1334 = vadd.f32 %v397, %v1333
      %1335 = vmatmul.bf16.gmra.mxu0 %v825
      %v1336 = vpop.f32.mrf.mxu0
      %v1337 = vadd.f32 %v397, %v1336
      %v1338 = vpop.f32.mrf.mxu0
      %v1339 = vadd.f32 %v397, %v1338
      %1340 = vmatmul.bf16.gmra.mxu0 %v827
      %v1341 = vpop.f32.mrf.mxu0
      %v1342 = vadd.f32 %v397, %v1341
      %v1343 = vpop.f32.mrf.mxu0
      %v1344 = vadd.f32 %v397, %v1343
      %1345 = vmatmul.bf16.gmra.mxu0 %v829
      %v1346 = vpop.f32.mrf.mxu0
      %v1347 = vadd.f32 %v397, %v1346
      %v1348 = vpop.f32.mrf.mxu0
      %v1349 = vadd.f32 %v397, %v1348
      %1350 = vmatmul.bf16.gmra.mxu0 %v831
      %v1351 = vpop.f32.mrf.mxu0
      %v1352 = vadd.f32 %v397, %v1351
      %v1353 = vpop.f32.mrf.mxu0
      %v1354 = vadd.f32 %v397, %v1353
      %1355 = vmatmul.bf16.gmra.mxu0 %v833
      %v1356 = vpop.f32.mrf.mxu0
      %v1357 = vadd.f32 %v397, %v1356
      %v1358 = vpop.f32.mrf.mxu0
      %v1359 = vadd.f32 %v397, %v1358
      %1360 = vmatmul.bf16.gmra.mxu0 %v835
      %v1361 = vpop.f32.mrf.mxu0
      %v1362 = vadd.f32 %v397, %v1361
      %v1363 = vpop.f32.mrf.mxu0
      %v1364 = vadd.f32 %v397, %v1363
      %1365 = vmatmul.bf16.gmra.mxu0 %v837
      %v1366 = vpop.f32.mrf.mxu0
      %v1367 = vadd.f32 %v397, %v1366
      %v1368 = vpop.f32.mrf.mxu0
      %v1369 = vadd.f32 %v397, %v1368
      %1370 = vmatmul.bf16.gmra.mxu0 %v839
      %v1371 = vpop.f32.mrf.mxu0
      %v1372 = vadd.f32 %v397, %v1371
      %v1373 = vpop.f32.mrf.mxu0
      %v1374 = vadd.f32 %v397, %v1373
      %1375 = vmatmul.bf16.gmra.mxu0 %v841
      %v1376 = vpop.f32.mrf.mxu0
      %v1377 = vadd.f32 %v397, %v1376
      %v1378 = vpop.f32.mrf.mxu0
      %v1379 = vadd.f32 %v397, %v1378
      %1380 = vmatmul.bf16.gmra.mxu0 %v843
      %v1381 = vpop.f32.mrf.mxu0
      %v1382 = vadd.f32 %v397, %v1381
      %v1383 = vpop.f32.mrf.mxu0
      %v1384 = vadd.f32 %v397, %v1383
      %1385 = vmatmul.bf16.gmra.mxu0 %v845
      %v1386 = vpop.f32.mrf.mxu0
      %v1387 = vadd.f32 %v397, %v1386
      %v1388 = vpop.f32.mrf.mxu0
      %v1389 = vadd.f32 %v397, %v1388
      %1390 = vmatmul.bf16.gmra.mxu0 %v847
      %v1391 = vpop.f32.mrf.mxu0
      %v1392 = vadd.f32 %v397, %v1391
      %v1393 = vpop.f32.mrf.mxu0
      %v1394 = vadd.f32 %v397, %v1393
      %1395 = vmatmul.bf16.gmra.mxu0 %v849
      %v1396 = vpop.f32.mrf.mxu0
      %v1397 = vadd.f32 %v397, %v1396
      %v1398 = vpop.f32.mrf.mxu0
      %v1399 = vadd.f32 %v397, %v1398
      %1400 = vmatmul.bf16.gmra.mxu0 %v851
      %v1401 = vpop.f32.mrf.mxu0
      %v1402 = vadd.f32 %v397, %v1401
      %v1403 = vpop.f32.mrf.mxu0
      %v1404 = vadd.f32 %v397, %v1403
      %1405 = vmatmul.bf16.gmra.mxu0 %v853
      %v1406 = vpop.f32.mrf.mxu0
      %v1407 = vadd.f32 %v397, %v1406
      %v1408 = vpop.f32.mrf.mxu0
      %v1409 = vadd.f32 %v397, %v1408
      %1410 = vmatmul.bf16.gmra.mxu0 %v855
      %v1411 = vpop.f32.mrf.mxu0
      %v1412 = vadd.f32 %v397, %v1411
      %v1413 = vpop.f32.mrf.mxu0
      %v1414 = vadd.f32 %v397, %v1413
      %1415 = vmatmul.bf16.gmra.mxu0 %v857
      %v1416 = vpop.f32.mrf.mxu0
      %v1417 = vadd.f32 %v397, %v1416
      %v1418 = vpop.f32.mrf.mxu0
      %v1419 = vadd.f32 %v397, %v1418
      %1420 = vmatmul.bf16.gmra.mxu0 %v859
      %v1421 = vpop.f32.mrf.mxu0
      %v1422 = vadd.f32 %v397, %v1421
      %v1423 = vpop.f32.mrf.mxu0
      %v1424 = vadd.f32 %v397, %v1423
      %1425 = vmatmul.bf16.gmra.mxu0 %v861
      %v1426 = vpop.f32.mrf.mxu0
      %v1427 = vadd.f32 %v397, %v1426
      %v1428 = vpop.f32.mrf.mxu0
      %v1429 = vadd.f32 %v397, %v1428
      %1430 = vmatmul.bf16.gmra.mxu0 %v863
      %v1431 = vpop.f32.mrf.mxu0
      %v1432 = vadd.f32 %v397, %v1431
      %v1433 = vpop.f32.mrf.mxu0
      %v1434 = vadd.f32 %v397, %v1433
      %1435 = vmatmul.bf16.gmra.mxu0 %v865
      %v1436 = vpop.f32.mrf.mxu0
      %v1437 = vadd.f32 %v397, %v1436
      %v1438 = vpop.f32.mrf.mxu0
      %v1439 = vadd.f32 %v397, %v1438
      %1440 = vmatmul.bf16.gmra.mxu0 %v867
      %v1441 = vpop.f32.mrf.mxu0
      %v1442 = vadd.f32 %v397, %v1441
      %v1443 = vpop.f32.mrf.mxu0
      %v1444 = vadd.f32 %v397, %v1443
      %1445 = vmatmul.bf16.gmra.mxu0 %v869
      %v1446 = vpop.f32.mrf.mxu0
      %v1447 = vadd.f32 %v397, %v1446
      %v1448 = vpop.f32.mrf.mxu0
      %v1449 = vadd.f32 %v397, %v1448
      %1450 = vmatmul.bf16.gmra.mxu0 %v871
      %v1451 = vpop.f32.mrf.mxu0
      %v1452 = vadd.f32 %v397, %v1451
      %v1453 = vpop.f32.mrf.mxu0
      %v1454 = vadd.f32 %v397, %v1453
      %1455 = vmatmul.bf16.gmra.mxu0 %v873
      %v1456 = vpop.f32.mrf.mxu0
      %v1457 = vadd.f32 %v397, %v1456
      %v1458 = vpop.f32.mrf.mxu0
      %v1459 = vadd.f32 %v397, %v1458
      %1460 = vmatmul.bf16.gmra.mxu0 %v875
      %v1461 = vpop.f32.mrf.mxu0
      %v1462 = vadd.f32 %v397, %v1461
      %v1463 = vpop.f32.mrf.mxu0
      %v1464 = vadd.f32 %v397, %v1463
      %1465 = vmatmul.bf16.gmra.mxu0 %v877
      %v1466 = vpop.f32.mrf.mxu0
      %v1467 = vadd.f32 %v397, %v1466
      %v1468 = vpop.f32.mrf.mxu0
      %v1469 = vadd.f32 %v397, %v1468
      %1470 = vmatmul.bf16.gmra.mxu0 %v879
      %v1471 = vpop.f32.mrf.mxu0
      %v1472 = vadd.f32 %v397, %v1471
      %v1473 = vpop.f32.mrf.mxu0
      %v1474 = vadd.f32 %v397, %v1473
      %1475 = vmatmul.bf16.gmra.mxu0 %v881
      %v1476 = vpop.f32.mrf.mxu0
      %v1477 = vadd.f32 %v397, %v1476
      %v1478 = vpop.f32.mrf.mxu0
      %v1479 = vadd.f32 %v397, %v1478
      %1480 = vmatmul.bf16.gmra.mxu0 %v883
      %v1481 = vpop.f32.mrf.mxu0
      %v1482 = vadd.f32 %v397, %v1481
      %v1483 = vpop.f32.mrf.mxu0
      %v1484 = vadd.f32 %v397, %v1483
      %1485 = vmatmul.bf16.gmra.mxu0 %v885
      %v1486 = vpop.f32.mrf.mxu0
      %v1487 = vadd.f32 %v397, %v1486
      %v1488 = vpop.f32.mrf.mxu0
      %v1489 = vadd.f32 %v397, %v1488
      %1490 = vmatmul.bf16.gmra.mxu0 %v887
      %v1491 = vpop.f32.mrf.mxu0
      %v1492 = vadd.f32 %v397, %v1491
      %v1493 = vpop.f32.mrf.mxu0
      %v1494 = vadd.f32 %v397, %v1493
      %1495 = vmatmul.bf16.gmra.mxu0 %v889
      %v1496 = vpop.f32.mrf.mxu0
      %v1497 = vadd.f32 %v397, %v1496
      %v1498 = vpop.f32.mrf.mxu0
      %v1499 = vadd.f32 %v397, %v1498
      %1500 = vmatmul.bf16.gmra.mxu0 %v891
      %v1501 = vpop.f32.mrf.mxu0
      %v1502 = vadd.f32 %v397, %v1501
      %v1503 = vpop.f32.mrf.mxu0
      %v1504 = vadd.f32 %v397, %v1503
      %1505 = vmatmul.bf16.gmra.mxu0 %v893
      %v1506 = vpop.f32.mrf.mxu0
      %v1507 = vadd.f32 %v397, %v1506
      %v1508 = vpop.f32.mrf.mxu0
      %v1509 = vadd.f32 %v397, %v1508
      %1510 = vmatmul.bf16.gmra.mxu0 %v895
      %v1511 = vpop.f32.mrf.mxu0
      %v1512 = vadd.f32 %v397, %v1511
      %v1513 = vpop.f32.mrf.mxu0
      %v1514 = vadd.f32 %v397, %v1513
      %1515 = vmatmul.bf16.gmra.mxu0 %v897
      %v1516 = vpop.f32.mrf.mxu0
      %v1517 = vadd.f32 %v397, %v1516
      %v1518 = vpop.f32.mrf.mxu0
      %v1519 = vadd.f32 %v397, %v1518
      %1520 = vmatmul.bf16.gmra.mxu0 %v899
      %v1521 = vpop.f32.mrf.mxu0
      %v1522 = vadd.f32 %v397, %v1521
      %v1523 = vpop.f32.mrf.mxu0
      %v1524 = vadd.f32 %v397, %v1523
      %1525 = vmatmul.bf16.gmra.mxu0 %v901
      %v1526 = vpop.f32.mrf.mxu0
      %v1527 = vadd.f32 %v397, %v1526
      %v1528 = vpop.f32.mrf.mxu0
      %v1529 = vadd.f32 %v397, %v1528
      %1530 = vmatmul.bf16.gmra.mxu0 %v903
      %v1531 = vpop.f32.mrf.mxu0
      %v1532 = vadd.f32 %v397, %v1531
      %v1533 = vpop.f32.mrf.mxu0
      %v1534 = vadd.f32 %v397, %v1533
      %1535 = vmatmul.bf16.gmra.mxu0 %v905
      %v1536 = vpop.f32.mrf.mxu0
      %v1537 = vadd.f32 %v397, %v1536
      %v1538 = vpop.f32.mrf.mxu0
      %v1539 = vadd.f32 %v397, %v1538
      %1540 = vmatmul.bf16.gmra.mxu0 %v907
      %v1541 = vpop.f32.mrf.mxu0
      %v1542 = vadd.f32 %v397, %v1541
      %v1543 = vpop.f32.mrf.mxu0
      %v1544 = vadd.f32 %v397, %v1543
      %1545 = vmatmul.bf16.gmra.mxu0 %v909
      %v1546 = vpop.f32.mrf.mxu0
      %v1547 = vadd.f32 %v397, %v1546
      %v1548 = vpop.f32.mrf.mxu0
      %v1549 = vadd.f32 %v397, %v1548
      %1550 = vdwg.mxu0
      %1551 = vmatpush.bf16.msra.mxu0 0
      %1552 = vmatpush.bf16.msra.mxu0 0
      %1553 = vmatpush.bf16.msra.mxu0 0
      %1554 = vmatpush.bf16.msra.mxu0 0
      %1555 = vmatpush.bf16.msra.mxu0 0
      %1556 = vmatpush.bf16.msra.mxu0 0
      %1557 = vmatpush.bf16.msra.mxu0 0
      %1558 = vmatpush.bf16.msra.mxu0 %v1019
      %1559 = vmatmul.bf16.gmra.mxu0 %v1031
      %v1560 = vpop.f32.mrf.mxu0
      %v1561 = vadd.f32 %v1232, %v1560
      %v1562 = vpop.f32.mrf.mxu0
      %v1563 = vadd.f32 %v1234, %v1562
      %1564 = vmatmul.bf16.gmra.mxu0 %v1034
      %v1565 = vpop.f32.mrf.mxu0
      %v1566 = vadd.f32 %v1237, %v1565
      %v1567 = vpop.f32.mrf.mxu0
      %v1568 = vadd.f32 %v1239, %v1567
      %1569 = vmatmul.bf16.gmra.mxu0 %v1037
      %v1570 = vpop.f32.mrf.mxu0
      %v1571 = vadd.f32 %v1242, %v1570
      %v1572 = vpop.f32.mrf.mxu0
      %v1573 = vadd.f32 %v1244, %v1572
      %1574 = vmatmul.bf16.gmra.mxu0 %v1040
      %v1575 = vpop.f32.mrf.mxu0
      %v1576 = vadd.f32 %v1247, %v1575
      %v1577 = vpop.f32.mrf.mxu0
      %v1578 = vadd.f32 %v1249, %v1577
      %1579 = vmatmul.bf16.gmra.mxu0 %v1043
      %v1580 = vpop.f32.mrf.mxu0
      %v1581 = vadd.f32 %v1252, %v1580
      %v1582 = vpop.f32.mrf.mxu0
      %v1583 = vadd.f32 %v1254, %v1582
      %1584 = vmatmul.bf16.gmra.mxu0 %v1046
      %v1585 = vpop.f32.mrf.mxu0
      %v1586 = vadd.f32 %v1257, %v1585
      %v1587 = vpop.f32.mrf.mxu0
      %v1588 = vadd.f32 %v1259, %v1587
      %1589 = vmatmul.bf16.gmra.mxu0 %v1049
      %v1590 = vpop.f32.mrf.mxu0
      %v1591 = vadd.f32 %v1262, %v1590
      %v1592 = vpop.f32.mrf.mxu0
      %v1593 = vadd.f32 %v1264, %v1592
      %1594 = vmatmul.bf16.gmra.mxu0 %v1052
      %v1595 = vpop.f32.mrf.mxu0
      %v1596 = vadd.f32 %v1267, %v1595
      %v1597 = vpop.f32.mrf.mxu0
      %v1598 = vadd.f32 %v1269, %v1597
      %1599 = vmatmul.bf16.gmra.mxu0 %v1055
      %v1600 = vpop.f32.mrf.mxu0
      %v1601 = vadd.f32 %v1272, %v1600
      %v1602 = vpop.f32.mrf.mxu0
      %v1603 = vadd.f32 %v1274, %v1602
      %1604 = vmatmul.bf16.gmra.mxu0 %v1058
      %v1605 = vpop.f32.mrf.mxu0
      %v1606 = vadd.f32 %v1277, %v1605
      %v1607 = vpop.f32.mrf.mxu0
      %v1608 = vadd.f32 %v1279, %v1607
      %1609 = vmatmul.bf16.gmra.mxu0 %v1061
      %v1610 = vpop.f32.mrf.mxu0
      %v1611 = vadd.f32 %v1282, %v1610
      %v1612 = vpop.f32.mrf.mxu0
      %v1613 = vadd.f32 %v1284, %v1612
      %1614 = vmatmul.bf16.gmra.mxu0 %v1064
      %v1615 = vpop.f32.mrf.mxu0
      %v1616 = vadd.f32 %v1287, %v1615
      %v1617 = vpop.f32.mrf.mxu0
      %v1618 = vadd.f32 %v1289, %v1617
      %1619 = vmatmul.bf16.gmra.mxu0 %v1067
      %v1620 = vpop.f32.mrf.mxu0
      %v1621 = vadd.f32 %v1292, %v1620
      %v1622 = vpop.f32.mrf.mxu0
      %v1623 = vadd.f32 %v1294, %v1622
      %1624 = vmatmul.bf16.gmra.mxu0 %v1070
      %v1625 = vpop.f32.mrf.mxu0
      %v1626 = vadd.f32 %v1297, %v1625
      %v1627 = vpop.f32.mrf.mxu0
      %v1628 = vadd.f32 %v1299, %v1627
      %1629 = vmatmul.bf16.gmra.mxu0 %v1073
      %v1630 = vpop.f32.mrf.mxu0
      %v1631 = vadd.f32 %v1302, %v1630
      %v1632 = vpop.f32.mrf.mxu0
      %v1633 = vadd.f32 %v1304, %v1632
      %1634 = vmatmul.bf16.gmra.mxu0 %v1076
      %v1635 = vpop.f32.mrf.mxu0
      %v1636 = vadd.f32 %v1307, %v1635
      %v1637 = vpop.f32.mrf.mxu0
      %v1638 = vadd.f32 %v1309, %v1637
      %1639 = vmatmul.bf16.gmra.mxu0 %v1079
      %v1640 = vpop.f32.mrf.mxu0
      %v1641 = vadd.f32 %v1312, %v1640
      %v1642 = vpop.f32.mrf.mxu0
      %v1643 = vadd.f32 %v1314, %v1642
      %1644 = vmatmul.bf16.gmra.mxu0 %v1082
      %v1645 = vpop.f32.mrf.mxu0
      %v1646 = vadd.f32 %v1317, %v1645
      %v1647 = vpop.f32.mrf.mxu0
      %v1648 = vadd.f32 %v1319, %v1647
      %1649 = vmatmul.bf16.gmra.mxu0 %v1085
      %v1650 = vpop.f32.mrf.mxu0
      %v1651 = vadd.f32 %v1322, %v1650
      %v1652 = vpop.f32.mrf.mxu0
      %v1653 = vadd.f32 %v1324, %v1652
      %1654 = vmatmul.bf16.gmra.mxu0 %v1088
      %v1655 = vpop.f32.mrf.mxu0
      %v1656 = vadd.f32 %v1327, %v1655
      %v1657 = vpop.f32.mrf.mxu0
      %v1658 = vadd.f32 %v1329, %v1657
      %1659 = vmatmul.bf16.gmra.mxu0 %v1091
      %v1660 = vpop.f32.mrf.mxu0
      %v1661 = vadd.f32 %v1332, %v1660
      %v1662 = vpop.f32.mrf.mxu0
      %v1663 = vadd.f32 %v1334, %v1662
      %1664 = vmatmul.bf16.gmra.mxu0 %v1094
      %v1665 = vpop.f32.mrf.mxu0
      %v1666 = vadd.f32 %v1337, %v1665
      %v1667 = vpop.f32.mrf.mxu0
      %v1668 = vadd.f32 %v1339, %v1667
      %1669 = vmatmul.bf16.gmra.mxu0 %v1097
      %v1670 = vpop.f32.mrf.mxu0
      %v1671 = vadd.f32 %v1342, %v1670
      %v1672 = vpop.f32.mrf.mxu0
      %v1673 = vadd.f32 %v1344, %v1672
      %1674 = vmatmul.bf16.gmra.mxu0 %v1100
      %v1675 = vpop.f32.mrf.mxu0
      %v1676 = vadd.f32 %v1347, %v1675
      %v1677 = vpop.f32.mrf.mxu0
      %v1678 = vadd.f32 %v1349, %v1677
      %1679 = vmatmul.bf16.gmra.mxu0 %v1103
      %v1680 = vpop.f32.mrf.mxu0
      %v1681 = vadd.f32 %v1352, %v1680
      %v1682 = vpop.f32.mrf.mxu0
      %v1683 = vadd.f32 %v1354, %v1682
      %1684 = vmatmul.bf16.gmra.mxu0 %v1106
      %v1685 = vpop.f32.mrf.mxu0
      %v1686 = vadd.f32 %v1357, %v1685
      %v1687 = vpop.f32.mrf.mxu0
      %v1688 = vadd.f32 %v1359, %v1687
      %1689 = vmatmul.bf16.gmra.mxu0 %v1109
      %v1690 = vpop.f32.mrf.mxu0
      %v1691 = vadd.f32 %v1362, %v1690
      %v1692 = vpop.f32.mrf.mxu0
      %v1693 = vadd.f32 %v1364, %v1692
      %1694 = vmatmul.bf16.gmra.mxu0 %v1112
      %v1695 = vpop.f32.mrf.mxu0
      %v1696 = vadd.f32 %v1367, %v1695
      %v1697 = vpop.f32.mrf.mxu0
      %v1698 = vadd.f32 %v1369, %v1697
      %1699 = vmatmul.bf16.gmra.mxu0 %v1115
      %v1700 = vpop.f32.mrf.mxu0
      %v1701 = vadd.f32 %v1372, %v1700
      %v1702 = vpop.f32.mrf.mxu0
      %v1703 = vadd.f32 %v1374, %v1702
      %1704 = vmatmul.bf16.gmra.mxu0 %v1118
      %v1705 = vpop.f32.mrf.mxu0
      %v1706 = vadd.f32 %v1377, %v1705
      %v1707 = vpop.f32.mrf.mxu0
      %v1708 = vadd.f32 %v1379, %v1707
      %1709 = vmatmul.bf16.gmra.mxu0 %v1121
      %v1710 = vpop.f32.mrf.mxu0
      %v1711 = vadd.f32 %v1382, %v1710
      %v1712 = vpop.f32.mrf.mxu0
      %v1713 = vadd.f32 %v1384, %v1712
      %1714 = vmatmul.bf16.gmra.mxu0 %v1124
      %v1715 = vpop.f32.mrf.mxu0
      %v1716 = vadd.f32 %v1387, %v1715
      %v1717 = vpop.f32.mrf.mxu0
      %v1718 = vadd.f32 %v1389, %v1717
      %1719 = vmatmul.bf16.gmra.mxu0 %v1127
      %v1720 = vpop.f32.mrf.mxu0
      %v1721 = vadd.f32 %v1392, %v1720
      %v1722 = vpop.f32.mrf.mxu0
      %v1723 = vadd.f32 %v1394, %v1722
      %1724 = vmatmul.bf16.gmra.mxu0 %v1130
      %v1725 = vpop.f32.mrf.mxu0
      %v1726 = vadd.f32 %v1397, %v1725
      %v1727 = vpop.f32.mrf.mxu0
      %v1728 = vadd.f32 %v1399, %v1727
      %1729 = vmatmul.bf16.gmra.mxu0 %v1133
      %v1730 = vpop.f32.mrf.mxu0
      %v1731 = vadd.f32 %v1402, %v1730
      %v1732 = vpop.f32.mrf.mxu0
      %v1733 = vadd.f32 %v1404, %v1732
      %1734 = vmatmul.bf16.gmra.mxu0 %v1136
      %v1735 = vpop.f32.mrf.mxu0
      %v1736 = vadd.f32 %v1407, %v1735
      %v1737 = vpop.f32.mrf.mxu0
      %v1738 = vadd.f32 %v1409, %v1737
      %1739 = vmatmul.bf16.gmra.mxu0 %v1139
      %v1740 = vpop.f32.mrf.mxu0
      %v1741 = vadd.f32 %v1412, %v1740
      %v1742 = vpop.f32.mrf.mxu0
      %v1743 = vadd.f32 %v1414, %v1742
      %1744 = vmatmul.bf16.gmra.mxu0 %v1142
      %v1745 = vpop.f32.mrf.mxu0
      %v1746 = vadd.f32 %v1417, %v1745
      %v1747 = vpop.f32.mrf.mxu0
      %v1748 = vadd.f32 %v1419, %v1747
      %1749 = vmatmul.bf16.gmra.mxu0 %v1145
      %v1750 = vpop.f32.mrf.mxu0
      %v1751 = vadd.f32 %v1422, %v1750
      %v1752 = vpop.f32.mrf.mxu0
      %v1753 = vadd.f32 %v1424, %v1752
      %1754 = vmatmul.bf16.gmra.mxu0 %v1148
      %v1755 = vpop.f32.mrf.mxu0
      %v1756 = vadd.f32 %v1427, %v1755
      %v1757 = vpop.f32.mrf.mxu0
      %v1758 = vadd.f32 %v1429, %v1757
      %1759 = vmatmul.bf16.gmra.mxu0 %v1151
      %v1760 = vpop.f32.mrf.mxu0
      %v1761 = vadd.f32 %v1432, %v1760
      %v1762 = vpop.f32.mrf.mxu0
      %v1763 = vadd.f32 %v1434, %v1762
      %1764 = vmatmul.bf16.gmra.mxu0 %v1154
      %v1765 = vpop.f32.mrf.mxu0
      %v1766 = vadd.f32 %v1437, %v1765
      %v1767 = vpop.f32.mrf.mxu0
      %v1768 = vadd.f32 %v1439, %v1767
      %1769 = vmatmul.bf16.gmra.mxu0 %v1157
      %v1770 = vpop.f32.mrf.mxu0
      %v1771 = vadd.f32 %v1442, %v1770
      %v1772 = vpop.f32.mrf.mxu0
      %v1773 = vadd.f32 %v1444, %v1772
      %1774 = vmatmul.bf16.gmra.mxu0 %v1160
      %v1775 = vpop.f32.mrf.mxu0
      %v1776 = vadd.f32 %v1447, %v1775
      %v1777 = vpop.f32.mrf.mxu0
      %v1778 = vadd.f32 %v1449, %v1777
      %1779 = vmatmul.bf16.gmra.mxu0 %v1163
      %v1780 = vpop.f32.mrf.mxu0
      %v1781 = vadd.f32 %v1452, %v1780
      %v1782 = vpop.f32.mrf.mxu0
      %v1783 = vadd.f32 %v1454, %v1782
      %1784 = vmatmul.bf16.gmra.mxu0 %v1166
      %v1785 = vpop.f32.mrf.mxu0
      %v1786 = vadd.f32 %v1457, %v1785
      %v1787 = vpop.f32.mrf.mxu0
      %v1788 = vadd.f32 %v1459, %v1787
      %1789 = vmatmul.bf16.gmra.mxu0 %v1169
      %v1790 = vpop.f32.mrf.mxu0
      %v1791 = vadd.f32 %v1462, %v1790
      %v1792 = vpop.f32.mrf.mxu0
      %v1793 = vadd.f32 %v1464, %v1792
      %1794 = vmatmul.bf16.gmra.mxu0 %v1172
      %v1795 = vpop.f32.mrf.mxu0
      %v1796 = vadd.f32 %v1467, %v1795
      %v1797 = vpop.f32.mrf.mxu0
      %v1798 = vadd.f32 %v1469, %v1797
      %1799 = vmatmul.bf16.gmra.mxu0 %v1175
      %v1800 = vpop.f32.mrf.mxu0
      %v1801 = vadd.f32 %v1472, %v1800
      %v1802 = vpop.f32.mrf.mxu0
      %v1803 = vadd.f32 %v1474, %v1802
      %1804 = vmatmul.bf16.gmra.mxu0 %v1178
      %v1805 = vpop.f32.mrf.mxu0
      %v1806 = vadd.f32 %v1477, %v1805
      %v1807 = vpop.f32.mrf.mxu0
      %v1808 = vadd.f32 %v1479, %v1807
      %1809 = vmatmul.bf16.gmra.mxu0 %v1181
      %v1810 = vpop.f32.mrf.mxu0
      %v1811 = vadd.f32 %v1482, %v1810
      %v1812 = vpop.f32.mrf.mxu0
      %v1813 = vadd.f32 %v1484, %v1812
      %1814 = vmatmul.bf16.gmra.mxu0 %v1184
      %v1815 = vpop.f32.mrf.mxu0
      %v1816 = vadd.f32 %v1487, %v1815
      %v1817 = vpop.f32.mrf.mxu0
      %v1818 = vadd.f32 %v1489, %v1817
      %1819 = vmatmul.bf16.gmra.mxu0 %v1187
      %v1820 = vpop.f32.mrf.mxu0
      %v1821 = vadd.f32 %v1492, %v1820
      %v1822 = vpop.f32.mrf.mxu0
      %v1823 = vadd.f32 %v1494, %v1822
      %1824 = vmatmul.bf16.gmra.mxu0 %v1190
      %v1825 = vpop.f32.mrf.mxu0
      %v1826 = vadd.f32 %v1497, %v1825
      %v1827 = vpop.f32.mrf.mxu0
      %v1828 = vadd.f32 %v1499, %v1827
      %1829 = vmatmul.bf16.gmra.mxu0 %v1193
      %v1830 = vpop.f32.mrf.mxu0
      %v1831 = vadd.f32 %v1502, %v1830
      %v1832 = vpop.f32.mrf.mxu0
      %v1833 = vadd.f32 %v1504, %v1832
      %1834 = vmatmul.bf16.gmra.mxu0 %v1196
      %v1835 = vpop.f32.mrf.mxu0
      %v1836 = vadd.f32 %v1507, %v1835
      %v1837 = vpop.f32.mrf.mxu0
      %v1838 = vadd.f32 %v1509, %v1837
      %1839 = vmatmul.bf16.gmra.mxu0 %v1199
      %v1840 = vpop.f32.mrf.mxu0
      %v1841 = vadd.f32 %v1512, %v1840
      %v1842 = vpop.f32.mrf.mxu0
      %v1843 = vadd.f32 %v1514, %v1842
      %1844 = vmatmul.bf16.gmra.mxu0 %v1202
      %v1845 = vpop.f32.mrf.mxu0
      %v1846 = vadd.f32 %v1517, %v1845
      %v1847 = vpop.f32.mrf.mxu0
      %v1848 = vadd.f32 %v1519, %v1847
      %1849 = vmatmul.bf16.gmra.mxu0 %v1205
      %v1850 = vpop.f32.mrf.mxu0
      %v1851 = vadd.f32 %v1522, %v1850
      %v1852 = vpop.f32.mrf.mxu0
      %v1853 = vadd.f32 %v1524, %v1852
      %1854 = vmatmul.bf16.gmra.mxu0 %v1208
      %v1855 = vpop.f32.mrf.mxu0
      %v1856 = vadd.f32 %v1527, %v1855
      %v1857 = vpop.f32.mrf.mxu0
      %v1858 = vadd.f32 %v1529, %v1857
      %1859 = vmatmul.bf16.gmra.mxu0 %v1211
      %v1860 = vpop.f32.mrf.mxu0
      %v1861 = vadd.f32 %v1532, %v1860
      %v1862 = vpop.f32.mrf.mxu0
      %v1863 = vadd.f32 %v1534, %v1862
      %1864 = vmatmul.bf16.gmra.mxu0 %v1214
      %v1865 = vpop.f32.mrf.mxu0
      %v1866 = vadd.f32 %v1537, %v1865
      %v1867 = vpop.f32.mrf.mxu0
      %v1868 = vadd.f32 %v1539, %v1867
      %1869 = vmatmul.bf16.gmra.mxu0 %v1217
      %v1870 = vpop.f32.mrf.mxu0
      %v1871 = vadd.f32 %v1542, %v1870
      %v1872 = vpop.f32.mrf.mxu0
      %v1873 = vadd.f32 %v1544, %v1872
      %1874 = vmatmul.bf16.gmra.mxu0 %v1220
      %v1875 = vpop.f32.mrf.mxu0
      %v1876 = vadd.f32 %v1547, %v1875
      %v1877 = vpop.f32.mrf.mxu0
      %v1878 = vadd.f32 %v1549, %v1877
      %1879 = vdwg.mxu0
      %1880 = vst [vmem:[%s240] sm:$0xff] %v1561
      %1881 = vst [vmem:[%s240 + $0x8] sm:$0xff] %v1563
      %1882 = vst [vmem:[%s240 + $0x10] sm:$0xff] %v1566
      %1883 = vst [vmem:[%s240 + $0x18] sm:$0xff] %v1568
      %1884 = vst [vmem:[%s240 + $0x20] sm:$0xff] %v1571
      %1885 = vst [vmem:[%s240 + $0x28] sm:$0xff] %v1573
      %1886 = vst [vmem:[%s240 + $0x30] sm:$0xff] %v1576
      %1887 = vst [vmem:[%s240 + $0x38] sm:$0xff] %v1578
      %1888 = vst [vmem:[%s240 + $0x40] sm:$0xff] %v1581
      %1889 = vst [vmem:[%s240 + $0x48] sm:$0xff] %v1583
      %1890 = vst [vmem:[%s240 + $0x50] sm:$0xff] %v1586
      %1891 = vst [vmem:[%s240 + $0x58] sm:$0xff] %v1588
      %1892 = vst [vmem:[%s240 + $0x60] sm:$0xff] %v1591
      %1893 = vst [vmem:[%s240 + $0x68] sm:$0xff] %v1593
      %1894 = vst [vmem:[%s240 + $0x70] sm:$0xff] %v1596
      %1895 = vst [vmem:[%s240 + $0x78] sm:$0xff] %v1598
      %1896 = vst [vmem:[%s240 + $0x80] sm:$0xff] %v1601
      %1897 = vst [vmem:[%s240 + $0x88] sm:$0xff] %v1603
      %1898 = vst [vmem:[%s240 + $0x90] sm:$0xff] %v1606
      %1899 = vst [vmem:[%s240 + $0x98] sm:$0xff] %v1608
      %1900 = vst [vmem:[%s240 + $0xa0] sm:$0xff] %v1611
      %1901 = vst [vmem:[%s240 + $0xa8] sm:$0xff] %v1613
      %1902 = vst [vmem:[%s240 + $0xb0] sm:$0xff] %v1616
      %1903 = vst [vmem:[%s240 + $0xb8] sm:$0xff] %v1618
      %1904 = vst [vmem:[%s240 + $0xc0] sm:$0xff] %v1621
      %1905 = vst [vmem:[%s240 + $0xc8] sm:$0xff] %v1623
      %1906 = vst [vmem:[%s240 + $0xd0] sm:$0xff] %v1626
      %1907 = vst [vmem:[%s240 + $0xd8] sm:$0xff] %v1628
      %1908 = vst [vmem:[%s240 + $0xe0] sm:$0xff] %v1631
      %1909 = vst [vmem:[%s240 + $0xe8] sm:$0xff] %v1633
      %1910 = vst [vmem:[%s240 + $0xf0] sm:$0xff] %v1636
      %1911 = vst [vmem:[%s240 + $0xf8] sm:$0xff] %v1638
      %1912 = vst [vmem:[%s240 + $0x100] sm:$0xff] %v1641
      %1913 = vst [vmem:[%s240 + $0x108] sm:$0xff] %v1643
      %1914 = vst [vmem:[%s240 + $0x110] sm:$0xff] %v1646
      %1915 = vst [vmem:[%s240 + $0x118] sm:$0xff] %v1648
      %1916 = vst [vmem:[%s240 + $0x120] sm:$0xff] %v1651
      %1917 = vst [vmem:[%s240 + $0x128] sm:$0xff] %v1653
      %1918 = vst [vmem:[%s240 + $0x130] sm:$0xff] %v1656
      %1919 = vst [vmem:[%s240 + $0x138] sm:$0xff] %v1658
      %1920 = vst [vmem:[%s240 + $0x140] sm:$0xff] %v1661
      %1921 = vst [vmem:[%s240 + $0x148] sm:$0xff] %v1663
      %1922 = vst [vmem:[%s240 + $0x150] sm:$0xff] %v1666
      %1923 = vst [vmem:[%s240 + $0x158] sm:$0xff] %v1668
      %1924 = vst [vmem:[%s240 + $0x160] sm:$0xff] %v1671
      %1925 = vst [vmem:[%s240 + $0x168] sm:$0xff] %v1673
      %1926 = vst [vmem:[%s240 + $0x170] sm:$0xff] %v1676
      %1927 = vst [vmem:[%s240 + $0x178] sm:$0xff] %v1678
      %1928 = vst [vmem:[%s240 + $0x180] sm:$0xff] %v1681
      %1929 = vst [vmem:[%s240 + $0x188] sm:$0xff] %v1683
      %1930 = vst [vmem:[%s240 + $0x190] sm:$0xff] %v1686
      %1931 = vst [vmem:[%s240 + $0x198] sm:$0xff] %v1688
      %1932 = vst [vmem:[%s240 + $0x1a0] sm:$0xff] %v1691
      %1933 = vst [vmem:[%s240 + $0x1a8] sm:$0xff] %v1693
      %1934 = vst [vmem:[%s240 + $0x1b0] sm:$0xff] %v1696
      %1935 = vst [vmem:[%s240 + $0x1b8] sm:$0xff] %v1698
      %1936 = vst [vmem:[%s240 + $0x1c0] sm:$0xff] %v1701
      %1937 = vst [vmem:[%s240 + $0x1c8] sm:$0xff] %v1703
      %1938 = vst [vmem:[%s240 + $0x1d0] sm:$0xff] %v1706
      %1939 = vst [vmem:[%s240 + $0x1d8] sm:$0xff] %v1708
      %1940 = vst [vmem:[%s240 + $0x1e0] sm:$0xff] %v1711
      %1941 = vst [vmem:[%s240 + $0x1e8] sm:$0xff] %v1713
      %1942 = vst [vmem:[%s240 + $0x1f0] sm:$0xff] %v1716
      %1943 = vst [vmem:[%s240 + $0x1f8] sm:$0xff] %v1718
      %1944 = vst [vmem:[%s240 + $0x200] sm:$0xff] %v1721
      %1945 = vst [vmem:[%s240 + $0x208] sm:$0xff] %v1723
      %1946 = vst [vmem:[%s240 + $0x210] sm:$0xff] %v1726
      %1947 = vst [vmem:[%s240 + $0x218] sm:$0xff] %v1728
      %1948 = vst [vmem:[%s240 + $0x220] sm:$0xff] %v1731
      %1949 = vst [vmem:[%s240 + $0x228] sm:$0xff] %v1733
      %1950 = vst [vmem:[%s240 + $0x230] sm:$0xff] %v1736
      %1951 = vst [vmem:[%s240 + $0x238] sm:$0xff] %v1738
      %1952 = vst [vmem:[%s240 + $0x240] sm:$0xff] %v1741
      %1953 = vst [vmem:[%s240 + $0x248] sm:$0xff] %v1743
      %1954 = vst [vmem:[%s240 + $0x250] sm:$0xff] %v1746
      %1955 = vst [vmem:[%s240 + $0x258] sm:$0xff] %v1748
      %1956 = vst [vmem:[%s240 + $0x260] sm:$0xff] %v1751
      %1957 = vst [vmem:[%s240 + $0x268] sm:$0xff] %v1753
      %1958 = vst [vmem:[%s240 + $0x270] sm:$0xff] %v1756
      %1959 = vst [vmem:[%s240 + $0x278] sm:$0xff] %v1758
      %1960 = vst [vmem:[%s240 + $0x280] sm:$0xff] %v1761
      %1961 = vst [vmem:[%s240 + $0x288] sm:$0xff] %v1763
      %1962 = vst [vmem:[%s240 + $0x290] sm:$0xff] %v1766
      %1963 = vst [vmem:[%s240 + $0x298] sm:$0xff] %v1768
      %1964 = vst [vmem:[%s240 + $0x2a0] sm:$0xff] %v1771
      %1965 = vst [vmem:[%s240 + $0x2a8] sm:$0xff] %v1773
      %1966 = vst [vmem:[%s240 + $0x2b0] sm:$0xff] %v1776
      %1967 = vst [vmem:[%s240 + $0x2b8] sm:$0xff] %v1778
      %1968 = vst [vmem:[%s240 + $0x2c0] sm:$0xff] %v1781
      %1969 = vst [vmem:[%s240 + $0x2c8] sm:$0xff] %v1783
      %1970 = vst [vmem:[%s240 + $0x2d0] sm:$0xff] %v1786
      %1971 = vst [vmem:[%s240 + $0x2d8] sm:$0xff] %v1788
      %1972 = vst [vmem:[%s240 + $0x2e0] sm:$0xff] %v1791
      %1973 = vst [vmem:[%s240 + $0x2e8] sm:$0xff] %v1793
      %1974 = vst [vmem:[%s240 + $0x2f0] sm:$0xff] %v1796
      %1975 = vst [vmem:[%s240 + $0x2f8] sm:$0xff] %v1798
      %1976 = vst [vmem:[%s240 + $0x300] sm:$0xff] %v1801
      %1977 = vst [vmem:[%s240 + $0x308] sm:$0xff] %v1803
      %1978 = vst [vmem:[%s240 + $0x310] sm:$0xff] %v1806
      %1979 = vst [vmem:[%s240 + $0x318] sm:$0xff] %v1808
      %1980 = vst [vmem:[%s240 + $0x320] sm:$0xff] %v1811
      %1981 = vst [vmem:[%s240 + $0x328] sm:$0xff] %v1813
      %1982 = vst [vmem:[%s240 + $0x330] sm:$0xff] %v1816
      %1983 = vst [vmem:[%s240 + $0x338] sm:$0xff] %v1818
      %1984 = vst [vmem:[%s240 + $0x340] sm:$0xff] %v1821
      %1985 = vst [vmem:[%s240 + $0x348] sm:$0xff] %v1823
      %1986 = vst [vmem:[%s240 + $0x350] sm:$0xff] %v1826
      %1987 = vst [vmem:[%s240 + $0x358] sm:$0xff] %v1828
      %1988 = vst [vmem:[%s240 + $0x360] sm:$0xff] %v1831
      %1989 = vst [vmem:[%s240 + $0x368] sm:$0xff] %v1833
      %1990 = vst [vmem:[%s240 + $0x370] sm:$0xff] %v1836
      %1991 = vst [vmem:[%s240 + $0x378] sm:$0xff] %v1838
      %1992 = vst [vmem:[%s240 + $0x380] sm:$0xff] %v1841
      %1993 = vst [vmem:[%s240 + $0x388] sm:$0xff] %v1843
      %1994 = vst [vmem:[%s240 + $0x390] sm:$0xff] %v1846
      %1995 = vst [vmem:[%s240 + $0x398] sm:$0xff] %v1848
      %1996 = vst [vmem:[%s240 + $0x3a0] sm:$0xff] %v1851
      %1997 = vst [vmem:[%s240 + $0x3a8] sm:$0xff] %v1853
      %1998 = vst [vmem:[%s240 + $0x3b0] sm:$0xff] %v1856
      %1999 = vst [vmem:[%s240 + $0x3b8] sm:$0xff] %v1858
      %2000 = vst [vmem:[%s240 + $0x3c0] sm:$0xff] %v1861
      %2001 = vst [vmem:[%s240 + $0x3c8] sm:$0xff] %v1863
      %2002 = vst [vmem:[%s240 + $0x3d0] sm:$0xff] %v1866
      %2003 = vst [vmem:[%s240 + $0x3d8] sm:$0xff] %v1868
      %2004 = vst [vmem:[%s240 + $0x3e0] sm:$0xff] %v1871
      %2005 = vst [vmem:[%s240 + $0x3e8] sm:$0xff] %v1873
      %2006 = vst [vmem:[%s240 + $0x3f0] sm:$0xff] %v1876
      %2007 = vst [vmem:[%s240 + $0x3f8] sm:$0xff] %v1878
      %v2008 = vadd.f32 %v1561, %v1563
      %v2009 = vadd.f32 %v2008, %v1566
      %v2010 = vadd.f32 %v2009, %v1568
      %v2011 = vadd.f32 %v2010, %v1571
      %v2012 = vadd.f32 %v2011, %v1573
      %v2013 = vadd.f32 %v2012, %v1576
      %v2014 = vadd.f32 %v2013, %v1578
      %v2015 = vadd.f32 %v2014, %v1581
      %v2016 = vadd.f32 %v2015, %v1583
      %v2017 = vadd.f32 %v2016, %v1586
      %v2018 = vadd.f32 %v2017, %v1588
      %v2019 = vadd.f32 %v2018, %v1591
      %v2020 = vadd.f32 %v2019, %v1593
      %v2021 = vadd.f32 %v2020, %v1596
      %v2022 = vadd.f32 %v2021, %v1598
      %v2023 = vadd.f32 %v2022, %v1601
      %v2024 = vadd.f32 %v2023, %v1603
      %v2025 = vadd.f32 %v2024, %v1606
      %v2026 = vadd.f32 %v2025, %v1608
      %v2027 = vadd.f32 %v2026, %v1611
      %v2028 = vadd.f32 %v2027, %v1613
      %v2029 = vadd.f32 %v2028, %v1616
      %v2030 = vadd.f32 %v2029, %v1618
      %v2031 = vadd.f32 %v2030, %v1621
      %v2032 = vadd.f32 %v2031, %v1623
      %v2033 = vadd.f32 %v2032, %v1626
      %v2034 = vadd.f32 %v2033, %v1628
      %v2035 = vadd.f32 %v2034, %v1631
      %v2036 = vadd.f32 %v2035, %v1633
      %v2037 = vadd.f32 %v2036, %v1636
      %v2038 = vadd.f32 %v2037, %v1638
      %v2039 = vadd.f32 %v2038, %v1641
      %v2040 = vadd.f32 %v2039, %v1643
      %v2041 = vadd.f32 %v2040, %v1646
      %v2042 = vadd.f32 %v2041, %v1648
      %v2043 = vadd.f32 %v2042, %v1651
      %v2044 = vadd.f32 %v2043, %v1653
      %v2045 = vadd.f32 %v2044, %v1656
      %v2046 = vadd.f32 %v2045, %v1658
      %v2047 = vadd.f32 %v2046, %v1661
      %v2048 = vadd.f32 %v2047, %v1663
      %v2049 = vadd.f32 %v2048, %v1666
      %v2050 = vadd.f32 %v2049, %v1668
      %v2051 = vadd.f32 %v2050, %v1671
      %v2052 = vadd.f32 %v2051, %v1673
      %v2053 = vadd.f32 %v2052, %v1676
      %v2054 = vadd.f32 %v2053, %v1678
      %v2055 = vadd.f32 %v2054, %v1681
      %v2056 = vadd.f32 %v2055, %v1683
      %v2057 = vadd.f32 %v2056, %v1686
      %v2058 = vadd.f32 %v2057, %v1688
      %v2059 = vadd.f32 %v2058, %v1691
      %v2060 = vadd.f32 %v2059, %v1693
      %v2061 = vadd.f32 %v2060, %v1696
      %v2062 = vadd.f32 %v2061, %v1698
      %v2063 = vadd.f32 %v2062, %v1701
      %v2064 = vadd.f32 %v2063, %v1703
      %v2065 = vadd.f32 %v2064, %v1706
      %v2066 = vadd.f32 %v2065, %v1708
      %v2067 = vadd.f32 %v2066, %v1711
      %v2068 = vadd.f32 %v2067, %v1713
      %v2069 = vadd.f32 %v2068, %v1716
      %v2070 = vadd.f32 %v2069, %v1718
      %v2071 = vadd.f32 %v2070, %v1721
      %v2072 = vadd.f32 %v2071, %v1723
      %v2073 = vadd.f32 %v2072, %v1726
      %v2074 = vadd.f32 %v2073, %v1728
      %v2075 = vadd.f32 %v2074, %v1731
      %v2076 = vadd.f32 %v2075, %v1733
      %v2077 = vadd.f32 %v2076, %v1736
      %v2078 = vadd.f32 %v2077, %v1738
      %v2079 = vadd.f32 %v2078, %v1741
      %v2080 = vadd.f32 %v2079, %v1743
      %v2081 = vadd.f32 %v2080, %v1746
      %v2082 = vadd.f32 %v2081, %v1748
      %v2083 = vadd.f32 %v2082, %v1751
      %v2084 = vadd.f32 %v2083, %v1753
      %v2085 = vadd.f32 %v2084, %v1756
      %v2086 = vadd.f32 %v2085, %v1758
      %v2087 = vadd.f32 %v2086, %v1761
      %v2088 = vadd.f32 %v2087, %v1763
      %v2089 = vadd.f32 %v2088, %v1766
      %v2090 = vadd.f32 %v2089, %v1768
      %v2091 = vadd.f32 %v2090, %v1771
      %v2092 = vadd.f32 %v2091, %v1773
      %v2093 = vadd.f32 %v2092, %v1776
      %v2094 = vadd.f32 %v2093, %v1778
      %v2095 = vadd.f32 %v2094, %v1781
      %v2096 = vadd.f32 %v2095, %v1783
      %v2097 = vadd.f32 %v2096, %v1786
      %v2098 = vadd.f32 %v2097, %v1788
      %v2099 = vadd.f32 %v2098, %v1791
      %v2100 = vadd.f32 %v2099, %v1793
      %v2101 = vadd.f32 %v2100, %v1796
      %v2102 = vadd.f32 %v2101, %v1798
      %v2103 = vadd.f32 %v2102, %v1801
      %v2104 = vadd.f32 %v2103, %v1803
      %v2105 = vadd.f32 %v2104, %v1806
      %v2106 = vadd.f32 %v2105, %v1808
      %v2107 = vadd.f32 %v2106, %v1811
      %v2108 = vadd.f32 %v2107, %v1813
      %v2109 = vadd.f32 %v2108, %v1816
      %v2110 = vadd.f32 %v2109, %v1818
      %v2111 = vadd.f32 %v2110, %v1821
      %v2112 = vadd.f32 %v2111, %v1823
      %v2113 = vadd.f32 %v2112, %v1826
      %v2114 = vadd.f32 %v2113, %v1828
      %v2115 = vadd.f32 %v2114, %v1831
      %v2116 = vadd.f32 %v2115, %v1833
      %v2117 = vadd.f32 %v2116, %v1836
      %v2118 = vadd.f32 %v2117, %v1838
      %v2119 = vadd.f32 %v2118, %v1841
      %v2120 = vadd.f32 %v2119, %v1843
      %v2121 = vadd.f32 %v2120, %v1846
      %v2122 = vadd.f32 %v2121, %v1848
      %v2123 = vadd.f32 %v2122, %v1851
      %v2124 = vadd.f32 %v2123, %v1853
      %v2125 = vadd.f32 %v2124, %v1856
      %v2126 = vadd.f32 %v2125, %v1858
      %v2127 = vadd.f32 %v2126, %v1861
      %v2128 = vadd.f32 %v2127, %v1863
      %v2129 = vadd.f32 %v2128, %v1866
      %v2130 = vadd.f32 %v2129, %v1868
      %v2131 = vadd.f32 %v2130, %v1871
      %v2132 = vadd.f32 %v2131, %v1873
      %v2133 = vadd.f32 %v2132, %v1876
      %v2134 = vadd.f32 %v2133, %v1878
      %v2135 = vrot.slane %v2134, 4
      %v2136 = vadd.f32 %v2134, %v2135
      %v2137 = vrot.slane %v2136, 2
      %v2138 = vadd.f32 %v2136, %v2137
      %v2139 = vrot.slane %v2138, 1
      %v2140 = vadd.f32 %v2138, %v2139
      %v2141 = vmul.f32 %v1561, %v1561
      %v2142 = vmul.f32 %v1563, %v1563
      %v2143 = vmul.f32 %v1566, %v1566
      %v2144 = vmul.f32 %v1568, %v1568
      %v2145 = vmul.f32 %v1571, %v1571
      %v2146 = vmul.f32 %v1573, %v1573
      %v2147 = vmul.f32 %v1576, %v1576
      %v2148 = vmul.f32 %v1578, %v1578
      %v2149 = vmul.f32 %v1581, %v1581
      %v2150 = vmul.f32 %v1583, %v1583
      %v2151 = vmul.f32 %v1586, %v1586
      %v2152 = vmul.f32 %v1588, %v1588
      %v2153 = vmul.f32 %v1591, %v1591
      %v2154 = vmul.f32 %v1593, %v1593
      %v2155 = vmul.f32 %v1596, %v1596
      %v2156 = vmul.f32 %v1598, %v1598
      %v2157 = vmul.f32 %v1601, %v1601
      %v2158 = vmul.f32 %v1603, %v1603
      %v2159 = vmul.f32 %v1606, %v1606
      %v2160 = vmul.f32 %v1608, %v1608
      %v2161 = vmul.f32 %v1611, %v1611
      %v2162 = vmul.f32 %v1613, %v1613
      %v2163 = vmul.f32 %v1616, %v1616
      %v2164 = vmul.f32 %v1618, %v1618
      %v2165 = vmul.f32 %v1621, %v1621
      %v2166 = vmul.f32 %v1623, %v1623
      %v2167 = vmul.f32 %v1626, %v1626
      %v2168 = vmul.f32 %v1628, %v1628
      %v2169 = vmul.f32 %v1631, %v1631
      %v2170 = vmul.f32 %v1633, %v1633
      %v2171 = vmul.f32 %v1636, %v1636
      %v2172 = vmul.f32 %v1638, %v1638
      %v2173 = vmul.f32 %v1641, %v1641
      %v2174 = vmul.f32 %v1643, %v1643
      %v2175 = vmul.f32 %v1646, %v1646
      %v2176 = vmul.f32 %v1648, %v1648
      %v2177 = vmul.f32 %v1651, %v1651
      %v2178 = vmul.f32 %v1653, %v1653
      %v2179 = vmul.f32 %v1656, %v1656
      %v2180 = vmul.f32 %v1658, %v1658
      %v2181 = vmul.f32 %v1661, %v1661
      %v2182 = vmul.f32 %v1663, %v1663
      %v2183 = vmul.f32 %v1666, %v1666
      %v2184 = vmul.f32 %v1668, %v1668
      %v2185 = vmul.f32 %v1671, %v1671
      %v2186 = vmul.f32 %v1673, %v1673
      %v2187 = vmul.f32 %v1676, %v1676
      %v2188 = vmul.f32 %v1678, %v1678
      %v2189 = vmul.f32 %v1681, %v1681
      %v2190 = vmul.f32 %v1683, %v1683
      %v2191 = vmul.f32 %v1686, %v1686
      %v2192 = vmul.f32 %v1688, %v1688
      %v2193 = vmul.f32 %v1691, %v1691
      %v2194 = vmul.f32 %v1693, %v1693
      %v2195 = vmul.f32 %v1696, %v1696
      %v2196 = vmul.f32 %v1698, %v1698
      %v2197 = vmul.f32 %v1701, %v1701
      %v2198 = vmul.f32 %v1703, %v1703
      %v2199 = vmul.f32 %v1706, %v1706
      %v2200 = vmul.f32 %v1708, %v1708
      %v2201 = vmul.f32 %v1711, %v1711
      %v2202 = vmul.f32 %v1713, %v1713
      %v2203 = vmul.f32 %v1716, %v1716
      %v2204 = vmul.f32 %v1718, %v1718
      %v2205 = vmul.f32 %v1721, %v1721
      %v2206 = vmul.f32 %v1723, %v1723
      %v2207 = vmul.f32 %v1726, %v1726
      %v2208 = vmul.f32 %v1728, %v1728
      %v2209 = vmul.f32 %v1731, %v1731
      %v2210 = vmul.f32 %v1733, %v1733
      %v2211 = vmul.f32 %v1736, %v1736
      %v2212 = vmul.f32 %v1738, %v1738
      %v2213 = vmul.f32 %v1741, %v1741
      %v2214 = vmul.f32 %v1743, %v1743
      %v2215 = vmul.f32 %v1746, %v1746
      %v2216 = vmul.f32 %v1748, %v1748
      %v2217 = vmul.f32 %v1751, %v1751
      %v2218 = vmul.f32 %v1753, %v1753
      %v2219 = vmul.f32 %v1756, %v1756
      %v2220 = vmul.f32 %v1758, %v1758
      %v2221 = vmul.f32 %v1761, %v1761
      %v2222 = vmul.f32 %v1763, %v1763
      %v2223 = vmul.f32 %v1766, %v1766
      %v2224 = vmul.f32 %v1768, %v1768
      %v2225 = vmul.f32 %v1771, %v1771
      %v2226 = vmul.f32 %v1773, %v1773
      %v2227 = vmul.f32 %v1776, %v1776
      %v2228 = vmul.f32 %v1778, %v1778
      %v2229 = vmul.f32 %v1781, %v1781
      %v2230 = vmul.f32 %v1783, %v1783
      %v2231 = vmul.f32 %v1786, %v1786
      %v2232 = vmul.f32 %v1788, %v1788
      %v2233 = vmul.f32 %v1791, %v1791
      %v2234 = vmul.f32 %v1793, %v1793
      %v2235 = vmul.f32 %v1796, %v1796
      %v2236 = vmul.f32 %v1798, %v1798
      %v2237 = vmul.f32 %v1801, %v1801
      %v2238 = vmul.f32 %v1803, %v1803
      %v2239 = vmul.f32 %v1806, %v1806
      %v2240 = vmul.f32 %v1808, %v1808
      %v2241 = vmul.f32 %v1811, %v1811
      %v2242 = vmul.f32 %v1813, %v1813
      %v2243 = vmul.f32 %v1816, %v1816
      %v2244 = vmul.f32 %v1818, %v1818
      %v2245 = vmul.f32 %v1821, %v1821
      %v2246 = vmul.f32 %v1823, %v1823
      %v2247 = vmul.f32 %v1826, %v1826
      %v2248 = vmul.f32 %v1828, %v1828
      %v2249 = vmul.f32 %v1831, %v1831
      %v2250 = vmul.f32 %v1833, %v1833
      %v2251 = vmul.f32 %v1836, %v1836
      %v2252 = vmul.f32 %v1838, %v1838
      %v2253 = vmul.f32 %v1841, %v1841
      %v2254 = vmul.f32 %v1843, %v1843
      %v2255 = vmul.f32 %v1846, %v1846
      %v2256 = vmul.f32 %v1848, %v1848
      %v2257 = vmul.f32 %v1851, %v1851
      %v2258 = vmul.f32 %v1853, %v1853
      %v2259 = vmul.f32 %v1856, %v1856
      %v2260 = vmul.f32 %v1858, %v1858
      %v2261 = vmul.f32 %v1861, %v1861
      %v2262 = vmul.f32 %v1863, %v1863
      %v2263 = vmul.f32 %v1866, %v1866
      %v2264 = vmul.f32 %v1868, %v1868
      %v2265 = vmul.f32 %v1871, %v1871
      %v2266 = vmul.f32 %v1873, %v1873
      %v2267 = vmul.f32 %v1876, %v1876
      %v2268 = vmul.f32 %v1878, %v1878
      %v2269 = vadd.f32 %v2141, %v2142
      %v2270 = vadd.f32 %v2269, %v2143
      %v2271 = vadd.f32 %v2270, %v2144
      %v2272 = vadd.f32 %v2271, %v2145
      %v2273 = vadd.f32 %v2272, %v2146
      %v2274 = vadd.f32 %v2273, %v2147
      %v2275 = vadd.f32 %v2274, %v2148
      %v2276 = vadd.f32 %v2275, %v2149
      %v2277 = vadd.f32 %v2276, %v2150
      %v2278 = vadd.f32 %v2277, %v2151
      %v2279 = vadd.f32 %v2278, %v2152
      %v2280 = vadd.f32 %v2279, %v2153
      %v2281 = vadd.f32 %v2280, %v2154
      %v2282 = vadd.f32 %v2281, %v2155
      %v2283 = vadd.f32 %v2282, %v2156
      %v2284 = vadd.f32 %v2283, %v2157
      %v2285 = vadd.f32 %v2284, %v2158
      %v2286 = vadd.f32 %v2285, %v2159
      %v2287 = vadd.f32 %v2286, %v2160
      %v2288 = vadd.f32 %v2287, %v2161
      %v2289 = vadd.f32 %v2288, %v2162
      %v2290 = vadd.f32 %v2289, %v2163
      %v2291 = vadd.f32 %v2290, %v2164
      %v2292 = vadd.f32 %v2291, %v2165
      %v2293 = vadd.f32 %v2292, %v2166
      %v2294 = vadd.f32 %v2293, %v2167
      %v2295 = vadd.f32 %v2294, %v2168
      %v2296 = vadd.f32 %v2295, %v2169
      %v2297 = vadd.f32 %v2296, %v2170
      %v2298 = vadd.f32 %v2297, %v2171
      %v2299 = vadd.f32 %v2298, %v2172
      %v2300 = vadd.f32 %v2299, %v2173
      %v2301 = vadd.f32 %v2300, %v2174
      %v2302 = vadd.f32 %v2301, %v2175
      %v2303 = vadd.f32 %v2302, %v2176
      %v2304 = vadd.f32 %v2303, %v2177
      %v2305 = vadd.f32 %v2304, %v2178
      %v2306 = vadd.f32 %v2305, %v2179
      %v2307 = vadd.f32 %v2306, %v2180
      %v2308 = vadd.f32 %v2307, %v2181
      %v2309 = vadd.f32 %v2308, %v2182
      %v2310 = vadd.f32 %v2309, %v2183
      %v2311 = vadd.f32 %v2310, %v2184
      %v2312 = vadd.f32 %v2311, %v2185
      %v2313 = vadd.f32 %v2312, %v2186
      %v2314 = vadd.f32 %v2313, %v2187
      %v2315 = vadd.f32 %v2314, %v2188
      %v2316 = vadd.f32 %v2315, %v2189
      %v2317 = vadd.f32 %v2316, %v2190
      %v2318 = vadd.f32 %v2317, %v2191
      %v2319 = vadd.f32 %v2318, %v2192
      %v2320 = vadd.f32 %v2319, %v2193
      %v2321 = vadd.f32 %v2320, %v2194
      %v2322 = vadd.f32 %v2321, %v2195
      %v2323 = vadd.f32 %v2322, %v2196
      %v2324 = vadd.f32 %v2323, %v2197
      %v2325 = vadd.f32 %v2324, %v2198
      %v2326 = vadd.f32 %v2325, %v2199
      %v2327 = vadd.f32 %v2326, %v2200
      %v2328 = vadd.f32 %v2327, %v2201
      %v2329 = vadd.f32 %v2328, %v2202
      %v2330 = vadd.f32 %v2329, %v2203
      %v2331 = vadd.f32 %v2330, %v2204
      %v2332 = vadd.f32 %v2331, %v2205
      %v2333 = vadd.f32 %v2332, %v2206
      %v2334 = vadd.f32 %v2333, %v2207
      %v2335 = vadd.f32 %v2334, %v2208
      %v2336 = vadd.f32 %v2335, %v2209
      %v2337 = vadd.f32 %v2336, %v2210
      %v2338 = vadd.f32 %v2337, %v2211
      %v2339 = vadd.f32 %v2338, %v2212
      %v2340 = vadd.f32 %v2339, %v2213
      %v2341 = vadd.f32 %v2340, %v2214
      %v2342 = vadd.f32 %v2341, %v2215
      %v2343 = vadd.f32 %v2342, %v2216
      %v2344 = vadd.f32 %v2343, %v2217
      %v2345 = vadd.f32 %v2344, %v2218
      %v2346 = vadd.f32 %v2345, %v2219
      %v2347 = vadd.f32 %v2346, %v2220
      %v2348 = vadd.f32 %v2347, %v2221
      %v2349 = vadd.f32 %v2348, %v2222
      %v2350 = vadd.f32 %v2349, %v2223
      %v2351 = vadd.f32 %v2350, %v2224
      %v2352 = vadd.f32 %v2351, %v2225
      %v2353 = vadd.f32 %v2352, %v2226
      %v2354 = vadd.f32 %v2353, %v2227
      %v2355 = vadd.f32 %v2354, %v2228
      %v2356 = vadd.f32 %v2355, %v2229
      %v2357 = vadd.f32 %v2356, %v2230
      %v2358 = vadd.f32 %v2357, %v2231
      %v2359 = vadd.f32 %v2358, %v2232
      %v2360 = vadd.f32 %v2359, %v2233
      %v2361 = vadd.f32 %v2360, %v2234
      %v2362 = vadd.f32 %v2361, %v2235
      %v2363 = vadd.f32 %v2362, %v2236
      %v2364 = vadd.f32 %v2363, %v2237
      %v2365 = vadd.f32 %v2364, %v2238
      %v2366 = vadd.f32 %v2365, %v2239
      %v2367 = vadd.f32 %v2366, %v2240
      %v2368 = vadd.f32 %v2367, %v2241
      %v2369 = vadd.f32 %v2368, %v2242
      %v2370 = vadd.f32 %v2369, %v2243
      %v2371 = vadd.f32 %v2370, %v2244
      %v2372 = vadd.f32 %v2371, %v2245
      %v2373 = vadd.f32 %v2372, %v2246
      %v2374 = vadd.f32 %v2373, %v2247
      %v2375 = vadd.f32 %v2374, %v2248
      %v2376 = vadd.f32 %v2375, %v2249
      %v2377 = vadd.f32 %v2376, %v2250
      %v2378 = vadd.f32 %v2377, %v2251
      %v2379 = vadd.f32 %v2378, %v2252
      %v2380 = vadd.f32 %v2379, %v2253
      %v2381 = vadd.f32 %v2380, %v2254
      %v2382 = vadd.f32 %v2381, %v2255
      %v2383 = vadd.f32 %v2382, %v2256
      %v2384 = vadd.f32 %v2383, %v2257
      %v2385 = vadd.f32 %v2384, %v2258
      %v2386 = vadd.f32 %v2385, %v2259
      %v2387 = vadd.f32 %v2386, %v2260
      %v2388 = vadd.f32 %v2387, %v2261
      %v2389 = vadd.f32 %v2388, %v2262
      %v2390 = vadd.f32 %v2389, %v2263
      %v2391 = vadd.f32 %v2390, %v2264
      %v2392 = vadd.f32 %v2391, %v2265
      %v2393 = vadd.f32 %v2392, %v2266
      %v2394 = vadd.f32 %v2393, %v2267
      %v2395 = vadd.f32 %v2394, %v2268
      %v2396 = vrot.slane %v2395, 4
      %v2397 = vadd.f32 %v2395, %v2396
      %v2398 = vrot.slane %v2397, 2
      %v2399 = vadd.f32 %v2397, %v2398
      %v2400 = vrot.slane %v2399, 1
      %v2401 = vadd.f32 %v2399, %v2400
      %2402 = vst [vmem:[%s244] sm:$0x1] %v2140
      %2403 = vst [vmem:[%s247] sm:$0x1] %v2401
      %s2404 = smul.u32 128, %s17
      %p2405 = scmp.lt.s32.totalorder %s2404, 255
      %s2406 = scalar_select %p2405, %s2404, 255
      %s2407 = smul.addr %s2406, 8
      %s2408 = scalar_lea.vmem %s3, %s2407
      %p2409 = scmp.lt.s32.totalorder %s17, 1
      %s2410 = scalar_select %p2409, %s17, 1
      %s2411 = scalar_lea.vmem %s4, %s2410
      %p2412 = scmp.lt.s32.totalorder %s17, 1
      %s2413 = scalar_select %p2412, %s17, 1
      %s2414 = scalar_lea.vmem %s5, %s2413
      // Predicated region
      $region33: #{simple_convnet_forward.7} parent=31 // pred_check
        %p2415 = pneg %p103
      $region34: #{simple_convnet_forward.7} parent=31 // pred_check_branch
        %2417 = sbr.rel (%p2415) target = $region36
      $region35: #{simple_convnet_forward.7} parent=31 // pred_region
        %s2418 = smul.u32 128, %s17
      $region36: #{simple_convnet_forward.7} parent=31 // pred_fallthru
        _
      // Predicated region
      $region37: #{simple_convnet_forward.7} parent=31 // pred_check
        %p2419 = pneg %p129
      $region38: #{simple_convnet_forward.7} parent=31 // pred_check_branch
        %2421 = sbr.rel (%p2419) target = $region40
      $region39: #{simple_convnet_forward.7} parent=31 // pred_region
        _
      $region40: #{simple_convnet_forward.7} parent=31 // pred_fallthru
        _
      // Predicated region
      $region41: #{simple_convnet_forward.7} parent=31 // pred_check
        %p2422 = pneg %p155
      $region42: #{simple_convnet_forward.7} parent=31 // pred_check_branch
        %2424 = sbr.rel (%p2422) target = $region44
      $region43: #{simple_convnet_forward.7} parent=31 // pred_region
        _
      $region44: #{simple_convnet_forward.7} parent=31 // pred_fallthru
        _
    $region32: #{simple_convnet_forward.7} parent=5 // pred_fallthru
      _
    %p2425 = scmp.le.s32.totalorder 2, %s12
    // Predicated region
    $region45: #{simple_convnet_forward.7} parent=5 // pred_check
      %p2426 = pneg %p2425
    $region46: #{simple_convnet_forward.7} parent=5 // pred_check_branch
      %2428 = sbr.rel (%p2426) target = $region48
    $region47: #{simple_convnet_forward.7} parent=5 // pred_region
      %s2429 = ssub.s32 %s12, 2
      // Predicated region
      $region49: #{simple_convnet_forward.7} parent=47 // pred_check
        %p2430 = pneg %p109
      $region50: #{simple_convnet_forward.7} parent=47 // pred_check_branch
        %2432 = sbr.rel (%p2430) target = $region52
      $region51: #{simple_convnet_forward.7} parent=47 // pred_region
        %s2433 = smul.u32 128, %s18
        %p2434 = scmp.lt.s32.totalorder %s2433, 255
        %s2435 = scalar_select %p2434, %s2433, 255
        %s2436 = smul.addr %s2435, 8
        %s2437 = scalar_lea.vmem %s3, %s2436
      $region52: #{simple_convnet_forward.7} parent=47 // pred_fallthru
        _
      // Predicated region
      $region53: #{simple_convnet_forward.7} parent=47 // pred_check
        %p2438 = pneg %p135
      $region54: #{simple_convnet_forward.7} parent=47 // pred_check_branch
        %2440 = sbr.rel (%p2438) target = $region56
      $region55: #{simple_convnet_forward.7} parent=47 // pred_region
        %p2441 = scmp.lt.s32.totalorder %s18, 1
        %s2442 = scalar_select %p2441, %s18, 1
        %s2443 = scalar_lea.vmem %s4, %s2442
      $region56: #{simple_convnet_forward.7} parent=47 // pred_fallthru
        _
      // Predicated region
      $region57: #{simple_convnet_forward.7} parent=47 // pred_check
        %p2444 = pneg %p161
      $region58: #{simple_convnet_forward.7} parent=47 // pred_check_branch
        %2446 = sbr.rel (%p2444) target = $region60
      $region59: #{simple_convnet_forward.7} parent=47 // pred_region
        %p2447 = scmp.lt.s32.totalorder %s18, 1
        %s2448 = scalar_select %p2447, %s18, 1
        %s2449 = scalar_lea.vmem %s5, %s2448
      $region60: #{simple_convnet_forward.7} parent=47 // pred_fallthru
        _
    $region48: #{simple_convnet_forward.7} parent=5 // pred_fallthru
      _
  $region6: #{simple_convnet_forward.7} parent=0 // loop_footer
    %s16 = sadd.s32 1, %s12
  $region7: #{simple_convnet_forward.7} parent=0 // loop_footer_branch
    %11 = sbr.rel target = $region3
  $region8: #{simple_convnet_forward.7} parent=0 // loop_exit
    _

// kernel: simple_convnet_forward.8
$region0: #{simple_convnet_forward.8}
  #allocation0 [shape = 'u32[]', space=smem, size = 0x4, offset = 0x4, fixed_abs, tag = 'smem constant byte address 0x4 - core index']
  #allocation1 [shape = 'u32[72,128]{1,0:T(1,128)}', space=vmem, size = 0x9000, scoped, tag = 'internal scratch']
  %s0 = inlined_call_operand.vmem [shape: f32[64,32,128], index: 0, kind: input, shape index: {}]
  %s1 = inlined_call_operand.vmem [shape: f32[1,128], index: 1, kind: input, shape index: {}]
  %s2 = inlined_call_operand.vmem [shape: f32[1,128], index: 2, kind: input, shape index: {}]
  %s3 = inlined_call_operand.vmem [shape: f32[32,16,128], index: 3, kind: output, shape index: {}]
  %s4 = sld [smem:[#allocation0]]
  $region45: #{simple_convnet_forward.8} parent=0
    _
  %s6 = ssub.s32 1, %s4
  %s7 = scalar_select 0, %s6, %s4
  loop: start=0, step=1, limit=6
  $region2: #{simple_convnet_forward.8} parent=0 // loop_pre_header
    _
  $region3: #{simple_convnet_forward.8} parent=0 // loop_header
    %s9 = sphi 0, %s13
    %p10 = scmp.ge.s32.totalorder %s9, 6
    %s19 = sphi 0, %s21
    %s22 = sphi 0, %s19
    %s23 = sphi 0, %s22
    %s39 = sphi 0, %s23
    %s43 = sphi 0, %s43
    %s45 = sphi 0, %s43
    %s46 = sphi 0, %s45
    %s60 = sphi 0, %s46
    %s64 = sphi 0, %s64
    %s66 = sphi 0, %s64
    %s67 = sphi 0, %s66
    %s81 = sphi 0, %s67
    %s87 = sphi 0, %s89
    %s90 = sphi 0, %s87
    %s91 = sphi 0, %s90
    %s107 = sphi 0, %s91
  $region4: #{simple_convnet_forward.8} parent=0 // loop_header_branch
    %12 = sbr.rel (%p10) target = $region8
  $region5: #{simple_convnet_forward.8} parent=0 // loop_body
    %s14 = ssub.s32 %s9, 1
    %s15 = ssub.s32 %s9, 2
    %s16 = sadd.s32 %s9, 1
    %s17 = ssub.s32 %s9, %s16
    %p18 = scmp.eq.s32.totalorder %s17, 0
    %s20 = sadd.s32 %s19, 1
    %s21 = scalar_select %p18, %s19, %s20
    %p24 = pneg %p18
    %p25 = scmp.eq.s32.totalorder %s9, 3
    %p26 = por %p24, %p25
    %p27 = scmp.ne.s32.totalorder %s19, %s22
    %p28 = scmp.eq.s32.totalorder %s9, 0
    %p29 = por %p27, %p28
    %p30 = scmp.ne.s32.totalorder %s19, %s22
    %p31 = scmp.eq.s32.totalorder %s14, 3
    %p32 = por %p30, %p31
    %p33 = scmp.ne.s32.totalorder %s22, %s23
    %p34 = scmp.eq.s32.totalorder %s14, 0
    %p35 = por %p33, %p34
    %p36 = scmp.ne.s32.totalorder %s22, %s23
    %p37 = scmp.eq.s32.totalorder %s15, 3
    %p38 = por %p36, %p37
    %p40 = scmp.ne.s32.totalorder %s23, %s39
    %p41 = scmp.eq.s32.totalorder %s15, 0
    %p42 = por %p40, %p41
    %s44 = sadd.s32 %s43, 1
    %p47 = scmp.eq.s32.totalorder %s9, 3
    %p48 = scmp.ne.s32.totalorder %s43, %s45
    %p49 = scmp.eq.s32.totalorder %s9, 0
    %p50 = por %p48, %p49
    %p51 = scmp.ne.s32.totalorder %s43, %s45
    %p52 = scmp.eq.s32.totalorder %s14, 3
    %p53 = por %p51, %p52
    %p54 = scmp.ne.s32.totalorder %s45, %s46
    %p55 = scmp.eq.s32.totalorder %s14, 0
    %p56 = por %p54, %p55
    %p57 = scmp.ne.s32.totalorder %s45, %s46
    %p58 = scmp.eq.s32.totalorder %s15, 3
    %p59 = por %p57, %p58
    %p61 = scmp.ne.s32.totalorder %s46, %s60
    %p62 = scmp.eq.s32.totalorder %s15, 0
    %p63 = por %p61, %p62
    %s65 = sadd.s32 %s64, 1
    %p68 = scmp.eq.s32.totalorder %s9, 3
    %p69 = scmp.ne.s32.totalorder %s64, %s66
    %p70 = scmp.eq.s32.totalorder %s9, 0
    %p71 = por %p69, %p70
    %p72 = scmp.ne.s32.totalorder %s64, %s66
    %p73 = scmp.eq.s32.totalorder %s14, 3
    %p74 = por %p72, %p73
    %p75 = scmp.ne.s32.totalorder %s66, %s67
    %p76 = scmp.eq.s32.totalorder %s14, 0
    %p77 = por %p75, %p76
    %p78 = scmp.ne.s32.totalorder %s66, %s67
    %p79 = scmp.eq.s32.totalorder %s15, 3
    %p80 = por %p78, %p79
    %p82 = scmp.ne.s32.totalorder %s67, %s81
    %p83 = scmp.eq.s32.totalorder %s15, 0
    %p84 = por %p82, %p83
    %s85 = ssub.s32 %s9, %s16
    %p86 = scmp.eq.s32.totalorder %s85, 0
    %s88 = sadd.s32 %s87, 1
    %s89 = scalar_select %p86, %s87, %s88
    %p92 = pneg %p86
    %p93 = scmp.eq.s32.totalorder %s9, 3
    %p94 = por %p92, %p93
    %p95 = scmp.ne.s32.totalorder %s87, %s90
    %p96 = scmp.eq.s32.totalorder %s9, 0
    %p97 = por %p95, %p96
    %p98 = scmp.ne.s32.totalorder %s87, %s90
    %p99 = scmp.eq.s32.totalorder %s14, 3
    %p100 = por %p98, %p99
    %p101 = scmp.ne.s32.totalorder %s90, %s91
    %p102 = scmp.eq.s32.totalorder %s14, 0
    %p103 = por %p101, %p102
    %p104 = scmp.ne.s32.totalorder %s90, %s91
    %p105 = scmp.eq.s32.totalorder %s15, 3
    %p106 = por %p104, %p105
    %p108 = scmp.ne.s32.totalorder %s91, %s107
    %p109 = scmp.eq.s32.totalorder %s15, 0
    %p110 = por %p108, %p109
    %p111 = scmp.le.s32.totalorder 1, %s9
    %p112 = scmp.lt.s32.totalorder %s9, 5
    %p113 = pnand %p111, %p112
    %p114 = pneg %p113
    // Predicated region
    $region9: #{simple_convnet_forward.8} parent=5 // pred_check
      _
    $region10: #{simple_convnet_forward.8} parent=5 // pred_check_branch
      %116 = sbr.rel (%p113) target = $region12
    $region11: #{simple_convnet_forward.8} parent=5 // pred_region
      %s117 = ssub.s32 %s9, 1
      // Predicated region
      $region13: #{simple_convnet_forward.8} parent=11 // pred_check
        %p118 = pneg %p56
      $region14: #{simple_convnet_forward.8} parent=11 // pred_check_branch
        %120 = sbr.rel (%p118) target = $region16
      $region15: #{simple_convnet_forward.8} parent=11 // pred_region
        _
      $region16: #{simple_convnet_forward.8} parent=11 // pred_fallthru
        _
      // Predicated region
      $region17: #{simple_convnet_forward.8} parent=11 // pred_check
        %p121 = pneg %p77
      $region18: #{simple_convnet_forward.8} parent=11 // pred_check_branch
        %123 = sbr.rel (%p121) target = $region20
      $region19: #{simple_convnet_forward.8} parent=11 // pred_region
        _
      $region20: #{simple_convnet_forward.8} parent=11 // pred_fallthru
        _
    $region12: #{simple_convnet_forward.8} parent=5 // pred_fallthru
      _
    %p124 = scmp.lt.s32.totalorder %s9, 4
    // Predicated region
    $region21: #{simple_convnet_forward.8} parent=5 // pred_check
      %p125 = pneg %p124
    $region22: #{simple_convnet_forward.8} parent=5 // pred_check_branch
      %127 = sbr.rel (%p125) target = $region24
    $region23: #{simple_convnet_forward.8} parent=5 // pred_region
      // Predicated region
      $region25: #{simple_convnet_forward.8} parent=23 // pred_check
        %p128 = pneg %p29
      $region26: #{simple_convnet_forward.8} parent=23 // pred_check_branch
        %130 = sbr.rel (%p128) target = $region28
      $region27: #{simple_convnet_forward.8} parent=23 // pred_region
        %s131 = smul.u32 16, %s9
        %p132 = scmp.lt.s32.totalorder %s131, 63
        %s133 = scalar_select %p132, %s131, 63
        %s134 = smul.addr %s133, 4
        %s135 = smul.addr %s134, 8
        %s136 = scalar_lea.vmem %s0, %s135
        %s137 = smul.u32 16, %s9
      $region28: #{simple_convnet_forward.8} parent=23 // pred_fallthru
        _
    $region24: #{simple_convnet_forward.8} parent=5 // pred_fallthru
      _
    %p138 = scmp.le.s32.totalorder 1, %s9
    %p139 = scmp.lt.s32.totalorder %s9, 5
    %p140 = pnand %p138, %p139
    %p141 = pneg %p140
    // Predicated region
    $region29: #{simple_convnet_forward.8} parent=5 // pred_check
      _
    $region30: #{simple_convnet_forward.8} parent=5 // pred_check_branch
      %143 = sbr.rel (%p140) target = $region32
    $region31: #{simple_convnet_forward.8} parent=5 // pred_region
      %s144 = ssub.s32 %s9, 1
      %s145 = smul.u32 16, %s14
      %p146 = scmp.lt.s32.totalorder %s145, 63
      %s147 = scalar_select %p146, %s145, 63
      %s148 = smul.addr %s147, 4
      %s149 = smul.addr %s148, 8
      %s150 = scalar_lea.vmem %s0, %s149
      %p151 = pneg %p35
      %p152 = pneg %p32
      %p153 = pneg %p56
      %p154 = pneg %p53
      %p155 = pneg %p77
      %p156 = pneg %p74
      %p157 = pneg %p103
      %p158 = pneg %p100
      %s159 = smul.u32 8, %s14
      %p160 = scmp.lt.s32.totalorder %s159, 31
      %s161 = scalar_select %p160, %s159, 31
      %s162 = smul.addr %s161, 2
      %s163 = smul.addr %s162, 8
      %s164 = scalar_lea.vmem %s3, %s163
      %s165 = smul.u32 16, %s14
      %p166 = scmp.lt.s32.totalorder %s165, 63
      %s167 = scalar_select %p166, %s165, 63
      %s168 = smul.addr %s167, 4
      %s169 = smul.addr %s168, 8
      %s170 = scalar_lea.vmem %s0, %s169
      %s171 = smul.u32 16, %s14
      %s172 = smul.u32 8, %s14
      %p173 = scmp.lt.s32.totalorder %s172, 31
      %s174 = scalar_select %p173, %s172, 31
      %s175 = smul.addr %s174, 2
      %s176 = smul.addr %s175, 8
      %s177 = scalar_lea.vmem %s3, %s176
      %s178 = smul.u32 8, %s14
      %v179 = vld [vmem:[%s1] sm:$0x1]
      %v180 = vld [vmem:[%s2] sm:$0x1]
      %v181 = vld [vmem:[%s170] ss:$2 sm:$0xff]
      %s182 = scalar_lea.vmem %s170, 16
      %v183 = vld [vmem:[%s182] ss:$2 sm:$0xff]
      %s184 = scalar_lea.vmem %s170, 32
      %v185 = vld [vmem:[%s184] ss:$2 sm:$0xff]
      %s186 = scalar_lea.vmem %s170, 48
      %v187 = vld [vmem:[%s186] ss:$2 sm:$0xff]
      %s188 = scalar_lea.vmem %s170, 64
      %v189 = vld [vmem:[%s188] ss:$2 sm:$0xff]
      %s190 = scalar_lea.vmem %s170, 80
      %v191 = vld [vmem:[%s190] ss:$2 sm:$0xff]
      %s192 = scalar_lea.vmem %s170, 96
      %v193 = vld [vmem:[%s192] ss:$2 sm:$0xff]
      %s194 = scalar_lea.vmem %s170, 112
      %v195 = vld [vmem:[%s194] ss:$2 sm:$0xff]
      %s196 = scalar_lea.vmem %s170, 128
      %v197 = vld [vmem:[%s196] ss:$2 sm:$0xff]
      %s198 = scalar_lea.vmem %s170, 144
      %v199 = vld [vmem:[%s198] ss:$2 sm:$0xff]
      %s200 = scalar_lea.vmem %s170, 160
      %v201 = vld [vmem:[%s200] ss:$2 sm:$0xff]
      %s202 = scalar_lea.vmem %s170, 176
      %v203 = vld [vmem:[%s202] ss:$2 sm:$0xff]
      %s204 = scalar_lea.vmem %s170, 192
      %v205 = vld [vmem:[%s204] ss:$2 sm:$0xff]
      %s206 = scalar_lea.vmem %s170, 208
      %v207 = vld [vmem:[%s206] ss:$2 sm:$0xff]
      %s208 = scalar_lea.vmem %s170, 224
      %v209 = vld [vmem:[%s208] ss:$2 sm:$0xff]
      %s210 = scalar_lea.vmem %s170, 240
      %v211 = vld [vmem:[%s210] ss:$2 sm:$0xff]
      %s212 = scalar_lea.vmem %s170, 256
      %v213 = vld [vmem:[%s212] ss:$2 sm:$0xff]
      %s214 = scalar_lea.vmem %s170, 272
      %v215 = vld [vmem:[%s214] ss:$2 sm:$0xff]
      %s216 = scalar_lea.vmem %s170, 288
      %v217 = vld [vmem:[%s216] ss:$2 sm:$0xff]
      %s218 = scalar_lea.vmem %s170, 304
      %v219 = vld [vmem:[%s218] ss:$2 sm:$0xff]
      %s220 = scalar_lea.vmem %s170, 320
      %v221 = vld [vmem:[%s220] ss:$2 sm:$0xff]
      %s222 = scalar_lea.vmem %s170, 336
      %v223 = vld [vmem:[%s222] ss:$2 sm:$0xff]
      %s224 = scalar_lea.vmem %s170, 352
      %v225 = vld [vmem:[%s224] ss:$2 sm:$0xff]
      %s226 = scalar_lea.vmem %s170, 368
      %v227 = vld [vmem:[%s226] ss:$2 sm:$0xff]
      %s228 = scalar_lea.vmem %s170, 384
      %v229 = vld [vmem:[%s228] ss:$2 sm:$0xff]
      %s230 = scalar_lea.vmem %s170, 400
      %v231 = vld [vmem:[%s230] ss:$2 sm:$0xff]
      %s232 = scalar_lea.vmem %s170, 416
      %v233 = vld [vmem:[%s232] ss:$2 sm:$0xff]
      %s234 = scalar_lea.vmem %s170, 432
      %v235 = vld [vmem:[%s234] ss:$2 sm:$0xff]
      %s236 = scalar_lea.vmem %s170, 448
      %v237 = vld [vmem:[%s236] ss:$2 sm:$0xff]
      %s238 = scalar_lea.vmem %s170, 464
      %v239 = vld [vmem:[%s238] ss:$2 sm:$0xff]
      %s240 = scalar_lea.vmem %s170, 480
      %v241 = vld [vmem:[%s240] ss:$2 sm:$0xff]
      %s242 = scalar_lea.vmem %s170, 496
      %v243 = vld [vmem:[%s242] ss:$2 sm:$0xff]
      %s244 = scalar_lea.vmem %s170, 1
      %v245 = vld [vmem:[%s244] ss:$2 sm:$0xff]
      %s246 = scalar_lea.vmem %s170, 17
      %v247 = vld [vmem:[%s246] ss:$2 sm:$0xff]
      %s248 = scalar_lea.vmem %s170, 33
      %v249 = vld [vmem:[%s248] ss:$2 sm:$0xff]
      %s250 = scalar_lea.vmem %s170, 49
      %v251 = vld [vmem:[%s250] ss:$2 sm:$0xff]
      %s252 = scalar_lea.vmem %s170, 65
      %v253 = vld [vmem:[%s252] ss:$2 sm:$0xff]
      %s254 = scalar_lea.vmem %s170, 81
      %v255 = vld [vmem:[%s254] ss:$2 sm:$0xff]
      %s256 = scalar_lea.vmem %s170, 97
      %v257 = vld [vmem:[%s256] ss:$2 sm:$0xff]
      %s258 = scalar_lea.vmem %s170, 113
      %v259 = vld [vmem:[%s258] ss:$2 sm:$0xff]
      %s260 = scalar_lea.vmem %s170, 129
      %v261 = vld [vmem:[%s260] ss:$2 sm:$0xff]
      %s262 = scalar_lea.vmem %s170, 145
      %v263 = vld [vmem:[%s262] ss:$2 sm:$0xff]
      %s264 = scalar_lea.vmem %s170, 161
      %v265 = vld [vmem:[%s264] ss:$2 sm:$0xff]
      %s266 = scalar_lea.vmem %s170, 177
      %v267 = vld [vmem:[%s266] ss:$2 sm:$0xff]
      %s268 = scalar_lea.vmem %s170, 193
      %v269 = vld [vmem:[%s268] ss:$2 sm:$0xff]
      %s270 = scalar_lea.vmem %s170, 209
      %v271 = vld [vmem:[%s270] ss:$2 sm:$0xff]
      %s272 = scalar_lea.vmem %s170, 225
      %v273 = vld [vmem:[%s272] ss:$2 sm:$0xff]
      %s274 = scalar_lea.vmem %s170, 241
      %v275 = vld [vmem:[%s274] ss:$2 sm:$0xff]
      %s276 = scalar_lea.vmem %s170, 257
      %v277 = vld [vmem:[%s276] ss:$2 sm:$0xff]
      %s278 = scalar_lea.vmem %s170, 273
      %v279 = vld [vmem:[%s278] ss:$2 sm:$0xff]
      %s280 = scalar_lea.vmem %s170, 289
      %v281 = vld [vmem:[%s280] ss:$2 sm:$0xff]
      %s282 = scalar_lea.vmem %s170, 305
      %v283 = vld [vmem:[%s282] ss:$2 sm:$0xff]
      %s284 = scalar_lea.vmem %s170, 321
      %v285 = vld [vmem:[%s284] ss:$2 sm:$0xff]
      %s286 = scalar_lea.vmem %s170, 337
      %v287 = vld [vmem:[%s286] ss:$2 sm:$0xff]
      %s288 = scalar_lea.vmem %s170, 353
      %v289 = vld [vmem:[%s288] ss:$2 sm:$0xff]
      %s290 = scalar_lea.vmem %s170, 369
      %v291 = vld [vmem:[%s290] ss:$2 sm:$0xff]
      %s292 = scalar_lea.vmem %s170, 385
      %v293 = vld [vmem:[%s292] ss:$2 sm:$0xff]
      %s294 = scalar_lea.vmem %s170, 401
      %v295 = vld [vmem:[%s294] ss:$2 sm:$0xff]
      %s296 = scalar_lea.vmem %s170, 417
      %v297 = vld [vmem:[%s296] ss:$2 sm:$0xff]
      %s298 = scalar_lea.vmem %s170, 433
      %v299 = vld [vmem:[%s298] ss:$2 sm:$0xff]
      %s300 = scalar_lea.vmem %s170, 449
      %v301 = vld [vmem:[%s300] ss:$2 sm:$0xff]
      %s302 = scalar_lea.vmem %s170, 465
      %v303 = vld [vmem:[%s302] ss:$2 sm:$0xff]
      %s304 = scalar_lea.vmem %s170, 481
      %v305 = vld [vmem:[%s304] ss:$2 sm:$0xff]
      %s306 = scalar_lea.vmem %s170, 497
      %v307 = vld [vmem:[%s306] ss:$2 sm:$0xff]
      %v309 = vperm.slane %v179, 0
      %v311 = vmul.f32 %v181, %v309
      %v312 = vmul.f32 %v183, %v309
      %v313 = vmul.f32 %v185, %v309
      %v314 = vmul.f32 %v187, %v309
      %v315 = vmul.f32 %v189, %v309
      %v316 = vmul.f32 %v191, %v309
      %v317 = vmul.f32 %v193, %v309
      %v318 = vmul.f32 %v195, %v309
      %v319 = vmul.f32 %v197, %v309
      %v320 = vmul.f32 %v199, %v309
      %v321 = vmul.f32 %v201, %v309
      %v322 = vmul.f32 %v203, %v309
      %v323 = vmul.f32 %v205, %v309
      %v324 = vmul.f32 %v207, %v309
      %v325 = vmul.f32 %v209, %v309
      %v326 = vmul.f32 %v211, %v309
      %v327 = vmul.f32 %v213, %v309
      %v328 = vmul.f32 %v215, %v309
      %v329 = vmul.f32 %v217, %v309
      %v330 = vmul.f32 %v219, %v309
      %v331 = vmul.f32 %v221, %v309
      %v332 = vmul.f32 %v223, %v309
      %v333 = vmul.f32 %v225, %v309
      %v334 = vmul.f32 %v227, %v309
      %v335 = vmul.f32 %v229, %v309
      %v336 = vmul.f32 %v231, %v309
      %v337 = vmul.f32 %v233, %v309
      %v338 = vmul.f32 %v235, %v309
      %v339 = vmul.f32 %v237, %v309
      %v340 = vmul.f32 %v239, %v309
      %v341 = vmul.f32 %v241, %v309
      %v342 = vmul.f32 %v243, %v309
      %v344 = vperm.slane %v180, 0
      %v346 = vadd.f32 %v311, %v344
      %v347 = vadd.f32 %v312, %v344
      %v348 = vadd.f32 %v313, %v344
      %v349 = vadd.f32 %v314, %v344
      %v350 = vadd.f32 %v315, %v344
      %v351 = vadd.f32 %v316, %v344
      %v352 = vadd.f32 %v317, %v344
      %v353 = vadd.f32 %v318, %v344
      %v354 = vadd.f32 %v319, %v344
      %v355 = vadd.f32 %v320, %v344
      %v356 = vadd.f32 %v321, %v344
      %v357 = vadd.f32 %v322, %v344
      %v358 = vadd.f32 %v323, %v344
      %v359 = vadd.f32 %v324, %v344
      %v360 = vadd.f32 %v325, %v344
      %v361 = vadd.f32 %v326, %v344
      %v362 = vadd.f32 %v327, %v344
      %v363 = vadd.f32 %v328, %v344
      %v364 = vadd.f32 %v329, %v344
      %v365 = vadd.f32 %v330, %v344
      %v366 = vadd.f32 %v331, %v344
      %v367 = vadd.f32 %v332, %v344
      %v368 = vadd.f32 %v333, %v344
      %v369 = vadd.f32 %v334, %v344
      %v370 = vadd.f32 %v335, %v344
      %v371 = vadd.f32 %v336, %v344
      %v372 = vadd.f32 %v337, %v344
      %v373 = vadd.f32 %v338, %v344
      %v374 = vadd.f32 %v339, %v344
      %v375 = vadd.f32 %v340, %v344
      %v376 = vadd.f32 %v341, %v344
      %v377 = vadd.f32 %v342, %v344
      %v378 = vmax.f32 %v346, 0.0
      %v379 = vmax.f32 %v347, 0.0
      %v380 = vmax.f32 %v348, 0.0
      %v381 = vmax.f32 %v349, 0.0
      %v382 = vmax.f32 %v350, 0.0
      %v383 = vmax.f32 %v351, 0.0
      %v384 = vmax.f32 %v352, 0.0
      %v385 = vmax.f32 %v353, 0.0
      %v386 = vmax.f32 %v354, 0.0
      %v387 = vmax.f32 %v355, 0.0
      %v388 = vmax.f32 %v356, 0.0
      %v389 = vmax.f32 %v357, 0.0
      %v390 = vmax.f32 %v358, 0.0
      %v391 = vmax.f32 %v359, 0.0
      %v392 = vmax.f32 %v360, 0.0
      %v393 = vmax.f32 %v361, 0.0
      %v394 = vmax.f32 %v362, 0.0
      %v395 = vmax.f32 %v363, 0.0
      %v396 = vmax.f32 %v364, 0.0
      %v397 = vmax.f32 %v365, 0.0
      %v398 = vmax.f32 %v366, 0.0
      %v399 = vmax.f32 %v367, 0.0
      %v400 = vmax.f32 %v368, 0.0
      %v401 = vmax.f32 %v369, 0.0
      %v402 = vmax.f32 %v370, 0.0
      %v403 = vmax.f32 %v371, 0.0
      %v404 = vmax.f32 %v372, 0.0
      %v405 = vmax.f32 %v373, 0.0
      %v406 = vmax.f32 %v374, 0.0
      %v407 = vmax.f32 %v375, 0.0
      %v408 = vmax.f32 %v376, 0.0
      %v409 = vmax.f32 %v377, 0.0
      %v410 = vmul.f32 %v245, %v309
      %v411 = vmul.f32 %v247, %v309
      %v412 = vmul.f32 %v249, %v309
      %v413 = vmul.f32 %v251, %v309
      %v414 = vmul.f32 %v253, %v309
      %v415 = vmul.f32 %v255, %v309
      %v416 = vmul.f32 %v257, %v309
      %v417 = vmul.f32 %v259, %v309
      %v418 = vmul.f32 %v261, %v309
      %v419 = vmul.f32 %v263, %v309
      %v420 = vmul.f32 %v265, %v309
      %v421 = vmul.f32 %v267, %v309
      %v422 = vmul.f32 %v269, %v309
      %v423 = vmul.f32 %v271, %v309
      %v424 = vmul.f32 %v273, %v309
      %v425 = vmul.f32 %v275, %v309
      %v426 = vmul.f32 %v277, %v309
      %v427 = vmul.f32 %v279, %v309
      %v428 = vmul.f32 %v281, %v309
      %v429 = vmul.f32 %v283, %v309
      %v430 = vmul.f32 %v285, %v309
      %v431 = vmul.f32 %v287, %v309
      %v432 = vmul.f32 %v289, %v309
      %v433 = vmul.f32 %v291, %v309
      %v434 = vmul.f32 %v293, %v309
      %v435 = vmul.f32 %v295, %v309
      %v436 = vmul.f32 %v297, %v309
      %v437 = vmul.f32 %v299, %v309
      %v438 = vmul.f32 %v301, %v309
      %v439 = vmul.f32 %v303, %v309
      %v440 = vmul.f32 %v305, %v309
      %v441 = vmul.f32 %v307, %v309
      %v442 = vadd.f32 %v410, %v344
      %v443 = vadd.f32 %v411, %v344
      %v444 = vadd.f32 %v412, %v344
      %v445 = vadd.f32 %v413, %v344
      %v446 = vadd.f32 %v414, %v344
      %v447 = vadd.f32 %v415, %v344
      %v448 = vadd.f32 %v416, %v344
      %v449 = vadd.f32 %v417, %v344
      %v450 = vadd.f32 %v418, %v344
      %v451 = vadd.f32 %v419, %v344
      %v452 = vadd.f32 %v420, %v344
      %v453 = vadd.f32 %v421, %v344
      %v454 = vadd.f32 %v422, %v344
      %v455 = vadd.f32 %v423, %v344
      %v456 = vadd.f32 %v424, %v344
      %v457 = vadd.f32 %v425, %v344
      %v458 = vadd.f32 %v426, %v344
      %v459 = vadd.f32 %v427, %v344
      %v460 = vadd.f32 %v428, %v344
      %v461 = vadd.f32 %v429, %v344
      %v462 = vadd.f32 %v430, %v344
      %v463 = vadd.f32 %v431, %v344
      %v464 = vadd.f32 %v432, %v344
      %v465 = vadd.f32 %v433, %v344
      %v466 = vadd.f32 %v434, %v344
      %v467 = vadd.f32 %v435, %v344
      %v468 = vadd.f32 %v436, %v344
      %v469 = vadd.f32 %v437, %v344
      %v470 = vadd.f32 %v438, %v344
      %v471 = vadd.f32 %v439, %v344
      %v472 = vadd.f32 %v440, %v344
      %v473 = vadd.f32 %v441, %v344
      %v474 = vmax.f32 %v442, 0.0
      %v475 = vmax.f32 %v443, 0.0
      %v476 = vmax.f32 %v444, 0.0
      %v477 = vmax.f32 %v445, 0.0
      %v478 = vmax.f32 %v446, 0.0
      %v479 = vmax.f32 %v447, 0.0
      %v480 = vmax.f32 %v448, 0.0
      %v481 = vmax.f32 %v449, 0.0
      %v482 = vmax.f32 %v450, 0.0
      %v483 = vmax.f32 %v451, 0.0
      %v484 = vmax.f32 %v452, 0.0
      %v485 = vmax.f32 %v453, 0.0
      %v486 = vmax.f32 %v454, 0.0
      %v487 = vmax.f32 %v455, 0.0
      %v488 = vmax.f32 %v456, 0.0
      %v489 = vmax.f32 %v457, 0.0
      %v490 = vmax.f32 %v458, 0.0
      %v491 = vmax.f32 %v459, 0.0
      %v492 = vmax.f32 %v460, 0.0
      %v493 = vmax.f32 %v461, 0.0
      %v494 = vmax.f32 %v462, 0.0
      %v495 = vmax.f32 %v463, 0.0
      %v496 = vmax.f32 %v464, 0.0
      %v497 = vmax.f32 %v465, 0.0
      %v498 = vmax.f32 %v466, 0.0
      %v499 = vmax.f32 %v467, 0.0
      %v500 = vmax.f32 %v468, 0.0
      %v501 = vmax.f32 %v469, 0.0
      %v502 = vmax.f32 %v470, 0.0
      %v503 = vmax.f32 %v471, 0.0
      %v504 = vmax.f32 %v472, 0.0
      %v505 = vmax.f32 %v473, 0.0
      %v506 = vmax.f32 %v378, %v474
      %v507 = vmax.f32 %v379, %v475
      %v508 = vmax.f32 %v380, %v476
      %v509 = vmax.f32 %v381, %v477
      %v510 = vmax.f32 %v382, %v478
      %v511 = vmax.f32 %v383, %v479
      %v512 = vmax.f32 %v384, %v480
      %v513 = vmax.f32 %v385, %v481
      %v514 = vmax.f32 %v386, %v482
      %v515 = vmax.f32 %v387, %v483
      %v516 = vmax.f32 %v388, %v484
      %v517 = vmax.f32 %v389, %v485
      %v518 = vmax.f32 %v390, %v486
      %v519 = vmax.f32 %v391, %v487
      %v520 = vmax.f32 %v392, %v488
      %v521 = vmax.f32 %v393, %v489
      %v522 = vmax.f32 %v394, %v490
      %v523 = vmax.f32 %v395, %v491
      %v524 = vmax.f32 %v396, %v492
      %v525 = vmax.f32 %v397, %v493
      %v526 = vmax.f32 %v398, %v494
      %v527 = vmax.f32 %v399, %v495
      %v528 = vmax.f32 %v400, %v496
      %v529 = vmax.f32 %v401, %v497
      %v530 = vmax.f32 %v402, %v498
      %v531 = vmax.f32 %v403, %v499
      %v532 = vmax.f32 %v404, %v500
      %v533 = vmax.f32 %v405, %v501
      %v534 = vmax.f32 %v406, %v502
      %v535 = vmax.f32 %v407, %v503
      %v536 = vmax.f32 %v408, %v504
      %v537 = vmax.f32 %v409, %v505
      %v538 = vmax.f32 %v506, %v508
      %v539 = vmax.f32 %v507, %v509
      %v540 = vmax.f32 %v510, %v512
      %v541 = vmax.f32 %v511, %v513
      %v542 = vmax.f32 %v514, %v516
      %v543 = vmax.f32 %v515, %v517
      %v544 = vmax.f32 %v518, %v520
      %v545 = vmax.f32 %v519, %v521
      %v546 = vmax.f32 %v522, %v524
      %v547 = vmax.f32 %v523, %v525
      %v548 = vmax.f32 %v526, %v528
      %v549 = vmax.f32 %v527, %v529
      %v550 = vmax.f32 %v530, %v532
      %v551 = vmax.f32 %v531, %v533
      %v552 = vmax.f32 %v534, %v536
      %v553 = vmax.f32 %v535, %v537
      %554 = vst [vmem:[%s177] sm:$0xff] %v538
      %555 = vst [vmem:[%s177 + $0x8] sm:$0xff] %v539
      %556 = vst [vmem:[%s177 + $0x10] sm:$0xff] %v540
      %557 = vst [vmem:[%s177 + $0x18] sm:$0xff] %v541
      %558 = vst [vmem:[%s177 + $0x20] sm:$0xff] %v542
      %559 = vst [vmem:[%s177 + $0x28] sm:$0xff] %v543
      %560 = vst [vmem:[%s177 + $0x30] sm:$0xff] %v544
      %561 = vst [vmem:[%s177 + $0x38] sm:$0xff] %v545
      %562 = vst [vmem:[%s177 + $0x40] sm:$0xff] %v546
      %563 = vst [vmem:[%s177 + $0x48] sm:$0xff] %v547
      %564 = vst [vmem:[%s177 + $0x50] sm:$0xff] %v548
      %565 = vst [vmem:[%s177 + $0x58] sm:$0xff] %v549
      %566 = vst [vmem:[%s177 + $0x60] sm:$0xff] %v550
      %567 = vst [vmem:[%s177 + $0x68] sm:$0xff] %v551
      %568 = vst [vmem:[%s177 + $0x70] sm:$0xff] %v552
      %569 = vst [vmem:[%s177 + $0x78] sm:$0xff] %v553
      %s570 = smul.u32 8, %s14
      %p571 = scmp.lt.s32.totalorder %s570, 31
      %s572 = scalar_select %p571, %s570, 31
      %s573 = smul.addr %s572, 2
      %s574 = smul.addr %s573, 8
      %s575 = scalar_lea.vmem %s3, %s574
      // Predicated region
      $region33: #{simple_convnet_forward.8} parent=31 // pred_check
        %p576 = pneg %p100
      $region34: #{simple_convnet_forward.8} parent=31 // pred_check_branch
        %578 = sbr.rel (%p576) target = $region36
      $region35: #{simple_convnet_forward.8} parent=31 // pred_region
        %s579 = smul.u32 8, %s14
      $region36: #{simple_convnet_forward.8} parent=31 // pred_fallthru
        _
    $region32: #{simple_convnet_forward.8} parent=5 // pred_fallthru
      _
    %p580 = scmp.le.s32.totalorder 2, %s9
    // Predicated region
    $region37: #{simple_convnet_forward.8} parent=5 // pred_check
      %p581 = pneg %p580
    $region38: #{simple_convnet_forward.8} parent=5 // pred_check_branch
      %583 = sbr.rel (%p581) target = $region40
    $region39: #{simple_convnet_forward.8} parent=5 // pred_region
      %s584 = ssub.s32 %s9, 2
      // Predicated region
      $region41: #{simple_convnet_forward.8} parent=39 // pred_check
        %p585 = pneg %p106
      $region42: #{simple_convnet_forward.8} parent=39 // pred_check_branch
        %587 = sbr.rel (%p585) target = $region44
      $region43: #{simple_convnet_forward.8} parent=39 // pred_region
        %s588 = smul.u32 8, %s15
        %p589 = scmp.lt.s32.totalorder %s588, 31
        %s590 = scalar_select %p589, %s588, 31
        %s591 = smul.addr %s590, 2
        %s592 = smul.addr %s591, 8
        %s593 = scalar_lea.vmem %s3, %s592
      $region44: #{simple_convnet_forward.8} parent=39 // pred_fallthru
        _
    $region40: #{simple_convnet_forward.8} parent=5 // pred_fallthru
      _
  $region6: #{simple_convnet_forward.8} parent=0 // loop_footer
    %s13 = sadd.s32 1, %s9
  $region7: #{simple_convnet_forward.8} parent=0 // loop_footer_branch
    %8 = sbr.rel target = $region3
  $region8: #{simple_convnet_forward.8} parent=0 // loop_exit
    _

// kernel: simple_convnet_forward.9
$region0: #{simple_convnet_forward.9}
  #allocation0 [shape = 'u32[]', space=smem, size = 0x4, offset = 0x4, fixed_abs, tag = 'smem constant byte address 0x4 - core index']
  #allocation1 [shape = 'u32[72,128]{1,0:T(1,128)}', space=vmem, size = 0x9000, scoped, tag = 'internal scratch']
  %s0 = inlined_call_operand.vmem [shape: bf16[2,8192], index: 0, kind: input, shape index: {}]
  %s1 = inlined_call_operand.vmem [shape: bf16[8192,128], index: 1, kind: input, shape index: {}]
  %s2 = inlined_call_operand.vmem [shape: f32[1,128], index: 2, kind: input, shape index: {}]
  %s3 = inlined_call_operand.hbm [shape: f32[2,128], index: 3, kind: output, shape index: {}]
  %s4 = sld [smem:[#allocation0]]
  $region22: #{simple_convnet_forward.9} parent=0
    _
  %s6 = ssub.s32 1, %s4
  %s7 = scalar_select 0, %s6, %s4
  $region1: #{simple_convnet_forward.9} parent=0
    #allocation2 [shape = 'u8[1024]{0}', space=vmem, size = 0x400, scoped, tag = 'output window, operand 0, single buffered']
    #allocation3 [shape = 's32[1]{0}', space=sflag, size = 0x4, scoped, tag = 'scoped memory for simple_convnet_forward.9']
    %8 = vsyncpa [#allocation3], 0
    // Predicated region
    $region2: #{simple_convnet_forward.9} parent=1 // pred_check
      _
    $region3: #{simple_convnet_forward.9} parent=1 // pred_check_branch
      %10 = sbr.rel (0) target = $region5
    $region4: #{simple_convnet_forward.9} parent=1 // pred_region
      _
    $region5: #{simple_convnet_forward.9} parent=1 // pred_fallthru
      _
    // Predicated region
    $region6: #{simple_convnet_forward.9} parent=1 // pred_check
      _
    $region7: #{simple_convnet_forward.9} parent=1 // pred_check_branch
      %12 = sbr.rel (0) target = $region9
    $region8: #{simple_convnet_forward.9} parent=1 // pred_region
      _
    $region9: #{simple_convnet_forward.9} parent=1 // pred_fallthru
      _
    // Predicated region
    $region10: #{simple_convnet_forward.9} parent=1 // pred_check
      _
    $region11: #{simple_convnet_forward.9} parent=1 // pred_check_branch
      %14 = sbr.rel (0) target = $region13
    $region12: #{simple_convnet_forward.9} parent=1 // pred_region
      _
    $region13: #{simple_convnet_forward.9} parent=1 // pred_fallthru
      _
    %v15 = vld [vmem:[%s0] sm:$0xff]
    %v16 = vld [vmem:[%s0 + $0x8] sm:$0xff]
    %v17 = vld [vmem:[%s0 + $0x10] sm:$0xff]
    %v18 = vld [vmem:[%s0 + $0x18] sm:$0xff]
    %v19 = vld [vmem:[%s0 + $0x20] sm:$0xff]
    %v20 = vld [vmem:[%s0 + $0x28] sm:$0xff]
    %v21 = vld [vmem:[%s0 + $0x30] sm:$0xff]
    %v22 = vld [vmem:[%s0 + $0x38] sm:$0xff]
    %v23 = vld [vmem:[%s1] sm:$0xf]
    %v24 = vld [vmem:[%s1 + $0x4] sm:$0xf]
    %v25 = vld [vmem:[%s1 + $0x8] sm:$0xf]
    %v26 = vld [vmem:[%s1 + $0xc] sm:$0xf]
    %v27 = vld [vmem:[%s1 + $0x10] sm:$0xf]
    %v28 = vld [vmem:[%s1 + $0x14] sm:$0xf]
    %v29 = vld [vmem:[%s1 + $0x18] sm:$0xf]
    %v30 = vld [vmem:[%s1 + $0x1c] sm:$0xf]
    %v31 = vld [vmem:[%s1 + $0x20] sm:$0xf]
    %v32 = vld [vmem:[%s1 + $0x24] sm:$0xf]
    %v33 = vld [vmem:[%s1 + $0x28] sm:$0xf]
    %v34 = vld [vmem:[%s1 + $0x2c] sm:$0xf]
    %v35 = vld [vmem:[%s1 + $0x30] sm:$0xf]
    %v36 = vld [vmem:[%s1 + $0x34] sm:$0xf]
    %v37 = vld [vmem:[%s1 + $0x38] sm:$0xf]
    %v38 = vld [vmem:[%s1 + $0x3c] sm:$0xf]
    %v39 = vld [vmem:[%s1 + $0x40] sm:$0xf]
    %v40 = vld [vmem:[%s1 + $0x44] sm:$0xf]
    %v41 = vld [vmem:[%s1 + $0x48] sm:$0xf]
    %v42 = vld [vmem:[%s1 + $0x4c] sm:$0xf]
    %v43 = vld [vmem:[%s1 + $0x50] sm:$0xf]
    %v44 = vld [vmem:[%s1 + $0x54] sm:$0xf]
    %v45 = vld [vmem:[%s1 + $0x58] sm:$0xf]
    %v46 = vld [vmem:[%s1 + $0x5c] sm:$0xf]
    %v47 = vld [vmem:[%s1 + $0x60] sm:$0xf]
    %v48 = vld [vmem:[%s1 + $0x64] sm:$0xf]
    %v49 = vld [vmem:[%s1 + $0x68] sm:$0xf]
    %v50 = vld [vmem:[%s1 + $0x6c] sm:$0xf]
    %v51 = vld [vmem:[%s1 + $0x70] sm:$0xf]
    %v52 = vld [vmem:[%s1 + $0x74] sm:$0xf]
    %v53 = vld [vmem:[%s1 + $0x78] sm:$0xf]
    %v54 = vld [vmem:[%s1 + $0x7c] sm:$0xf]
    %v55 = vld [vmem:[%s1 + $0x80] sm:$0xf]
    %v56 = vld [vmem:[%s1 + $0x84] sm:$0xf]
    %v57 = vld [vmem:[%s1 + $0x88] sm:$0xf]
    %v58 = vld [vmem:[%s1 + $0x8c] sm:$0xf]
    %v59 = vld [vmem:[%s1 + $0x90] sm:$0xf]
    %v60 = vld [vmem:[%s1 + $0x94] sm:$0xf]
    %v61 = vld [vmem:[%s1 + $0x98] sm:$0xf]
    %v62 = vld [vmem:[%s1 + $0x9c] sm:$0xf]
    %v63 = vld [vmem:[%s1 + $0xa0] sm:$0xf]
    %v64 = vld [vmem:[%s1 + $0xa4] sm:$0xf]
    %v65 = vld [vmem:[%s1 + $0xa8] sm:$0xf]
    %v66 = vld [vmem:[%s1 + $0xac] sm:$0xf]
    %v67 = vld [vmem:[%s1 + $0xb0] sm:$0xf]
    %v68 = vld [vmem:[%s1 + $0xb4] sm:$0xf]
    %v69 = vld [vmem:[%s1 + $0xb8] sm:$0xf]
    %v70 = vld [vmem:[%s1 + $0xbc] sm:$0xf]
    %v71 = vld [vmem:[%s1 + $0xc0] sm:$0xf]
    %v72 = vld [vmem:[%s1 + $0xc4] sm:$0xf]
    %v73 = vld [vmem:[%s1 + $0xc8] sm:$0xf]
    %v74 = vld [vmem:[%s1 + $0xcc] sm:$0xf]
    %v75 = vld [vmem:[%s1 + $0xd0] sm:$0xf]
    %v76 = vld [vmem:[%s1 + $0xd4] sm:$0xf]
    %v77 = vld [vmem:[%s1 + $0xd8] sm:$0xf]
    %v78 = vld [vmem:[%s1 + $0xdc] sm:$0xf]
    %v79 = vld [vmem:[%s1 + $0xe0] sm:$0xf]
    %v80 = vld [vmem:[%s1 + $0xe4] sm:$0xf]
    %v81 = vld [vmem:[%s1 + $0xe8] sm:$0xf]
    %v82 = vld [vmem:[%s1 + $0xec] sm:$0xf]
    %v83 = vld [vmem:[%s1 + $0xf0] sm:$0xf]
    %v84 = vld [vmem:[%s1 + $0xf4] sm:$0xf]
    %v85 = vld [vmem:[%s1 + $0xf8] sm:$0xf]
    %v86 = vld [vmem:[%s1 + $0xfc] sm:$0xf]
    %v87 = vld [vmem:[%s1 + $0x100] sm:$0xf]
    %v88 = vld [vmem:[%s1 + $0x104] sm:$0xf]
    %v89 = vld [vmem:[%s1 + $0x108] sm:$0xf]
    %v90 = vld [vmem:[%s1 + $0x10c] sm:$0xf]
    %v91 = vld [vmem:[%s1 + $0x110] sm:$0xf]
    %v92 = vld [vmem:[%s1 + $0x114] sm:$0xf]
    %v93 = vld [vmem:[%s1 + $0x118] sm:$0xf]
    %v94 = vld [vmem:[%s1 + $0x11c] sm:$0xf]
    %v95 = vld [vmem:[%s1 + $0x120] sm:$0xf]
    %v96 = vld [vmem:[%s1 + $0x124] sm:$0xf]
    %v97 = vld [vmem:[%s1 + $0x128] sm:$0xf]
    %v98 = vld [vmem:[%s1 + $0x12c] sm:$0xf]
    %v99 = vld [vmem:[%s1 + $0x130] sm:$0xf]
    %v100 = vld [vmem:[%s1 + $0x134] sm:$0xf]
    %v101 = vld [vmem:[%s1 + $0x138] sm:$0xf]
    %v102 = vld [vmem:[%s1 + $0x13c] sm:$0xf]
    %v103 = vld [vmem:[%s1 + $0x140] sm:$0xf]
    %v104 = vld [vmem:[%s1 + $0x144] sm:$0xf]
    %v105 = vld [vmem:[%s1 + $0x148] sm:$0xf]
    %v106 = vld [vmem:[%s1 + $0x14c] sm:$0xf]
    %v107 = vld [vmem:[%s1 + $0x150] sm:$0xf]
    %v108 = vld [vmem:[%s1 + $0x154] sm:$0xf]
    %v109 = vld [vmem:[%s1 + $0x158] sm:$0xf]
    %v110 = vld [vmem:[%s1 + $0x15c] sm:$0xf]
    %v111 = vld [vmem:[%s1 + $0x160] sm:$0xf]
    %v112 = vld [vmem:[%s1 + $0x164] sm:$0xf]
    %v113 = vld [vmem:[%s1 + $0x168] sm:$0xf]
    %v114 = vld [vmem:[%s1 + $0x16c] sm:$0xf]
    %v115 = vld [vmem:[%s1 + $0x170] sm:$0xf]
    %v116 = vld [vmem:[%s1 + $0x174] sm:$0xf]
    %v117 = vld [vmem:[%s1 + $0x178] sm:$0xf]
    %v118 = vld [vmem:[%s1 + $0x17c] sm:$0xf]
    %v119 = vld [vmem:[%s1 + $0x180] sm:$0xf]
    %v120 = vld [vmem:[%s1 + $0x184] sm:$0xf]
    %v121 = vld [vmem:[%s1 + $0x188] sm:$0xf]
    %v122 = vld [vmem:[%s1 + $0x18c] sm:$0xf]
    %v123 = vld [vmem:[%s1 + $0x190] sm:$0xf]
    %v124 = vld [vmem:[%s1 + $0x194] sm:$0xf]
    %v125 = vld [vmem:[%s1 + $0x198] sm:$0xf]
    %v126 = vld [vmem:[%s1 + $0x19c] sm:$0xf]
    %v127 = vld [vmem:[%s1 + $0x1a0] sm:$0xf]
    %v128 = vld [vmem:[%s1 + $0x1a4] sm:$0xf]
    %v129 = vld [vmem:[%s1 + $0x1a8] sm:$0xf]
    %v130 = vld [vmem:[%s1 + $0x1ac] sm:$0xf]
    %v131 = vld [vmem:[%s1 + $0x1b0] sm:$0xf]
    %v132 = vld [vmem:[%s1 + $0x1b4] sm:$0xf]
    %v133 = vld [vmem:[%s1 + $0x1b8] sm:$0xf]
    %v134 = vld [vmem:[%s1 + $0x1bc] sm:$0xf]
    %v135 = vld [vmem:[%s1 + $0x1c0] sm:$0xf]
    %v136 = vld [vmem:[%s1 + $0x1c4] sm:$0xf]
    %v137 = vld [vmem:[%s1 + $0x1c8] sm:$0xf]
    %v138 = vld [vmem:[%s1 + $0x1cc] sm:$0xf]
    %v139 = vld [vmem:[%s1 + $0x1d0] sm:$0xf]
    %v140 = vld [vmem:[%s1 + $0x1d4] sm:$0xf]
    %v141 = vld [vmem:[%s1 + $0x1d8] sm:$0xf]
    %v142 = vld [vmem:[%s1 + $0x1dc] sm:$0xf]
    %v143 = vld [vmem:[%s1 + $0x1e0] sm:$0xf]
    %v144 = vld [vmem:[%s1 + $0x1e4] sm:$0xf]
    %v145 = vld [vmem:[%s1 + $0x1e8] sm:$0xf]
    %v146 = vld [vmem:[%s1 + $0x1ec] sm:$0xf]
    %v147 = vld [vmem:[%s1 + $0x1f0] sm:$0xf]
    %v148 = vld [vmem:[%s1 + $0x1f4] sm:$0xf]
    %v149 = vld [vmem:[%s1 + $0x1f8] sm:$0xf]
    %v150 = vld [vmem:[%s1 + $0x1fc] sm:$0xf]
    %v151 = vld [vmem:[%s1 + $0x200] sm:$0xf]
    %v152 = vld [vmem:[%s1 + $0x204] sm:$0xf]
    %v153 = vld [vmem:[%s1 + $0x208] sm:$0xf]
    %v154 = vld [vmem:[%s1 + $0x20c] sm:$0xf]
    %v155 = vld [vmem:[%s1 + $0x210] sm:$0xf]
    %v156 = vld [vmem:[%s1 + $0x214] sm:$0xf]
    %v157 = vld [vmem:[%s1 + $0x218] sm:$0xf]
    %v158 = vld [vmem:[%s1 + $0x21c] sm:$0xf]
    %v159 = vld [vmem:[%s1 + $0x220] sm:$0xf]
    %v160 = vld [vmem:[%s1 + $0x224] sm:$0xf]
    %v161 = vld [vmem:[%s1 + $0x228] sm:$0xf]
    %v162 = vld [vmem:[%s1 + $0x22c] sm:$0xf]
    %v163 = vld [vmem:[%s1 + $0x230] sm:$0xf]
    %v164 = vld [vmem:[%s1 + $0x234] sm:$0xf]
    %v165 = vld [vmem:[%s1 + $0x238] sm:$0xf]
    %v166 = vld [vmem:[%s1 + $0x23c] sm:$0xf]
    %v167 = vld [vmem:[%s1 + $0x240] sm:$0xf]
    %v168 = vld [vmem:[%s1 + $0x244] sm:$0xf]
    %v169 = vld [vmem:[%s1 + $0x248] sm:$0xf]
    %v170 = vld [vmem:[%s1 + $0x24c] sm:$0xf]
    %v171 = vld [vmem:[%s1 + $0x250] sm:$0xf]
    %v172 = vld [vmem:[%s1 + $0x254] sm:$0xf]
    %v173 = vld [vmem:[%s1 + $0x258] sm:$0xf]
    %v174 = vld [vmem:[%s1 + $0x25c] sm:$0xf]
    %v175 = vld [vmem:[%s1 + $0x260] sm:$0xf]
    %v176 = vld [vmem:[%s1 + $0x264] sm:$0xf]
    %v177 = vld [vmem:[%s1 + $0x268] sm:$0xf]
    %v178 = vld [vmem:[%s1 + $0x26c] sm:$0xf]
    %v179 = vld [vmem:[%s1 + $0x270] sm:$0xf]
    %v180 = vld [vmem:[%s1 + $0x274] sm:$0xf]
    %v181 = vld [vmem:[%s1 + $0x278] sm:$0xf]
    %v182 = vld [vmem:[%s1 + $0x27c] sm:$0xf]
    %v183 = vld [vmem:[%s1 + $0x280] sm:$0xf]
    %v184 = vld [vmem:[%s1 + $0x284] sm:$0xf]
    %v185 = vld [vmem:[%s1 + $0x288] sm:$0xf]
    %v186 = vld [vmem:[%s1 + $0x28c] sm:$0xf]
    %v187 = vld [vmem:[%s1 + $0x290] sm:$0xf]
    %v188 = vld [vmem:[%s1 + $0x294] sm:$0xf]
    %v189 = vld [vmem:[%s1 + $0x298] sm:$0xf]
    %v190 = vld [vmem:[%s1 + $0x29c] sm:$0xf]
    %v191 = vld [vmem:[%s1 + $0x2a0] sm:$0xf]
    %v192 = vld [vmem:[%s1 + $0x2a4] sm:$0xf]
    %v193 = vld [vmem:[%s1 + $0x2a8] sm:$0xf]
    %v194 = vld [vmem:[%s1 + $0x2ac] sm:$0xf]
    %v195 = vld [vmem:[%s1 + $0x2b0] sm:$0xf]
    %v196 = vld [vmem:[%s1 + $0x2b4] sm:$0xf]
    %v197 = vld [vmem:[%s1 + $0x2b8] sm:$0xf]
    %v198 = vld [vmem:[%s1 + $0x2bc] sm:$0xf]
    %v199 = vld [vmem:[%s1 + $0x2c0] sm:$0xf]
    %v200 = vld [vmem:[%s1 + $0x2c4] sm:$0xf]
    %v201 = vld [vmem:[%s1 + $0x2c8] sm:$0xf]
    %v202 = vld [vmem:[%s1 + $0x2cc] sm:$0xf]
    %v203 = vld [vmem:[%s1 + $0x2d0] sm:$0xf]
    %v204 = vld [vmem:[%s1 + $0x2d4] sm:$0xf]
    %v205 = vld [vmem:[%s1 + $0x2d8] sm:$0xf]
    %v206 = vld [vmem:[%s1 + $0x2dc] sm:$0xf]
    %v207 = vld [vmem:[%s1 + $0x2e0] sm:$0xf]
    %v208 = vld [vmem:[%s1 + $0x2e4] sm:$0xf]
    %v209 = vld [vmem:[%s1 + $0x2e8] sm:$0xf]
    %v210 = vld [vmem:[%s1 + $0x2ec] sm:$0xf]
    %v211 = vld [vmem:[%s1 + $0x2f0] sm:$0xf]
    %v212 = vld [vmem:[%s1 + $0x2f4] sm:$0xf]
    %v213 = vld [vmem:[%s1 + $0x2f8] sm:$0xf]
    %v214 = vld [vmem:[%s1 + $0x2fc] sm:$0xf]
    %v215 = vld [vmem:[%s1 + $0x300] sm:$0xf]
    %v216 = vld [vmem:[%s1 + $0x304] sm:$0xf]
    %v217 = vld [vmem:[%s1 + $0x308] sm:$0xf]
    %v218 = vld [vmem:[%s1 + $0x30c] sm:$0xf]
    %v219 = vld [vmem:[%s1 + $0x310] sm:$0xf]
    %v220 = vld [vmem:[%s1 + $0x314] sm:$0xf]
    %v221 = vld [vmem:[%s1 + $0x318] sm:$0xf]
    %v222 = vld [vmem:[%s1 + $0x31c] sm:$0xf]
    %v223 = vld [vmem:[%s1 + $0x320] sm:$0xf]
    %v224 = vld [vmem:[%s1 + $0x324] sm:$0xf]
    %v225 = vld [vmem:[%s1 + $0x328] sm:$0xf]
    %v226 = vld [vmem:[%s1 + $0x32c] sm:$0xf]
    %v227 = vld [vmem:[%s1 + $0x330] sm:$0xf]
    %v228 = vld [vmem:[%s1 + $0x334] sm:$0xf]
    %v229 = vld [vmem:[%s1 + $0x338] sm:$0xf]
    %v230 = vld [vmem:[%s1 + $0x33c] sm:$0xf]
    %v231 = vld [vmem:[%s1 + $0x340] sm:$0xf]
    %v232 = vld [vmem:[%s1 + $0x344] sm:$0xf]
    %v233 = vld [vmem:[%s1 + $0x348] sm:$0xf]
    %v234 = vld [vmem:[%s1 + $0x34c] sm:$0xf]
    %v235 = vld [vmem:[%s1 + $0x350] sm:$0xf]
    %v236 = vld [vmem:[%s1 + $0x354] sm:$0xf]
    %v237 = vld [vmem:[%s1 + $0x358] sm:$0xf]
    %v238 = vld [vmem:[%s1 + $0x35c] sm:$0xf]
    %v239 = vld [vmem:[%s1 + $0x360] sm:$0xf]
    %v240 = vld [vmem:[%s1 + $0x364] sm:$0xf]
    %v241 = vld [vmem:[%s1 + $0x368] sm:$0xf]
    %v242 = vld [vmem:[%s1 + $0x36c] sm:$0xf]
    %v243 = vld [vmem:[%s1 + $0x370] sm:$0xf]
    %v244 = vld [vmem:[%s1 + $0x374] sm:$0xf]
    %v245 = vld [vmem:[%s1 + $0x378] sm:$0xf]
    %v246 = vld [vmem:[%s1 + $0x37c] sm:$0xf]
    %v247 = vld [vmem:[%s1 + $0x380] sm:$0xf]
    %v248 = vld [vmem:[%s1 + $0x384] sm:$0xf]
    %v249 = vld [vmem:[%s1 + $0x388] sm:$0xf]
    %v250 = vld [vmem:[%s1 + $0x38c] sm:$0xf]
    %v251 = vld [vmem:[%s1 + $0x390] sm:$0xf]
    %v252 = vld [vmem:[%s1 + $0x394] sm:$0xf]
    %v253 = vld [vmem:[%s1 + $0x398] sm:$0xf]
    %v254 = vld [vmem:[%s1 + $0x39c] sm:$0xf]
    %v255 = vld [vmem:[%s1 + $0x3a0] sm:$0xf]
    %v256 = vld [vmem:[%s1 + $0x3a4] sm:$0xf]
    %v257 = vld [vmem:[%s1 + $0x3a8] sm:$0xf]
    %v258 = vld [vmem:[%s1 + $0x3ac] sm:$0xf]
    %v259 = vld [vmem:[%s1 + $0x3b0] sm:$0xf]
    %v260 = vld [vmem:[%s1 + $0x3b4] sm:$0xf]
    %v261 = vld [vmem:[%s1 + $0x3b8] sm:$0xf]
    %v262 = vld [vmem:[%s1 + $0x3bc] sm:$0xf]
    %v263 = vld [vmem:[%s1 + $0x3c0] sm:$0xf]
    %v264 = vld [vmem:[%s1 + $0x3c4] sm:$0xf]
    %v265 = vld [vmem:[%s1 + $0x3c8] sm:$0xf]
    %v266 = vld [vmem:[%s1 + $0x3cc] sm:$0xf]
    %v267 = vld [vmem:[%s1 + $0x3d0] sm:$0xf]
    %v268 = vld [vmem:[%s1 + $0x3d4] sm:$0xf]
    %v269 = vld [vmem:[%s1 + $0x3d8] sm:$0xf]
    %v270 = vld [vmem:[%s1 + $0x3dc] sm:$0xf]
    %v271 = vld [vmem:[%s1 + $0x3e0] sm:$0xf]
    %v272 = vld [vmem:[%s1 + $0x3e4] sm:$0xf]
    %v273 = vld [vmem:[%s1 + $0x3e8] sm:$0xf]
    %v274 = vld [vmem:[%s1 + $0x3ec] sm:$0xf]
    %v275 = vld [vmem:[%s1 + $0x3f0] sm:$0xf]
    %v276 = vld [vmem:[%s1 + $0x3f4] sm:$0xf]
    %v277 = vld [vmem:[%s1 + $0x3f8] sm:$0xf]
    %v278 = vld [vmem:[%s1 + $0x3fc] sm:$0xf]
    %v279 = vld [vmem:[%s1 + $0x400] sm:$0xf]
    %v280 = vld [vmem:[%s1 + $0x404] sm:$0xf]
    %v281 = vld [vmem:[%s1 + $0x408] sm:$0xf]
    %v282 = vld [vmem:[%s1 + $0x40c] sm:$0xf]
    %v283 = vld [vmem:[%s1 + $0x410] sm:$0xf]
    %v284 = vld [vmem:[%s1 + $0x414] sm:$0xf]
    %v285 = vld [vmem:[%s1 + $0x418] sm:$0xf]
    %v286 = vld [vmem:[%s1 + $0x41c] sm:$0xf]
    %v287 = vld [vmem:[%s1 + $0x420] sm:$0xf]
    %v288 = vld [vmem:[%s1 + $0x424] sm:$0xf]
    %v289 = vld [vmem:[%s1 + $0x428] sm:$0xf]
    %v290 = vld [vmem:[%s1 + $0x42c] sm:$0xf]
    %v291 = vld [vmem:[%s1 + $0x430] sm:$0xf]
    %v292 = vld [vmem:[%s1 + $0x434] sm:$0xf]
    %v293 = vld [vmem:[%s1 + $0x438] sm:$0xf]
    %v294 = vld [vmem:[%s1 + $0x43c] sm:$0xf]
    %v295 = vld [vmem:[%s1 + $0x440] sm:$0xf]
    %v296 = vld [vmem:[%s1 + $0x444] sm:$0xf]
    %v297 = vld [vmem:[%s1 + $0x448] sm:$0xf]
    %v298 = vld [vmem:[%s1 + $0x44c] sm:$0xf]
    %v299 = vld [vmem:[%s1 + $0x450] sm:$0xf]
    %v300 = vld [vmem:[%s1 + $0x454] sm:$0xf]
    %v301 = vld [vmem:[%s1 + $0x458] sm:$0xf]
    %v302 = vld [vmem:[%s1 + $0x45c] sm:$0xf]
    %v303 = vld [vmem:[%s1 + $0x460] sm:$0xf]
    %v304 = vld [vmem:[%s1 + $0x464] sm:$0xf]
    %v305 = vld [vmem:[%s1 + $0x468] sm:$0xf]
    %v306 = vld [vmem:[%s1 + $0x46c] sm:$0xf]
    %v307 = vld [vmem:[%s1 + $0x470] sm:$0xf]
    %v308 = vld [vmem:[%s1 + $0x474] sm:$0xf]
    %v309 = vld [vmem:[%s1 + $0x478] sm:$0xf]
    %v310 = vld [vmem:[%s1 + $0x47c] sm:$0xf]
    %v311 = vld [vmem:[%s1 + $0x480] sm:$0xf]
    %v312 = vld [vmem:[%s1 + $0x484] sm:$0xf]
    %v313 = vld [vmem:[%s1 + $0x488] sm:$0xf]
    %v314 = vld [vmem:[%s1 + $0x48c] sm:$0xf]
    %v315 = vld [vmem:[%s1 + $0x490] sm:$0xf]
    %v316 = vld [vmem:[%s1 + $0x494] sm:$0xf]
    %v317 = vld [vmem:[%s1 + $0x498] sm:$0xf]
    %v318 = vld [vmem:[%s1 + $0x49c] sm:$0xf]
    %v319 = vld [vmem:[%s1 + $0x4a0] sm:$0xf]
    %v320 = vld [vmem:[%s1 + $0x4a4] sm:$0xf]
    %v321 = vld [vmem:[%s1 + $0x4a8] sm:$0xf]
    %v322 = vld [vmem:[%s1 + $0x4ac] sm:$0xf]
    %v323 = vld [vmem:[%s1 + $0x4b0] sm:$0xf]
    %v324 = vld [vmem:[%s1 + $0x4b4] sm:$0xf]
    %v325 = vld [vmem:[%s1 + $0x4b8] sm:$0xf]
    %v326 = vld [vmem:[%s1 + $0x4bc] sm:$0xf]
    %v327 = vld [vmem:[%s1 + $0x4c0] sm:$0xf]
    %v328 = vld [vmem:[%s1 + $0x4c4] sm:$0xf]
    %v329 = vld [vmem:[%s1 + $0x4c8] sm:$0xf]
    %v330 = vld [vmem:[%s1 + $0x4cc] sm:$0xf]
    %v331 = vld [vmem:[%s1 + $0x4d0] sm:$0xf]
    %v332 = vld [vmem:[%s1 + $0x4d4] sm:$0xf]
    %v333 = vld [vmem:[%s1 + $0x4d8] sm:$0xf]
    %v334 = vld [vmem:[%s1 + $0x4dc] sm:$0xf]
    %v335 = vld [vmem:[%s1 + $0x4e0] sm:$0xf]
    %v336 = vld [vmem:[%s1 + $0x4e4] sm:$0xf]
    %v337 = vld [vmem:[%s1 + $0x4e8] sm:$0xf]
    %v338 = vld [vmem:[%s1 + $0x4ec] sm:$0xf]
    %v339 = vld [vmem:[%s1 + $0x4f0] sm:$0xf]
    %v340 = vld [vmem:[%s1 + $0x4f4] sm:$0xf]
    %v341 = vld [vmem:[%s1 + $0x4f8] sm:$0xf]
    %v342 = vld [vmem:[%s1 + $0x4fc] sm:$0xf]
    %v343 = vld [vmem:[%s1 + $0x500] sm:$0xf]
    %v344 = vld [vmem:[%s1 + $0x504] sm:$0xf]
    %v345 = vld [vmem:[%s1 + $0x508] sm:$0xf]
    %v346 = vld [vmem:[%s1 + $0x50c] sm:$0xf]
    %v347 = vld [vmem:[%s1 + $0x510] sm:$0xf]
    %v348 = vld [vmem:[%s1 + $0x514] sm:$0xf]
    %v349 = vld [vmem:[%s1 + $0x518] sm:$0xf]
    %v350 = vld [vmem:[%s1 + $0x51c] sm:$0xf]
    %v351 = vld [vmem:[%s1 + $0x520] sm:$0xf]
    %v352 = vld [vmem:[%s1 + $0x524] sm:$0xf]
    %v353 = vld [vmem:[%s1 + $0x528] sm:$0xf]
    %v354 = vld [vmem:[%s1 + $0x52c] sm:$0xf]
    %v355 = vld [vmem:[%s1 + $0x530] sm:$0xf]
    %v356 = vld [vmem:[%s1 + $0x534] sm:$0xf]
    %v357 = vld [vmem:[%s1 + $0x538] sm:$0xf]
    %v358 = vld [vmem:[%s1 + $0x53c] sm:$0xf]
    %v359 = vld [vmem:[%s1 + $0x540] sm:$0xf]
    %v360 = vld [vmem:[%s1 + $0x544] sm:$0xf]
    %v361 = vld [vmem:[%s1 + $0x548] sm:$0xf]
    %v362 = vld [vmem:[%s1 + $0x54c] sm:$0xf]
    %v363 = vld [vmem:[%s1 + $0x550] sm:$0xf]
    %v364 = vld [vmem:[%s1 + $0x554] sm:$0xf]
    %v365 = vld [vmem:[%s1 + $0x558] sm:$0xf]
    %v366 = vld [vmem:[%s1 + $0x55c] sm:$0xf]
    %v367 = vld [vmem:[%s1 + $0x560] sm:$0xf]
    %v368 = vld [vmem:[%s1 + $0x564] sm:$0xf]
    %v369 = vld [vmem:[%s1 + $0x568] sm:$0xf]
    %v370 = vld [vmem:[%s1 + $0x56c] sm:$0xf]
    %v371 = vld [vmem:[%s1 + $0x570] sm:$0xf]
    %v372 = vld [vmem:[%s1 + $0x574] sm:$0xf]
    %v373 = vld [vmem:[%s1 + $0x578] sm:$0xf]
    %v374 = vld [vmem:[%s1 + $0x57c] sm:$0xf]
    %v375 = vld [vmem:[%s1 + $0x580] sm:$0xf]
    %v376 = vld [vmem:[%s1 + $0x584] sm:$0xf]
    %v377 = vld [vmem:[%s1 + $0x588] sm:$0xf]
    %v378 = vld [vmem:[%s1 + $0x58c] sm:$0xf]
    %v379 = vld [vmem:[%s1 + $0x590] sm:$0xf]
    %v380 = vld [vmem:[%s1 + $0x594] sm:$0xf]
    %v381 = vld [vmem:[%s1 + $0x598] sm:$0xf]
    %v382 = vld [vmem:[%s1 + $0x59c] sm:$0xf]
    %v383 = vld [vmem:[%s1 + $0x5a0] sm:$0xf]
    %v384 = vld [vmem:[%s1 + $0x5a4] sm:$0xf]
    %v385 = vld [vmem:[%s1 + $0x5a8] sm:$0xf]
    %v386 = vld [vmem:[%s1 + $0x5ac] sm:$0xf]
    %v387 = vld [vmem:[%s1 + $0x5b0] sm:$0xf]
    %v388 = vld [vmem:[%s1 + $0x5b4] sm:$0xf]
    %v389 = vld [vmem:[%s1 + $0x5b8] sm:$0xf]
    %v390 = vld [vmem:[%s1 + $0x5bc] sm:$0xf]
    %v391 = vld [vmem:[%s1 + $0x5c0] sm:$0xf]
    %v392 = vld [vmem:[%s1 + $0x5c4] sm:$0xf]
    %v393 = vld [vmem:[%s1 + $0x5c8] sm:$0xf]
    %v394 = vld [vmem:[%s1 + $0x5cc] sm:$0xf]
    %v395 = vld [vmem:[%s1 + $0x5d0] sm:$0xf]
    %v396 = vld [vmem:[%s1 + $0x5d4] sm:$0xf]
    %v397 = vld [vmem:[%s1 + $0x5d8] sm:$0xf]
    %v398 = vld [vmem:[%s1 + $0x5dc] sm:$0xf]
    %v399 = vld [vmem:[%s1 + $0x5e0] sm:$0xf]
    %v400 = vld [vmem:[%s1 + $0x5e4] sm:$0xf]
    %v401 = vld [vmem:[%s1 + $0x5e8] sm:$0xf]
    %v402 = vld [vmem:[%s1 + $0x5ec] sm:$0xf]
    %v403 = vld [vmem:[%s1 + $0x5f0] sm:$0xf]
    %v404 = vld [vmem:[%s1 + $0x5f4] sm:$0xf]
    %v405 = vld [vmem:[%s1 + $0x5f8] sm:$0xf]
    %v406 = vld [vmem:[%s1 + $0x5fc] sm:$0xf]
    %v407 = vld [vmem:[%s1 + $0x600] sm:$0xf]
    %v408 = vld [vmem:[%s1 + $0x604] sm:$0xf]
    %v409 = vld [vmem:[%s1 + $0x608] sm:$0xf]
    %v410 = vld [vmem:[%s1 + $0x60c] sm:$0xf]
    %v411 = vld [vmem:[%s1 + $0x610] sm:$0xf]
    %v412 = vld [vmem:[%s1 + $0x614] sm:$0xf]
    %v413 = vld [vmem:[%s1 + $0x618] sm:$0xf]
    %v414 = vld [vmem:[%s1 + $0x61c] sm:$0xf]
    %v415 = vld [vmem:[%s1 + $0x620] sm:$0xf]
    %v416 = vld [vmem:[%s1 + $0x624] sm:$0xf]
    %v417 = vld [vmem:[%s1 + $0x628] sm:$0xf]
    %v418 = vld [vmem:[%s1 + $0x62c] sm:$0xf]
    %v419 = vld [vmem:[%s1 + $0x630] sm:$0xf]
    %v420 = vld [vmem:[%s1 + $0x634] sm:$0xf]
    %v421 = vld [vmem:[%s1 + $0x638] sm:$0xf]
    %v422 = vld [vmem:[%s1 + $0x63c] sm:$0xf]
    %v423 = vld [vmem:[%s1 + $0x640] sm:$0xf]
    %v424 = vld [vmem:[%s1 + $0x644] sm:$0xf]
    %v425 = vld [vmem:[%s1 + $0x648] sm:$0xf]
    %v426 = vld [vmem:[%s1 + $0x64c] sm:$0xf]
    %v427 = vld [vmem:[%s1 + $0x650] sm:$0xf]
    %v428 = vld [vmem:[%s1 + $0x654] sm:$0xf]
    %v429 = vld [vmem:[%s1 + $0x658] sm:$0xf]
    %v430 = vld [vmem:[%s1 + $0x65c] sm:$0xf]
    %v431 = vld [vmem:[%s1 + $0x660] sm:$0xf]
    %v432 = vld [vmem:[%s1 + $0x664] sm:$0xf]
    %v433 = vld [vmem:[%s1 + $0x668] sm:$0xf]
    %v434 = vld [vmem:[%s1 + $0x66c] sm:$0xf]
    %v435 = vld [vmem:[%s1 + $0x670] sm:$0xf]
    %v436 = vld [vmem:[%s1 + $0x674] sm:$0xf]
    %v437 = vld [vmem:[%s1 + $0x678] sm:$0xf]
    %v438 = vld [vmem:[%s1 + $0x67c] sm:$0xf]
    %v439 = vld [vmem:[%s1 + $0x680] sm:$0xf]
    %v440 = vld [vmem:[%s1 + $0x684] sm:$0xf]
    %v441 = vld [vmem:[%s1 + $0x688] sm:$0xf]
    %v442 = vld [vmem:[%s1 + $0x68c] sm:$0xf]
    %v443 = vld [vmem:[%s1 + $0x690] sm:$0xf]
    %v444 = vld [vmem:[%s1 + $0x694] sm:$0xf]
    %v445 = vld [vmem:[%s1 + $0x698] sm:$0xf]
    %v446 = vld [vmem:[%s1 + $0x69c] sm:$0xf]
    %v447 = vld [vmem:[%s1 + $0x6a0] sm:$0xf]
    %v448 = vld [vmem:[%s1 + $0x6a4] sm:$0xf]
    %v449 = vld [vmem:[%s1 + $0x6a8] sm:$0xf]
    %v450 = vld [vmem:[%s1 + $0x6ac] sm:$0xf]
    %v451 = vld [vmem:[%s1 + $0x6b0] sm:$0xf]
    %v452 = vld [vmem:[%s1 + $0x6b4] sm:$0xf]
    %v453 = vld [vmem:[%s1 + $0x6b8] sm:$0xf]
    %v454 = vld [vmem:[%s1 + $0x6bc] sm:$0xf]
    %v455 = vld [vmem:[%s1 + $0x6c0] sm:$0xf]
    %v456 = vld [vmem:[%s1 + $0x6c4] sm:$0xf]
    %v457 = vld [vmem:[%s1 + $0x6c8] sm:$0xf]
    %v458 = vld [vmem:[%s1 + $0x6cc] sm:$0xf]
    %v459 = vld [vmem:[%s1 + $0x6d0] sm:$0xf]
    %v460 = vld [vmem:[%s1 + $0x6d4] sm:$0xf]
    %v461 = vld [vmem:[%s1 + $0x6d8] sm:$0xf]
    %v462 = vld [vmem:[%s1 + $0x6dc] sm:$0xf]
    %v463 = vld [vmem:[%s1 + $0x6e0] sm:$0xf]
    %v464 = vld [vmem:[%s1 + $0x6e4] sm:$0xf]
    %v465 = vld [vmem:[%s1 + $0x6e8] sm:$0xf]
    %v466 = vld [vmem:[%s1 + $0x6ec] sm:$0xf]
    %v467 = vld [vmem:[%s1 + $0x6f0] sm:$0xf]
    %v468 = vld [vmem:[%s1 + $0x6f4] sm:$0xf]
    %v469 = vld [vmem:[%s1 + $0x6f8] sm:$0xf]
    %v470 = vld [vmem:[%s1 + $0x6fc] sm:$0xf]
    %v471 = vld [vmem:[%s1 + $0x700] sm:$0xf]
    %v472 = vld [vmem:[%s1 + $0x704] sm:$0xf]
    %v473 = vld [vmem:[%s1 + $0x708] sm:$0xf]
    %v474 = vld [vmem:[%s1 + $0x70c] sm:$0xf]
    %v475 = vld [vmem:[%s1 + $0x710] sm:$0xf]
    %v476 = vld [vmem:[%s1 + $0x714] sm:$0xf]
    %v477 = vld [vmem:[%s1 + $0x718] sm:$0xf]
    %v478 = vld [vmem:[%s1 + $0x71c] sm:$0xf]
    %v479 = vld [vmem:[%s1 + $0x720] sm:$0xf]
    %v480 = vld [vmem:[%s1 + $0x724] sm:$0xf]
    %v481 = vld [vmem:[%s1 + $0x728] sm:$0xf]
    %v482 = vld [vmem:[%s1 + $0x72c] sm:$0xf]
    %v483 = vld [vmem:[%s1 + $0x730] sm:$0xf]
    %v484 = vld [vmem:[%s1 + $0x734] sm:$0xf]
    %v485 = vld [vmem:[%s1 + $0x738] sm:$0xf]
    %v486 = vld [vmem:[%s1 + $0x73c] sm:$0xf]
    %v487 = vld [vmem:[%s1 + $0x740] sm:$0xf]
    %v488 = vld [vmem:[%s1 + $0x744] sm:$0xf]
    %v489 = vld [vmem:[%s1 + $0x748] sm:$0xf]
    %v490 = vld [vmem:[%s1 + $0x74c] sm:$0xf]
    %v491 = vld [vmem:[%s1 + $0x750] sm:$0xf]
    %v492 = vld [vmem:[%s1 + $0x754] sm:$0xf]
    %v493 = vld [vmem:[%s1 + $0x758] sm:$0xf]
    %v494 = vld [vmem:[%s1 + $0x75c] sm:$0xf]
    %v495 = vld [vmem:[%s1 + $0x760] sm:$0xf]
    %v496 = vld [vmem:[%s1 + $0x764] sm:$0xf]
    %v497 = vld [vmem:[%s1 + $0x768] sm:$0xf]
    %v498 = vld [vmem:[%s1 + $0x76c] sm:$0xf]
    %v499 = vld [vmem:[%s1 + $0x770] sm:$0xf]
    %v500 = vld [vmem:[%s1 + $0x774] sm:$0xf]
    %v501 = vld [vmem:[%s1 + $0x778] sm:$0xf]
    %v502 = vld [vmem:[%s1 + $0x77c] sm:$0xf]
    %v503 = vld [vmem:[%s1 + $0x780] sm:$0xf]
    %v504 = vld [vmem:[%s1 + $0x784] sm:$0xf]
    %v505 = vld [vmem:[%s1 + $0x788] sm:$0xf]
    %v506 = vld [vmem:[%s1 + $0x78c] sm:$0xf]
    %v507 = vld [vmem:[%s1 + $0x790] sm:$0xf]
    %v508 = vld [vmem:[%s1 + $0x794] sm:$0xf]
    %v509 = vld [vmem:[%s1 + $0x798] sm:$0xf]
    %v510 = vld [vmem:[%s1 + $0x79c] sm:$0xf]
    %v511 = vld [vmem:[%s1 + $0x7a0] sm:$0xf]
    %v512 = vld [vmem:[%s1 + $0x7a4] sm:$0xf]
    %v513 = vld [vmem:[%s1 + $0x7a8] sm:$0xf]
    %v514 = vld [vmem:[%s1 + $0x7ac] sm:$0xf]
    %v515 = vld [vmem:[%s1 + $0x7b0] sm:$0xf]
    %v516 = vld [vmem:[%s1 + $0x7b4] sm:$0xf]
    %v517 = vld [vmem:[%s1 + $0x7b8] sm:$0xf]
    %v518 = vld [vmem:[%s1 + $0x7bc] sm:$0xf]
    %v519 = vld [vmem:[%s1 + $0x7c0] sm:$0xf]
    %v520 = vld [vmem:[%s1 + $0x7c4] sm:$0xf]
    %v521 = vld [vmem:[%s1 + $0x7c8] sm:$0xf]
    %v522 = vld [vmem:[%s1 + $0x7cc] sm:$0xf]
    %v523 = vld [vmem:[%s1 + $0x7d0] sm:$0xf]
    %v524 = vld [vmem:[%s1 + $0x7d4] sm:$0xf]
    %v525 = vld [vmem:[%s1 + $0x7d8] sm:$0xf]
    %v526 = vld [vmem:[%s1 + $0x7dc] sm:$0xf]
    %v527 = vld [vmem:[%s1 + $0x7e0] sm:$0xf]
    %v528 = vld [vmem:[%s1 + $0x7e4] sm:$0xf]
    %v529 = vld [vmem:[%s1 + $0x7e8] sm:$0xf]
    %v530 = vld [vmem:[%s1 + $0x7ec] sm:$0xf]
    %v531 = vld [vmem:[%s1 + $0x7f0] sm:$0xf]
    %v532 = vld [vmem:[%s1 + $0x7f4] sm:$0xf]
    %v533 = vld [vmem:[%s1 + $0x7f8] sm:$0xf]
    %v534 = vld [vmem:[%s1 + $0x7fc] sm:$0xf]
    %v535 = vld [vmem:[%s1 + $0x800] sm:$0xf]
    %v536 = vld [vmem:[%s1 + $0x804] sm:$0xf]
    %v537 = vld [vmem:[%s1 + $0x808] sm:$0xf]
    %v538 = vld [vmem:[%s1 + $0x80c] sm:$0xf]
    %v539 = vld [vmem:[%s1 + $0x810] sm:$0xf]
    %v540 = vld [vmem:[%s1 + $0x814] sm:$0xf]
    %v541 = vld [vmem:[%s1 + $0x818] sm:$0xf]
    %v542 = vld [vmem:[%s1 + $0x81c] sm:$0xf]
    %v543 = vld [vmem:[%s1 + $0x820] sm:$0xf]
    %v544 = vld [vmem:[%s1 + $0x824] sm:$0xf]
    %v545 = vld [vmem:[%s1 + $0x828] sm:$0xf]
    %v546 = vld [vmem:[%s1 + $0x82c] sm:$0xf]
    %v547 = vld [vmem:[%s1 + $0x830] sm:$0xf]
    %v548 = vld [vmem:[%s1 + $0x834] sm:$0xf]
    %v549 = vld [vmem:[%s1 + $0x838] sm:$0xf]
    %v550 = vld [vmem:[%s1 + $0x83c] sm:$0xf]
    %v551 = vld [vmem:[%s1 + $0x840] sm:$0xf]
    %v552 = vld [vmem:[%s1 + $0x844] sm:$0xf]
    %v553 = vld [vmem:[%s1 + $0x848] sm:$0xf]
    %v554 = vld [vmem:[%s1 + $0x84c] sm:$0xf]
    %v555 = vld [vmem:[%s1 + $0x850] sm:$0xf]
    %v556 = vld [vmem:[%s1 + $0x854] sm:$0xf]
    %v557 = vld [vmem:[%s1 + $0x858] sm:$0xf]
    %v558 = vld [vmem:[%s1 + $0x85c] sm:$0xf]
    %v559 = vld [vmem:[%s1 + $0x860] sm:$0xf]
    %v560 = vld [vmem:[%s1 + $0x864] sm:$0xf]
    %v561 = vld [vmem:[%s1 + $0x868] sm:$0xf]
    %v562 = vld [vmem:[%s1 + $0x86c] sm:$0xf]
    %v563 = vld [vmem:[%s1 + $0x870] sm:$0xf]
    %v564 = vld [vmem:[%s1 + $0x874] sm:$0xf]
    %v565 = vld [vmem:[%s1 + $0x878] sm:$0xf]
    %v566 = vld [vmem:[%s1 + $0x87c] sm:$0xf]
    %v567 = vld [vmem:[%s1 + $0x880] sm:$0xf]
    %v568 = vld [vmem:[%s1 + $0x884] sm:$0xf]
    %v569 = vld [vmem:[%s1 + $0x888] sm:$0xf]
    %v570 = vld [vmem:[%s1 + $0x88c] sm:$0xf]
    %v571 = vld [vmem:[%s1 + $0x890] sm:$0xf]
    %v572 = vld [vmem:[%s1 + $0x894] sm:$0xf]
    %v573 = vld [vmem:[%s1 + $0x898] sm:$0xf]
    %v574 = vld [vmem:[%s1 + $0x89c] sm:$0xf]
    %v575 = vld [vmem:[%s1 + $0x8a0] sm:$0xf]
    %v576 = vld [vmem:[%s1 + $0x8a4] sm:$0xf]
    %v577 = vld [vmem:[%s1 + $0x8a8] sm:$0xf]
    %v578 = vld [vmem:[%s1 + $0x8ac] sm:$0xf]
    %v579 = vld [vmem:[%s1 + $0x8b0] sm:$0xf]
    %v580 = vld [vmem:[%s1 + $0x8b4] sm:$0xf]
    %v581 = vld [vmem:[%s1 + $0x8b8] sm:$0xf]
    %v582 = vld [vmem:[%s1 + $0x8bc] sm:$0xf]
    %v583 = vld [vmem:[%s1 + $0x8c0] sm:$0xf]
    %v584 = vld [vmem:[%s1 + $0x8c4] sm:$0xf]
    %v585 = vld [vmem:[%s1 + $0x8c8] sm:$0xf]
    %v586 = vld [vmem:[%s1 + $0x8cc] sm:$0xf]
    %v587 = vld [vmem:[%s1 + $0x8d0] sm:$0xf]
    %v588 = vld [vmem:[%s1 + $0x8d4] sm:$0xf]
    %v589 = vld [vmem:[%s1 + $0x8d8] sm:$0xf]
    %v590 = vld [vmem:[%s1 + $0x8dc] sm:$0xf]
    %v591 = vld [vmem:[%s1 + $0x8e0] sm:$0xf]
    %v592 = vld [vmem:[%s1 + $0x8e4] sm:$0xf]
    %v593 = vld [vmem:[%s1 + $0x8e8] sm:$0xf]
    %v594 = vld [vmem:[%s1 + $0x8ec] sm:$0xf]
    %v595 = vld [vmem:[%s1 + $0x8f0] sm:$0xf]
    %v596 = vld [vmem:[%s1 + $0x8f4] sm:$0xf]
    %v597 = vld [vmem:[%s1 + $0x8f8] sm:$0xf]
    %v598 = vld [vmem:[%s1 + $0x8fc] sm:$0xf]
    %v599 = vld [vmem:[%s1 + $0x900] sm:$0xf]
    %v600 = vld [vmem:[%s1 + $0x904] sm:$0xf]
    %v601 = vld [vmem:[%s1 + $0x908] sm:$0xf]
    %v602 = vld [vmem:[%s1 + $0x90c] sm:$0xf]
    %v603 = vld [vmem:[%s1 + $0x910] sm:$0xf]
    %v604 = vld [vmem:[%s1 + $0x914] sm:$0xf]
    %v605 = vld [vmem:[%s1 + $0x918] sm:$0xf]
    %v606 = vld [vmem:[%s1 + $0x91c] sm:$0xf]
    %v607 = vld [vmem:[%s1 + $0x920] sm:$0xf]
    %v608 = vld [vmem:[%s1 + $0x924] sm:$0xf]
    %v609 = vld [vmem:[%s1 + $0x928] sm:$0xf]
    %v610 = vld [vmem:[%s1 + $0x92c] sm:$0xf]
    %v611 = vld [vmem:[%s1 + $0x930] sm:$0xf]
    %v612 = vld [vmem:[%s1 + $0x934] sm:$0xf]
    %v613 = vld [vmem:[%s1 + $0x938] sm:$0xf]
    %v614 = vld [vmem:[%s1 + $0x93c] sm:$0xf]
    %v615 = vld [vmem:[%s1 + $0x940] sm:$0xf]
    %v616 = vld [vmem:[%s1 + $0x944] sm:$0xf]
    %v617 = vld [vmem:[%s1 + $0x948] sm:$0xf]
    %v618 = vld [vmem:[%s1 + $0x94c] sm:$0xf]
    %v619 = vld [vmem:[%s1 + $0x950] sm:$0xf]
    %v620 = vld [vmem:[%s1 + $0x954] sm:$0xf]
    %v621 = vld [vmem:[%s1 + $0x958] sm:$0xf]
    %v622 = vld [vmem:[%s1 + $0x95c] sm:$0xf]
    %v623 = vld [vmem:[%s1 + $0x960] sm:$0xf]
    %v624 = vld [vmem:[%s1 + $0x964] sm:$0xf]
    %v625 = vld [vmem:[%s1 + $0x968] sm:$0xf]
    %v626 = vld [vmem:[%s1 + $0x96c] sm:$0xf]
    %v627 = vld [vmem:[%s1 + $0x970] sm:$0xf]
    %v628 = vld [vmem:[%s1 + $0x974] sm:$0xf]
    %v629 = vld [vmem:[%s1 + $0x978] sm:$0xf]
    %v630 = vld [vmem:[%s1 + $0x97c] sm:$0xf]
    %v631 = vld [vmem:[%s1 + $0x980] sm:$0xf]
    %v632 = vld [vmem:[%s1 + $0x984] sm:$0xf]
    %v633 = vld [vmem:[%s1 + $0x988] sm:$0xf]
    %v634 = vld [vmem:[%s1 + $0x98c] sm:$0xf]
    %v635 = vld [vmem:[%s1 + $0x990] sm:$0xf]
    %v636 = vld [vmem:[%s1 + $0x994] sm:$0xf]
    %v637 = vld [vmem:[%s1 + $0x998] sm:$0xf]
    %v638 = vld [vmem:[%s1 + $0x99c] sm:$0xf]
    %v639 = vld [vmem:[%s1 + $0x9a0] sm:$0xf]
    %v640 = vld [vmem:[%s1 + $0x9a4] sm:$0xf]
    %v641 = vld [vmem:[%s1 + $0x9a8] sm:$0xf]
    %v642 = vld [vmem:[%s1 + $0x9ac] sm:$0xf]
    %v643 = vld [vmem:[%s1 + $0x9b0] sm:$0xf]
    %v644 = vld [vmem:[%s1 + $0x9b4] sm:$0xf]
    %v645 = vld [vmem:[%s1 + $0x9b8] sm:$0xf]
    %v646 = vld [vmem:[%s1 + $0x9bc] sm:$0xf]
    %v647 = vld [vmem:[%s1 + $0x9c0] sm:$0xf]
    %v648 = vld [vmem:[%s1 + $0x9c4] sm:$0xf]
    %v649 = vld [vmem:[%s1 + $0x9c8] sm:$0xf]
    %v650 = vld [vmem:[%s1 + $0x9cc] sm:$0xf]
    %v651 = vld [vmem:[%s1 + $0x9d0] sm:$0xf]
    %v652 = vld [vmem:[%s1 + $0x9d4] sm:$0xf]
    %v653 = vld [vmem:[%s1 + $0x9d8] sm:$0xf]
    %v654 = vld [vmem:[%s1 + $0x9dc] sm:$0xf]
    %v655 = vld [vmem:[%s1 + $0x9e0] sm:$0xf]
    %v656 = vld [vmem:[%s1 + $0x9e4] sm:$0xf]
    %v657 = vld [vmem:[%s1 + $0x9e8] sm:$0xf]
    %v658 = vld [vmem:[%s1 + $0x9ec] sm:$0xf]
    %v659 = vld [vmem:[%s1 + $0x9f0] sm:$0xf]
    %v660 = vld [vmem:[%s1 + $0x9f4] sm:$0xf]
    %v661 = vld [vmem:[%s1 + $0x9f8] sm:$0xf]
    %v662 = vld [vmem:[%s1 + $0x9fc] sm:$0xf]
    %v663 = vld [vmem:[%s1 + $0xa00] sm:$0xf]
    %v664 = vld [vmem:[%s1 + $0xa04] sm:$0xf]
    %v665 = vld [vmem:[%s1 + $0xa08] sm:$0xf]
    %v666 = vld [vmem:[%s1 + $0xa0c] sm:$0xf]
    %v667 = vld [vmem:[%s1 + $0xa10] sm:$0xf]
    %v668 = vld [vmem:[%s1 + $0xa14] sm:$0xf]
    %v669 = vld [vmem:[%s1 + $0xa18] sm:$0xf]
    %v670 = vld [vmem:[%s1 + $0xa1c] sm:$0xf]
    %v671 = vld [vmem:[%s1 + $0xa20] sm:$0xf]
    %v672 = vld [vmem:[%s1 + $0xa24] sm:$0xf]
    %v673 = vld [vmem:[%s1 + $0xa28] sm:$0xf]
    %v674 = vld [vmem:[%s1 + $0xa2c] sm:$0xf]
    %v675 = vld [vmem:[%s1 + $0xa30] sm:$0xf]
    %v676 = vld [vmem:[%s1 + $0xa34] sm:$0xf]
    %v677 = vld [vmem:[%s1 + $0xa38] sm:$0xf]
    %v678 = vld [vmem:[%s1 + $0xa3c] sm:$0xf]
    %v679 = vld [vmem:[%s1 + $0xa40] sm:$0xf]
    %v680 = vld [vmem:[%s1 + $0xa44] sm:$0xf]
    %v681 = vld [vmem:[%s1 + $0xa48] sm:$0xf]
    %v682 = vld [vmem:[%s1 + $0xa4c] sm:$0xf]
    %v683 = vld [vmem:[%s1 + $0xa50] sm:$0xf]
    %v684 = vld [vmem:[%s1 + $0xa54] sm:$0xf]
    %v685 = vld [vmem:[%s1 + $0xa58] sm:$0xf]
    %v686 = vld [vmem:[%s1 + $0xa5c] sm:$0xf]
    %v687 = vld [vmem:[%s1 + $0xa60] sm:$0xf]
    %v688 = vld [vmem:[%s1 + $0xa64] sm:$0xf]
    %v689 = vld [vmem:[%s1 + $0xa68] sm:$0xf]
    %v690 = vld [vmem:[%s1 + $0xa6c] sm:$0xf]
    %v691 = vld [vmem:[%s1 + $0xa70] sm:$0xf]
    %v692 = vld [vmem:[%s1 + $0xa74] sm:$0xf]
    %v693 = vld [vmem:[%s1 + $0xa78] sm:$0xf]
    %v694 = vld [vmem:[%s1 + $0xa7c] sm:$0xf]
    %v695 = vld [vmem:[%s1 + $0xa80] sm:$0xf]
    %v696 = vld [vmem:[%s1 + $0xa84] sm:$0xf]
    %v697 = vld [vmem:[%s1 + $0xa88] sm:$0xf]
    %v698 = vld [vmem:[%s1 + $0xa8c] sm:$0xf]
    %v699 = vld [vmem:[%s1 + $0xa90] sm:$0xf]
    %v700 = vld [vmem:[%s1 + $0xa94] sm:$0xf]
    %v701 = vld [vmem:[%s1 + $0xa98] sm:$0xf]
    %v702 = vld [vmem:[%s1 + $0xa9c] sm:$0xf]
    %v703 = vld [vmem:[%s1 + $0xaa0] sm:$0xf]
    %v704 = vld [vmem:[%s1 + $0xaa4] sm:$0xf]
    %v705 = vld [vmem:[%s1 + $0xaa8] sm:$0xf]
    %v706 = vld [vmem:[%s1 + $0xaac] sm:$0xf]
    %v707 = vld [vmem:[%s1 + $0xab0] sm:$0xf]
    %v708 = vld [vmem:[%s1 + $0xab4] sm:$0xf]
    %v709 = vld [vmem:[%s1 + $0xab8] sm:$0xf]
    %v710 = vld [vmem:[%s1 + $0xabc] sm:$0xf]
    %v711 = vld [vmem:[%s1 + $0xac0] sm:$0xf]
    %v712 = vld [vmem:[%s1 + $0xac4] sm:$0xf]
    %v713 = vld [vmem:[%s1 + $0xac8] sm:$0xf]
    %v714 = vld [vmem:[%s1 + $0xacc] sm:$0xf]
    %v715 = vld [vmem:[%s1 + $0xad0] sm:$0xf]
    %v716 = vld [vmem:[%s1 + $0xad4] sm:$0xf]
    %v717 = vld [vmem:[%s1 + $0xad8] sm:$0xf]
    %v718 = vld [vmem:[%s1 + $0xadc] sm:$0xf]
    %v719 = vld [vmem:[%s1 + $0xae0] sm:$0xf]
    %v720 = vld [vmem:[%s1 + $0xae4] sm:$0xf]
    %v721 = vld [vmem:[%s1 + $0xae8] sm:$0xf]
    %v722 = vld [vmem:[%s1 + $0xaec] sm:$0xf]
    %v723 = vld [vmem:[%s1 + $0xaf0] sm:$0xf]
    %v724 = vld [vmem:[%s1 + $0xaf4] sm:$0xf]
    %v725 = vld [vmem:[%s1 + $0xaf8] sm:$0xf]
    %v726 = vld [vmem:[%s1 + $0xafc] sm:$0xf]
    %v727 = vld [vmem:[%s1 + $0xb00] sm:$0xf]
    %v728 = vld [vmem:[%s1 + $0xb04] sm:$0xf]
    %v729 = vld [vmem:[%s1 + $0xb08] sm:$0xf]
    %v730 = vld [vmem:[%s1 + $0xb0c] sm:$0xf]
    %v731 = vld [vmem:[%s1 + $0xb10] sm:$0xf]
    %v732 = vld [vmem:[%s1 + $0xb14] sm:$0xf]
    %v733 = vld [vmem:[%s1 + $0xb18] sm:$0xf]
    %v734 = vld [vmem:[%s1 + $0xb1c] sm:$0xf]
    %v735 = vld [vmem:[%s1 + $0xb20] sm:$0xf]
    %v736 = vld [vmem:[%s1 + $0xb24] sm:$0xf]
    %v737 = vld [vmem:[%s1 + $0xb28] sm:$0xf]
    %v738 = vld [vmem:[%s1 + $0xb2c] sm:$0xf]
    %v739 = vld [vmem:[%s1 + $0xb30] sm:$0xf]
    %v740 = vld [vmem:[%s1 + $0xb34] sm:$0xf]
    %v741 = vld [vmem:[%s1 + $0xb38] sm:$0xf]
    %v742 = vld [vmem:[%s1 + $0xb3c] sm:$0xf]
    %v743 = vld [vmem:[%s1 + $0xb40] sm:$0xf]
    %v744 = vld [vmem:[%s1 + $0xb44] sm:$0xf]
    %v745 = vld [vmem:[%s1 + $0xb48] sm:$0xf]
    %v746 = vld [vmem:[%s1 + $0xb4c] sm:$0xf]
    %v747 = vld [vmem:[%s1 + $0xb50] sm:$0xf]
    %v748 = vld [vmem:[%s1 + $0xb54] sm:$0xf]
    %v749 = vld [vmem:[%s1 + $0xb58] sm:$0xf]
    %v750 = vld [vmem:[%s1 + $0xb5c] sm:$0xf]
    %v751 = vld [vmem:[%s1 + $0xb60] sm:$0xf]
    %v752 = vld [vmem:[%s1 + $0xb64] sm:$0xf]
    %v753 = vld [vmem:[%s1 + $0xb68] sm:$0xf]
    %v754 = vld [vmem:[%s1 + $0xb6c] sm:$0xf]
    %v755 = vld [vmem:[%s1 + $0xb70] sm:$0xf]
    %v756 = vld [vmem:[%s1 + $0xb74] sm:$0xf]
    %v757 = vld [vmem:[%s1 + $0xb78] sm:$0xf]
    %v758 = vld [vmem:[%s1 + $0xb7c] sm:$0xf]
    %v759 = vld [vmem:[%s1 + $0xb80] sm:$0xf]
    %v760 = vld [vmem:[%s1 + $0xb84] sm:$0xf]
    %v761 = vld [vmem:[%s1 + $0xb88] sm:$0xf]
    %v762 = vld [vmem:[%s1 + $0xb8c] sm:$0xf]
    %v763 = vld [vmem:[%s1 + $0xb90] sm:$0xf]
    %v764 = vld [vmem:[%s1 + $0xb94] sm:$0xf]
    %v765 = vld [vmem:[%s1 + $0xb98] sm:$0xf]
    %v766 = vld [vmem:[%s1 + $0xb9c] sm:$0xf]
    %v767 = vld [vmem:[%s1 + $0xba0] sm:$0xf]
    %v768 = vld [vmem:[%s1 + $0xba4] sm:$0xf]
    %v769 = vld [vmem:[%s1 + $0xba8] sm:$0xf]
    %v770 = vld [vmem:[%s1 + $0xbac] sm:$0xf]
    %v771 = vld [vmem:[%s1 + $0xbb0] sm:$0xf]
    %v772 = vld [vmem:[%s1 + $0xbb4] sm:$0xf]
    %v773 = vld [vmem:[%s1 + $0xbb8] sm:$0xf]
    %v774 = vld [vmem:[%s1 + $0xbbc] sm:$0xf]
    %v775 = vld [vmem:[%s1 + $0xbc0] sm:$0xf]
    %v776 = vld [vmem:[%s1 + $0xbc4] sm:$0xf]
    %v777 = vld [vmem:[%s1 + $0xbc8] sm:$0xf]
    %v778 = vld [vmem:[%s1 + $0xbcc] sm:$0xf]
    %v779 = vld [vmem:[%s1 + $0xbd0] sm:$0xf]
    %v780 = vld [vmem:[%s1 + $0xbd4] sm:$0xf]
    %v781 = vld [vmem:[%s1 + $0xbd8] sm:$0xf]
    %v782 = vld [vmem:[%s1 + $0xbdc] sm:$0xf]
    %v783 = vld [vmem:[%s1 + $0xbe0] sm:$0xf]
    %v784 = vld [vmem:[%s1 + $0xbe4] sm:$0xf]
    %v785 = vld [vmem:[%s1 + $0xbe8] sm:$0xf]
    %v786 = vld [vmem:[%s1 + $0xbec] sm:$0xf]
    %v787 = vld [vmem:[%s1 + $0xbf0] sm:$0xf]
    %v788 = vld [vmem:[%s1 + $0xbf4] sm:$0xf]
    %v789 = vld [vmem:[%s1 + $0xbf8] sm:$0xf]
    %v790 = vld [vmem:[%s1 + $0xbfc] sm:$0xf]
    %v791 = vld [vmem:[%s1 + $0xc00] sm:$0xf]
    %v792 = vld [vmem:[%s1 + $0xc04] sm:$0xf]
    %v793 = vld [vmem:[%s1 + $0xc08] sm:$0xf]
    %v794 = vld [vmem:[%s1 + $0xc0c] sm:$0xf]
    %v795 = vld [vmem:[%s1 + $0xc10] sm:$0xf]
    %v796 = vld [vmem:[%s1 + $0xc14] sm:$0xf]
    %v797 = vld [vmem:[%s1 + $0xc18] sm:$0xf]
    %v798 = vld [vmem:[%s1 + $0xc1c] sm:$0xf]
    %v799 = vld [vmem:[%s1 + $0xc20] sm:$0xf]
    %v800 = vld [vmem:[%s1 + $0xc24] sm:$0xf]
    %v801 = vld [vmem:[%s1 + $0xc28] sm:$0xf]
    %v802 = vld [vmem:[%s1 + $0xc2c] sm:$0xf]
    %v803 = vld [vmem:[%s1 + $0xc30] sm:$0xf]
    %v804 = vld [vmem:[%s1 + $0xc34] sm:$0xf]
    %v805 = vld [vmem:[%s1 + $0xc38] sm:$0xf]
    %v806 = vld [vmem:[%s1 + $0xc3c] sm:$0xf]
    %v807 = vld [vmem:[%s1 + $0xc40] sm:$0xf]
    %v808 = vld [vmem:[%s1 + $0xc44] sm:$0xf]
    %v809 = vld [vmem:[%s1 + $0xc48] sm:$0xf]
    %v810 = vld [vmem:[%s1 + $0xc4c] sm:$0xf]
    %v811 = vld [vmem:[%s1 + $0xc50] sm:$0xf]
    %v812 = vld [vmem:[%s1 + $0xc54] sm:$0xf]
    %v813 = vld [vmem:[%s1 + $0xc58] sm:$0xf]
    %v814 = vld [vmem:[%s1 + $0xc5c] sm:$0xf]
    %v815 = vld [vmem:[%s1 + $0xc60] sm:$0xf]
    %v816 = vld [vmem:[%s1 + $0xc64] sm:$0xf]
    %v817 = vld [vmem:[%s1 + $0xc68] sm:$0xf]
    %v818 = vld [vmem:[%s1 + $0xc6c] sm:$0xf]
    %v819 = vld [vmem:[%s1 + $0xc70] sm:$0xf]
    %v820 = vld [vmem:[%s1 + $0xc74] sm:$0xf]
    %v821 = vld [vmem:[%s1 + $0xc78] sm:$0xf]
    %v822 = vld [vmem:[%s1 + $0xc7c] sm:$0xf]
    %v823 = vld [vmem:[%s1 + $0xc80] sm:$0xf]
    %v824 = vld [vmem:[%s1 + $0xc84] sm:$0xf]
    %v825 = vld [vmem:[%s1 + $0xc88] sm:$0xf]
    %v826 = vld [vmem:[%s1 + $0xc8c] sm:$0xf]
    %v827 = vld [vmem:[%s1 + $0xc90] sm:$0xf]
    %v828 = vld [vmem:[%s1 + $0xc94] sm:$0xf]
    %v829 = vld [vmem:[%s1 + $0xc98] sm:$0xf]
    %v830 = vld [vmem:[%s1 + $0xc9c] sm:$0xf]
    %v831 = vld [vmem:[%s1 + $0xca0] sm:$0xf]
    %v832 = vld [vmem:[%s1 + $0xca4] sm:$0xf]
    %v833 = vld [vmem:[%s1 + $0xca8] sm:$0xf]
    %v834 = vld [vmem:[%s1 + $0xcac] sm:$0xf]
    %v835 = vld [vmem:[%s1 + $0xcb0] sm:$0xf]
    %v836 = vld [vmem:[%s1 + $0xcb4] sm:$0xf]
    %v837 = vld [vmem:[%s1 + $0xcb8] sm:$0xf]
    %v838 = vld [vmem:[%s1 + $0xcbc] sm:$0xf]
    %v839 = vld [vmem:[%s1 + $0xcc0] sm:$0xf]
    %v840 = vld [vmem:[%s1 + $0xcc4] sm:$0xf]
    %v841 = vld [vmem:[%s1 + $0xcc8] sm:$0xf]
    %v842 = vld [vmem:[%s1 + $0xccc] sm:$0xf]
    %v843 = vld [vmem:[%s1 + $0xcd0] sm:$0xf]
    %v844 = vld [vmem:[%s1 + $0xcd4] sm:$0xf]
    %v845 = vld [vmem:[%s1 + $0xcd8] sm:$0xf]
    %v846 = vld [vmem:[%s1 + $0xcdc] sm:$0xf]
    %v847 = vld [vmem:[%s1 + $0xce0] sm:$0xf]
    %v848 = vld [vmem:[%s1 + $0xce4] sm:$0xf]
    %v849 = vld [vmem:[%s1 + $0xce8] sm:$0xf]
    %v850 = vld [vmem:[%s1 + $0xcec] sm:$0xf]
    %v851 = vld [vmem:[%s1 + $0xcf0] sm:$0xf]
    %v852 = vld [vmem:[%s1 + $0xcf4] sm:$0xf]
    %v853 = vld [vmem:[%s1 + $0xcf8] sm:$0xf]
    %v854 = vld [vmem:[%s1 + $0xcfc] sm:$0xf]
    %v855 = vld [vmem:[%s1 + $0xd00] sm:$0xf]
    %v856 = vld [vmem:[%s1 + $0xd04] sm:$0xf]
    %v857 = vld [vmem:[%s1 + $0xd08] sm:$0xf]
    %v858 = vld [vmem:[%s1 + $0xd0c] sm:$0xf]
    %v859 = vld [vmem:[%s1 + $0xd10] sm:$0xf]
    %v860 = vld [vmem:[%s1 + $0xd14] sm:$0xf]
    %v861 = vld [vmem:[%s1 + $0xd18] sm:$0xf]
    %v862 = vld [vmem:[%s1 + $0xd1c] sm:$0xf]
    %v863 = vld [vmem:[%s1 + $0xd20] sm:$0xf]
    %v864 = vld [vmem:[%s1 + $0xd24] sm:$0xf]
    %v865 = vld [vmem:[%s1 + $0xd28] sm:$0xf]
    %v866 = vld [vmem:[%s1 + $0xd2c] sm:$0xf]
    %v867 = vld [vmem:[%s1 + $0xd30] sm:$0xf]
    %v868 = vld [vmem:[%s1 + $0xd34] sm:$0xf]
    %v869 = vld [vmem:[%s1 + $0xd38] sm:$0xf]
    %v870 = vld [vmem:[%s1 + $0xd3c] sm:$0xf]
    %v871 = vld [vmem:[%s1 + $0xd40] sm:$0xf]
    %v872 = vld [vmem:[%s1 + $0xd44] sm:$0xf]
    %v873 = vld [vmem:[%s1 + $0xd48] sm:$0xf]
    %v874 = vld [vmem:[%s1 + $0xd4c] sm:$0xf]
    %v875 = vld [vmem:[%s1 + $0xd50] sm:$0xf]
    %v876 = vld [vmem:[%s1 + $0xd54] sm:$0xf]
    %v877 = vld [vmem:[%s1 + $0xd58] sm:$0xf]
    %v878 = vld [vmem:[%s1 + $0xd5c] sm:$0xf]
    %v879 = vld [vmem:[%s1 + $0xd60] sm:$0xf]
    %v880 = vld [vmem:[%s1 + $0xd64] sm:$0xf]
    %v881 = vld [vmem:[%s1 + $0xd68] sm:$0xf]
    %v882 = vld [vmem:[%s1 + $0xd6c] sm:$0xf]
    %v883 = vld [vmem:[%s1 + $0xd70] sm:$0xf]
    %v884 = vld [vmem:[%s1 + $0xd74] sm:$0xf]
    %v885 = vld [vmem:[%s1 + $0xd78] sm:$0xf]
    %v886 = vld [vmem:[%s1 + $0xd7c] sm:$0xf]
    %v887 = vld [vmem:[%s1 + $0xd80] sm:$0xf]
    %v888 = vld [vmem:[%s1 + $0xd84] sm:$0xf]
    %v889 = vld [vmem:[%s1 + $0xd88] sm:$0xf]
    %v890 = vld [vmem:[%s1 + $0xd8c] sm:$0xf]
    %v891 = vld [vmem:[%s1 + $0xd90] sm:$0xf]
    %v892 = vld [vmem:[%s1 + $0xd94] sm:$0xf]
    %v893 = vld [vmem:[%s1 + $0xd98] sm:$0xf]
    %v894 = vld [vmem:[%s1 + $0xd9c] sm:$0xf]
    %v895 = vld [vmem:[%s1 + $0xda0] sm:$0xf]
    %v896 = vld [vmem:[%s1 + $0xda4] sm:$0xf]
    %v897 = vld [vmem:[%s1 + $0xda8] sm:$0xf]
    %v898 = vld [vmem:[%s1 + $0xdac] sm:$0xf]
    %v899 = vld [vmem:[%s1 + $0xdb0] sm:$0xf]
    %v900 = vld [vmem:[%s1 + $0xdb4] sm:$0xf]
    %v901 = vld [vmem:[%s1 + $0xdb8] sm:$0xf]
    %v902 = vld [vmem:[%s1 + $0xdbc] sm:$0xf]
    %v903 = vld [vmem:[%s1 + $0xdc0] sm:$0xf]
    %v904 = vld [vmem:[%s1 + $0xdc4] sm:$0xf]
    %v905 = vld [vmem:[%s1 + $0xdc8] sm:$0xf]
    %v906 = vld [vmem:[%s1 + $0xdcc] sm:$0xf]
    %v907 = vld [vmem:[%s1 + $0xdd0] sm:$0xf]
    %v908 = vld [vmem:[%s1 + $0xdd4] sm:$0xf]
    %v909 = vld [vmem:[%s1 + $0xdd8] sm:$0xf]
    %v910 = vld [vmem:[%s1 + $0xddc] sm:$0xf]
    %v911 = vld [vmem:[%s1 + $0xde0] sm:$0xf]
    %v912 = vld [vmem:[%s1 + $0xde4] sm:$0xf]
    %v913 = vld [vmem:[%s1 + $0xde8] sm:$0xf]
    %v914 = vld [vmem:[%s1 + $0xdec] sm:$0xf]
    %v915 = vld [vmem:[%s1 + $0xdf0] sm:$0xf]
    %v916 = vld [vmem:[%s1 + $0xdf4] sm:$0xf]
    %v917 = vld [vmem:[%s1 + $0xdf8] sm:$0xf]
    %v918 = vld [vmem:[%s1 + $0xdfc] sm:$0xf]
    %v919 = vld [vmem:[%s1 + $0xe00] sm:$0xf]
    %v920 = vld [vmem:[%s1 + $0xe04] sm:$0xf]
    %v921 = vld [vmem:[%s1 + $0xe08] sm:$0xf]
    %v922 = vld [vmem:[%s1 + $0xe0c] sm:$0xf]
    %v923 = vld [vmem:[%s1 + $0xe10] sm:$0xf]
    %v924 = vld [vmem:[%s1 + $0xe14] sm:$0xf]
    %v925 = vld [vmem:[%s1 + $0xe18] sm:$0xf]
    %v926 = vld [vmem:[%s1 + $0xe1c] sm:$0xf]
    %v927 = vld [vmem:[%s1 + $0xe20] sm:$0xf]
    %v928 = vld [vmem:[%s1 + $0xe24] sm:$0xf]
    %v929 = vld [vmem:[%s1 + $0xe28] sm:$0xf]
    %v930 = vld [vmem:[%s1 + $0xe2c] sm:$0xf]
    %v931 = vld [vmem:[%s1 + $0xe30] sm:$0xf]
    %v932 = vld [vmem:[%s1 + $0xe34] sm:$0xf]
    %v933 = vld [vmem:[%s1 + $0xe38] sm:$0xf]
    %v934 = vld [vmem:[%s1 + $0xe3c] sm:$0xf]
    %v935 = vld [vmem:[%s1 + $0xe40] sm:$0xf]
    %v936 = vld [vmem:[%s1 + $0xe44] sm:$0xf]
    %v937 = vld [vmem:[%s1 + $0xe48] sm:$0xf]
    %v938 = vld [vmem:[%s1 + $0xe4c] sm:$0xf]
    %v939 = vld [vmem:[%s1 + $0xe50] sm:$0xf]
    %v940 = vld [vmem:[%s1 + $0xe54] sm:$0xf]
    %v941 = vld [vmem:[%s1 + $0xe58] sm:$0xf]
    %v942 = vld [vmem:[%s1 + $0xe5c] sm:$0xf]
    %v943 = vld [vmem:[%s1 + $0xe60] sm:$0xf]
    %v944 = vld [vmem:[%s1 + $0xe64] sm:$0xf]
    %v945 = vld [vmem:[%s1 + $0xe68] sm:$0xf]
    %v946 = vld [vmem:[%s1 + $0xe6c] sm:$0xf]
    %v947 = vld [vmem:[%s1 + $0xe70] sm:$0xf]
    %v948 = vld [vmem:[%s1 + $0xe74] sm:$0xf]
    %v949 = vld [vmem:[%s1 + $0xe78] sm:$0xf]
    %v950 = vld [vmem:[%s1 + $0xe7c] sm:$0xf]
    %v951 = vld [vmem:[%s1 + $0xe80] sm:$0xf]
    %v952 = vld [vmem:[%s1 + $0xe84] sm:$0xf]
    %v953 = vld [vmem:[%s1 + $0xe88] sm:$0xf]
    %v954 = vld [vmem:[%s1 + $0xe8c] sm:$0xf]
    %v955 = vld [vmem:[%s1 + $0xe90] sm:$0xf]
    %v956 = vld [vmem:[%s1 + $0xe94] sm:$0xf]
    %v957 = vld [vmem:[%s1 + $0xe98] sm:$0xf]
    %v958 = vld [vmem:[%s1 + $0xe9c] sm:$0xf]
    %v959 = vld [vmem:[%s1 + $0xea0] sm:$0xf]
    %v960 = vld [vmem:[%s1 + $0xea4] sm:$0xf]
    %v961 = vld [vmem:[%s1 + $0xea8] sm:$0xf]
    %v962 = vld [vmem:[%s1 + $0xeac] sm:$0xf]
    %v963 = vld [vmem:[%s1 + $0xeb0] sm:$0xf]
    %v964 = vld [vmem:[%s1 + $0xeb4] sm:$0xf]
    %v965 = vld [vmem:[%s1 + $0xeb8] sm:$0xf]
    %v966 = vld [vmem:[%s1 + $0xebc] sm:$0xf]
    %v967 = vld [vmem:[%s1 + $0xec0] sm:$0xf]
    %v968 = vld [vmem:[%s1 + $0xec4] sm:$0xf]
    %v969 = vld [vmem:[%s1 + $0xec8] sm:$0xf]
    %v970 = vld [vmem:[%s1 + $0xecc] sm:$0xf]
    %v971 = vld [vmem:[%s1 + $0xed0] sm:$0xf]
    %v972 = vld [vmem:[%s1 + $0xed4] sm:$0xf]
    %v973 = vld [vmem:[%s1 + $0xed8] sm:$0xf]
    %v974 = vld [vmem:[%s1 + $0xedc] sm:$0xf]
    %v975 = vld [vmem:[%s1 + $0xee0] sm:$0xf]
    %v976 = vld [vmem:[%s1 + $0xee4] sm:$0xf]
    %v977 = vld [vmem:[%s1 + $0xee8] sm:$0xf]
    %v978 = vld [vmem:[%s1 + $0xeec] sm:$0xf]
    %v979 = vld [vmem:[%s1 + $0xef0] sm:$0xf]
    %v980 = vld [vmem:[%s1 + $0xef4] sm:$0xf]
    %v981 = vld [vmem:[%s1 + $0xef8] sm:$0xf]
    %v982 = vld [vmem:[%s1 + $0xefc] sm:$0xf]
    %v983 = vld [vmem:[%s1 + $0xf00] sm:$0xf]
    %v984 = vld [vmem:[%s1 + $0xf04] sm:$0xf]
    %v985 = vld [vmem:[%s1 + $0xf08] sm:$0xf]
    %v986 = vld [vmem:[%s1 + $0xf0c] sm:$0xf]
    %v987 = vld [vmem:[%s1 + $0xf10] sm:$0xf]
    %v988 = vld [vmem:[%s1 + $0xf14] sm:$0xf]
    %v989 = vld [vmem:[%s1 + $0xf18] sm:$0xf]
    %v990 = vld [vmem:[%s1 + $0xf1c] sm:$0xf]
    %v991 = vld [vmem:[%s1 + $0xf20] sm:$0xf]
    %v992 = vld [vmem:[%s1 + $0xf24] sm:$0xf]
    %v993 = vld [vmem:[%s1 + $0xf28] sm:$0xf]
    %v994 = vld [vmem:[%s1 + $0xf2c] sm:$0xf]
    %v995 = vld [vmem:[%s1 + $0xf30] sm:$0xf]
    %v996 = vld [vmem:[%s1 + $0xf34] sm:$0xf]
    %v997 = vld [vmem:[%s1 + $0xf38] sm:$0xf]
    %v998 = vld [vmem:[%s1 + $0xf3c] sm:$0xf]
    %v999 = vld [vmem:[%s1 + $0xf40] sm:$0xf]
    %v1000 = vld [vmem:[%s1 + $0xf44] sm:$0xf]
    %v1001 = vld [vmem:[%s1 + $0xf48] sm:$0xf]
    %v1002 = vld [vmem:[%s1 + $0xf4c] sm:$0xf]
    %v1003 = vld [vmem:[%s1 + $0xf50] sm:$0xf]
    %v1004 = vld [vmem:[%s1 + $0xf54] sm:$0xf]
    %v1005 = vld [vmem:[%s1 + $0xf58] sm:$0xf]
    %v1006 = vld [vmem:[%s1 + $0xf5c] sm:$0xf]
    %v1007 = vld [vmem:[%s1 + $0xf60] sm:$0xf]
    %v1008 = vld [vmem:[%s1 + $0xf64] sm:$0xf]
    %v1009 = vld [vmem:[%s1 + $0xf68] sm:$0xf]
    %v1010 = vld [vmem:[%s1 + $0xf6c] sm:$0xf]
    %v1011 = vld [vmem:[%s1 + $0xf70] sm:$0xf]
    %v1012 = vld [vmem:[%s1 + $0xf74] sm:$0xf]
    %v1013 = vld [vmem:[%s1 + $0xf78] sm:$0xf]
    %v1014 = vld [vmem:[%s1 + $0xf7c] sm:$0xf]
    %v1015 = vld [vmem:[%s1 + $0xf80] sm:$0xf]
    %v1016 = vld [vmem:[%s1 + $0xf84] sm:$0xf]
    %v1017 = vld [vmem:[%s1 + $0xf88] sm:$0xf]
    %v1018 = vld [vmem:[%s1 + $0xf8c] sm:$0xf]
    %v1019 = vld [vmem:[%s1 + $0xf90] sm:$0xf]
    %v1020 = vld [vmem:[%s1 + $0xf94] sm:$0xf]
    %v1021 = vld [vmem:[%s1 + $0xf98] sm:$0xf]
    %v1022 = vld [vmem:[%s1 + $0xf9c] sm:$0xf]
    %v1023 = vld [vmem:[%s1 + $0xfa0] sm:$0xf]
    %v1024 = vld [vmem:[%s1 + $0xfa4] sm:$0xf]
    %v1025 = vld [vmem:[%s1 + $0xfa8] sm:$0xf]
    %v1026 = vld [vmem:[%s1 + $0xfac] sm:$0xf]
    %v1027 = vld [vmem:[%s1 + $0xfb0] sm:$0xf]
    %v1028 = vld [vmem:[%s1 + $0xfb4] sm:$0xf]
    %v1029 = vld [vmem:[%s1 + $0xfb8] sm:$0xf]
    %v1030 = vld [vmem:[%s1 + $0xfbc] sm:$0xf]
    %v1031 = vld [vmem:[%s1 + $0xfc0] sm:$0xf]
    %v1032 = vld [vmem:[%s1 + $0xfc4] sm:$0xf]
    %v1033 = vld [vmem:[%s1 + $0xfc8] sm:$0xf]
    %v1034 = vld [vmem:[%s1 + $0xfcc] sm:$0xf]
    %v1035 = vld [vmem:[%s1 + $0xfd0] sm:$0xf]
    %v1036 = vld [vmem:[%s1 + $0xfd4] sm:$0xf]
    %v1037 = vld [vmem:[%s1 + $0xfd8] sm:$0xf]
    %v1038 = vld [vmem:[%s1 + $0xfdc] sm:$0xf]
    %v1039 = vld [vmem:[%s1 + $0xfe0] sm:$0xf]
    %v1040 = vld [vmem:[%s1 + $0xfe4] sm:$0xf]
    %v1041 = vld [vmem:[%s1 + $0xfe8] sm:$0xf]
    %v1042 = vld [vmem:[%s1 + $0xfec] sm:$0xf]
    %v1043 = vld [vmem:[%s1 + $0xff0] sm:$0xf]
    %v1044 = vld [vmem:[%s1 + $0xff4] sm:$0xf]
    %v1045 = vld [vmem:[%s1 + $0xff8] sm:$0xf]
    %v1046 = vld [vmem:[%s1 + $0xffc] sm:$0xf]
    %v1047 = vld [vmem:[%s2] sm:$0x1]
    %v1049 = vperm.slane %v1047, 0
    %1052 = vst [vmem:[#allocation1] ss:$9 sm:$0xff] %v15
    %v1053 = vld [vmem:[#allocation1] sm:$0xff]
    %v1054 = vld [vmem:[#allocation1 + $0x9] sm:$0xff]
    %v1055 = vld [vmem:[#allocation1 + $0x12] sm:$0xff]
    %v1056 = vld [vmem:[#allocation1 + $0x1b] sm:$0xff]
    %v1057 = vld [vmem:[#allocation1 + $0x24] sm:$0xff]
    %v1058 = vld [vmem:[#allocation1 + $0x2d] sm:$0xff]
    %v1059 = vld [vmem:[#allocation1 + $0x36] sm:$0xff]
    %v1060 = vld [vmem:[#allocation1 + $0x3f] sm:$0xff]
    %1062 = vst [vmem:[#allocation1] ss:$9 sm:$0xff] %v16
    %v1063 = vld [vmem:[#allocation1] sm:$0xff]
    %v1064 = vld [vmem:[#allocation1 + $0x9] sm:$0xff]
    %v1065 = vld [vmem:[#allocation1 + $0x12] sm:$0xff]
    %v1066 = vld [vmem:[#allocation1 + $0x1b] sm:$0xff]
    %v1067 = vld [vmem:[#allocation1 + $0x24] sm:$0xff]
    %v1068 = vld [vmem:[#allocation1 + $0x2d] sm:$0xff]
    %v1069 = vld [vmem:[#allocation1 + $0x36] sm:$0xff]
    %v1070 = vld [vmem:[#allocation1 + $0x3f] sm:$0xff]
    %1072 = vst [vmem:[#allocation1] ss:$9 sm:$0xff] %v17
    %v1073 = vld [vmem:[#allocation1] sm:$0xff]
    %v1074 = vld [vmem:[#allocation1 + $0x9] sm:$0xff]
    %v1075 = vld [vmem:[#allocation1 + $0x12] sm:$0xff]
    %v1076 = vld [vmem:[#allocation1 + $0x1b] sm:$0xff]
    %v1077 = vld [vmem:[#allocation1 + $0x24] sm:$0xff]
    %v1078 = vld [vmem:[#allocation1 + $0x2d] sm:$0xff]
    %v1079 = vld [vmem:[#allocation1 + $0x36] sm:$0xff]
    %v1080 = vld [vmem:[#allocation1 + $0x3f] sm:$0xff]
    %1082 = vst [vmem:[#allocation1] ss:$9 sm:$0xff] %v18
    %v1083 = vld [vmem:[#allocation1] sm:$0xff]
    %v1084 = vld [vmem:[#allocation1 + $0x9] sm:$0xff]
    %v1085 = vld [vmem:[#allocation1 + $0x12] sm:$0xff]
    %v1086 = vld [vmem:[#allocation1 + $0x1b] sm:$0xff]
    %v1087 = vld [vmem:[#allocation1 + $0x24] sm:$0xff]
    %v1088 = vld [vmem:[#allocation1 + $0x2d] sm:$0xff]
    %v1089 = vld [vmem:[#allocation1 + $0x36] sm:$0xff]
    %v1090 = vld [vmem:[#allocation1 + $0x3f] sm:$0xff]
    %1092 = vst [vmem:[#allocation1] ss:$9 sm:$0xff] %v19
    %v1093 = vld [vmem:[#allocation1] sm:$0xff]
    %v1094 = vld [vmem:[#allocation1 + $0x9] sm:$0xff]
    %v1095 = vld [vmem:[#allocation1 + $0x12] sm:$0xff]
    %v1096 = vld [vmem:[#allocation1 + $0x1b] sm:$0xff]
    %v1097 = vld [vmem:[#allocation1 + $0x24] sm:$0xff]
    %v1098 = vld [vmem:[#allocation1 + $0x2d] sm:$0xff]
    %v1099 = vld [vmem:[#allocation1 + $0x36] sm:$0xff]
    %v1100 = vld [vmem:[#allocation1 + $0x3f] sm:$0xff]
    %1102 = vst [vmem:[#allocation1] ss:$9 sm:$0xff] %v20
    %v1103 = vld [vmem:[#allocation1] sm:$0xff]
    %v1104 = vld [vmem:[#allocation1 + $0x9] sm:$0xff]
    %v1105 = vld [vmem:[#allocation1 + $0x12] sm:$0xff]
    %v1106 = vld [vmem:[#allocation1 + $0x1b] sm:$0xff]
    %v1107 = vld [vmem:[#allocation1 + $0x24] sm:$0xff]
    %v1108 = vld [vmem:[#allocation1 + $0x2d] sm:$0xff]
    %v1109 = vld [vmem:[#allocation1 + $0x36] sm:$0xff]
    %v1110 = vld [vmem:[#allocation1 + $0x3f] sm:$0xff]
    %1112 = vst [vmem:[#allocation1] ss:$9 sm:$0xff] %v21
    %v1113 = vld [vmem:[#allocation1] sm:$0xff]
    %v1114 = vld [vmem:[#allocation1 + $0x9] sm:$0xff]
    %v1115 = vld [vmem:[#allocation1 + $0x12] sm:$0xff]
    %v1116 = vld [vmem:[#allocation1 + $0x1b] sm:$0xff]
    %v1117 = vld [vmem:[#allocation1 + $0x24] sm:$0xff]
    %v1118 = vld [vmem:[#allocation1 + $0x2d] sm:$0xff]
    %v1119 = vld [vmem:[#allocation1 + $0x36] sm:$0xff]
    %v1120 = vld [vmem:[#allocation1 + $0x3f] sm:$0xff]
    %1122 = vst [vmem:[#allocation1] ss:$9 sm:$0xff] %v22
    %v1123 = vld [vmem:[#allocation1] sm:$0xff]
    %v1124 = vld [vmem:[#allocation1 + $0x9] sm:$0xff]
    %v1125 = vld [vmem:[#allocation1 + $0x12] sm:$0xff]
    %v1126 = vld [vmem:[#allocation1 + $0x1b] sm:$0xff]
    %v1127 = vld [vmem:[#allocation1 + $0x24] sm:$0xff]
    %v1128 = vld [vmem:[#allocation1 + $0x2d] sm:$0xff]
    %v1129 = vld [vmem:[#allocation1 + $0x36] sm:$0xff]
    %v1130 = vld [vmem:[#allocation1 + $0x3f] sm:$0xff]
    %v2219 = vunpack.c.l.b16 %v23
    %v2220 = vunpack.c.l.b16 %v24
    %v2221 = vunpack.c.l.b16 %v25
    %v2222 = vunpack.c.l.b16 %v26
    %v2223 = vunpack.c.l.b16 %v27
    %v2224 = vunpack.c.l.b16 %v28
    %v2225 = vunpack.c.l.b16 %v29
    %v2226 = vunpack.c.l.b16 %v30
    %v2227 = vunpack.c.l.b16 %v31
    %v2228 = vunpack.c.l.b16 %v32
    %v2229 = vunpack.c.l.b16 %v33
    %v2230 = vunpack.c.l.b16 %v34
    %v2231 = vunpack.c.l.b16 %v35
    %v2232 = vunpack.c.l.b16 %v36
    %v2233 = vunpack.c.l.b16 %v37
    %v2234 = vunpack.c.l.b16 %v38
    %v2235 = vunpack.c.l.b16 %v39
    %v2236 = vunpack.c.l.b16 %v40
    %v2237 = vunpack.c.l.b16 %v41
    %v2238 = vunpack.c.l.b16 %v42
    %v2239 = vunpack.c.l.b16 %v43
    %v2240 = vunpack.c.l.b16 %v44
    %v2241 = vunpack.c.l.b16 %v45
    %v2242 = vunpack.c.l.b16 %v46
    %v2243 = vunpack.c.l.b16 %v47
    %v2244 = vunpack.c.l.b16 %v48
    %v2245 = vunpack.c.l.b16 %v49
    %v2246 = vunpack.c.l.b16 %v50
    %v2247 = vunpack.c.l.b16 %v51
    %v2248 = vunpack.c.l.b16 %v52
    %v2249 = vunpack.c.l.b16 %v53
    %v2250 = vunpack.c.l.b16 %v54
    %v2251 = vunpack.c.l.b16 %v55
    %v2252 = vunpack.c.l.b16 %v56
    %v2253 = vunpack.c.l.b16 %v57
    %v2254 = vunpack.c.l.b16 %v58
    %v2255 = vunpack.c.l.b16 %v59
    %v2256 = vunpack.c.l.b16 %v60
    %v2257 = vunpack.c.l.b16 %v61
    %v2258 = vunpack.c.l.b16 %v62
    %v2259 = vunpack.c.l.b16 %v63
    %v2260 = vunpack.c.l.b16 %v64
    %v2261 = vunpack.c.l.b16 %v65
    %v2262 = vunpack.c.l.b16 %v66
    %v2263 = vunpack.c.l.b16 %v67
    %v2264 = vunpack.c.l.b16 %v68
    %v2265 = vunpack.c.l.b16 %v69
    %v2266 = vunpack.c.l.b16 %v70
    %v2267 = vunpack.c.l.b16 %v71
    %v2268 = vunpack.c.l.b16 %v72
    %v2269 = vunpack.c.l.b16 %v73
    %v2270 = vunpack.c.l.b16 %v74
    %v2271 = vunpack.c.l.b16 %v75
    %v2272 = vunpack.c.l.b16 %v76
    %v2273 = vunpack.c.l.b16 %v77
    %v2274 = vunpack.c.l.b16 %v78
    %v2275 = vunpack.c.l.b16 %v79
    %v2276 = vunpack.c.l.b16 %v80
    %v2277 = vunpack.c.l.b16 %v81
    %v2278 = vunpack.c.l.b16 %v82
    %v2279 = vunpack.c.l.b16 %v83
    %v2280 = vunpack.c.l.b16 %v84
    %v2281 = vunpack.c.l.b16 %v85
    %v2282 = vunpack.c.l.b16 %v86
    %v2283 = vunpack.c.l.b16 %v87
    %v2284 = vunpack.c.l.b16 %v88
    %v2285 = vunpack.c.l.b16 %v89
    %v2286 = vunpack.c.l.b16 %v90
    %v2287 = vunpack.c.l.b16 %v91
    %v2288 = vunpack.c.l.b16 %v92
    %v2289 = vunpack.c.l.b16 %v93
    %v2290 = vunpack.c.l.b16 %v94
    %v2291 = vunpack.c.l.b16 %v95
    %v2292 = vunpack.c.l.b16 %v96
    %v2293 = vunpack.c.l.b16 %v97
    %v2294 = vunpack.c.l.b16 %v98
    %v2295 = vunpack.c.l.b16 %v99
    %v2296 = vunpack.c.l.b16 %v100
    %v2297 = vunpack.c.l.b16 %v101
    %v2298 = vunpack.c.l.b16 %v102
    %v2299 = vunpack.c.l.b16 %v103
    %v2300 = vunpack.c.l.b16 %v104
    %v2301 = vunpack.c.l.b16 %v105
    %v2302 = vunpack.c.l.b16 %v106
    %v2303 = vunpack.c.l.b16 %v107
    %v2304 = vunpack.c.l.b16 %v108
    %v2305 = vunpack.c.l.b16 %v109
    %v2306 = vunpack.c.l.b16 %v110
    %v2307 = vunpack.c.l.b16 %v111
    %v2308 = vunpack.c.l.b16 %v112
    %v2309 = vunpack.c.l.b16 %v113
    %v2310 = vunpack.c.l.b16 %v114
    %v2311 = vunpack.c.l.b16 %v115
    %v2312 = vunpack.c.l.b16 %v116
    %v2313 = vunpack.c.l.b16 %v117
    %v2314 = vunpack.c.l.b16 %v118
    %v2315 = vunpack.c.l.b16 %v119
    %v2316 = vunpack.c.l.b16 %v120
    %v2317 = vunpack.c.l.b16 %v121
    %v2318 = vunpack.c.l.b16 %v122
    %v2319 = vunpack.c.l.b16 %v123
    %v2320 = vunpack.c.l.b16 %v124
    %v2321 = vunpack.c.l.b16 %v125
    %v2322 = vunpack.c.l.b16 %v126
    %v2323 = vunpack.c.l.b16 %v127
    %v2324 = vunpack.c.l.b16 %v128
    %v2325 = vunpack.c.l.b16 %v129
    %v2326 = vunpack.c.l.b16 %v130
    %v2327 = vunpack.c.l.b16 %v131
    %v2328 = vunpack.c.l.b16 %v132
    %v2329 = vunpack.c.l.b16 %v133
    %v2330 = vunpack.c.l.b16 %v134
    %v2331 = vunpack.c.l.b16 %v135
    %v2332 = vunpack.c.l.b16 %v136
    %v2333 = vunpack.c.l.b16 %v137
    %v2334 = vunpack.c.l.b16 %v138
    %v2335 = vunpack.c.l.b16 %v139
    %v2336 = vunpack.c.l.b16 %v140
    %v2337 = vunpack.c.l.b16 %v141
    %v2338 = vunpack.c.l.b16 %v142
    %v2339 = vunpack.c.l.b16 %v143
    %v2340 = vunpack.c.l.b16 %v144
    %v2341 = vunpack.c.l.b16 %v145
    %v2342 = vunpack.c.l.b16 %v146
    %v2343 = vunpack.c.l.b16 %v147
    %v2344 = vunpack.c.l.b16 %v148
    %v2345 = vunpack.c.l.b16 %v149
    %v2346 = vunpack.c.l.b16 %v150
    %v2347 = vunpack.c.l.b16 %v151
    %v2348 = vunpack.c.l.b16 %v152
    %v2349 = vunpack.c.l.b16 %v153
    %v2350 = vunpack.c.l.b16 %v154
    %v2351 = vunpack.c.l.b16 %v155
    %v2352 = vunpack.c.l.b16 %v156
    %v2353 = vunpack.c.l.b16 %v157
    %v2354 = vunpack.c.l.b16 %v158
    %v2355 = vunpack.c.l.b16 %v159
    %v2356 = vunpack.c.l.b16 %v160
    %v2357 = vunpack.c.l.b16 %v161
    %v2358 = vunpack.c.l.b16 %v162
    %v2359 = vunpack.c.l.b16 %v163
    %v2360 = vunpack.c.l.b16 %v164
    %v2361 = vunpack.c.l.b16 %v165
    %v2362 = vunpack.c.l.b16 %v166
    %v2363 = vunpack.c.l.b16 %v167
    %v2364 = vunpack.c.l.b16 %v168
    %v2365 = vunpack.c.l.b16 %v169
    %v2366 = vunpack.c.l.b16 %v170
    %v2367 = vunpack.c.l.b16 %v171
    %v2368 = vunpack.c.l.b16 %v172
    %v2369 = vunpack.c.l.b16 %v173
    %v2370 = vunpack.c.l.b16 %v174
    %v2371 = vunpack.c.l.b16 %v175
    %v2372 = vunpack.c.l.b16 %v176
    %v2373 = vunpack.c.l.b16 %v177
    %v2374 = vunpack.c.l.b16 %v178
    %v2375 = vunpack.c.l.b16 %v179
    %v2376 = vunpack.c.l.b16 %v180
    %v2377 = vunpack.c.l.b16 %v181
    %v2378 = vunpack.c.l.b16 %v182
    %v2379 = vunpack.c.l.b16 %v183
    %v2380 = vunpack.c.l.b16 %v184
    %v2381 = vunpack.c.l.b16 %v185
    %v2382 = vunpack.c.l.b16 %v186
    %v2383 = vunpack.c.l.b16 %v187
    %v2384 = vunpack.c.l.b16 %v188
    %v2385 = vunpack.c.l.b16 %v189
    %v2386 = vunpack.c.l.b16 %v190
    %v2387 = vunpack.c.l.b16 %v191
    %v2388 = vunpack.c.l.b16 %v192
    %v2389 = vunpack.c.l.b16 %v193
    %v2390 = vunpack.c.l.b16 %v194
    %v2391 = vunpack.c.l.b16 %v195
    %v2392 = vunpack.c.l.b16 %v196
    %v2393 = vunpack.c.l.b16 %v197
    %v2394 = vunpack.c.l.b16 %v198
    %v2395 = vunpack.c.l.b16 %v199
    %v2396 = vunpack.c.l.b16 %v200
    %v2397 = vunpack.c.l.b16 %v201
    %v2398 = vunpack.c.l.b16 %v202
    %v2399 = vunpack.c.l.b16 %v203
    %v2400 = vunpack.c.l.b16 %v204
    %v2401 = vunpack.c.l.b16 %v205
    %v2402 = vunpack.c.l.b16 %v206
    %v2403 = vunpack.c.l.b16 %v207
    %v2404 = vunpack.c.l.b16 %v208
    %v2405 = vunpack.c.l.b16 %v209
    %v2406 = vunpack.c.l.b16 %v210
    %v2407 = vunpack.c.l.b16 %v211
    %v2408 = vunpack.c.l.b16 %v212
    %v2409 = vunpack.c.l.b16 %v213
    %v2410 = vunpack.c.l.b16 %v214
    %v2411 = vunpack.c.l.b16 %v215
    %v2412 = vunpack.c.l.b16 %v216
    %v2413 = vunpack.c.l.b16 %v217
    %v2414 = vunpack.c.l.b16 %v218
    %v2415 = vunpack.c.l.b16 %v219
    %v2416 = vunpack.c.l.b16 %v220
    %v2417 = vunpack.c.l.b16 %v221
    %v2418 = vunpack.c.l.b16 %v222
    %v2419 = vunpack.c.l.b16 %v223
    %v2420 = vunpack.c.l.b16 %v224
    %v2421 = vunpack.c.l.b16 %v225
    %v2422 = vunpack.c.l.b16 %v226
    %v2423 = vunpack.c.l.b16 %v227
    %v2424 = vunpack.c.l.b16 %v228
    %v2425 = vunpack.c.l.b16 %v229
    %v2426 = vunpack.c.l.b16 %v230
    %v2427 = vunpack.c.l.b16 %v231
    %v2428 = vunpack.c.l.b16 %v232
    %v2429 = vunpack.c.l.b16 %v233
    %v2430 = vunpack.c.l.b16 %v234
    %v2431 = vunpack.c.l.b16 %v235
    %v2432 = vunpack.c.l.b16 %v236
    %v2433 = vunpack.c.l.b16 %v237
    %v2434 = vunpack.c.l.b16 %v238
    %v2435 = vunpack.c.l.b16 %v239
    %v2436 = vunpack.c.l.b16 %v240
    %v2437 = vunpack.c.l.b16 %v241
    %v2438 = vunpack.c.l.b16 %v242
    %v2439 = vunpack.c.l.b16 %v243
    %v2440 = vunpack.c.l.b16 %v244
    %v2441 = vunpack.c.l.b16 %v245
    %v2442 = vunpack.c.l.b16 %v246
    %v2443 = vunpack.c.l.b16 %v247
    %v2444 = vunpack.c.l.b16 %v248
    %v2445 = vunpack.c.l.b16 %v249
    %v2446 = vunpack.c.l.b16 %v250
    %v2447 = vunpack.c.l.b16 %v251
    %v2448 = vunpack.c.l.b16 %v252
    %v2449 = vunpack.c.l.b16 %v253
    %v2450 = vunpack.c.l.b16 %v254
    %v2451 = vunpack.c.l.b16 %v255
    %v2452 = vunpack.c.l.b16 %v256
    %v2453 = vunpack.c.l.b16 %v257
    %v2454 = vunpack.c.l.b16 %v258
    %v2455 = vunpack.c.l.b16 %v259
    %v2456 = vunpack.c.l.b16 %v260
    %v2457 = vunpack.c.l.b16 %v261
    %v2458 = vunpack.c.l.b16 %v262
    %v2459 = vunpack.c.l.b16 %v263
    %v2460 = vunpack.c.l.b16 %v264
    %v2461 = vunpack.c.l.b16 %v265
    %v2462 = vunpack.c.l.b16 %v266
    %v2463 = vunpack.c.l.b16 %v267
    %v2464 = vunpack.c.l.b16 %v268
    %v2465 = vunpack.c.l.b16 %v269
    %v2466 = vunpack.c.l.b16 %v270
    %v2467 = vunpack.c.l.b16 %v271
    %v2468 = vunpack.c.l.b16 %v272
    %v2469 = vunpack.c.l.b16 %v273
    %v2470 = vunpack.c.l.b16 %v274
    %v2471 = vunpack.c.l.b16 %v275
    %v2472 = vunpack.c.l.b16 %v276
    %v2473 = vunpack.c.l.b16 %v277
    %v2474 = vunpack.c.l.b16 %v278
    %v2475 = vunpack.c.l.b16 %v279
    %v2476 = vunpack.c.l.b16 %v280
    %v2477 = vunpack.c.l.b16 %v281
    %v2478 = vunpack.c.l.b16 %v282
    %v2479 = vunpack.c.l.b16 %v283
    %v2480 = vunpack.c.l.b16 %v284
    %v2481 = vunpack.c.l.b16 %v285
    %v2482 = vunpack.c.l.b16 %v286
    %v2483 = vunpack.c.l.b16 %v287
    %v2484 = vunpack.c.l.b16 %v288
    %v2485 = vunpack.c.l.b16 %v289
    %v2486 = vunpack.c.l.b16 %v290
    %v2487 = vunpack.c.l.b16 %v291
    %v2488 = vunpack.c.l.b16 %v292
    %v2489 = vunpack.c.l.b16 %v293
    %v2490 = vunpack.c.l.b16 %v294
    %v2491 = vunpack.c.l.b16 %v295
    %v2492 = vunpack.c.l.b16 %v296
    %v2493 = vunpack.c.l.b16 %v297
    %v2494 = vunpack.c.l.b16 %v298
    %v2495 = vunpack.c.l.b16 %v299
    %v2496 = vunpack.c.l.b16 %v300
    %v2497 = vunpack.c.l.b16 %v301
    %v2498 = vunpack.c.l.b16 %v302
    %v2499 = vunpack.c.l.b16 %v303
    %v2500 = vunpack.c.l.b16 %v304
    %v2501 = vunpack.c.l.b16 %v305
    %v2502 = vunpack.c.l.b16 %v306
    %v2503 = vunpack.c.l.b16 %v307
    %v2504 = vunpack.c.l.b16 %v308
    %v2505 = vunpack.c.l.b16 %v309
    %v2506 = vunpack.c.l.b16 %v310
    %v2507 = vunpack.c.l.b16 %v311
    %v2508 = vunpack.c.l.b16 %v312
    %v2509 = vunpack.c.l.b16 %v313
    %v2510 = vunpack.c.l.b16 %v314
    %v2511 = vunpack.c.l.b16 %v315
    %v2512 = vunpack.c.l.b16 %v316
    %v2513 = vunpack.c.l.b16 %v317
    %v2514 = vunpack.c.l.b16 %v318
    %v2515 = vunpack.c.l.b16 %v319
    %v2516 = vunpack.c.l.b16 %v320
    %v2517 = vunpack.c.l.b16 %v321
    %v2518 = vunpack.c.l.b16 %v322
    %v2519 = vunpack.c.l.b16 %v323
    %v2520 = vunpack.c.l.b16 %v324
    %v2521 = vunpack.c.l.b16 %v325
    %v2522 = vunpack.c.l.b16 %v326
    %v2523 = vunpack.c.l.b16 %v327
    %v2524 = vunpack.c.l.b16 %v328
    %v2525 = vunpack.c.l.b16 %v329
    %v2526 = vunpack.c.l.b16 %v330
    %v2527 = vunpack.c.l.b16 %v331
    %v2528 = vunpack.c.l.b16 %v332
    %v2529 = vunpack.c.l.b16 %v333
    %v2530 = vunpack.c.l.b16 %v334
    %v2531 = vunpack.c.l.b16 %v335
    %v2532 = vunpack.c.l.b16 %v336
    %v2533 = vunpack.c.l.b16 %v337
    %v2534 = vunpack.c.l.b16 %v338
    %v2535 = vunpack.c.l.b16 %v339
    %v2536 = vunpack.c.l.b16 %v340
    %v2537 = vunpack.c.l.b16 %v341
    %v2538 = vunpack.c.l.b16 %v342
    %v2539 = vunpack.c.l.b16 %v343
    %v2540 = vunpack.c.l.b16 %v344
    %v2541 = vunpack.c.l.b16 %v345
    %v2542 = vunpack.c.l.b16 %v346
    %v2543 = vunpack.c.l.b16 %v347
    %v2544 = vunpack.c.l.b16 %v348
    %v2545 = vunpack.c.l.b16 %v349
    %v2546 = vunpack.c.l.b16 %v350
    %v2547 = vunpack.c.l.b16 %v351
    %v2548 = vunpack.c.l.b16 %v352
    %v2549 = vunpack.c.l.b16 %v353
    %v2550 = vunpack.c.l.b16 %v354
    %v2551 = vunpack.c.l.b16 %v355
    %v2552 = vunpack.c.l.b16 %v356
    %v2553 = vunpack.c.l.b16 %v357
    %v2554 = vunpack.c.l.b16 %v358
    %v2555 = vunpack.c.l.b16 %v359
    %v2556 = vunpack.c.l.b16 %v360
    %v2557 = vunpack.c.l.b16 %v361
    %v2558 = vunpack.c.l.b16 %v362
    %v2559 = vunpack.c.l.b16 %v363
    %v2560 = vunpack.c.l.b16 %v364
    %v2561 = vunpack.c.l.b16 %v365
    %v2562 = vunpack.c.l.b16 %v366
    %v2563 = vunpack.c.l.b16 %v367
    %v2564 = vunpack.c.l.b16 %v368
    %v2565 = vunpack.c.l.b16 %v369
    %v2566 = vunpack.c.l.b16 %v370
    %v2567 = vunpack.c.l.b16 %v371
    %v2568 = vunpack.c.l.b16 %v372
    %v2569 = vunpack.c.l.b16 %v373
    %v2570 = vunpack.c.l.b16 %v374
    %v2571 = vunpack.c.l.b16 %v375
    %v2572 = vunpack.c.l.b16 %v376
    %v2573 = vunpack.c.l.b16 %v377
    %v2574 = vunpack.c.l.b16 %v378
    %v2575 = vunpack.c.l.b16 %v379
    %v2576 = vunpack.c.l.b16 %v380
    %v2577 = vunpack.c.l.b16 %v381
    %v2578 = vunpack.c.l.b16 %v382
    %v2579 = vunpack.c.l.b16 %v383
    %v2580 = vunpack.c.l.b16 %v384
    %v2581 = vunpack.c.l.b16 %v385
    %v2582 = vunpack.c.l.b16 %v386
    %v2583 = vunpack.c.l.b16 %v387
    %v2584 = vunpack.c.l.b16 %v388
    %v2585 = vunpack.c.l.b16 %v389
    %v2586 = vunpack.c.l.b16 %v390
    %v2587 = vunpack.c.l.b16 %v391
    %v2588 = vunpack.c.l.b16 %v392
    %v2589 = vunpack.c.l.b16 %v393
    %v2590 = vunpack.c.l.b16 %v394
    %v2591 = vunpack.c.l.b16 %v395
    %v2592 = vunpack.c.l.b16 %v396
    %v2593 = vunpack.c.l.b16 %v397
    %v2594 = vunpack.c.l.b16 %v398
    %v2595 = vunpack.c.l.b16 %v399
    %v2596 = vunpack.c.l.b16 %v400
    %v2597 = vunpack.c.l.b16 %v401
    %v2598 = vunpack.c.l.b16 %v402
    %v2599 = vunpack.c.l.b16 %v403
    %v2600 = vunpack.c.l.b16 %v404
    %v2601 = vunpack.c.l.b16 %v405
    %v2602 = vunpack.c.l.b16 %v406
    %v2603 = vunpack.c.l.b16 %v407
    %v2604 = vunpack.c.l.b16 %v408
    %v2605 = vunpack.c.l.b16 %v409
    %v2606 = vunpack.c.l.b16 %v410
    %v2607 = vunpack.c.l.b16 %v411
    %v2608 = vunpack.c.l.b16 %v412
    %v2609 = vunpack.c.l.b16 %v413
    %v2610 = vunpack.c.l.b16 %v414
    %v2611 = vunpack.c.l.b16 %v415
    %v2612 = vunpack.c.l.b16 %v416
    %v2613 = vunpack.c.l.b16 %v417
    %v2614 = vunpack.c.l.b16 %v418
    %v2615 = vunpack.c.l.b16 %v419
    %v2616 = vunpack.c.l.b16 %v420
    %v2617 = vunpack.c.l.b16 %v421
    %v2618 = vunpack.c.l.b16 %v422
    %v2619 = vunpack.c.l.b16 %v423
    %v2620 = vunpack.c.l.b16 %v424
    %v2621 = vunpack.c.l.b16 %v425
    %v2622 = vunpack.c.l.b16 %v426
    %v2623 = vunpack.c.l.b16 %v427
    %v2624 = vunpack.c.l.b16 %v428
    %v2625 = vunpack.c.l.b16 %v429
    %v2626 = vunpack.c.l.b16 %v430
    %v2627 = vunpack.c.l.b16 %v431
    %v2628 = vunpack.c.l.b16 %v432
    %v2629 = vunpack.c.l.b16 %v433
    %v2630 = vunpack.c.l.b16 %v434
    %v2631 = vunpack.c.l.b16 %v435
    %v2632 = vunpack.c.l.b16 %v436
    %v2633 = vunpack.c.l.b16 %v437
    %v2634 = vunpack.c.l.b16 %v438
    %v2635 = vunpack.c.l.b16 %v439
    %v2636 = vunpack.c.l.b16 %v440
    %v2637 = vunpack.c.l.b16 %v441
    %v2638 = vunpack.c.l.b16 %v442
    %v2639 = vunpack.c.l.b16 %v443
    %v2640 = vunpack.c.l.b16 %v444
    %v2641 = vunpack.c.l.b16 %v445
    %v2642 = vunpack.c.l.b16 %v446
    %v2643 = vunpack.c.l.b16 %v447
    %v2644 = vunpack.c.l.b16 %v448
    %v2645 = vunpack.c.l.b16 %v449
    %v2646 = vunpack.c.l.b16 %v450
    %v2647 = vunpack.c.l.b16 %v451
    %v2648 = vunpack.c.l.b16 %v452
    %v2649 = vunpack.c.l.b16 %v453
    %v2650 = vunpack.c.l.b16 %v454
    %v2651 = vunpack.c.l.b16 %v455
    %v2652 = vunpack.c.l.b16 %v456
    %v2653 = vunpack.c.l.b16 %v457
    %v2654 = vunpack.c.l.b16 %v458
    %v2655 = vunpack.c.l.b16 %v459
    %v2656 = vunpack.c.l.b16 %v460
    %v2657 = vunpack.c.l.b16 %v461
    %v2658 = vunpack.c.l.b16 %v462
    %v2659 = vunpack.c.l.b16 %v463
    %v2660 = vunpack.c.l.b16 %v464
    %v2661 = vunpack.c.l.b16 %v465
    %v2662 = vunpack.c.l.b16 %v466
    %v2663 = vunpack.c.l.b16 %v467
    %v2664 = vunpack.c.l.b16 %v468
    %v2665 = vunpack.c.l.b16 %v469
    %v2666 = vunpack.c.l.b16 %v470
    %v2667 = vunpack.c.l.b16 %v471
    %v2668 = vunpack.c.l.b16 %v472
    %v2669 = vunpack.c.l.b16 %v473
    %v2670 = vunpack.c.l.b16 %v474
    %v2671 = vunpack.c.l.b16 %v475
    %v2672 = vunpack.c.l.b16 %v476
    %v2673 = vunpack.c.l.b16 %v477
    %v2674 = vunpack.c.l.b16 %v478
    %v2675 = vunpack.c.l.b16 %v479
    %v2676 = vunpack.c.l.b16 %v480
    %v2677 = vunpack.c.l.b16 %v481
    %v2678 = vunpack.c.l.b16 %v482
    %v2679 = vunpack.c.l.b16 %v483
    %v2680 = vunpack.c.l.b16 %v484
    %v2681 = vunpack.c.l.b16 %v485
    %v2682 = vunpack.c.l.b16 %v486
    %v2683 = vunpack.c.l.b16 %v487
    %v2684 = vunpack.c.l.b16 %v488
    %v2685 = vunpack.c.l.b16 %v489
    %v2686 = vunpack.c.l.b16 %v490
    %v2687 = vunpack.c.l.b16 %v491
    %v2688 = vunpack.c.l.b16 %v492
    %v2689 = vunpack.c.l.b16 %v493
    %v2690 = vunpack.c.l.b16 %v494
    %v2691 = vunpack.c.l.b16 %v495
    %v2692 = vunpack.c.l.b16 %v496
    %v2693 = vunpack.c.l.b16 %v497
    %v2694 = vunpack.c.l.b16 %v498
    %v2695 = vunpack.c.l.b16 %v499
    %v2696 = vunpack.c.l.b16 %v500
    %v2697 = vunpack.c.l.b16 %v501
    %v2698 = vunpack.c.l.b16 %v502
    %v2699 = vunpack.c.l.b16 %v503
    %v2700 = vunpack.c.l.b16 %v504
    %v2701 = vunpack.c.l.b16 %v505
    %v2702 = vunpack.c.l.b16 %v506
    %v2703 = vunpack.c.l.b16 %v507
    %v2704 = vunpack.c.l.b16 %v508
    %v2705 = vunpack.c.l.b16 %v509
    %v2706 = vunpack.c.l.b16 %v510
    %v2707 = vunpack.c.l.b16 %v511
    %v2708 = vunpack.c.l.b16 %v512
    %v2709 = vunpack.c.l.b16 %v513
    %v2710 = vunpack.c.l.b16 %v514
    %v2711 = vunpack.c.l.b16 %v515
    %v2712 = vunpack.c.l.b16 %v516
    %v2713 = vunpack.c.l.b16 %v517
    %v2714 = vunpack.c.l.b16 %v518
    %v2715 = vunpack.c.l.b16 %v519
    %v2716 = vunpack.c.l.b16 %v520
    %v2717 = vunpack.c.l.b16 %v521
    %v2718 = vunpack.c.l.b16 %v522
    %v2719 = vunpack.c.l.b16 %v523
    %v2720 = vunpack.c.l.b16 %v524
    %v2721 = vunpack.c.l.b16 %v525
    %v2722 = vunpack.c.l.b16 %v526
    %v2723 = vunpack.c.l.b16 %v527
    %v2724 = vunpack.c.l.b16 %v528
    %v2725 = vunpack.c.l.b16 %v529
    %v2726 = vunpack.c.l.b16 %v530
    %v2727 = vunpack.c.l.b16 %v531
    %v2728 = vunpack.c.l.b16 %v532
    %v2729 = vunpack.c.l.b16 %v533
    %v2730 = vunpack.c.l.b16 %v534
    %v2731 = vunpack.c.l.b16 %v535
    %v2732 = vunpack.c.l.b16 %v536
    %v2733 = vunpack.c.l.b16 %v537
    %v2734 = vunpack.c.l.b16 %v538
    %v2735 = vunpack.c.l.b16 %v539
    %v2736 = vunpack.c.l.b16 %v540
    %v2737 = vunpack.c.l.b16 %v541
    %v2738 = vunpack.c.l.b16 %v542
    %v2739 = vunpack.c.l.b16 %v543
    %v2740 = vunpack.c.l.b16 %v544
    %v2741 = vunpack.c.l.b16 %v545
    %v2742 = vunpack.c.l.b16 %v546
    %v2743 = vunpack.c.l.b16 %v547
    %v2744 = vunpack.c.l.b16 %v548
    %v2745 = vunpack.c.l.b16 %v549
    %v2746 = vunpack.c.l.b16 %v550
    %v2747 = vunpack.c.l.b16 %v551
    %v2748 = vunpack.c.l.b16 %v552
    %v2749 = vunpack.c.l.b16 %v553
    %v2750 = vunpack.c.l.b16 %v554
    %v2751 = vunpack.c.l.b16 %v555
    %v2752 = vunpack.c.l.b16 %v556
    %v2753 = vunpack.c.l.b16 %v557
    %v2754 = vunpack.c.l.b16 %v558
    %v2755 = vunpack.c.l.b16 %v559
    %v2756 = vunpack.c.l.b16 %v560
    %v2757 = vunpack.c.l.b16 %v561
    %v2758 = vunpack.c.l.b16 %v562
    %v2759 = vunpack.c.l.b16 %v563
    %v2760 = vunpack.c.l.b16 %v564
    %v2761 = vunpack.c.l.b16 %v565
    %v2762 = vunpack.c.l.b16 %v566
    %v2763 = vunpack.c.l.b16 %v567
    %v2764 = vunpack.c.l.b16 %v568
    %v2765 = vunpack.c.l.b16 %v569
    %v2766 = vunpack.c.l.b16 %v570
    %v2767 = vunpack.c.l.b16 %v571
    %v2768 = vunpack.c.l.b16 %v572
    %v2769 = vunpack.c.l.b16 %v573
    %v2770 = vunpack.c.l.b16 %v574
    %v2771 = vunpack.c.l.b16 %v575
    %v2772 = vunpack.c.l.b16 %v576
    %v2773 = vunpack.c.l.b16 %v577
    %v2774 = vunpack.c.l.b16 %v578
    %v2775 = vunpack.c.l.b16 %v579
    %v2776 = vunpack.c.l.b16 %v580
    %v2777 = vunpack.c.l.b16 %v581
    %v2778 = vunpack.c.l.b16 %v582
    %v2779 = vunpack.c.l.b16 %v583
    %v2780 = vunpack.c.l.b16 %v584
    %v2781 = vunpack.c.l.b16 %v585
    %v2782 = vunpack.c.l.b16 %v586
    %v2783 = vunpack.c.l.b16 %v587
    %v2784 = vunpack.c.l.b16 %v588
    %v2785 = vunpack.c.l.b16 %v589
    %v2786 = vunpack.c.l.b16 %v590
    %v2787 = vunpack.c.l.b16 %v591
    %v2788 = vunpack.c.l.b16 %v592
    %v2789 = vunpack.c.l.b16 %v593
    %v2790 = vunpack.c.l.b16 %v594
    %v2791 = vunpack.c.l.b16 %v595
    %v2792 = vunpack.c.l.b16 %v596
    %v2793 = vunpack.c.l.b16 %v597
    %v2794 = vunpack.c.l.b16 %v598
    %v2795 = vunpack.c.l.b16 %v599
    %v2796 = vunpack.c.l.b16 %v600
    %v2797 = vunpack.c.l.b16 %v601
    %v2798 = vunpack.c.l.b16 %v602
    %v2799 = vunpack.c.l.b16 %v603
    %v2800 = vunpack.c.l.b16 %v604
    %v2801 = vunpack.c.l.b16 %v605
    %v2802 = vunpack.c.l.b16 %v606
    %v2803 = vunpack.c.l.b16 %v607
    %v2804 = vunpack.c.l.b16 %v608
    %v2805 = vunpack.c.l.b16 %v609
    %v2806 = vunpack.c.l.b16 %v610
    %v2807 = vunpack.c.l.b16 %v611
    %v2808 = vunpack.c.l.b16 %v612
    %v2809 = vunpack.c.l.b16 %v613
    %v2810 = vunpack.c.l.b16 %v614
    %v2811 = vunpack.c.l.b16 %v615
    %v2812 = vunpack.c.l.b16 %v616
    %v2813 = vunpack.c.l.b16 %v617
    %v2814 = vunpack.c.l.b16 %v618
    %v2815 = vunpack.c.l.b16 %v619
    %v2816 = vunpack.c.l.b16 %v620
    %v2817 = vunpack.c.l.b16 %v621
    %v2818 = vunpack.c.l.b16 %v622
    %v2819 = vunpack.c.l.b16 %v623
    %v2820 = vunpack.c.l.b16 %v624
    %v2821 = vunpack.c.l.b16 %v625
    %v2822 = vunpack.c.l.b16 %v626
    %v2823 = vunpack.c.l.b16 %v627
    %v2824 = vunpack.c.l.b16 %v628
    %v2825 = vunpack.c.l.b16 %v629
    %v2826 = vunpack.c.l.b16 %v630
    %v2827 = vunpack.c.l.b16 %v631
    %v2828 = vunpack.c.l.b16 %v632
    %v2829 = vunpack.c.l.b16 %v633
    %v2830 = vunpack.c.l.b16 %v634
    %v2831 = vunpack.c.l.b16 %v635
    %v2832 = vunpack.c.l.b16 %v636
    %v2833 = vunpack.c.l.b16 %v637
    %v2834 = vunpack.c.l.b16 %v638
    %v2835 = vunpack.c.l.b16 %v639
    %v2836 = vunpack.c.l.b16 %v640
    %v2837 = vunpack.c.l.b16 %v641
    %v2838 = vunpack.c.l.b16 %v642
    %v2839 = vunpack.c.l.b16 %v643
    %v2840 = vunpack.c.l.b16 %v644
    %v2841 = vunpack.c.l.b16 %v645
    %v2842 = vunpack.c.l.b16 %v646
    %v2843 = vunpack.c.l.b16 %v647
    %v2844 = vunpack.c.l.b16 %v648
    %v2845 = vunpack.c.l.b16 %v649
    %v2846 = vunpack.c.l.b16 %v650
    %v2847 = vunpack.c.l.b16 %v651
    %v2848 = vunpack.c.l.b16 %v652
    %v2849 = vunpack.c.l.b16 %v653
    %v2850 = vunpack.c.l.b16 %v654
    %v2851 = vunpack.c.l.b16 %v655
    %v2852 = vunpack.c.l.b16 %v656
    %v2853 = vunpack.c.l.b16 %v657
    %v2854 = vunpack.c.l.b16 %v658
    %v2855 = vunpack.c.l.b16 %v659
    %v2856 = vunpack.c.l.b16 %v660
    %v2857 = vunpack.c.l.b16 %v661
    %v2858 = vunpack.c.l.b16 %v662
    %v2859 = vunpack.c.l.b16 %v663
    %v2860 = vunpack.c.l.b16 %v664
    %v2861 = vunpack.c.l.b16 %v665
    %v2862 = vunpack.c.l.b16 %v666
    %v2863 = vunpack.c.l.b16 %v667
    %v2864 = vunpack.c.l.b16 %v668
    %v2865 = vunpack.c.l.b16 %v669
    %v2866 = vunpack.c.l.b16 %v670
    %v2867 = vunpack.c.l.b16 %v671
    %v2868 = vunpack.c.l.b16 %v672
    %v2869 = vunpack.c.l.b16 %v673
    %v2870 = vunpack.c.l.b16 %v674
    %v2871 = vunpack.c.l.b16 %v675
    %v2872 = vunpack.c.l.b16 %v676
    %v2873 = vunpack.c.l.b16 %v677
    %v2874 = vunpack.c.l.b16 %v678
    %v2875 = vunpack.c.l.b16 %v679
    %v2876 = vunpack.c.l.b16 %v680
    %v2877 = vunpack.c.l.b16 %v681
    %v2878 = vunpack.c.l.b16 %v682
    %v2879 = vunpack.c.l.b16 %v683
    %v2880 = vunpack.c.l.b16 %v684
    %v2881 = vunpack.c.l.b16 %v685
    %v2882 = vunpack.c.l.b16 %v686
    %v2883 = vunpack.c.l.b16 %v687
    %v2884 = vunpack.c.l.b16 %v688
    %v2885 = vunpack.c.l.b16 %v689
    %v2886 = vunpack.c.l.b16 %v690
    %v2887 = vunpack.c.l.b16 %v691
    %v2888 = vunpack.c.l.b16 %v692
    %v2889 = vunpack.c.l.b16 %v693
    %v2890 = vunpack.c.l.b16 %v694
    %v2891 = vunpack.c.l.b16 %v695
    %v2892 = vunpack.c.l.b16 %v696
    %v2893 = vunpack.c.l.b16 %v697
    %v2894 = vunpack.c.l.b16 %v698
    %v2895 = vunpack.c.l.b16 %v699
    %v2896 = vunpack.c.l.b16 %v700
    %v2897 = vunpack.c.l.b16 %v701
    %v2898 = vunpack.c.l.b16 %v702
    %v2899 = vunpack.c.l.b16 %v703
    %v2900 = vunpack.c.l.b16 %v704
    %v2901 = vunpack.c.l.b16 %v705
    %v2902 = vunpack.c.l.b16 %v706
    %v2903 = vunpack.c.l.b16 %v707
    %v2904 = vunpack.c.l.b16 %v708
    %v2905 = vunpack.c.l.b16 %v709
    %v2906 = vunpack.c.l.b16 %v710
    %v2907 = vunpack.c.l.b16 %v711
    %v2908 = vunpack.c.l.b16 %v712
    %v2909 = vunpack.c.l.b16 %v713
    %v2910 = vunpack.c.l.b16 %v714
    %v2911 = vunpack.c.l.b16 %v715
    %v2912 = vunpack.c.l.b16 %v716
    %v2913 = vunpack.c.l.b16 %v717
    %v2914 = vunpack.c.l.b16 %v718
    %v2915 = vunpack.c.l.b16 %v719
    %v2916 = vunpack.c.l.b16 %v720
    %v2917 = vunpack.c.l.b16 %v721
    %v2918 = vunpack.c.l.b16 %v722
    %v2919 = vunpack.c.l.b16 %v723
    %v2920 = vunpack.c.l.b16 %v724
    %v2921 = vunpack.c.l.b16 %v725
    %v2922 = vunpack.c.l.b16 %v726
    %v2923 = vunpack.c.l.b16 %v727
    %v2924 = vunpack.c.l.b16 %v728
    %v2925 = vunpack.c.l.b16 %v729
    %v2926 = vunpack.c.l.b16 %v730
    %v2927 = vunpack.c.l.b16 %v731
    %v2928 = vunpack.c.l.b16 %v732
    %v2929 = vunpack.c.l.b16 %v733
    %v2930 = vunpack.c.l.b16 %v734
    %v2931 = vunpack.c.l.b16 %v735
    %v2932 = vunpack.c.l.b16 %v736
    %v2933 = vunpack.c.l.b16 %v737
    %v2934 = vunpack.c.l.b16 %v738
    %v2935 = vunpack.c.l.b16 %v739
    %v2936 = vunpack.c.l.b16 %v740
    %v2937 = vunpack.c.l.b16 %v741
    %v2938 = vunpack.c.l.b16 %v742
    %v2939 = vunpack.c.l.b16 %v743
    %v2940 = vunpack.c.l.b16 %v744
    %v2941 = vunpack.c.l.b16 %v745
    %v2942 = vunpack.c.l.b16 %v746
    %v2943 = vunpack.c.l.b16 %v747
    %v2944 = vunpack.c.l.b16 %v748
    %v2945 = vunpack.c.l.b16 %v749
    %v2946 = vunpack.c.l.b16 %v750
    %v2947 = vunpack.c.l.b16 %v751
    %v2948 = vunpack.c.l.b16 %v752
    %v2949 = vunpack.c.l.b16 %v753
    %v2950 = vunpack.c.l.b16 %v754
    %v2951 = vunpack.c.l.b16 %v755
    %v2952 = vunpack.c.l.b16 %v756
    %v2953 = vunpack.c.l.b16 %v757
    %v2954 = vunpack.c.l.b16 %v758
    %v2955 = vunpack.c.l.b16 %v759
    %v2956 = vunpack.c.l.b16 %v760
    %v2957 = vunpack.c.l.b16 %v761
    %v2958 = vunpack.c.l.b16 %v762
    %v2959 = vunpack.c.l.b16 %v763
    %v2960 = vunpack.c.l.b16 %v764
    %v2961 = vunpack.c.l.b16 %v765
    %v2962 = vunpack.c.l.b16 %v766
    %v2963 = vunpack.c.l.b16 %v767
    %v2964 = vunpack.c.l.b16 %v768
    %v2965 = vunpack.c.l.b16 %v769
    %v2966 = vunpack.c.l.b16 %v770
    %v2967 = vunpack.c.l.b16 %v771
    %v2968 = vunpack.c.l.b16 %v772
    %v2969 = vunpack.c.l.b16 %v773
    %v2970 = vunpack.c.l.b16 %v774
    %v2971 = vunpack.c.l.b16 %v775
    %v2972 = vunpack.c.l.b16 %v776
    %v2973 = vunpack.c.l.b16 %v777
    %v2974 = vunpack.c.l.b16 %v778
    %v2975 = vunpack.c.l.b16 %v779
    %v2976 = vunpack.c.l.b16 %v780
    %v2977 = vunpack.c.l.b16 %v781
    %v2978 = vunpack.c.l.b16 %v782
    %v2979 = vunpack.c.l.b16 %v783
    %v2980 = vunpack.c.l.b16 %v784
    %v2981 = vunpack.c.l.b16 %v785
    %v2982 = vunpack.c.l.b16 %v786
    %v2983 = vunpack.c.l.b16 %v787
    %v2984 = vunpack.c.l.b16 %v788
    %v2985 = vunpack.c.l.b16 %v789
    %v2986 = vunpack.c.l.b16 %v790
    %v2987 = vunpack.c.l.b16 %v791
    %v2988 = vunpack.c.l.b16 %v792
    %v2989 = vunpack.c.l.b16 %v793
    %v2990 = vunpack.c.l.b16 %v794
    %v2991 = vunpack.c.l.b16 %v795
    %v2992 = vunpack.c.l.b16 %v796
    %v2993 = vunpack.c.l.b16 %v797
    %v2994 = vunpack.c.l.b16 %v798
    %v2995 = vunpack.c.l.b16 %v799
    %v2996 = vunpack.c.l.b16 %v800
    %v2997 = vunpack.c.l.b16 %v801
    %v2998 = vunpack.c.l.b16 %v802
    %v2999 = vunpack.c.l.b16 %v803
    %v3000 = vunpack.c.l.b16 %v804
    %v3001 = vunpack.c.l.b16 %v805
    %v3002 = vunpack.c.l.b16 %v806
    %v3003 = vunpack.c.l.b16 %v807
    %v3004 = vunpack.c.l.b16 %v808
    %v3005 = vunpack.c.l.b16 %v809
    %v3006 = vunpack.c.l.b16 %v810
    %v3007 = vunpack.c.l.b16 %v811
    %v3008 = vunpack.c.l.b16 %v812
    %v3009 = vunpack.c.l.b16 %v813
    %v3010 = vunpack.c.l.b16 %v814
    %v3011 = vunpack.c.l.b16 %v815
    %v3012 = vunpack.c.l.b16 %v816
    %v3013 = vunpack.c.l.b16 %v817
    %v3014 = vunpack.c.l.b16 %v818
    %v3015 = vunpack.c.l.b16 %v819
    %v3016 = vunpack.c.l.b16 %v820
    %v3017 = vunpack.c.l.b16 %v821
    %v3018 = vunpack.c.l.b16 %v822
    %v3019 = vunpack.c.l.b16 %v823
    %v3020 = vunpack.c.l.b16 %v824
    %v3021 = vunpack.c.l.b16 %v825
    %v3022 = vunpack.c.l.b16 %v826
    %v3023 = vunpack.c.l.b16 %v827
    %v3024 = vunpack.c.l.b16 %v828
    %v3025 = vunpack.c.l.b16 %v829
    %v3026 = vunpack.c.l.b16 %v830
    %v3027 = vunpack.c.l.b16 %v831
    %v3028 = vunpack.c.l.b16 %v832
    %v3029 = vunpack.c.l.b16 %v833
    %v3030 = vunpack.c.l.b16 %v834
    %v3031 = vunpack.c.l.b16 %v835
    %v3032 = vunpack.c.l.b16 %v836
    %v3033 = vunpack.c.l.b16 %v837
    %v3034 = vunpack.c.l.b16 %v838
    %v3035 = vunpack.c.l.b16 %v839
    %v3036 = vunpack.c.l.b16 %v840
    %v3037 = vunpack.c.l.b16 %v841
    %v3038 = vunpack.c.l.b16 %v842
    %v3039 = vunpack.c.l.b16 %v843
    %v3040 = vunpack.c.l.b16 %v844
    %v3041 = vunpack.c.l.b16 %v845
    %v3042 = vunpack.c.l.b16 %v846
    %v3043 = vunpack.c.l.b16 %v847
    %v3044 = vunpack.c.l.b16 %v848
    %v3045 = vunpack.c.l.b16 %v849
    %v3046 = vunpack.c.l.b16 %v850
    %v3047 = vunpack.c.l.b16 %v851
    %v3048 = vunpack.c.l.b16 %v852
    %v3049 = vunpack.c.l.b16 %v853
    %v3050 = vunpack.c.l.b16 %v854
    %v3051 = vunpack.c.l.b16 %v855
    %v3052 = vunpack.c.l.b16 %v856
    %v3053 = vunpack.c.l.b16 %v857
    %v3054 = vunpack.c.l.b16 %v858
    %v3055 = vunpack.c.l.b16 %v859
    %v3056 = vunpack.c.l.b16 %v860
    %v3057 = vunpack.c.l.b16 %v861
    %v3058 = vunpack.c.l.b16 %v862
    %v3059 = vunpack.c.l.b16 %v863
    %v3060 = vunpack.c.l.b16 %v864
    %v3061 = vunpack.c.l.b16 %v865
    %v3062 = vunpack.c.l.b16 %v866
    %v3063 = vunpack.c.l.b16 %v867
    %v3064 = vunpack.c.l.b16 %v868
    %v3065 = vunpack.c.l.b16 %v869
    %v3066 = vunpack.c.l.b16 %v870
    %v3067 = vunpack.c.l.b16 %v871
    %v3068 = vunpack.c.l.b16 %v872
    %v3069 = vunpack.c.l.b16 %v873
    %v3070 = vunpack.c.l.b16 %v874
    %v3071 = vunpack.c.l.b16 %v875
    %v3072 = vunpack.c.l.b16 %v876
    %v3073 = vunpack.c.l.b16 %v877
    %v3074 = vunpack.c.l.b16 %v878
    %v3075 = vunpack.c.l.b16 %v879
    %v3076 = vunpack.c.l.b16 %v880
    %v3077 = vunpack.c.l.b16 %v881
    %v3078 = vunpack.c.l.b16 %v882
    %v3079 = vunpack.c.l.b16 %v883
    %v3080 = vunpack.c.l.b16 %v884
    %v3081 = vunpack.c.l.b16 %v885
    %v3082 = vunpack.c.l.b16 %v886
    %v3083 = vunpack.c.l.b16 %v887
    %v3084 = vunpack.c.l.b16 %v888
    %v3085 = vunpack.c.l.b16 %v889
    %v3086 = vunpack.c.l.b16 %v890
    %v3087 = vunpack.c.l.b16 %v891
    %v3088 = vunpack.c.l.b16 %v892
    %v3089 = vunpack.c.l.b16 %v893
    %v3090 = vunpack.c.l.b16 %v894
    %v3091 = vunpack.c.l.b16 %v895
    %v3092 = vunpack.c.l.b16 %v896
    %v3093 = vunpack.c.l.b16 %v897
    %v3094 = vunpack.c.l.b16 %v898
    %v3095 = vunpack.c.l.b16 %v899
    %v3096 = vunpack.c.l.b16 %v900
    %v3097 = vunpack.c.l.b16 %v901
    %v3098 = vunpack.c.l.b16 %v902
    %v3099 = vunpack.c.l.b16 %v903
    %v3100 = vunpack.c.l.b16 %v904
    %v3101 = vunpack.c.l.b16 %v905
    %v3102 = vunpack.c.l.b16 %v906
    %v3103 = vunpack.c.l.b16 %v907
    %v3104 = vunpack.c.l.b16 %v908
    %v3105 = vunpack.c.l.b16 %v909
    %v3106 = vunpack.c.l.b16 %v910
    %v3107 = vunpack.c.l.b16 %v911
    %v3108 = vunpack.c.l.b16 %v912
    %v3109 = vunpack.c.l.b16 %v913
    %v3110 = vunpack.c.l.b16 %v914
    %v3111 = vunpack.c.l.b16 %v915
    %v3112 = vunpack.c.l.b16 %v916
    %v3113 = vunpack.c.l.b16 %v917
    %v3114 = vunpack.c.l.b16 %v918
    %v3115 = vunpack.c.l.b16 %v919
    %v3116 = vunpack.c.l.b16 %v920
    %v3117 = vunpack.c.l.b16 %v921
    %v3118 = vunpack.c.l.b16 %v922
    %v3119 = vunpack.c.l.b16 %v923
    %v3120 = vunpack.c.l.b16 %v924
    %v3121 = vunpack.c.l.b16 %v925
    %v3122 = vunpack.c.l.b16 %v926
    %v3123 = vunpack.c.l.b16 %v927
    %v3124 = vunpack.c.l.b16 %v928
    %v3125 = vunpack.c.l.b16 %v929
    %v3126 = vunpack.c.l.b16 %v930
    %v3127 = vunpack.c.l.b16 %v931
    %v3128 = vunpack.c.l.b16 %v932
    %v3129 = vunpack.c.l.b16 %v933
    %v3130 = vunpack.c.l.b16 %v934
    %v3131 = vunpack.c.l.b16 %v935
    %v3132 = vunpack.c.l.b16 %v936
    %v3133 = vunpack.c.l.b16 %v937
    %v3134 = vunpack.c.l.b16 %v938
    %v3135 = vunpack.c.l.b16 %v939
    %v3136 = vunpack.c.l.b16 %v940
    %v3137 = vunpack.c.l.b16 %v941
    %v3138 = vunpack.c.l.b16 %v942
    %v3139 = vunpack.c.l.b16 %v943
    %v3140 = vunpack.c.l.b16 %v944
    %v3141 = vunpack.c.l.b16 %v945
    %v3142 = vunpack.c.l.b16 %v946
    %v3143 = vunpack.c.l.b16 %v947
    %v3144 = vunpack.c.l.b16 %v948
    %v3145 = vunpack.c.l.b16 %v949
    %v3146 = vunpack.c.l.b16 %v950
    %v3147 = vunpack.c.l.b16 %v951
    %v3148 = vunpack.c.l.b16 %v952
    %v3149 = vunpack.c.l.b16 %v953
    %v3150 = vunpack.c.l.b16 %v954
    %v3151 = vunpack.c.l.b16 %v955
    %v3152 = vunpack.c.l.b16 %v956
    %v3153 = vunpack.c.l.b16 %v957
    %v3154 = vunpack.c.l.b16 %v958
    %v3155 = vunpack.c.l.b16 %v959
    %v3156 = vunpack.c.l.b16 %v960
    %v3157 = vunpack.c.l.b16 %v961
    %v3158 = vunpack.c.l.b16 %v962
    %v3159 = vunpack.c.l.b16 %v963
    %v3160 = vunpack.c.l.b16 %v964
    %v3161 = vunpack.c.l.b16 %v965
    %v3162 = vunpack.c.l.b16 %v966
    %v3163 = vunpack.c.l.b16 %v967
    %v3164 = vunpack.c.l.b16 %v968
    %v3165 = vunpack.c.l.b16 %v969
    %v3166 = vunpack.c.l.b16 %v970
    %v3167 = vunpack.c.l.b16 %v971
    %v3168 = vunpack.c.l.b16 %v972
    %v3169 = vunpack.c.l.b16 %v973
    %v3170 = vunpack.c.l.b16 %v974
    %v3171 = vunpack.c.l.b16 %v975
    %v3172 = vunpack.c.l.b16 %v976
    %v3173 = vunpack.c.l.b16 %v977
    %v3174 = vunpack.c.l.b16 %v978
    %v3175 = vunpack.c.l.b16 %v979
    %v3176 = vunpack.c.l.b16 %v980
    %v3177 = vunpack.c.l.b16 %v981
    %v3178 = vunpack.c.l.b16 %v982
    %v3179 = vunpack.c.l.b16 %v983
    %v3180 = vunpack.c.l.b16 %v984
    %v3181 = vunpack.c.l.b16 %v985
    %v3182 = vunpack.c.l.b16 %v986
    %v3183 = vunpack.c.l.b16 %v987
    %v3184 = vunpack.c.l.b16 %v988
    %v3185 = vunpack.c.l.b16 %v989
    %v3186 = vunpack.c.l.b16 %v990
    %v3187 = vunpack.c.l.b16 %v991
    %v3188 = vunpack.c.l.b16 %v992
    %v3189 = vunpack.c.l.b16 %v993
    %v3190 = vunpack.c.l.b16 %v994
    %v3191 = vunpack.c.l.b16 %v995
    %v3192 = vunpack.c.l.b16 %v996
    %v3193 = vunpack.c.l.b16 %v997
    %v3194 = vunpack.c.l.b16 %v998
    %v3195 = vunpack.c.l.b16 %v999
    %v3196 = vunpack.c.l.b16 %v1000
    %v3197 = vunpack.c.l.b16 %v1001
    %v3198 = vunpack.c.l.b16 %v1002
    %v3199 = vunpack.c.l.b16 %v1003
    %v3200 = vunpack.c.l.b16 %v1004
    %v3201 = vunpack.c.l.b16 %v1005
    %v3202 = vunpack.c.l.b16 %v1006
    %v3203 = vunpack.c.l.b16 %v1007
    %v3204 = vunpack.c.l.b16 %v1008
    %v3205 = vunpack.c.l.b16 %v1009
    %v3206 = vunpack.c.l.b16 %v1010
    %v3207 = vunpack.c.l.b16 %v1011
    %v3208 = vunpack.c.l.b16 %v1012
    %v3209 = vunpack.c.l.b16 %v1013
    %v3210 = vunpack.c.l.b16 %v1014
    %v3211 = vunpack.c.l.b16 %v1015
    %v3212 = vunpack.c.l.b16 %v1016
    %v3213 = vunpack.c.l.b16 %v1017
    %v3214 = vunpack.c.l.b16 %v1018
    %v3215 = vunpack.c.l.b16 %v1019
    %v3216 = vunpack.c.l.b16 %v1020
    %v3217 = vunpack.c.l.b16 %v1021
    %v3218 = vunpack.c.l.b16 %v1022
    %v3219 = vunpack.c.l.b16 %v1023
    %v3220 = vunpack.c.l.b16 %v1024
    %v3221 = vunpack.c.l.b16 %v1025
    %v3222 = vunpack.c.l.b16 %v1026
    %v3223 = vunpack.c.l.b16 %v1027
    %v3224 = vunpack.c.l.b16 %v1028
    %v3225 = vunpack.c.l.b16 %v1029
    %v3226 = vunpack.c.l.b16 %v1030
    %v3227 = vunpack.c.l.b16 %v1031
    %v3228 = vunpack.c.l.b16 %v1032
    %v3229 = vunpack.c.l.b16 %v1033
    %v3230 = vunpack.c.l.b16 %v1034
    %v3231 = vunpack.c.l.b16 %v1035
    %v3232 = vunpack.c.l.b16 %v1036
    %v3233 = vunpack.c.l.b16 %v1037
    %v3234 = vunpack.c.l.b16 %v1038
    %v3235 = vunpack.c.l.b16 %v1039
    %v3236 = vunpack.c.l.b16 %v1040
    %v3237 = vunpack.c.l.b16 %v1041
    %v3238 = vunpack.c.l.b16 %v1042
    %v3239 = vunpack.c.l.b16 %v1043
    %v3240 = vunpack.c.l.b16 %v1044
    %v3241 = vunpack.c.l.b16 %v1045
    %v3242 = vunpack.c.l.b16 %v1046
    %v3243 = vpack.c.b16 %v2220, %v2219
    %v3244 = vpack.c.b16 %v2222, %v2221
    %v3245 = vpack.c.b16 %v2224, %v2223
    %v3246 = vpack.c.b16 %v2226, %v2225
    %v3247 = vpack.c.b16 %v2228, %v2227
    %v3248 = vpack.c.b16 %v2230, %v2229
    %v3249 = vpack.c.b16 %v2232, %v2231
    %v3250 = vpack.c.b16 %v2234, %v2233
    %v3251 = vpack.c.b16 %v2236, %v2235
    %v3252 = vpack.c.b16 %v2238, %v2237
    %v3253 = vpack.c.b16 %v2240, %v2239
    %v3254 = vpack.c.b16 %v2242, %v2241
    %v3255 = vpack.c.b16 %v2244, %v2243
    %v3256 = vpack.c.b16 %v2246, %v2245
    %v3257 = vpack.c.b16 %v2248, %v2247
    %v3258 = vpack.c.b16 %v2250, %v2249
    %v3259 = vpack.c.b16 %v2252, %v2251
    %v3260 = vpack.c.b16 %v2254, %v2253
    %v3261 = vpack.c.b16 %v2256, %v2255
    %v3262 = vpack.c.b16 %v2258, %v2257
    %v3263 = vpack.c.b16 %v2260, %v2259
    %v3264 = vpack.c.b16 %v2262, %v2261
    %v3265 = vpack.c.b16 %v2264, %v2263
    %v3266 = vpack.c.b16 %v2266, %v2265
    %v3267 = vpack.c.b16 %v2268, %v2267
    %v3268 = vpack.c.b16 %v2270, %v2269
    %v3269 = vpack.c.b16 %v2272, %v2271
    %v3270 = vpack.c.b16 %v2274, %v2273
    %v3271 = vpack.c.b16 %v2276, %v2275
    %v3272 = vpack.c.b16 %v2278, %v2277
    %v3273 = vpack.c.b16 %v2280, %v2279
    %v3274 = vpack.c.b16 %v2282, %v2281
    %v3275 = vpack.c.b16 %v2284, %v2283
    %v3276 = vpack.c.b16 %v2286, %v2285
    %v3277 = vpack.c.b16 %v2288, %v2287
    %v3278 = vpack.c.b16 %v2290, %v2289
    %v3279 = vpack.c.b16 %v2292, %v2291
    %v3280 = vpack.c.b16 %v2294, %v2293
    %v3281 = vpack.c.b16 %v2296, %v2295
    %v3282 = vpack.c.b16 %v2298, %v2297
    %v3283 = vpack.c.b16 %v2300, %v2299
    %v3284 = vpack.c.b16 %v2302, %v2301
    %v3285 = vpack.c.b16 %v2304, %v2303
    %v3286 = vpack.c.b16 %v2306, %v2305
    %v3287 = vpack.c.b16 %v2308, %v2307
    %v3288 = vpack.c.b16 %v2310, %v2309
    %v3289 = vpack.c.b16 %v2312, %v2311
    %v3290 = vpack.c.b16 %v2314, %v2313
    %v3291 = vpack.c.b16 %v2316, %v2315
    %v3292 = vpack.c.b16 %v2318, %v2317
    %v3293 = vpack.c.b16 %v2320, %v2319
    %v3294 = vpack.c.b16 %v2322, %v2321
    %v3295 = vpack.c.b16 %v2324, %v2323
    %v3296 = vpack.c.b16 %v2326, %v2325
    %v3297 = vpack.c.b16 %v2328, %v2327
    %v3298 = vpack.c.b16 %v2330, %v2329
    %v3299 = vpack.c.b16 %v2332, %v2331
    %v3300 = vpack.c.b16 %v2334, %v2333
    %v3301 = vpack.c.b16 %v2336, %v2335
    %v3302 = vpack.c.b16 %v2338, %v2337
    %v3303 = vpack.c.b16 %v2340, %v2339
    %v3304 = vpack.c.b16 %v2342, %v2341
    %v3305 = vpack.c.b16 %v2344, %v2343
    %v3306 = vpack.c.b16 %v2346, %v2345
    %v3307 = vpack.c.b16 %v2348, %v2347
    %v3308 = vpack.c.b16 %v2350, %v2349
    %v3309 = vpack.c.b16 %v2352, %v2351
    %v3310 = vpack.c.b16 %v2354, %v2353
    %v3311 = vpack.c.b16 %v2356, %v2355
    %v3312 = vpack.c.b16 %v2358, %v2357
    %v3313 = vpack.c.b16 %v2360, %v2359
    %v3314 = vpack.c.b16 %v2362, %v2361
    %v3315 = vpack.c.b16 %v2364, %v2363
    %v3316 = vpack.c.b16 %v2366, %v2365
    %v3317 = vpack.c.b16 %v2368, %v2367
    %v3318 = vpack.c.b16 %v2370, %v2369
    %v3319 = vpack.c.b16 %v2372, %v2371
    %v3320 = vpack.c.b16 %v2374, %v2373
    %v3321 = vpack.c.b16 %v2376, %v2375
    %v3322 = vpack.c.b16 %v2378, %v2377
    %v3323 = vpack.c.b16 %v2380, %v2379
    %v3324 = vpack.c.b16 %v2382, %v2381
    %v3325 = vpack.c.b16 %v2384, %v2383
    %v3326 = vpack.c.b16 %v2386, %v2385
    %v3327 = vpack.c.b16 %v2388, %v2387
    %v3328 = vpack.c.b16 %v2390, %v2389
    %v3329 = vpack.c.b16 %v2392, %v2391
    %v3330 = vpack.c.b16 %v2394, %v2393
    %v3331 = vpack.c.b16 %v2396, %v2395
    %v3332 = vpack.c.b16 %v2398, %v2397
    %v3333 = vpack.c.b16 %v2400, %v2399
    %v3334 = vpack.c.b16 %v2402, %v2401
    %v3335 = vpack.c.b16 %v2404, %v2403
    %v3336 = vpack.c.b16 %v2406, %v2405
    %v3337 = vpack.c.b16 %v2408, %v2407
    %v3338 = vpack.c.b16 %v2410, %v2409
    %v3339 = vpack.c.b16 %v2412, %v2411
    %v3340 = vpack.c.b16 %v2414, %v2413
    %v3341 = vpack.c.b16 %v2416, %v2415
    %v3342 = vpack.c.b16 %v2418, %v2417
    %v3343 = vpack.c.b16 %v2420, %v2419
    %v3344 = vpack.c.b16 %v2422, %v2421
    %v3345 = vpack.c.b16 %v2424, %v2423
    %v3346 = vpack.c.b16 %v2426, %v2425
    %v3347 = vpack.c.b16 %v2428, %v2427
    %v3348 = vpack.c.b16 %v2430, %v2429
    %v3349 = vpack.c.b16 %v2432, %v2431
    %v3350 = vpack.c.b16 %v2434, %v2433
    %v3351 = vpack.c.b16 %v2436, %v2435
    %v3352 = vpack.c.b16 %v2438, %v2437
    %v3353 = vpack.c.b16 %v2440, %v2439
    %v3354 = vpack.c.b16 %v2442, %v2441
    %v3355 = vpack.c.b16 %v2444, %v2443
    %v3356 = vpack.c.b16 %v2446, %v2445
    %v3357 = vpack.c.b16 %v2448, %v2447
    %v3358 = vpack.c.b16 %v2450, %v2449
    %v3359 = vpack.c.b16 %v2452, %v2451
    %v3360 = vpack.c.b16 %v2454, %v2453
    %v3361 = vpack.c.b16 %v2456, %v2455
    %v3362 = vpack.c.b16 %v2458, %v2457
    %v3363 = vpack.c.b16 %v2460, %v2459
    %v3364 = vpack.c.b16 %v2462, %v2461
    %v3365 = vpack.c.b16 %v2464, %v2463
    %v3366 = vpack.c.b16 %v2466, %v2465
    %v3367 = vpack.c.b16 %v2468, %v2467
    %v3368 = vpack.c.b16 %v2470, %v2469
    %v3369 = vpack.c.b16 %v2472, %v2471
    %v3370 = vpack.c.b16 %v2474, %v2473
    %v3371 = vpack.c.b16 %v2476, %v2475
    %v3372 = vpack.c.b16 %v2478, %v2477
    %v3373 = vpack.c.b16 %v2480, %v2479
    %v3374 = vpack.c.b16 %v2482, %v2481
    %v3375 = vpack.c.b16 %v2484, %v2483
    %v3376 = vpack.c.b16 %v2486, %v2485
    %v3377 = vpack.c.b16 %v2488, %v2487
    %v3378 = vpack.c.b16 %v2490, %v2489
    %v3379 = vpack.c.b16 %v2492, %v2491
    %v3380 = vpack.c.b16 %v2494, %v2493
    %v3381 = vpack.c.b16 %v2496, %v2495
    %v3382 = vpack.c.b16 %v2498, %v2497
    %v3383 = vpack.c.b16 %v2500, %v2499
    %v3384 = vpack.c.b16 %v2502, %v2501
    %v3385 = vpack.c.b16 %v2504, %v2503
    %v3386 = vpack.c.b16 %v2506, %v2505
    %v3387 = vpack.c.b16 %v2508, %v2507
    %v3388 = vpack.c.b16 %v2510, %v2509
    %v3389 = vpack.c.b16 %v2512, %v2511
    %v3390 = vpack.c.b16 %v2514, %v2513
    %v3391 = vpack.c.b16 %v2516, %v2515
    %v3392 = vpack.c.b16 %v2518, %v2517
    %v3393 = vpack.c.b16 %v2520, %v2519
    %v3394 = vpack.c.b16 %v2522, %v2521
    %v3395 = vpack.c.b16 %v2524, %v2523
    %v3396 = vpack.c.b16 %v2526, %v2525
    %v3397 = vpack.c.b16 %v2528, %v2527
    %v3398 = vpack.c.b16 %v2530, %v2529
    %v3399 = vpack.c.b16 %v2532, %v2531
    %v3400 = vpack.c.b16 %v2534, %v2533
    %v3401 = vpack.c.b16 %v2536, %v2535
    %v3402 = vpack.c.b16 %v2538, %v2537
    %v3403 = vpack.c.b16 %v2540, %v2539
    %v3404 = vpack.c.b16 %v2542, %v2541
    %v3405 = vpack.c.b16 %v2544, %v2543
    %v3406 = vpack.c.b16 %v2546, %v2545
    %v3407 = vpack.c.b16 %v2548, %v2547
    %v3408 = vpack.c.b16 %v2550, %v2549
    %v3409 = vpack.c.b16 %v2552, %v2551
    %v3410 = vpack.c.b16 %v2554, %v2553
    %v3411 = vpack.c.b16 %v2556, %v2555
    %v3412 = vpack.c.b16 %v2558, %v2557
    %v3413 = vpack.c.b16 %v2560, %v2559
    %v3414 = vpack.c.b16 %v2562, %v2561
    %v3415 = vpack.c.b16 %v2564, %v2563
    %v3416 = vpack.c.b16 %v2566, %v2565
    %v3417 = vpack.c.b16 %v2568, %v2567
    %v3418 = vpack.c.b16 %v2570, %v2569
    %v3419 = vpack.c.b16 %v2572, %v2571
    %v3420 = vpack.c.b16 %v2574, %v2573
    %v3421 = vpack.c.b16 %v2576, %v2575
    %v3422 = vpack.c.b16 %v2578, %v2577
    %v3423 = vpack.c.b16 %v2580, %v2579
    %v3424 = vpack.c.b16 %v2582, %v2581
    %v3425 = vpack.c.b16 %v2584, %v2583
    %v3426 = vpack.c.b16 %v2586, %v2585
    %v3427 = vpack.c.b16 %v2588, %v2587
    %v3428 = vpack.c.b16 %v2590, %v2589
    %v3429 = vpack.c.b16 %v2592, %v2591
    %v3430 = vpack.c.b16 %v2594, %v2593
    %v3431 = vpack.c.b16 %v2596, %v2595
    %v3432 = vpack.c.b16 %v2598, %v2597
    %v3433 = vpack.c.b16 %v2600, %v2599
    %v3434 = vpack.c.b16 %v2602, %v2601
    %v3435 = vpack.c.b16 %v2604, %v2603
    %v3436 = vpack.c.b16 %v2606, %v2605
    %v3437 = vpack.c.b16 %v2608, %v2607
    %v3438 = vpack.c.b16 %v2610, %v2609
    %v3439 = vpack.c.b16 %v2612, %v2611
    %v3440 = vpack.c.b16 %v2614, %v2613
    %v3441 = vpack.c.b16 %v2616, %v2615
    %v3442 = vpack.c.b16 %v2618, %v2617
    %v3443 = vpack.c.b16 %v2620, %v2619
    %v3444 = vpack.c.b16 %v2622, %v2621
    %v3445 = vpack.c.b16 %v2624, %v2623
    %v3446 = vpack.c.b16 %v2626, %v2625
    %v3447 = vpack.c.b16 %v2628, %v2627
    %v3448 = vpack.c.b16 %v2630, %v2629
    %v3449 = vpack.c.b16 %v2632, %v2631
    %v3450 = vpack.c.b16 %v2634, %v2633
    %v3451 = vpack.c.b16 %v2636, %v2635
    %v3452 = vpack.c.b16 %v2638, %v2637
    %v3453 = vpack.c.b16 %v2640, %v2639
    %v3454 = vpack.c.b16 %v2642, %v2641
    %v3455 = vpack.c.b16 %v2644, %v2643
    %v3456 = vpack.c.b16 %v2646, %v2645
    %v3457 = vpack.c.b16 %v2648, %v2647
    %v3458 = vpack.c.b16 %v2650, %v2649
    %v3459 = vpack.c.b16 %v2652, %v2651
    %v3460 = vpack.c.b16 %v2654, %v2653
    %v3461 = vpack.c.b16 %v2656, %v2655
    %v3462 = vpack.c.b16 %v2658, %v2657
    %v3463 = vpack.c.b16 %v2660, %v2659
    %v3464 = vpack.c.b16 %v2662, %v2661
    %v3465 = vpack.c.b16 %v2664, %v2663
    %v3466 = vpack.c.b16 %v2666, %v2665
    %v3467 = vpack.c.b16 %v2668, %v2667
    %v3468 = vpack.c.b16 %v2670, %v2669
    %v3469 = vpack.c.b16 %v2672, %v2671
    %v3470 = vpack.c.b16 %v2674, %v2673
    %v3471 = vpack.c.b16 %v2676, %v2675
    %v3472 = vpack.c.b16 %v2678, %v2677
    %v3473 = vpack.c.b16 %v2680, %v2679
    %v3474 = vpack.c.b16 %v2682, %v2681
    %v3475 = vpack.c.b16 %v2684, %v2683
    %v3476 = vpack.c.b16 %v2686, %v2685
    %v3477 = vpack.c.b16 %v2688, %v2687
    %v3478 = vpack.c.b16 %v2690, %v2689
    %v3479 = vpack.c.b16 %v2692, %v2691
    %v3480 = vpack.c.b16 %v2694, %v2693
    %v3481 = vpack.c.b16 %v2696, %v2695
    %v3482 = vpack.c.b16 %v2698, %v2697
    %v3483 = vpack.c.b16 %v2700, %v2699
    %v3484 = vpack.c.b16 %v2702, %v2701
    %v3485 = vpack.c.b16 %v2704, %v2703
    %v3486 = vpack.c.b16 %v2706, %v2705
    %v3487 = vpack.c.b16 %v2708, %v2707
    %v3488 = vpack.c.b16 %v2710, %v2709
    %v3489 = vpack.c.b16 %v2712, %v2711
    %v3490 = vpack.c.b16 %v2714, %v2713
    %v3491 = vpack.c.b16 %v2716, %v2715
    %v3492 = vpack.c.b16 %v2718, %v2717
    %v3493 = vpack.c.b16 %v2720, %v2719
    %v3494 = vpack.c.b16 %v2722, %v2721
    %v3495 = vpack.c.b16 %v2724, %v2723
    %v3496 = vpack.c.b16 %v2726, %v2725
    %v3497 = vpack.c.b16 %v2728, %v2727
    %v3498 = vpack.c.b16 %v2730, %v2729
    %v3499 = vpack.c.b16 %v2732, %v2731
    %v3500 = vpack.c.b16 %v2734, %v2733
    %v3501 = vpack.c.b16 %v2736, %v2735
    %v3502 = vpack.c.b16 %v2738, %v2737
    %v3503 = vpack.c.b16 %v2740, %v2739
    %v3504 = vpack.c.b16 %v2742, %v2741
    %v3505 = vpack.c.b16 %v2744, %v2743
    %v3506 = vpack.c.b16 %v2746, %v2745
    %v3507 = vpack.c.b16 %v2748, %v2747
    %v3508 = vpack.c.b16 %v2750, %v2749
    %v3509 = vpack.c.b16 %v2752, %v2751
    %v3510 = vpack.c.b16 %v2754, %v2753
    %v3511 = vpack.c.b16 %v2756, %v2755
    %v3512 = vpack.c.b16 %v2758, %v2757
    %v3513 = vpack.c.b16 %v2760, %v2759
    %v3514 = vpack.c.b16 %v2762, %v2761
    %v3515 = vpack.c.b16 %v2764, %v2763
    %v3516 = vpack.c.b16 %v2766, %v2765
    %v3517 = vpack.c.b16 %v2768, %v2767
    %v3518 = vpack.c.b16 %v2770, %v2769
    %v3519 = vpack.c.b16 %v2772, %v2771
    %v3520 = vpack.c.b16 %v2774, %v2773
    %v3521 = vpack.c.b16 %v2776, %v2775
    %v3522 = vpack.c.b16 %v2778, %v2777
    %v3523 = vpack.c.b16 %v2780, %v2779
    %v3524 = vpack.c.b16 %v2782, %v2781
    %v3525 = vpack.c.b16 %v2784, %v2783
    %v3526 = vpack.c.b16 %v2786, %v2785
    %v3527 = vpack.c.b16 %v2788, %v2787
    %v3528 = vpack.c.b16 %v2790, %v2789
    %v3529 = vpack.c.b16 %v2792, %v2791
    %v3530 = vpack.c.b16 %v2794, %v2793
    %v3531 = vpack.c.b16 %v2796, %v2795
    %v3532 = vpack.c.b16 %v2798, %v2797
    %v3533 = vpack.c.b16 %v2800, %v2799
    %v3534 = vpack.c.b16 %v2802, %v2801
    %v3535 = vpack.c.b16 %v2804, %v2803
    %v3536 = vpack.c.b16 %v2806, %v2805
    %v3537 = vpack.c.b16 %v2808, %v2807
    %v3538 = vpack.c.b16 %v2810, %v2809
    %v3539 = vpack.c.b16 %v2812, %v2811
    %v3540 = vpack.c.b16 %v2814, %v2813
    %v3541 = vpack.c.b16 %v2816, %v2815
    %v3542 = vpack.c.b16 %v2818, %v2817
    %v3543 = vpack.c.b16 %v2820, %v2819
    %v3544 = vpack.c.b16 %v2822, %v2821
    %v3545 = vpack.c.b16 %v2824, %v2823
    %v3546 = vpack.c.b16 %v2826, %v2825
    %v3547 = vpack.c.b16 %v2828, %v2827
    %v3548 = vpack.c.b16 %v2830, %v2829
    %v3549 = vpack.c.b16 %v2832, %v2831
    %v3550 = vpack.c.b16 %v2834, %v2833
    %v3551 = vpack.c.b16 %v2836, %v2835
    %v3552 = vpack.c.b16 %v2838, %v2837
    %v3553 = vpack.c.b16 %v2840, %v2839
    %v3554 = vpack.c.b16 %v2842, %v2841
    %v3555 = vpack.c.b16 %v2844, %v2843
    %v3556 = vpack.c.b16 %v2846, %v2845
    %v3557 = vpack.c.b16 %v2848, %v2847
    %v3558 = vpack.c.b16 %v2850, %v2849
    %v3559 = vpack.c.b16 %v2852, %v2851
    %v3560 = vpack.c.b16 %v2854, %v2853
    %v3561 = vpack.c.b16 %v2856, %v2855
    %v3562 = vpack.c.b16 %v2858, %v2857
    %v3563 = vpack.c.b16 %v2860, %v2859
    %v3564 = vpack.c.b16 %v2862, %v2861
    %v3565 = vpack.c.b16 %v2864, %v2863
    %v3566 = vpack.c.b16 %v2866, %v2865
    %v3567 = vpack.c.b16 %v2868, %v2867
    %v3568 = vpack.c.b16 %v2870, %v2869
    %v3569 = vpack.c.b16 %v2872, %v2871
    %v3570 = vpack.c.b16 %v2874, %v2873
    %v3571 = vpack.c.b16 %v2876, %v2875
    %v3572 = vpack.c.b16 %v2878, %v2877
    %v3573 = vpack.c.b16 %v2880, %v2879
    %v3574 = vpack.c.b16 %v2882, %v2881
    %v3575 = vpack.c.b16 %v2884, %v2883
    %v3576 = vpack.c.b16 %v2886, %v2885
    %v3577 = vpack.c.b16 %v2888, %v2887
    %v3578 = vpack.c.b16 %v2890, %v2889
    %v3579 = vpack.c.b16 %v2892, %v2891
    %v3580 = vpack.c.b16 %v2894, %v2893
    %v3581 = vpack.c.b16 %v2896, %v2895
    %v3582 = vpack.c.b16 %v2898, %v2897
    %v3583 = vpack.c.b16 %v2900, %v2899
    %v3584 = vpack.c.b16 %v2902, %v2901
    %v3585 = vpack.c.b16 %v2904, %v2903
    %v3586 = vpack.c.b16 %v2906, %v2905
    %v3587 = vpack.c.b16 %v2908, %v2907
    %v3588 = vpack.c.b16 %v2910, %v2909
    %v3589 = vpack.c.b16 %v2912, %v2911
    %v3590 = vpack.c.b16 %v2914, %v2913
    %v3591 = vpack.c.b16 %v2916, %v2915
    %v3592 = vpack.c.b16 %v2918, %v2917
    %v3593 = vpack.c.b16 %v2920, %v2919
    %v3594 = vpack.c.b16 %v2922, %v2921
    %v3595 = vpack.c.b16 %v2924, %v2923
    %v3596 = vpack.c.b16 %v2926, %v2925
    %v3597 = vpack.c.b16 %v2928, %v2927
    %v3598 = vpack.c.b16 %v2930, %v2929
    %v3599 = vpack.c.b16 %v2932, %v2931
    %v3600 = vpack.c.b16 %v2934, %v2933
    %v3601 = vpack.c.b16 %v2936, %v2935
    %v3602 = vpack.c.b16 %v2938, %v2937
    %v3603 = vpack.c.b16 %v2940, %v2939
    %v3604 = vpack.c.b16 %v2942, %v2941
    %v3605 = vpack.c.b16 %v2944, %v2943
    %v3606 = vpack.c.b16 %v2946, %v2945
    %v3607 = vpack.c.b16 %v2948, %v2947
    %v3608 = vpack.c.b16 %v2950, %v2949
    %v3609 = vpack.c.b16 %v2952, %v2951
    %v3610 = vpack.c.b16 %v2954, %v2953
    %v3611 = vpack.c.b16 %v2956, %v2955
    %v3612 = vpack.c.b16 %v2958, %v2957
    %v3613 = vpack.c.b16 %v2960, %v2959
    %v3614 = vpack.c.b16 %v2962, %v2961
    %v3615 = vpack.c.b16 %v2964, %v2963
    %v3616 = vpack.c.b16 %v2966, %v2965
    %v3617 = vpack.c.b16 %v2968, %v2967
    %v3618 = vpack.c.b16 %v2970, %v2969
    %v3619 = vpack.c.b16 %v2972, %v2971
    %v3620 = vpack.c.b16 %v2974, %v2973
    %v3621 = vpack.c.b16 %v2976, %v2975
    %v3622 = vpack.c.b16 %v2978, %v2977
    %v3623 = vpack.c.b16 %v2980, %v2979
    %v3624 = vpack.c.b16 %v2982, %v2981
    %v3625 = vpack.c.b16 %v2984, %v2983
    %v3626 = vpack.c.b16 %v2986, %v2985
    %v3627 = vpack.c.b16 %v2988, %v2987
    %v3628 = vpack.c.b16 %v2990, %v2989
    %v3629 = vpack.c.b16 %v2992, %v2991
    %v3630 = vpack.c.b16 %v2994, %v2993
    %v3631 = vpack.c.b16 %v2996, %v2995
    %v3632 = vpack.c.b16 %v2998, %v2997
    %v3633 = vpack.c.b16 %v3000, %v2999
    %v3634 = vpack.c.b16 %v3002, %v3001
    %v3635 = vpack.c.b16 %v3004, %v3003
    %v3636 = vpack.c.b16 %v3006, %v3005
    %v3637 = vpack.c.b16 %v3008, %v3007
    %v3638 = vpack.c.b16 %v3010, %v3009
    %v3639 = vpack.c.b16 %v3012, %v3011
    %v3640 = vpack.c.b16 %v3014, %v3013
    %v3641 = vpack.c.b16 %v3016, %v3015
    %v3642 = vpack.c.b16 %v3018, %v3017
    %v3643 = vpack.c.b16 %v3020, %v3019
    %v3644 = vpack.c.b16 %v3022, %v3021
    %v3645 = vpack.c.b16 %v3024, %v3023
    %v3646 = vpack.c.b16 %v3026, %v3025
    %v3647 = vpack.c.b16 %v3028, %v3027
    %v3648 = vpack.c.b16 %v3030, %v3029
    %v3649 = vpack.c.b16 %v3032, %v3031
    %v3650 = vpack.c.b16 %v3034, %v3033
    %v3651 = vpack.c.b16 %v3036, %v3035
    %v3652 = vpack.c.b16 %v3038, %v3037
    %v3653 = vpack.c.b16 %v3040, %v3039
    %v3654 = vpack.c.b16 %v3042, %v3041
    %v3655 = vpack.c.b16 %v3044, %v3043
    %v3656 = vpack.c.b16 %v3046, %v3045
    %v3657 = vpack.c.b16 %v3048, %v3047
    %v3658 = vpack.c.b16 %v3050, %v3049
    %v3659 = vpack.c.b16 %v3052, %v3051
    %v3660 = vpack.c.b16 %v3054, %v3053
    %v3661 = vpack.c.b16 %v3056, %v3055
    %v3662 = vpack.c.b16 %v3058, %v3057
    %v3663 = vpack.c.b16 %v3060, %v3059
    %v3664 = vpack.c.b16 %v3062, %v3061
    %v3665 = vpack.c.b16 %v3064, %v3063
    %v3666 = vpack.c.b16 %v3066, %v3065
    %v3667 = vpack.c.b16 %v3068, %v3067
    %v3668 = vpack.c.b16 %v3070, %v3069
    %v3669 = vpack.c.b16 %v3072, %v3071
    %v3670 = vpack.c.b16 %v3074, %v3073
    %v3671 = vpack.c.b16 %v3076, %v3075
    %v3672 = vpack.c.b16 %v3078, %v3077
    %v3673 = vpack.c.b16 %v3080, %v3079
    %v3674 = vpack.c.b16 %v3082, %v3081
    %v3675 = vpack.c.b16 %v3084, %v3083
    %v3676 = vpack.c.b16 %v3086, %v3085
    %v3677 = vpack.c.b16 %v3088, %v3087
    %v3678 = vpack.c.b16 %v3090, %v3089
    %v3679 = vpack.c.b16 %v3092, %v3091
    %v3680 = vpack.c.b16 %v3094, %v3093
    %v3681 = vpack.c.b16 %v3096, %v3095
    %v3682 = vpack.c.b16 %v3098, %v3097
    %v3683 = vpack.c.b16 %v3100, %v3099
    %v3684 = vpack.c.b16 %v3102, %v3101
    %v3685 = vpack.c.b16 %v3104, %v3103
    %v3686 = vpack.c.b16 %v3106, %v3105
    %v3687 = vpack.c.b16 %v3108, %v3107
    %v3688 = vpack.c.b16 %v3110, %v3109
    %v3689 = vpack.c.b16 %v3112, %v3111
    %v3690 = vpack.c.b16 %v3114, %v3113
    %v3691 = vpack.c.b16 %v3116, %v3115
    %v3692 = vpack.c.b16 %v3118, %v3117
    %v3693 = vpack.c.b16 %v3120, %v3119
    %v3694 = vpack.c.b16 %v3122, %v3121
    %v3695 = vpack.c.b16 %v3124, %v3123
    %v3696 = vpack.c.b16 %v3126, %v3125
    %v3697 = vpack.c.b16 %v3128, %v3127
    %v3698 = vpack.c.b16 %v3130, %v3129
    %v3699 = vpack.c.b16 %v3132, %v3131
    %v3700 = vpack.c.b16 %v3134, %v3133
    %v3701 = vpack.c.b16 %v3136, %v3135
    %v3702 = vpack.c.b16 %v3138, %v3137
    %v3703 = vpack.c.b16 %v3140, %v3139
    %v3704 = vpack.c.b16 %v3142, %v3141
    %v3705 = vpack.c.b16 %v3144, %v3143
    %v3706 = vpack.c.b16 %v3146, %v3145
    %v3707 = vpack.c.b16 %v3148, %v3147
    %v3708 = vpack.c.b16 %v3150, %v3149
    %v3709 = vpack.c.b16 %v3152, %v3151
    %v3710 = vpack.c.b16 %v3154, %v3153
    %v3711 = vpack.c.b16 %v3156, %v3155
    %v3712 = vpack.c.b16 %v3158, %v3157
    %v3713 = vpack.c.b16 %v3160, %v3159
    %v3714 = vpack.c.b16 %v3162, %v3161
    %v3715 = vpack.c.b16 %v3164, %v3163
    %v3716 = vpack.c.b16 %v3166, %v3165
    %v3717 = vpack.c.b16 %v3168, %v3167
    %v3718 = vpack.c.b16 %v3170, %v3169
    %v3719 = vpack.c.b16 %v3172, %v3171
    %v3720 = vpack.c.b16 %v3174, %v3173
    %v3721 = vpack.c.b16 %v3176, %v3175
    %v3722 = vpack.c.b16 %v3178, %v3177
    %v3723 = vpack.c.b16 %v3180, %v3179
    %v3724 = vpack.c.b16 %v3182, %v3181
    %v3725 = vpack.c.b16 %v3184, %v3183
    %v3726 = vpack.c.b16 %v3186, %v3185
    %v3727 = vpack.c.b16 %v3188, %v3187
    %v3728 = vpack.c.b16 %v3190, %v3189
    %v3729 = vpack.c.b16 %v3192, %v3191
    %v3730 = vpack.c.b16 %v3194, %v3193
    %v3731 = vpack.c.b16 %v3196, %v3195
    %v3732 = vpack.c.b16 %v3198, %v3197
    %v3733 = vpack.c.b16 %v3200, %v3199
    %v3734 = vpack.c.b16 %v3202, %v3201
    %v3735 = vpack.c.b16 %v3204, %v3203
    %v3736 = vpack.c.b16 %v3206, %v3205
    %v3737 = vpack.c.b16 %v3208, %v3207
    %v3738 = vpack.c.b16 %v3210, %v3209
    %v3739 = vpack.c.b16 %v3212, %v3211
    %v3740 = vpack.c.b16 %v3214, %v3213
    %v3741 = vpack.c.b16 %v3216, %v3215
    %v3742 = vpack.c.b16 %v3218, %v3217
    %v3743 = vpack.c.b16 %v3220, %v3219
    %v3744 = vpack.c.b16 %v3222, %v3221
    %v3745 = vpack.c.b16 %v3224, %v3223
    %v3746 = vpack.c.b16 %v3226, %v3225
    %v3747 = vpack.c.b16 %v3228, %v3227
    %v3748 = vpack.c.b16 %v3230, %v3229
    %v3749 = vpack.c.b16 %v3232, %v3231
    %v3750 = vpack.c.b16 %v3234, %v3233
    %v3751 = vpack.c.b16 %v3236, %v3235
    %v3752 = vpack.c.b16 %v3238, %v3237
    %v3753 = vpack.c.b16 %v3240, %v3239
    %v3754 = vpack.c.b16 %v3242, %v3241
    %4267 = vmatpush.bf16.msra.mxu0 %v3250
    %4268 = vmatpush.bf16.msra.mxu0 %v3249
    %4269 = vmatpush.bf16.msra.mxu0 %v3248
    %4270 = vmatpush.bf16.msra.mxu0 %v3247
    %4271 = vmatpush.bf16.msra.mxu0 %v3246
    %4272 = vmatpush.bf16.msra.mxu0 %v3245
    %4273 = vmatpush.bf16.msra.mxu0 %v3244
    %4274 = vmatpush.bf16.msra.mxu0 %v3243
    %4275 = vmatmul.bf16.gmra.mxu0 %v1053
    %v4276 = vpop.f32.mrf.mxu0
    %v4277 = vadd.f32 %v1049, %v4276
    %v4278 = vpop.f32.mrf.mxu0
    %4279 = vdwg.mxu0
    %4280 = vmatpush.bf16.msra.mxu0 %v3258
    %4281 = vmatpush.bf16.msra.mxu0 %v3257
    %4282 = vmatpush.bf16.msra.mxu0 %v3256
    %4283 = vmatpush.bf16.msra.mxu0 %v3255
    %4284 = vmatpush.bf16.msra.mxu0 %v3254
    %4285 = vmatpush.bf16.msra.mxu0 %v3253
    %4286 = vmatpush.bf16.msra.mxu0 %v3252
    %4287 = vmatpush.bf16.msra.mxu0 %v3251
    %4288 = vmatmul.bf16.gmra.mxu0 %v1054
    %v4289 = vpop.f32.mrf.mxu0
    %v4290 = vadd.f32 %v4277, %v4289
    %v4291 = vpop.f32.mrf.mxu0
    %4292 = vdwg.mxu0
    %4293 = vmatpush.bf16.msra.mxu0 %v3266
    %4294 = vmatpush.bf16.msra.mxu0 %v3265
    %4295 = vmatpush.bf16.msra.mxu0 %v3264
    %4296 = vmatpush.bf16.msra.mxu0 %v3263
    %4297 = vmatpush.bf16.msra.mxu0 %v3262
    %4298 = vmatpush.bf16.msra.mxu0 %v3261
    %4299 = vmatpush.bf16.msra.mxu0 %v3260
    %4300 = vmatpush.bf16.msra.mxu0 %v3259
    %4301 = vmatmul.bf16.gmra.mxu0 %v1055
    %v4302 = vpop.f32.mrf.mxu0
    %v4303 = vadd.f32 %v4290, %v4302
    %v4304 = vpop.f32.mrf.mxu0
    %4305 = vdwg.mxu0
    %4306 = vmatpush.bf16.msra.mxu0 %v3274
    %4307 = vmatpush.bf16.msra.mxu0 %v3273
    %4308 = vmatpush.bf16.msra.mxu0 %v3272
    %4309 = vmatpush.bf16.msra.mxu0 %v3271
    %4310 = vmatpush.bf16.msra.mxu0 %v3270
    %4311 = vmatpush.bf16.msra.mxu0 %v3269
    %4312 = vmatpush.bf16.msra.mxu0 %v3268
    %4313 = vmatpush.bf16.msra.mxu0 %v3267
    %4314 = vmatmul.bf16.gmra.mxu0 %v1056
    %v4315 = vpop.f32.mrf.mxu0
    %v4316 = vadd.f32 %v4303, %v4315
    %v4317 = vpop.f32.mrf.mxu0
    %4318 = vdwg.mxu0
    %4319 = vmatpush.bf16.msra.mxu0 %v3282
    %4320 = vmatpush.bf16.msra.mxu0 %v3281
    %4321 = vmatpush.bf16.msra.mxu0 %v3280
    %4322 = vmatpush.bf16.msra.mxu0 %v3279
    %4323 = vmatpush.bf16.msra.mxu0 %v3278
    %4324 = vmatpush.bf16.msra.mxu0 %v3277
    %4325 = vmatpush.bf16.msra.mxu0 %v3276
    %4326 = vmatpush.bf16.msra.mxu0 %v3275
    %4327 = vmatmul.bf16.gmra.mxu0 %v1057
    %v4328 = vpop.f32.mrf.mxu0
    %v4329 = vadd.f32 %v4316, %v4328
    %v4330 = vpop.f32.mrf.mxu0
    %4331 = vdwg.mxu0
    %4332 = vmatpush.bf16.msra.mxu0 %v3290
    %4333 = vmatpush.bf16.msra.mxu0 %v3289
    %4334 = vmatpush.bf16.msra.mxu0 %v3288
    %4335 = vmatpush.bf16.msra.mxu0 %v3287
    %4336 = vmatpush.bf16.msra.mxu0 %v3286
    %4337 = vmatpush.bf16.msra.mxu0 %v3285
    %4338 = vmatpush.bf16.msra.mxu0 %v3284
    %4339 = vmatpush.bf16.msra.mxu0 %v3283
    %4340 = vmatmul.bf16.gmra.mxu0 %v1058
    %v4341 = vpop.f32.mrf.mxu0
    %v4342 = vadd.f32 %v4329, %v4341
    %v4343 = vpop.f32.mrf.mxu0
    %4344 = vdwg.mxu0
    %4345 = vmatpush.bf16.msra.mxu0 %v3298
    %4346 = vmatpush.bf16.msra.mxu0 %v3297
    %4347 = vmatpush.bf16.msra.mxu0 %v3296
    %4348 = vmatpush.bf16.msra.mxu0 %v3295
    %4349 = vmatpush.bf16.msra.mxu0 %v3294
    %4350 = vmatpush.bf16.msra.mxu0 %v3293
    %4351 = vmatpush.bf16.msra.mxu0 %v3292
    %4352 = vmatpush.bf16.msra.mxu0 %v3291
    %4353 = vmatmul.bf16.gmra.mxu0 %v1059
    %v4354 = vpop.f32.mrf.mxu0
    %v4355 = vadd.f32 %v4342, %v4354
    %v4356 = vpop.f32.mrf.mxu0
    %4357 = vdwg.mxu0
    %4358 = vmatpush.bf16.msra.mxu0 %v3306
    %4359 = vmatpush.bf16.msra.mxu0 %v3305
    %4360 = vmatpush.bf16.msra.mxu0 %v3304
    %4361 = vmatpush.bf16.msra.mxu0 %v3303
    %4362 = vmatpush.bf16.msra.mxu0 %v3302
    %4363 = vmatpush.bf16.msra.mxu0 %v3301
    %4364 = vmatpush.bf16.msra.mxu0 %v3300
    %4365 = vmatpush.bf16.msra.mxu0 %v3299
    %4366 = vmatmul.bf16.gmra.mxu0 %v1060
    %v4367 = vpop.f32.mrf.mxu0
    %v4368 = vadd.f32 %v4355, %v4367
    %v4369 = vpop.f32.mrf.mxu0
    %4370 = vdwg.mxu0
    %4371 = vmatpush.bf16.msra.mxu0 %v3314
    %4372 = vmatpush.bf16.msra.mxu0 %v3313
    %4373 = vmatpush.bf16.msra.mxu0 %v3312
    %4374 = vmatpush.bf16.msra.mxu0 %v3311
    %4375 = vmatpush.bf16.msra.mxu0 %v3310
    %4376 = vmatpush.bf16.msra.mxu0 %v3309
    %4377 = vmatpush.bf16.msra.mxu0 %v3308
    %4378 = vmatpush.bf16.msra.mxu0 %v3307
    %4379 = vmatmul.bf16.gmra.mxu0 %v1063
    %v4380 = vpop.f32.mrf.mxu0
    %v4381 = vadd.f32 %v4368, %v4380
    %v4382 = vpop.f32.mrf.mxu0
    %4383 = vdwg.mxu0
    %4384 = vmatpush.bf16.msra.mxu0 %v3322
    %4385 = vmatpush.bf16.msra.mxu0 %v3321
    %4386 = vmatpush.bf16.msra.mxu0 %v3320
    %4387 = vmatpush.bf16.msra.mxu0 %v3319
    %4388 = vmatpush.bf16.msra.mxu0 %v3318
    %4389 = vmatpush.bf16.msra.mxu0 %v3317
    %4390 = vmatpush.bf16.msra.mxu0 %v3316
    %4391 = vmatpush.bf16.msra.mxu0 %v3315
    %4392 = vmatmul.bf16.gmra.mxu0 %v1064
    %v4393 = vpop.f32.mrf.mxu0
    %v4394 = vadd.f32 %v4381, %v4393
    %v4395 = vpop.f32.mrf.mxu0
    %4396 = vdwg.mxu0
    %4397 = vmatpush.bf16.msra.mxu0 %v3330
    %4398 = vmatpush.bf16.msra.mxu0 %v3329
    %4399 = vmatpush.bf16.msra.mxu0 %v3328
    %4400 = vmatpush.bf16.msra.mxu0 %v3327
    %4401 = vmatpush.bf16.msra.mxu0 %v3326
    %4402 = vmatpush.bf16.msra.mxu0 %v3325
    %4403 = vmatpush.bf16.msra.mxu0 %v3324
    %4404 = vmatpush.bf16.msra.mxu0 %v3323
    %4405 = vmatmul.bf16.gmra.mxu0 %v1065
    %v4406 = vpop.f32.mrf.mxu0
    %v4407 = vadd.f32 %v4394, %v4406
    %v4408 = vpop.f32.mrf.mxu0
    %4409 = vdwg.mxu0
    %4410 = vmatpush.bf16.msra.mxu0 %v3338
    %4411 = vmatpush.bf16.msra.mxu0 %v3337
    %4412 = vmatpush.bf16.msra.mxu0 %v3336
    %4413 = vmatpush.bf16.msra.mxu0 %v3335
    %4414 = vmatpush.bf16.msra.mxu0 %v3334
    %4415 = vmatpush.bf16.msra.mxu0 %v3333
    %4416 = vmatpush.bf16.msra.mxu0 %v3332
    %4417 = vmatpush.bf16.msra.mxu0 %v3331
    %4418 = vmatmul.bf16.gmra.mxu0 %v1066
    %v4419 = vpop.f32.mrf.mxu0
    %v4420 = vadd.f32 %v4407, %v4419
    %v4421 = vpop.f32.mrf.mxu0
    %4422 = vdwg.mxu0
    %4423 = vmatpush.bf16.msra.mxu0 %v3346
    %4424 = vmatpush.bf16.msra.mxu0 %v3345
    %4425 = vmatpush.bf16.msra.mxu0 %v3344
    %4426 = vmatpush.bf16.msra.mxu0 %v3343
    %4427 = vmatpush.bf16.msra.mxu0 %v3342
    %4428 = vmatpush.bf16.msra.mxu0 %v3341
    %4429 = vmatpush.bf16.msra.mxu0 %v3340
    %4430 = vmatpush.bf16.msra.mxu0 %v3339
    %4431 = vmatmul.bf16.gmra.mxu0 %v1067
    %v4432 = vpop.f32.mrf.mxu0
    %v4433 = vadd.f32 %v4420, %v4432
    %v4434 = vpop.f32.mrf.mxu0
    %4435 = vdwg.mxu0
    %4436 = vmatpush.bf16.msra.mxu0 %v3354
    %4437 = vmatpush.bf16.msra.mxu0 %v3353
    %4438 = vmatpush.bf16.msra.mxu0 %v3352
    %4439 = vmatpush.bf16.msra.mxu0 %v3351
    %4440 = vmatpush.bf16.msra.mxu0 %v3350
    %4441 = vmatpush.bf16.msra.mxu0 %v3349
    %4442 = vmatpush.bf16.msra.mxu0 %v3348
    %4443 = vmatpush.bf16.msra.mxu0 %v3347
    %4444 = vmatmul.bf16.gmra.mxu0 %v1068
    %v4445 = vpop.f32.mrf.mxu0
    %v4446 = vadd.f32 %v4433, %v4445
    %v4447 = vpop.f32.mrf.mxu0
    %4448 = vdwg.mxu0
    %4449 = vmatpush.bf16.msra.mxu0 %v3362
    %4450 = vmatpush.bf16.msra.mxu0 %v3361
    %4451 = vmatpush.bf16.msra.mxu0 %v3360
    %4452 = vmatpush.bf16.msra.mxu0 %v3359
    %4453 = vmatpush.bf16.msra.mxu0 %v3358
    %4454 = vmatpush.bf16.msra.mxu0 %v3357
    %4455 = vmatpush.bf16.msra.mxu0 %v3356
    %4456 = vmatpush.bf16.msra.mxu0 %v3355
    %4457 = vmatmul.bf16.gmra.mxu0 %v1069
    %v4458 = vpop.f32.mrf.mxu0
    %v4459 = vadd.f32 %v4446, %v4458
    %v4460 = vpop.f32.mrf.mxu0
    %4461 = vdwg.mxu0
    %4462 = vmatpush.bf16.msra.mxu0 %v3370
    %4463 = vmatpush.bf16.msra.mxu0 %v3369
    %4464 = vmatpush.bf16.msra.mxu0 %v3368
    %4465 = vmatpush.bf16.msra.mxu0 %v3367
    %4466 = vmatpush.bf16.msra.mxu0 %v3366
    %4467 = vmatpush.bf16.msra.mxu0 %v3365
    %4468 = vmatpush.bf16.msra.mxu0 %v3364
    %4469 = vmatpush.bf16.msra.mxu0 %v3363
    %4470 = vmatmul.bf16.gmra.mxu0 %v1070
    %v4471 = vpop.f32.mrf.mxu0
    %v4472 = vadd.f32 %v4459, %v4471
    %v4473 = vpop.f32.mrf.mxu0
    %4474 = vdwg.mxu0
    %4475 = vmatpush.bf16.msra.mxu0 %v3378
    %4476 = vmatpush.bf16.msra.mxu0 %v3377
    %4477 = vmatpush.bf16.msra.mxu0 %v3376
    %4478 = vmatpush.bf16.msra.mxu0 %v3375
    %4479 = vmatpush.bf16.msra.mxu0 %v3374
    %4480 = vmatpush.bf16.msra.mxu0 %v3373
    %4481 = vmatpush.bf16.msra.mxu0 %v3372
    %4482 = vmatpush.bf16.msra.mxu0 %v3371
    %4483 = vmatmul.bf16.gmra.mxu0 %v1073
    %v4484 = vpop.f32.mrf.mxu0
    %v4485 = vadd.f32 %v4472, %v4484
    %v4486 = vpop.f32.mrf.mxu0
    %4487 = vdwg.mxu0
    %4488 = vmatpush.bf16.msra.mxu0 %v3386
    %4489 = vmatpush.bf16.msra.mxu0 %v3385
    %4490 = vmatpush.bf16.msra.mxu0 %v3384
    %4491 = vmatpush.bf16.msra.mxu0 %v3383
    %4492 = vmatpush.bf16.msra.mxu0 %v3382
    %4493 = vmatpush.bf16.msra.mxu0 %v3381
    %4494 = vmatpush.bf16.msra.mxu0 %v3380
    %4495 = vmatpush.bf16.msra.mxu0 %v3379
    %4496 = vmatmul.bf16.gmra.mxu0 %v1074
    %v4497 = vpop.f32.mrf.mxu0
    %v4498 = vadd.f32 %v4485, %v4497
    %v4499 = vpop.f32.mrf.mxu0
    %4500 = vdwg.mxu0
    %4501 = vmatpush.bf16.msra.mxu0 %v3394
    %4502 = vmatpush.bf16.msra.mxu0 %v3393
    %4503 = vmatpush.bf16.msra.mxu0 %v3392
    %4504 = vmatpush.bf16.msra.mxu0 %v3391
    %4505 = vmatpush.bf16.msra.mxu0 %v3390
    %4506 = vmatpush.bf16.msra.mxu0 %v3389
    %4507 = vmatpush.bf16.msra.mxu0 %v3388
    %4508 = vmatpush.bf16.msra.mxu0 %v3387
    %4509 = vmatmul.bf16.gmra.mxu0 %v1075
    %v4510 = vpop.f32.mrf.mxu0
    %v4511 = vadd.f32 %v4498, %v4510
    %v4512 = vpop.f32.mrf.mxu0
    %4513 = vdwg.mxu0
    %4514 = vmatpush.bf16.msra.mxu0 %v3402
    %4515 = vmatpush.bf16.msra.mxu0 %v3401
    %4516 = vmatpush.bf16.msra.mxu0 %v3400
    %4517 = vmatpush.bf16.msra.mxu0 %v3399
    %4518 = vmatpush.bf16.msra.mxu0 %v3398
    %4519 = vmatpush.bf16.msra.mxu0 %v3397
    %4520 = vmatpush.bf16.msra.mxu0 %v3396
    %4521 = vmatpush.bf16.msra.mxu0 %v3395
    %4522 = vmatmul.bf16.gmra.mxu0 %v1076
    %v4523 = vpop.f32.mrf.mxu0
    %v4524 = vadd.f32 %v4511, %v4523
    %v4525 = vpop.f32.mrf.mxu0
    %4526 = vdwg.mxu0
    %4527 = vmatpush.bf16.msra.mxu0 %v3410
    %4528 = vmatpush.bf16.msra.mxu0 %v3409
    %4529 = vmatpush.bf16.msra.mxu0 %v3408
    %4530 = vmatpush.bf16.msra.mxu0 %v3407
    %4531 = vmatpush.bf16.msra.mxu0 %v3406
    %4532 = vmatpush.bf16.msra.mxu0 %v3405
    %4533 = vmatpush.bf16.msra.mxu0 %v3404
    %4534 = vmatpush.bf16.msra.mxu0 %v3403
    %4535 = vmatmul.bf16.gmra.mxu0 %v1077
    %v4536 = vpop.f32.mrf.mxu0
    %v4537 = vadd.f32 %v4524, %v4536
    %v4538 = vpop.f32.mrf.mxu0
    %4539 = vdwg.mxu0
    %4540 = vmatpush.bf16.msra.mxu0 %v3418
    %4541 = vmatpush.bf16.msra.mxu0 %v3417
    %4542 = vmatpush.bf16.msra.mxu0 %v3416
    %4543 = vmatpush.bf16.msra.mxu0 %v3415
    %4544 = vmatpush.bf16.msra.mxu0 %v3414
    %4545 = vmatpush.bf16.msra.mxu0 %v3413
    %4546 = vmatpush.bf16.msra.mxu0 %v3412
    %4547 = vmatpush.bf16.msra.mxu0 %v3411
    %4548 = vmatmul.bf16.gmra.mxu0 %v1078
    %v4549 = vpop.f32.mrf.mxu0
    %v4550 = vadd.f32 %v4537, %v4549
    %v4551 = vpop.f32.mrf.mxu0
    %4552 = vdwg.mxu0
    %4553 = vmatpush.bf16.msra.mxu0 %v3426
    %4554 = vmatpush.bf16.msra.mxu0 %v3425
    %4555 = vmatpush.bf16.msra.mxu0 %v3424
    %4556 = vmatpush.bf16.msra.mxu0 %v3423
    %4557 = vmatpush.bf16.msra.mxu0 %v3422
    %4558 = vmatpush.bf16.msra.mxu0 %v3421
    %4559 = vmatpush.bf16.msra.mxu0 %v3420
    %4560 = vmatpush.bf16.msra.mxu0 %v3419
    %4561 = vmatmul.bf16.gmra.mxu0 %v1079
    %v4562 = vpop.f32.mrf.mxu0
    %v4563 = vadd.f32 %v4550, %v4562
    %v4564 = vpop.f32.mrf.mxu0
    %4565 = vdwg.mxu0
    %4566 = vmatpush.bf16.msra.mxu0 %v3434
    %4567 = vmatpush.bf16.msra.mxu0 %v3433
    %4568 = vmatpush.bf16.msra.mxu0 %v3432
    %4569 = vmatpush.bf16.msra.mxu0 %v3431
    %4570 = vmatpush.bf16.msra.mxu0 %v3430
    %4571 = vmatpush.bf16.msra.mxu0 %v3429
    %4572 = vmatpush.bf16.msra.mxu0 %v3428
    %4573 = vmatpush.bf16.msra.mxu0 %v3427
    %4574 = vmatmul.bf16.gmra.mxu0 %v1080
    %v4575 = vpop.f32.mrf.mxu0
    %v4576 = vadd.f32 %v4563, %v4575
    %v4577 = vpop.f32.mrf.mxu0
    %4578 = vdwg.mxu0
    %4579 = vmatpush.bf16.msra.mxu0 %v3442
    %4580 = vmatpush.bf16.msra.mxu0 %v3441
    %4581 = vmatpush.bf16.msra.mxu0 %v3440
    %4582 = vmatpush.bf16.msra.mxu0 %v3439
    %4583 = vmatpush.bf16.msra.mxu0 %v3438
    %4584 = vmatpush.bf16.msra.mxu0 %v3437
    %4585 = vmatpush.bf16.msra.mxu0 %v3436
    %4586 = vmatpush.bf16.msra.mxu0 %v3435
    %4587 = vmatmul.bf16.gmra.mxu0 %v1083
    %v4588 = vpop.f32.mrf.mxu0
    %v4589 = vadd.f32 %v4576, %v4588
    %v4590 = vpop.f32.mrf.mxu0
    %4591 = vdwg.mxu0
    %4592 = vmatpush.bf16.msra.mxu0 %v3450
    %4593 = vmatpush.bf16.msra.mxu0 %v3449
    %4594 = vmatpush.bf16.msra.mxu0 %v3448
    %4595 = vmatpush.bf16.msra.mxu0 %v3447
    %4596 = vmatpush.bf16.msra.mxu0 %v3446
    %4597 = vmatpush.bf16.msra.mxu0 %v3445
    %4598 = vmatpush.bf16.msra.mxu0 %v3444
    %4599 = vmatpush.bf16.msra.mxu0 %v3443
    %4600 = vmatmul.bf16.gmra.mxu0 %v1084
    %v4601 = vpop.f32.mrf.mxu0
    %v4602 = vadd.f32 %v4589, %v4601
    %v4603 = vpop.f32.mrf.mxu0
    %4604 = vdwg.mxu0
    %4605 = vmatpush.bf16.msra.mxu0 %v3458
    %4606 = vmatpush.bf16.msra.mxu0 %v3457
    %4607 = vmatpush.bf16.msra.mxu0 %v3456
    %4608 = vmatpush.bf16.msra.mxu0 %v3455
    %4609 = vmatpush.bf16.msra.mxu0 %v3454
    %4610 = vmatpush.bf16.msra.mxu0 %v3453
    %4611 = vmatpush.bf16.msra.mxu0 %v3452
    %4612 = vmatpush.bf16.msra.mxu0 %v3451
    %4613 = vmatmul.bf16.gmra.mxu0 %v1085
    %v4614 = vpop.f32.mrf.mxu0
    %v4615 = vadd.f32 %v4602, %v4614
    %v4616 = vpop.f32.mrf.mxu0
    %4617 = vdwg.mxu0
    %4618 = vmatpush.bf16.msra.mxu0 %v3466
    %4619 = vmatpush.bf16.msra.mxu0 %v3465
    %4620 = vmatpush.bf16.msra.mxu0 %v3464
    %4621 = vmatpush.bf16.msra.mxu0 %v3463
    %4622 = vmatpush.bf16.msra.mxu0 %v3462
    %4623 = vmatpush.bf16.msra.mxu0 %v3461
    %4624 = vmatpush.bf16.msra.mxu0 %v3460
    %4625 = vmatpush.bf16.msra.mxu0 %v3459
    %4626 = vmatmul.bf16.gmra.mxu0 %v1086
    %v4627 = vpop.f32.mrf.mxu0
    %v4628 = vadd.f32 %v4615, %v4627
    %v4629 = vpop.f32.mrf.mxu0
    %4630 = vdwg.mxu0
    %4631 = vmatpush.bf16.msra.mxu0 %v3474
    %4632 = vmatpush.bf16.msra.mxu0 %v3473
    %4633 = vmatpush.bf16.msra.mxu0 %v3472
    %4634 = vmatpush.bf16.msra.mxu0 %v3471
    %4635 = vmatpush.bf16.msra.mxu0 %v3470
    %4636 = vmatpush.bf16.msra.mxu0 %v3469
    %4637 = vmatpush.bf16.msra.mxu0 %v3468
    %4638 = vmatpush.bf16.msra.mxu0 %v3467
    %4639 = vmatmul.bf16.gmra.mxu0 %v1087
    %v4640 = vpop.f32.mrf.mxu0
    %v4641 = vadd.f32 %v4628, %v4640
    %v4642 = vpop.f32.mrf.mxu0
    %4643 = vdwg.mxu0
    %4644 = vmatpush.bf16.msra.mxu0 %v3482
    %4645 = vmatpush.bf16.msra.mxu0 %v3481
    %4646 = vmatpush.bf16.msra.mxu0 %v3480
    %4647 = vmatpush.bf16.msra.mxu0 %v3479
    %4648 = vmatpush.bf16.msra.mxu0 %v3478
    %4649 = vmatpush.bf16.msra.mxu0 %v3477
    %4650 = vmatpush.bf16.msra.mxu0 %v3476
    %4651 = vmatpush.bf16.msra.mxu0 %v3475
    %4652 = vmatmul.bf16.gmra.mxu0 %v1088
    %v4653 = vpop.f32.mrf.mxu0
    %v4654 = vadd.f32 %v4641, %v4653
    %v4655 = vpop.f32.mrf.mxu0
    %4656 = vdwg.mxu0
    %4657 = vmatpush.bf16.msra.mxu0 %v3490
    %4658 = vmatpush.bf16.msra.mxu0 %v3489
    %4659 = vmatpush.bf16.msra.mxu0 %v3488
    %4660 = vmatpush.bf16.msra.mxu0 %v3487
    %4661 = vmatpush.bf16.msra.mxu0 %v3486
    %4662 = vmatpush.bf16.msra.mxu0 %v3485
    %4663 = vmatpush.bf16.msra.mxu0 %v3484
    %4664 = vmatpush.bf16.msra.mxu0 %v3483
    %4665 = vmatmul.bf16.gmra.mxu0 %v1089
    %v4666 = vpop.f32.mrf.mxu0
    %v4667 = vadd.f32 %v4654, %v4666
    %v4668 = vpop.f32.mrf.mxu0
    %4669 = vdwg.mxu0
    %4670 = vmatpush.bf16.msra.mxu0 %v3498
    %4671 = vmatpush.bf16.msra.mxu0 %v3497
    %4672 = vmatpush.bf16.msra.mxu0 %v3496
    %4673 = vmatpush.bf16.msra.mxu0 %v3495
    %4674 = vmatpush.bf16.msra.mxu0 %v3494
    %4675 = vmatpush.bf16.msra.mxu0 %v3493
    %4676 = vmatpush.bf16.msra.mxu0 %v3492
    %4677 = vmatpush.bf16.msra.mxu0 %v3491
    %4678 = vmatmul.bf16.gmra.mxu0 %v1090
    %v4679 = vpop.f32.mrf.mxu0
    %v4680 = vadd.f32 %v4667, %v4679
    %v4681 = vpop.f32.mrf.mxu0
    %4682 = vdwg.mxu0
    %4683 = vmatpush.bf16.msra.mxu0 %v3506
    %4684 = vmatpush.bf16.msra.mxu0 %v3505
    %4685 = vmatpush.bf16.msra.mxu0 %v3504
    %4686 = vmatpush.bf16.msra.mxu0 %v3503
    %4687 = vmatpush.bf16.msra.mxu0 %v3502
    %4688 = vmatpush.bf16.msra.mxu0 %v3501
    %4689 = vmatpush.bf16.msra.mxu0 %v3500
    %4690 = vmatpush.bf16.msra.mxu0 %v3499
    %4691 = vmatmul.bf16.gmra.mxu0 %v1093
    %v4692 = vpop.f32.mrf.mxu0
    %v4693 = vadd.f32 %v4680, %v4692
    %v4694 = vpop.f32.mrf.mxu0
    %4695 = vdwg.mxu0
    %4696 = vmatpush.bf16.msra.mxu0 %v3514
    %4697 = vmatpush.bf16.msra.mxu0 %v3513
    %4698 = vmatpush.bf16.msra.mxu0 %v3512
    %4699 = vmatpush.bf16.msra.mxu0 %v3511
    %4700 = vmatpush.bf16.msra.mxu0 %v3510
    %4701 = vmatpush.bf16.msra.mxu0 %v3509
    %4702 = vmatpush.bf16.msra.mxu0 %v3508
    %4703 = vmatpush.bf16.msra.mxu0 %v3507
    %4704 = vmatmul.bf16.gmra.mxu0 %v1094
    %v4705 = vpop.f32.mrf.mxu0
    %v4706 = vadd.f32 %v4693, %v4705
    %v4707 = vpop.f32.mrf.mxu0
    %4708 = vdwg.mxu0
    %4709 = vmatpush.bf16.msra.mxu0 %v3522
    %4710 = vmatpush.bf16.msra.mxu0 %v3521
    %4711 = vmatpush.bf16.msra.mxu0 %v3520
    %4712 = vmatpush.bf16.msra.mxu0 %v3519
    %4713 = vmatpush.bf16.msra.mxu0 %v3518
    %4714 = vmatpush.bf16.msra.mxu0 %v3517
    %4715 = vmatpush.bf16.msra.mxu0 %v3516
    %4716 = vmatpush.bf16.msra.mxu0 %v3515
    %4717 = vmatmul.bf16.gmra.mxu0 %v1095
    %v4718 = vpop.f32.mrf.mxu0
    %v4719 = vadd.f32 %v4706, %v4718
    %v4720 = vpop.f32.mrf.mxu0
    %4721 = vdwg.mxu0
    %4722 = vmatpush.bf16.msra.mxu0 %v3530
    %4723 = vmatpush.bf16.msra.mxu0 %v3529
    %4724 = vmatpush.bf16.msra.mxu0 %v3528
    %4725 = vmatpush.bf16.msra.mxu0 %v3527
    %4726 = vmatpush.bf16.msra.mxu0 %v3526
    %4727 = vmatpush.bf16.msra.mxu0 %v3525
    %4728 = vmatpush.bf16.msra.mxu0 %v3524
    %4729 = vmatpush.bf16.msra.mxu0 %v3523
    %4730 = vmatmul.bf16.gmra.mxu0 %v1096
    %v4731 = vpop.f32.mrf.mxu0
    %v4732 = vadd.f32 %v4719, %v4731
    %v4733 = vpop.f32.mrf.mxu0
    %4734 = vdwg.mxu0
    %4735 = vmatpush.bf16.msra.mxu0 %v3538
    %4736 = vmatpush.bf16.msra.mxu0 %v3537
    %4737 = vmatpush.bf16.msra.mxu0 %v3536
    %4738 = vmatpush.bf16.msra.mxu0 %v3535
    %4739 = vmatpush.bf16.msra.mxu0 %v3534
    %4740 = vmatpush.bf16.msra.mxu0 %v3533
    %4741 = vmatpush.bf16.msra.mxu0 %v3532
    %4742 = vmatpush.bf16.msra.mxu0 %v3531
    %4743 = vmatmul.bf16.gmra.mxu0 %v1097
    %v4744 = vpop.f32.mrf.mxu0
    %v4745 = vadd.f32 %v4732, %v4744
    %v4746 = vpop.f32.mrf.mxu0
    %4747 = vdwg.mxu0
    %4748 = vmatpush.bf16.msra.mxu0 %v3546
    %4749 = vmatpush.bf16.msra.mxu0 %v3545
    %4750 = vmatpush.bf16.msra.mxu0 %v3544
    %4751 = vmatpush.bf16.msra.mxu0 %v3543
    %4752 = vmatpush.bf16.msra.mxu0 %v3542
    %4753 = vmatpush.bf16.msra.mxu0 %v3541
    %4754 = vmatpush.bf16.msra.mxu0 %v3540
    %4755 = vmatpush.bf16.msra.mxu0 %v3539
    %4756 = vmatmul.bf16.gmra.mxu0 %v1098
    %v4757 = vpop.f32.mrf.mxu0
    %v4758 = vadd.f32 %v4745, %v4757
    %v4759 = vpop.f32.mrf.mxu0
    %4760 = vdwg.mxu0
    %4761 = vmatpush.bf16.msra.mxu0 %v3554
    %4762 = vmatpush.bf16.msra.mxu0 %v3553
    %4763 = vmatpush.bf16.msra.mxu0 %v3552
    %4764 = vmatpush.bf16.msra.mxu0 %v3551
    %4765 = vmatpush.bf16.msra.mxu0 %v3550
    %4766 = vmatpush.bf16.msra.mxu0 %v3549
    %4767 = vmatpush.bf16.msra.mxu0 %v3548
    %4768 = vmatpush.bf16.msra.mxu0 %v3547
    %4769 = vmatmul.bf16.gmra.mxu0 %v1099
    %v4770 = vpop.f32.mrf.mxu0
    %v4771 = vadd.f32 %v4758, %v4770
    %v4772 = vpop.f32.mrf.mxu0
    %4773 = vdwg.mxu0
    %4774 = vmatpush.bf16.msra.mxu0 %v3562
    %4775 = vmatpush.bf16.msra.mxu0 %v3561
    %4776 = vmatpush.bf16.msra.mxu0 %v3560
    %4777 = vmatpush.bf16.msra.mxu0 %v3559
    %4778 = vmatpush.bf16.msra.mxu0 %v3558
    %4779 = vmatpush.bf16.msra.mxu0 %v3557
    %4780 = vmatpush.bf16.msra.mxu0 %v3556
    %4781 = vmatpush.bf16.msra.mxu0 %v3555
    %4782 = vmatmul.bf16.gmra.mxu0 %v1100
    %v4783 = vpop.f32.mrf.mxu0
    %v4784 = vadd.f32 %v4771, %v4783
    %v4785 = vpop.f32.mrf.mxu0
    %4786 = vdwg.mxu0
    %4787 = vmatpush.bf16.msra.mxu0 %v3570
    %4788 = vmatpush.bf16.msra.mxu0 %v3569
    %4789 = vmatpush.bf16.msra.mxu0 %v3568
    %4790 = vmatpush.bf16.msra.mxu0 %v3567
    %4791 = vmatpush.bf16.msra.mxu0 %v3566
    %4792 = vmatpush.bf16.msra.mxu0 %v3565
    %4793 = vmatpush.bf16.msra.mxu0 %v3564
    %4794 = vmatpush.bf16.msra.mxu0 %v3563
    %4795 = vmatmul.bf16.gmra.mxu0 %v1103
    %v4796 = vpop.f32.mrf.mxu0
    %v4797 = vadd.f32 %v4784, %v4796
    %v4798 = vpop.f32.mrf.mxu0
    %4799 = vdwg.mxu0
    %4800 = vmatpush.bf16.msra.mxu0 %v3578
    %4801 = vmatpush.bf16.msra.mxu0 %v3577
    %4802 = vmatpush.bf16.msra.mxu0 %v3576
    %4803 = vmatpush.bf16.msra.mxu0 %v3575
    %4804 = vmatpush.bf16.msra.mxu0 %v3574
    %4805 = vmatpush.bf16.msra.mxu0 %v3573
    %4806 = vmatpush.bf16.msra.mxu0 %v3572
    %4807 = vmatpush.bf16.msra.mxu0 %v3571
    %4808 = vmatmul.bf16.gmra.mxu0 %v1104
    %v4809 = vpop.f32.mrf.mxu0
    %v4810 = vadd.f32 %v4797, %v4809
    %v4811 = vpop.f32.mrf.mxu0
    %4812 = vdwg.mxu0
    %4813 = vmatpush.bf16.msra.mxu0 %v3586
    %4814 = vmatpush.bf16.msra.mxu0 %v3585
    %4815 = vmatpush.bf16.msra.mxu0 %v3584
    %4816 = vmatpush.bf16.msra.mxu0 %v3583
    %4817 = vmatpush.bf16.msra.mxu0 %v3582
    %4818 = vmatpush.bf16.msra.mxu0 %v3581
    %4819 = vmatpush.bf16.msra.mxu0 %v3580
    %4820 = vmatpush.bf16.msra.mxu0 %v3579
    %4821 = vmatmul.bf16.gmra.mxu0 %v1105
    %v4822 = vpop.f32.mrf.mxu0
    %v4823 = vadd.f32 %v4810, %v4822
    %v4824 = vpop.f32.mrf.mxu0
    %4825 = vdwg.mxu0
    %4826 = vmatpush.bf16.msra.mxu0 %v3594
    %4827 = vmatpush.bf16.msra.mxu0 %v3593
    %4828 = vmatpush.bf16.msra.mxu0 %v3592
    %4829 = vmatpush.bf16.msra.mxu0 %v3591
    %4830 = vmatpush.bf16.msra.mxu0 %v3590
    %4831 = vmatpush.bf16.msra.mxu0 %v3589
    %4832 = vmatpush.bf16.msra.mxu0 %v3588
    %4833 = vmatpush.bf16.msra.mxu0 %v3587
    %4834 = vmatmul.bf16.gmra.mxu0 %v1106
    %v4835 = vpop.f32.mrf.mxu0
    %v4836 = vadd.f32 %v4823, %v4835
    %v4837 = vpop.f32.mrf.mxu0
    %4838 = vdwg.mxu0
    %4839 = vmatpush.bf16.msra.mxu0 %v3602
    %4840 = vmatpush.bf16.msra.mxu0 %v3601
    %4841 = vmatpush.bf16.msra.mxu0 %v3600
    %4842 = vmatpush.bf16.msra.mxu0 %v3599
    %4843 = vmatpush.bf16.msra.mxu0 %v3598
    %4844 = vmatpush.bf16.msra.mxu0 %v3597
    %4845 = vmatpush.bf16.msra.mxu0 %v3596
    %4846 = vmatpush.bf16.msra.mxu0 %v3595
    %4847 = vmatmul.bf16.gmra.mxu0 %v1107
    %v4848 = vpop.f32.mrf.mxu0
    %v4849 = vadd.f32 %v4836, %v4848
    %v4850 = vpop.f32.mrf.mxu0
    %4851 = vdwg.mxu0
    %4852 = vmatpush.bf16.msra.mxu0 %v3610
    %4853 = vmatpush.bf16.msra.mxu0 %v3609
    %4854 = vmatpush.bf16.msra.mxu0 %v3608
    %4855 = vmatpush.bf16.msra.mxu0 %v3607
    %4856 = vmatpush.bf16.msra.mxu0 %v3606
    %4857 = vmatpush.bf16.msra.mxu0 %v3605
    %4858 = vmatpush.bf16.msra.mxu0 %v3604
    %4859 = vmatpush.bf16.msra.mxu0 %v3603
    %4860 = vmatmul.bf16.gmra.mxu0 %v1108
    %v4861 = vpop.f32.mrf.mxu0
    %v4862 = vadd.f32 %v4849, %v4861
    %v4863 = vpop.f32.mrf.mxu0
    %4864 = vdwg.mxu0
    %4865 = vmatpush.bf16.msra.mxu0 %v3618
    %4866 = vmatpush.bf16.msra.mxu0 %v3617
    %4867 = vmatpush.bf16.msra.mxu0 %v3616
    %4868 = vmatpush.bf16.msra.mxu0 %v3615
    %4869 = vmatpush.bf16.msra.mxu0 %v3614
    %4870 = vmatpush.bf16.msra.mxu0 %v3613
    %4871 = vmatpush.bf16.msra.mxu0 %v3612
    %4872 = vmatpush.bf16.msra.mxu0 %v3611
    %4873 = vmatmul.bf16.gmra.mxu0 %v1109
    %v4874 = vpop.f32.mrf.mxu0
    %v4875 = vadd.f32 %v4862, %v4874
    %v4876 = vpop.f32.mrf.mxu0
    %4877 = vdwg.mxu0
    %4878 = vmatpush.bf16.msra.mxu0 %v3626
    %4879 = vmatpush.bf16.msra.mxu0 %v3625
    %4880 = vmatpush.bf16.msra.mxu0 %v3624
    %4881 = vmatpush.bf16.msra.mxu0 %v3623
    %4882 = vmatpush.bf16.msra.mxu0 %v3622
    %4883 = vmatpush.bf16.msra.mxu0 %v3621
    %4884 = vmatpush.bf16.msra.mxu0 %v3620
    %4885 = vmatpush.bf16.msra.mxu0 %v3619
    %4886 = vmatmul.bf16.gmra.mxu0 %v1110
    %v4887 = vpop.f32.mrf.mxu0
    %v4888 = vadd.f32 %v4875, %v4887
    %v4889 = vpop.f32.mrf.mxu0
    %4890 = vdwg.mxu0
    %4891 = vmatpush.bf16.msra.mxu0 %v3634
    %4892 = vmatpush.bf16.msra.mxu0 %v3633
    %4893 = vmatpush.bf16.msra.mxu0 %v3632
    %4894 = vmatpush.bf16.msra.mxu0 %v3631
    %4895 = vmatpush.bf16.msra.mxu0 %v3630
    %4896 = vmatpush.bf16.msra.mxu0 %v3629
    %4897 = vmatpush.bf16.msra.mxu0 %v3628
    %4898 = vmatpush.bf16.msra.mxu0 %v3627
    %4899 = vmatmul.bf16.gmra.mxu0 %v1113
    %v4900 = vpop.f32.mrf.mxu0
    %v4901 = vadd.f32 %v4888, %v4900
    %v4902 = vpop.f32.mrf.mxu0
    %4903 = vdwg.mxu0
    %4904 = vmatpush.bf16.msra.mxu0 %v3642
    %4905 = vmatpush.bf16.msra.mxu0 %v3641
    %4906 = vmatpush.bf16.msra.mxu0 %v3640
    %4907 = vmatpush.bf16.msra.mxu0 %v3639
    %4908 = vmatpush.bf16.msra.mxu0 %v3638
    %4909 = vmatpush.bf16.msra.mxu0 %v3637
    %4910 = vmatpush.bf16.msra.mxu0 %v3636
    %4911 = vmatpush.bf16.msra.mxu0 %v3635
    %4912 = vmatmul.bf16.gmra.mxu0 %v1114
    %v4913 = vpop.f32.mrf.mxu0
    %v4914 = vadd.f32 %v4901, %v4913
    %v4915 = vpop.f32.mrf.mxu0
    %4916 = vdwg.mxu0
    %4917 = vmatpush.bf16.msra.mxu0 %v3650
    %4918 = vmatpush.bf16.msra.mxu0 %v3649
    %4919 = vmatpush.bf16.msra.mxu0 %v3648
    %4920 = vmatpush.bf16.msra.mxu0 %v3647
    %4921 = vmatpush.bf16.msra.mxu0 %v3646
    %4922 = vmatpush.bf16.msra.mxu0 %v3645
    %4923 = vmatpush.bf16.msra.mxu0 %v3644
    %4924 = vmatpush.bf16.msra.mxu0 %v3643
    %4925 = vmatmul.bf16.gmra.mxu0 %v1115
    %v4926 = vpop.f32.mrf.mxu0
    %v4927 = vadd.f32 %v4914, %v4926
    %v4928 = vpop.f32.mrf.mxu0
    %4929 = vdwg.mxu0
    %4930 = vmatpush.bf16.msra.mxu0 %v3658
    %4931 = vmatpush.bf16.msra.mxu0 %v3657
    %4932 = vmatpush.bf16.msra.mxu0 %v3656
    %4933 = vmatpush.bf16.msra.mxu0 %v3655
    %4934 = vmatpush.bf16.msra.mxu0 %v3654
    %4935 = vmatpush.bf16.msra.mxu0 %v3653
    %4936 = vmatpush.bf16.msra.mxu0 %v3652
    %4937 = vmatpush.bf16.msra.mxu0 %v3651
    %4938 = vmatmul.bf16.gmra.mxu0 %v1116
    %v4939 = vpop.f32.mrf.mxu0
    %v4940 = vadd.f32 %v4927, %v4939
    %v4941 = vpop.f32.mrf.mxu0
    %4942 = vdwg.mxu0
    %4943 = vmatpush.bf16.msra.mxu0 %v3666
    %4944 = vmatpush.bf16.msra.mxu0 %v3665
    %4945 = vmatpush.bf16.msra.mxu0 %v3664
    %4946 = vmatpush.bf16.msra.mxu0 %v3663
    %4947 = vmatpush.bf16.msra.mxu0 %v3662
    %4948 = vmatpush.bf16.msra.mxu0 %v3661
    %4949 = vmatpush.bf16.msra.mxu0 %v3660
    %4950 = vmatpush.bf16.msra.mxu0 %v3659
    %4951 = vmatmul.bf16.gmra.mxu0 %v1117
    %v4952 = vpop.f32.mrf.mxu0
    %v4953 = vadd.f32 %v4940, %v4952
    %v4954 = vpop.f32.mrf.mxu0
    %4955 = vdwg.mxu0
    %4956 = vmatpush.bf16.msra.mxu0 %v3674
    %4957 = vmatpush.bf16.msra.mxu0 %v3673
    %4958 = vmatpush.bf16.msra.mxu0 %v3672
    %4959 = vmatpush.bf16.msra.mxu0 %v3671
    %4960 = vmatpush.bf16.msra.mxu0 %v3670
    %4961 = vmatpush.bf16.msra.mxu0 %v3669
    %4962 = vmatpush.bf16.msra.mxu0 %v3668
    %4963 = vmatpush.bf16.msra.mxu0 %v3667
    %4964 = vmatmul.bf16.gmra.mxu0 %v1118
    %v4965 = vpop.f32.mrf.mxu0
    %v4966 = vadd.f32 %v4953, %v4965
    %v4967 = vpop.f32.mrf.mxu0
    %4968 = vdwg.mxu0
    %4969 = vmatpush.bf16.msra.mxu0 %v3682
    %4970 = vmatpush.bf16.msra.mxu0 %v3681
    %4971 = vmatpush.bf16.msra.mxu0 %v3680
    %4972 = vmatpush.bf16.msra.mxu0 %v3679
    %4973 = vmatpush.bf16.msra.mxu0 %v3678
    %4974 = vmatpush.bf16.msra.mxu0 %v3677
    %4975 = vmatpush.bf16.msra.mxu0 %v3676
    %4976 = vmatpush.bf16.msra.mxu0 %v3675
    %4977 = vmatmul.bf16.gmra.mxu0 %v1119
    %v4978 = vpop.f32.mrf.mxu0
    %v4979 = vadd.f32 %v4966, %v4978
    %v4980 = vpop.f32.mrf.mxu0
    %4981 = vdwg.mxu0
    %4982 = vmatpush.bf16.msra.mxu0 %v3690
    %4983 = vmatpush.bf16.msra.mxu0 %v3689
    %4984 = vmatpush.bf16.msra.mxu0 %v3688
    %4985 = vmatpush.bf16.msra.mxu0 %v3687
    %4986 = vmatpush.bf16.msra.mxu0 %v3686
    %4987 = vmatpush.bf16.msra.mxu0 %v3685
    %4988 = vmatpush.bf16.msra.mxu0 %v3684
    %4989 = vmatpush.bf16.msra.mxu0 %v3683
    %4990 = vmatmul.bf16.gmra.mxu0 %v1120
    %v4991 = vpop.f32.mrf.mxu0
    %v4992 = vadd.f32 %v4979, %v4991
    %v4993 = vpop.f32.mrf.mxu0
    %4994 = vdwg.mxu0
    %4995 = vmatpush.bf16.msra.mxu0 %v3698
    %4996 = vmatpush.bf16.msra.mxu0 %v3697
    %4997 = vmatpush.bf16.msra.mxu0 %v3696
    %4998 = vmatpush.bf16.msra.mxu0 %v3695
    %4999 = vmatpush.bf16.msra.mxu0 %v3694
    %5000 = vmatpush.bf16.msra.mxu0 %v3693
    %5001 = vmatpush.bf16.msra.mxu0 %v3692
    %5002 = vmatpush.bf16.msra.mxu0 %v3691
    %5003 = vmatmul.bf16.gmra.mxu0 %v1123
    %v5004 = vpop.f32.mrf.mxu0
    %v5005 = vadd.f32 %v4992, %v5004
    %v5006 = vpop.f32.mrf.mxu0
    %5007 = vdwg.mxu0
    %5008 = vmatpush.bf16.msra.mxu0 %v3706
    %5009 = vmatpush.bf16.msra.mxu0 %v3705
    %5010 = vmatpush.bf16.msra.mxu0 %v3704
    %5011 = vmatpush.bf16.msra.mxu0 %v3703
    %5012 = vmatpush.bf16.msra.mxu0 %v3702
    %5013 = vmatpush.bf16.msra.mxu0 %v3701
    %5014 = vmatpush.bf16.msra.mxu0 %v3700
    %5015 = vmatpush.bf16.msra.mxu0 %v3699
    %5016 = vmatmul.bf16.gmra.mxu0 %v1124
    %v5017 = vpop.f32.mrf.mxu0
    %v5018 = vadd.f32 %v5005, %v5017
    %v5019 = vpop.f32.mrf.mxu0
    %5020 = vdwg.mxu0
    %5021 = vmatpush.bf16.msra.mxu0 %v3714
    %5022 = vmatpush.bf16.msra.mxu0 %v3713
    %5023 = vmatpush.bf16.msra.mxu0 %v3712
    %5024 = vmatpush.bf16.msra.mxu0 %v3711
    %5025 = vmatpush.bf16.msra.mxu0 %v3710
    %5026 = vmatpush.bf16.msra.mxu0 %v3709
    %5027 = vmatpush.bf16.msra.mxu0 %v3708
    %5028 = vmatpush.bf16.msra.mxu0 %v3707
    %5029 = vmatmul.bf16.gmra.mxu0 %v1125
    %v5030 = vpop.f32.mrf.mxu0
    %v5031 = vadd.f32 %v5018, %v5030
    %v5032 = vpop.f32.mrf.mxu0
    %5033 = vdwg.mxu0
    %5034 = vmatpush.bf16.msra.mxu0 %v3722
    %5035 = vmatpush.bf16.msra.mxu0 %v3721
    %5036 = vmatpush.bf16.msra.mxu0 %v3720
    %5037 = vmatpush.bf16.msra.mxu0 %v3719
    %5038 = vmatpush.bf16.msra.mxu0 %v3718
    %5039 = vmatpush.bf16.msra.mxu0 %v3717
    %5040 = vmatpush.bf16.msra.mxu0 %v3716
    %5041 = vmatpush.bf16.msra.mxu0 %v3715
    %5042 = vmatmul.bf16.gmra.mxu0 %v1126
    %v5043 = vpop.f32.mrf.mxu0
    %v5044 = vadd.f32 %v5031, %v5043
    %v5045 = vpop.f32.mrf.mxu0
    %5046 = vdwg.mxu0
    %5047 = vmatpush.bf16.msra.mxu0 %v3730
    %5048 = vmatpush.bf16.msra.mxu0 %v3729
    %5049 = vmatpush.bf16.msra.mxu0 %v3728
    %5050 = vmatpush.bf16.msra.mxu0 %v3727
    %5051 = vmatpush.bf16.msra.mxu0 %v3726
    %5052 = vmatpush.bf16.msra.mxu0 %v3725
    %5053 = vmatpush.bf16.msra.mxu0 %v3724
    %5054 = vmatpush.bf16.msra.mxu0 %v3723
    %5055 = vmatmul.bf16.gmra.mxu0 %v1127
    %v5056 = vpop.f32.mrf.mxu0
    %v5057 = vadd.f32 %v5044, %v5056
    %v5058 = vpop.f32.mrf.mxu0
    %5059 = vdwg.mxu0
    %5060 = vmatpush.bf16.msra.mxu0 %v3738
    %5061 = vmatpush.bf16.msra.mxu0 %v3737
    %5062 = vmatpush.bf16.msra.mxu0 %v3736
    %5063 = vmatpush.bf16.msra.mxu0 %v3735
    %5064 = vmatpush.bf16.msra.mxu0 %v3734
    %5065 = vmatpush.bf16.msra.mxu0 %v3733
    %5066 = vmatpush.bf16.msra.mxu0 %v3732
    %5067 = vmatpush.bf16.msra.mxu0 %v3731
    %5068 = vmatmul.bf16.gmra.mxu0 %v1128
    %v5069 = vpop.f32.mrf.mxu0
    %v5070 = vadd.f32 %v5057, %v5069
    %v5071 = vpop.f32.mrf.mxu0
    %5072 = vdwg.mxu0
    %5073 = vmatpush.bf16.msra.mxu0 %v3746
    %5074 = vmatpush.bf16.msra.mxu0 %v3745
    %5075 = vmatpush.bf16.msra.mxu0 %v3744
    %5076 = vmatpush.bf16.msra.mxu0 %v3743
    %5077 = vmatpush.bf16.msra.mxu0 %v3742
    %5078 = vmatpush.bf16.msra.mxu0 %v3741
    %5079 = vmatpush.bf16.msra.mxu0 %v3740
    %5080 = vmatpush.bf16.msra.mxu0 %v3739
    %5081 = vmatmul.bf16.gmra.mxu0 %v1129
    %v5082 = vpop.f32.mrf.mxu0
    %v5083 = vadd.f32 %v5070, %v5082
    %v5084 = vpop.f32.mrf.mxu0
    %5085 = vdwg.mxu0
    %5086 = vmatpush.bf16.msra.mxu0 %v3754
    %5087 = vmatpush.bf16.msra.mxu0 %v3753
    %5088 = vmatpush.bf16.msra.mxu0 %v3752
    %5089 = vmatpush.bf16.msra.mxu0 %v3751
    %5090 = vmatpush.bf16.msra.mxu0 %v3750
    %5091 = vmatpush.bf16.msra.mxu0 %v3749
    %5092 = vmatpush.bf16.msra.mxu0 %v3748
    %5093 = vmatpush.bf16.msra.mxu0 %v3747
    %5094 = vmatmul.bf16.gmra.mxu0 %v1130
    %v5095 = vpop.f32.mrf.mxu0
    %v5096 = vadd.f32 %v5083, %v5095
    %v5097 = vpop.f32.mrf.mxu0
    %5098 = vdwg.mxu0
    %5099 = vst [vmem:[#allocation2] sm:$0x3] %v5096
    // Predicated region
    $region14: #{simple_convnet_forward.9} parent=1 // pred_check
      _
    $region15: #{simple_convnet_forward.9} parent=1 // pred_check_branch
      %5101 = sbr.rel (0) target = $region17
    $region16: #{simple_convnet_forward.9} parent=1 // pred_region
      %5103 = vsyncadd [#allocation3], 0
      %s5105 = sshll.u32 [#allocation2], 4
      %s5106 = int_to_ptr.vmem [resolvable:$true] %s5105
      %s5107 = sshll.u32 %s3, 4
      %s5108 = int_to_ptr.hbm [resolvable:$true] %s5107
      %5110 = dma.vmem_to_hbm [thread:$0]  %s5106, 32, %s5108, [#allocation3]
    $region17: #{simple_convnet_forward.9} parent=1 // pred_fallthru
      _
    // Predicated region
    $region18: #{simple_convnet_forward.9} parent=1 // pred_check
      _
    $region19: #{simple_convnet_forward.9} parent=1 // pred_check_branch
      %5112 = sbr.rel (0) target = $region21
    $region20: #{simple_convnet_forward.9} parent=1 // pred_region
      %5114 = dma.done [#allocation3], 32
    $region21: #{simple_convnet_forward.9} parent=1 // pred_fallthru
      _
    %5115 = vsyncpa [#allocation3], 1

</llo_original>
